<compile_context>
chip_gen: v6e
topology: v6e:2x2x1
jax: 0.10.0
libtpu: 0.0.40
codegen_flags: <defaults>
</compile_context>

<pallas_src>
import functools

import jax
import jax.numpy as jnp
from jax.experimental import pallas as pl
from jax.experimental.pallas import tpu as pltpu

TILE_M = 128          # rows (output pixels) per grid step
LANES = 128           # channel padding granularity (lane width)
VMEM_LIMIT = 32 * 1024 * 1024


# ----------------------------------------------------------------------------
# small helpers
# ----------------------------------------------------------------------------
def _round_up(n, m):
    return ((n + m - 1) // m) * m


def _pad_to(x, axis, target):
    cur = x.shape[axis]
    if cur == target:
        return x
    pads = [(0, 0)] * x.ndim
    pads[axis] = (0, target - cur)
    return jnp.pad(x, pads)


def im2col_nhwc(x, ksize, stride, pad):
    """NHWC im2col. Row order = (n, oh, ow); K order = (kh, kw, cin)."""
    n, h, w, c = x.shape
    xp = jnp.pad(x, ((0, 0), (pad, pad), (pad, pad), (0, 0)))
    ho = (h + 2 * pad - ksize) // stride + 1
    wo = (w + 2 * pad - ksize) // stride + 1
    cols = []
    for i in range(ksize):
        for j in range(ksize):
            cols.append(
                xp[:, i: i + stride * (ho - 1) + 1: stride,
                      j: j + stride * (wo - 1) + 1: stride, :])     # (N,Ho,Wo,C)
    p = jnp.stack(cols, axis=3)                                     # (N,Ho,Wo,k*k,C)
    return p.reshape(n * ho * wo, ksize * ksize * c), ho, wo


# ----------------------------------------------------------------------------
# Pallas kernel 1: conv matmul (bf16 MXU) + per-tile BN partial statistics.
# ----------------------------------------------------------------------------
def _conv_stats_kernel(p_ref, w_ref, y_ref, s_ref):
    y = jnp.dot(p_ref[...], w_ref[...], preferred_element_type=jnp.float32)
    y_ref[...] = y
    s_ref[...] = jnp.concatenate(
        [jnp.sum(y, axis=0, keepdims=True),
         jnp.sum(y * y, axis=0, keepdims=True)], axis=0)            # (2, C)


def conv_matmul_stats(patches, w_mat, tile_m):
    m, k = patches.shape
    _, c = w_mat.shape
    nt = m // tile_m
    return pl.pallas_call(
        _conv_stats_kernel,
        out_shape=(jax.ShapeDtypeStruct((m, c), jnp.float32),
                   jax.ShapeDtypeStruct((nt, 2, c), jnp.float32)),
        grid=(nt,),
        in_specs=[
            pl.BlockSpec((tile_m, k), lambda i: (i, 0)),
            pl.BlockSpec((k, c), lambda i: (0, 0)),
        ],
        out_specs=(
            pl.BlockSpec((tile_m, c), lambda i: (i, 0)),
            pl.BlockSpec((None, 2, c), lambda i: (i, 0, 0)),
        ),
        compiler_params=pltpu.CompilerParams(
            dimension_semantics=("parallel",),
            vmem_limit_bytes=VMEM_LIMIT),
    )(patches, w_mat)


# ----------------------------------------------------------------------------
# Pallas kernel 2: apply BatchNorm scale/shift + LeakyReLU, tiled over rows.
# ----------------------------------------------------------------------------
def _bn_lrelu_kernel(y_ref, sc_ref, sh_ref, o_ref, *, slope):
    z = y_ref[...] * sc_ref[...] + sh_ref[...]
    o_ref[...] = jnp.where(z >= 0, z, slope * z).astype(o_ref.dtype)


def bn_lrelu_apply(y, scale, shift, tile_m, slope):
    m, c = y.shape
    nt = m // tile_m
    kern = functools.partial(_bn_lrelu_kernel, slope=slope)
    return pl.pallas_call(
        kern,
        out_shape=jax.ShapeDtypeStruct((m, c), jnp.bfloat16),
        grid=(nt,),
        in_specs=[
            pl.BlockSpec((tile_m, c), lambda i: (i, 0)),
            pl.BlockSpec((1, c), lambda i: (0, 0)),
            pl.BlockSpec((1, c), lambda i: (0, 0)),
        ],
        out_specs=pl.BlockSpec((tile_m, c), lambda i: (i, 0)),
        compiler_params=pltpu.CompilerParams(
            dimension_semantics=("parallel",),
            vmem_limit_bytes=VMEM_LIMIT),
    )(y, scale, shift)


# ----------------------------------------------------------------------------
# Pallas kernel 3: final conv matmul (128 padded output lanes) + Sigmoid.
# ----------------------------------------------------------------------------
def _conv_sigmoid_kernel(p_ref, w_ref, o_ref):
    y = jnp.dot(p_ref[...], w_ref[...], preferred_element_type=jnp.float32)
    # sigmoid via EUP exp + reciprocal (no VALU divide)
    o_ref[...] = pl.reciprocal(1.0 + jnp.exp(-y), approx=False)


def conv_sigmoid(patches, w_mat):
    m, k = patches.shape
    _, c = w_mat.shape
    return pl.pallas_call(
        _conv_sigmoid_kernel,
        out_shape=jax.ShapeDtypeStruct((m, c), jnp.float32),
        grid=(1,),
        in_specs=[
            pl.BlockSpec((m, k), lambda i: (0, 0)),
            pl.BlockSpec((k, c), lambda i: (0, 0)),
        ],
        out_specs=pl.BlockSpec((m, c), lambda i: (0, 0)),
        compiler_params=pltpu.CompilerParams(
            dimension_semantics=("arbitrary",),
            vmem_limit_bytes=VMEM_LIMIT),
    )(patches, w_mat)


# ----------------------------------------------------------------------------
# One Conv -> BatchNorm(batch stats) -> LeakyReLU stage (NHWC in / NHWC out).
# ----------------------------------------------------------------------------
def stage_conv_bn_lrelu(x_nhwc, w, gamma, beta, *, ksize, stride, pad,
                        eps=1e-5, slope=0.01):
    n, _, _, cin = x_nhwc.shape           # cin may already carry zero padding
    cout = w.shape[0]
    cout_p = _round_up(cout, LANES)

    # weight (Cout, Cin, kh, kw) -> zero-pad Cin to match (padded) input
    # channels -> (kh, kw, Cin, Cout) -> (kh*kw*Cin, Cout) -> pad Cout lanes.
    w = _pad_to(w, 1, cin)
    wm = jnp.transpose(w, (2, 3, 1, 0)).reshape(ksize * ksize * cin, cout)
    wm = _pad_to(wm, 1, cout_p).astype(jnp.bfloat16)
    g = _pad_to(gamma.reshape(1, -1), 1, cout_p)
    b = _pad_to(beta.reshape(1, -1), 1, cout_p)

    patches, ho, wo = im2col_nhwc(x_nhwc, ksize, stride, pad)
    m = patches.shape[0]
    m_p = _round_up(m, TILE_M)
    patches = _pad_to(patches, 0, m_p).astype(jnp.bfloat16)

    # Pass 1: tiled matmul + per-tile partial sums (padded rows are zero and
    # contribute nothing to the sums).
    y, stats = conv_matmul_stats(patches, wm, TILE_M)

    # Tiny XLA reduction -> per-channel training-mode BN scale/shift.
    s = jnp.sum(stats[:, 0, :], axis=0)
    ss = jnp.sum(stats[:, 1, :], axis=0)
    mean = s / m
    var = jnp.maximum(ss / m - mean * mean, 0.0)          # biased variance
    inv = jax.lax.rsqrt(var + eps)
    scale = (g[0] * inv).reshape(1, -1)
    shift = (b[0] - mean * g[0] * inv).reshape(1, -1)

    # Pass 2: apply BN + LeakyReLU, emit bf16 lane-dense activation.
    a = bn_lrelu_apply(y, scale, shift, TILE_M, slope)
    a = a[:m]                                             # drop padded rows
    return a.reshape(n, ho, wo, cout_p)                   # NHWC (padded channels = 0)


# ----------------------------------------------------------------------------
# BLA forward.
# ----------------------------------------------------------------------------
def bla_forward(x_nchw, params):
    x = jnp.transpose(x_nchw, (0, 2, 3, 1))               # NHWC once, up front

    # Stage 1: Conv2d(Cin -> 4W, k=4, s=2, p=1) + BN + LeakyReLU
    x = stage_conv_bn_lrelu(x, params["w1"], params["g1"], params["b1"],
                            ksize=4, stride=2, pad=1)
    # Stage 2: Conv2d(4W -> 8W, k=4, s=2, p=1) + BN + LeakyReLU
    x = stage_conv_bn_lrelu(x, params["w2"], params["g2"], params["b2"],
                            ksize=4, stride=2, pad=1)

    # Stage 3: Conv2d(8W -> 1, k=7, s=1, p=0) + Sigmoid (output padded to 128 lanes)
    cin3 = x.shape[3]
    patches3, _, _ = im2col_nhwc(x, 7, 1, 0)
    w3 = _pad_to(params["w3"], 1, cin3)                    # (1, cin3, 7, 7)
    w3m = jnp.transpose(w3, (2, 3, 1, 0)).reshape(49 * cin3, 1)
    w3m = _pad_to(w3m, 1, LANES).astype(jnp.bfloat16)

    m3 = patches3.shape[0]
    m3_p = _round_up(m3, 8)
    patches3 = _pad_to(patches3, 0, m3_p).astype(jnp.bfloat16)

    y3 = conv_sigmoid(patches3, w3m)                       # (m3_p, 128)
    return y3[:m3, :1]                                     # == .view(-1, 1)


def init_params(key, input_data_shape):
    num_channels, width, _height = input_data_shape
    c1, c2 = width * 4, width * 8
    k1, k2, k3 = jax.random.split(key, 3)
    return {
        "w1": 0.05 * jax.random.normal(k1, (c1, num_channels, 4, 4), jnp.float32),
        "g1": jnp.ones((c1,), jnp.float32),
        "b1": jnp.zeros((c1,), jnp.float32),
        "w2": 0.05 * jax.random.normal(k2, (c2, c1, 4, 4), jnp.float32),
        "g2": jnp.ones((c2,), jnp.float32),
        "b2": jnp.zeros((c2,), jnp.float32),
        "w3": 0.05 * jax.random.normal(k3, (1, c2, 7, 7), jnp.float32),
    }


if __name__ == "__main__":
    # Spatial size 28 is the smallest that keeps the final 7x7 valid conv legal
    # (28 -> 14 -> 7 -> 1), matching the module's intended geometry.
    batch, channels, spatial = 2, 4, 28
    input_data_shape = (channels, spatial, spatial)        # (C, W, H) per __init__

    key = jax.random.PRNGKey(0)
    kp, kx = jax.random.split(key)
    params = init_params(kp, input_data_shape)
    x = jax.random.normal(kx, (batch, channels, spatial, spatial), jnp.float32)

    out = jax.jit(bla_forward)(x, params)
    out = jax.block_until_ready(out)
    assert out.shape == (batch, 1), out.shape
    assert bool(jnp.all((out >= 0.0) & (out <= 1.0)))
    print("KERNEL_OK")
</pallas_src>

<mosaic_0001>
module attributes {stable_mosaic.version = 11 : i64} {
  func.func @_conv_stats_kernel(%arg0: i32, %arg1: memref<128x64xbf16, #tpu.memory_space<vmem>>, %arg2: memref<64x128xbf16, #tpu.memory_space<vmem>>, %arg3: memref<128x128xf32, #tpu.memory_space<vmem>>, %arg4: memref<1x2x128xf32, #tpu.memory_space<vmem>>) attributes {dimension_semantics = [#tpu.dimension_semantics<parallel>], iteration_bounds = array<i64: 4>, scalar_prefetch = 0 : i64, scratch_operands = 0 : i64, tpu.core_type = #tpu.core_type<tc>, window_params = [{transform_indices = @transform_0, window_bounds = array<i64: 128, 64>}, {pipeline_mode = #tpu.pipeline_mode<synchronous>, transform_indices = @transform_1, window_bounds = array<i64: 64, 128>}, {transform_indices = @transform_2, window_bounds = array<i64: 128, 128>}, {transform_indices = @transform_3, window_bounds = array<i64: 1, 2, 128>}]} {
    %c0 = arith.constant 0 : index
    %c0_0 = arith.constant 0 : index
    %0 = vector.load %arg1[%c0, %c0_0] : memref<128x64xbf16, #tpu.memory_space<vmem>>, vector<128x64xbf16>
    %c0_1 = arith.constant 0 : index
    %c0_2 = arith.constant 0 : index
    %1 = vector.load %arg2[%c0_1, %c0_2] : memref<64x128xbf16, #tpu.memory_space<vmem>>, vector<64x128xbf16>
    %cst = arith.constant dense<0.000000e+00> : vector<128x128xf32>
    %2 = tpu.matmul %0, %1, %cst {dimension_numbers = #tpu.dot_dimension_numbers<[1], [0], [0], [1], [0, 0, 1, 1], [], []>} : vector<128x64xbf16>, vector<64x128xbf16>, vector<128x128xf32> -> vector<128x128xf32>
    %c0_3 = arith.constant 0 : index
    %c0_4 = arith.constant 0 : index
    %3 = vector.load %arg3[%c0_3, %c0_4] : memref<128x128xf32, #tpu.memory_space<vmem>>, vector<128x128xf32>
    tpu.vector_store %arg3[%c0_3, %c0_4], %2 {strides = array<i32>} : memref<128x128xf32, #tpu.memory_space<vmem>>, vector<128x128xf32>,
    %cst_5 = arith.constant dense<0.000000e+00> : vector<128xf32>
    %4 = vector.multi_reduction <add>, %2, %cst_5 [0] : vector<128x128xf32> to vector<128xf32>
    %5 = vector.shape_cast %4 : vector<128xf32> to vector<1x128xf32>
    %6 = arith.mulf %2, %2 : vector<128x128xf32>
    %cst_6 = arith.constant dense<0.000000e+00> : vector<128xf32>
    %7 = vector.multi_reduction <add>, %6, %cst_6 [0] : vector<128x128xf32> to vector<128xf32>
    %8 = vector.shape_cast %7 : vector<128xf32> to vector<1x128xf32>
    %9 = tpu.concatenate %5, %8 in 0 : vector<1x128xf32>, vector<1x128xf32> -> vector<2x128xf32>
    %c0_7 = arith.constant 0 : index
    %c0_8 = arith.constant 0 : index
    %c0_9 = arith.constant 0 : index
    %10 = vector.load %arg4[%c0_7, %c0_8, %c0_9] : memref<1x2x128xf32, #tpu.memory_space<vmem>>, vector<1x2x128xf32>
    %11 = vector.shape_cast %10 : vector<1x2x128xf32> to vector<2x128xf32>
    %12 = vector.shape_cast %9 : vector<2x128xf32> to vector<1x2x128xf32>
    tpu.vector_store %arg4[%c0_7, %c0_8, %c0_9], %12 {strides = array<i32>} : memref<1x2x128xf32, #tpu.memory_space<vmem>>, vector<1x2x128xf32>,
    return
  }
  func.func @transform_0(%arg0: i32) -> (i32, i32) {
    %c0_i32 = arith.constant 0 : i32
    %c0_i32_0 = arith.constant 0 : i32
    return %arg0, %c0_i32 : i32, i32
  }
  func.func @transform_1(%arg0: i32) -> (i32, i32) {
    %c0_i32 = arith.constant 0 : i32
    %c0_i32_0 = arith.constant 0 : i32
    %c0_i32_1 = arith.constant 0 : i32
    return %c0_i32, %c0_i32_0 : i32, i32
  }
  func.func @transform_2(%arg0: i32) -> (i32, i32) {
    %c0_i32 = arith.constant 0 : i32
    %c0_i32_0 = arith.constant 0 : i32
    return %arg0, %c0_i32 : i32, i32
  }
  func.func @transform_3(%arg0: i32) -> (i32, i32, i32) {
    %c0_i32 = arith.constant 0 : i32
    %c0_i32_0 = arith.constant 0 : i32
    %c0_i32_1 = arith.constant 0 : i32
    return %arg0, %c0_i32, %c0_i32_0 : i32, i32, i32
  }
}

module attributes {stable_mosaic.version = 11 : i64} {
  func.func @_bn_lrelu_kernel(%arg0: i32, %arg1: memref<128x128xf32, #tpu.memory_space<vmem>>, %arg2: memref<1x128xf32, #tpu.memory_space<vmem>>, %arg3: memref<1x128xf32, #tpu.memory_space<vmem>>, %arg4: memref<128x128xbf16, #tpu.memory_space<vmem>>) attributes {dimension_semantics = [#tpu.dimension_semantics<parallel>], iteration_bounds = array<i64: 4>, scalar_prefetch = 0 : i64, scratch_operands = 0 : i64, tpu.core_type = #tpu.core_type<tc>, window_params = [{transform_indices = @transform_0, window_bounds = array<i64: 128, 128>}, {pipeline_mode = #tpu.pipeline_mode<synchronous>, transform_indices = @transform_1, window_bounds = array<i64: 1, 128>}, {pipeline_mode = #tpu.pipeline_mode<synchronous>, transform_indices = @transform_2, window_bounds = array<i64: 1, 128>}, {transform_indices = @transform_3, window_bounds = array<i64: 128, 128>}]} {
    %c0 = arith.constant 0 : index
    %c0_0 = arith.constant 0 : index
    %0 = vector.load %arg1[%c0, %c0_0] : memref<128x128xf32, #tpu.memory_space<vmem>>, vector<128x128xf32>
    %c0_1 = arith.constant 0 : index
    %c0_2 = arith.constant 0 : index
    %1 = vector.load %arg2[%c0_1, %c0_2] : memref<1x128xf32, #tpu.memory_space<vmem>>, vector<1x128xf32>
    %2 = vector.broadcast %1 : vector<1x128xf32> to vector<128x128xf32>
    %3 = arith.mulf %0, %2 : vector<128x128xf32>
    %c0_3 = arith.constant 0 : index
    %c0_4 = arith.constant 0 : index
    %4 = vector.load %arg3[%c0_3, %c0_4] : memref<1x128xf32, #tpu.memory_space<vmem>>, vector<1x128xf32>
    %5 = vector.broadcast %4 : vector<1x128xf32> to vector<128x128xf32>
    %6 = arith.addf %3, %5 : vector<128x128xf32>
    %cst = arith.constant 0.000000e+00 : f32
    %7 = vector.broadcast %cst : f32 to vector<128x128xf32>
    %8 = arith.cmpf oge, %6, %7 : vector<128x128xf32>
    %cst_5 = arith.constant 0.00999999977 : f32
    %9 = vector.broadcast %cst_5 : f32 to vector<128x128xf32>
    %10 = arith.mulf %9, %6 : vector<128x128xf32>
    %11 = arith.select %8, %6, %10 : vector<128x128xi1>, vector<128x128xf32>
    %12 = arith.truncf %11 : vector<128x128xf32> to vector<128x128xbf16>
    %c0_6 = arith.constant 0 : index
    %c0_7 = arith.constant 0 : index
    %13 = vector.load %arg4[%c0_6, %c0_7] : memref<128x128xbf16, #tpu.memory_space<vmem>>, vector<128x128xbf16>
    tpu.vector_store %arg4[%c0_6, %c0_7], %12 {strides = array<i32>} : memref<128x128xbf16, #tpu.memory_space<vmem>>, vector<128x128xbf16>,
    return
  }
  func.func @transform_0(%arg0: i32) -> (i32, i32) {
    %c0_i32 = arith.constant 0 : i32
    %c0_i32_0 = arith.constant 0 : i32
    return %arg0, %c0_i32 : i32, i32
  }
  func.func @transform_1(%arg0: i32) -> (i32, i32) {
    %c0_i32 = arith.constant 0 : i32
    %c0_i32_0 = arith.constant 0 : i32
    %c0_i32_1 = arith.constant 0 : i32
    return %c0_i32, %c0_i32_0 : i32, i32
  }
  func.func @transform_2(%arg0: i32) -> (i32, i32) {
    %c0_i32 = arith.constant 0 : i32
    %c0_i32_0 = arith.constant 0 : i32
    %c0_i32_1 = arith.constant 0 : i32
    return %c0_i32, %c0_i32_0 : i32, i32
  }
  func.func @transform_3(%arg0: i32) -> (i32, i32) {
    %c0_i32 = arith.constant 0 : i32
    %c0_i32_0 = arith.constant 0 : i32
    return %arg0, %c0_i32 : i32, i32
  }
}

module attributes {stable_mosaic.version = 11 : i64} {
  func.func @_conv_stats_kernel(%arg0: i32, %arg1: memref<128x2048xbf16, #tpu.memory_space<vmem>>, %arg2: memref<2048x256xbf16, #tpu.memory_space<vmem>>, %arg3: memref<128x256xf32, #tpu.memory_space<vmem>>, %arg4: memref<1x2x256xf32, #tpu.memory_space<vmem>>) attributes {dimension_semantics = [#tpu.dimension_semantics<parallel>], iteration_bounds = array<i64: 1>, scalar_prefetch = 0 : i64, scratch_operands = 0 : i64, tpu.core_type = #tpu.core_type<tc>, window_params = [{transform_indices = @transform_0, window_bounds = array<i64: 128, 2048>}, {pipeline_mode = #tpu.pipeline_mode<synchronous>, transform_indices = @transform_1, window_bounds = array<i64: 2048, 256>}, {transform_indices = @transform_2, window_bounds = array<i64: 128, 256>}, {transform_indices = @transform_3, window_bounds = array<i64: 1, 2, 256>}]} {
    %c0 = arith.constant 0 : index
    %c0_0 = arith.constant 0 : index
    %0 = vector.load %arg1[%c0, %c0_0] : memref<128x2048xbf16, #tpu.memory_space<vmem>>, vector<128x2048xbf16>
    %c0_1 = arith.constant 0 : index
    %c0_2 = arith.constant 0 : index
    %1 = vector.load %arg2[%c0_1, %c0_2] : memref<2048x256xbf16, #tpu.memory_space<vmem>>, vector<2048x256xbf16>
    %cst = arith.constant dense<0.000000e+00> : vector<128x256xf32>
    %2 = tpu.matmul %0, %1, %cst {dimension_numbers = #tpu.dot_dimension_numbers<[1], [0], [0], [1], [0, 0, 1, 1], [], []>} : vector<128x2048xbf16>, vector<2048x256xbf16>, vector<128x256xf32> -> vector<128x256xf32>
    %c0_3 = arith.constant 0 : index
    %c0_4 = arith.constant 0 : index
    %3 = vector.load %arg3[%c0_3, %c0_4] : memref<128x256xf32, #tpu.memory_space<vmem>>, vector<128x256xf32>
    tpu.vector_store %arg3[%c0_3, %c0_4], %2 {strides = array<i32>} : memref<128x256xf32, #tpu.memory_space<vmem>>, vector<128x256xf32>,
    %cst_5 = arith.constant dense<0.000000e+00> : vector<256xf32>
    %4 = vector.multi_reduction <add>, %2, %cst_5 [0] : vector<128x256xf32> to vector<256xf32>
    %5 = vector.shape_cast %4 : vector<256xf32> to vector<1x256xf32>
    %6 = arith.mulf %2, %2 : vector<128x256xf32>
    %cst_6 = arith.constant dense<0.000000e+00> : vector<256xf32>
    %7 = vector.multi_reduction <add>, %6, %cst_6 [0] : vector<128x256xf32> to vector<256xf32>
    %8 = vector.shape_cast %7 : vector<256xf32> to vector<1x256xf32>
    %9 = tpu.concatenate %5, %8 in 0 : vector<1x256xf32>, vector<1x256xf32> -> vector<2x256xf32>
    %c0_7 = arith.constant 0 : index
    %c0_8 = arith.constant 0 : index
    %c0_9 = arith.constant 0 : index
    %10 = vector.load %arg4[%c0_7, %c0_8, %c0_9] : memref<1x2x256xf32, #tpu.memory_space<vmem>>, vector<1x2x256xf32>
    %11 = vector.shape_cast %10 : vector<1x2x256xf32> to vector<2x256xf32>
    %12 = vector.shape_cast %9 : vector<2x256xf32> to vector<1x2x256xf32>
    tpu.vector_store %arg4[%c0_7, %c0_8, %c0_9], %12 {strides = array<i32>} : memref<1x2x256xf32, #tpu.memory_space<vmem>>, vector<1x2x256xf32>,
    return
  }
  func.func @transform_0(%arg0: i32) -> (i32, i32) {
    %c0_i32 = arith.constant 0 : i32
    %c0_i32_0 = arith.constant 0 : i32
    return %arg0, %c0_i32 : i32, i32
  }
  func.func @transform_1(%arg0: i32) -> (i32, i32) {
    %c0_i32 = arith.constant 0 : i32
    %c0_i32_0 = arith.constant 0 : i32
    %c0_i32_1 = arith.constant 0 : i32
    return %c0_i32, %c0_i32_0 : i32, i32
  }
  func.func @transform_2(%arg0: i32) -> (i32, i32) {
    %c0_i32 = arith.constant 0 : i32
    %c0_i32_0 = arith.constant 0 : i32
    return %arg0, %c0_i32 : i32, i32
  }
  func.func @transform_3(%arg0: i32) -> (i32, i32, i32) {
    %c0_i32 = arith.constant 0 : i32
    %c0_i32_0 = arith.constant 0 : i32
    %c0_i32_1 = arith.constant 0 : i32
    return %arg0, %c0_i32, %c0_i32_0 : i32, i32, i32
  }
}

module attributes {stable_mosaic.version = 11 : i64} {
  func.func @_bn_lrelu_kernel(%arg0: i32, %arg1: memref<128x256xf32, #tpu.memory_space<vmem>>, %arg2: memref<1x256xf32, #tpu.memory_space<vmem>>, %arg3: memref<1x256xf32, #tpu.memory_space<vmem>>, %arg4: memref<128x256xbf16, #tpu.memory_space<vmem>>) attributes {dimension_semantics = [#tpu.dimension_semantics<parallel>], iteration_bounds = array<i64: 1>, scalar_prefetch = 0 : i64, scratch_operands = 0 : i64, tpu.core_type = #tpu.core_type<tc>, window_params = [{transform_indices = @transform_0, window_bounds = array<i64: 128, 256>}, {pipeline_mode = #tpu.pipeline_mode<synchronous>, transform_indices = @transform_1, window_bounds = array<i64: 1, 256>}, {pipeline_mode = #tpu.pipeline_mode<synchronous>, transform_indices = @transform_2, window_bounds = array<i64: 1, 256>}, {transform_indices = @transform_3, window_bounds = array<i64: 128, 256>}]} {
    %c0 = arith.constant 0 : index
    %c0_0 = arith.constant 0 : index
    %0 = vector.load %arg1[%c0, %c0_0] : memref<128x256xf32, #tpu.memory_space<vmem>>, vector<128x256xf32>
    %c0_1 = arith.constant 0 : index
    %c0_2 = arith.constant 0 : index
    %1 = vector.load %arg2[%c0_1, %c0_2] : memref<1x256xf32, #tpu.memory_space<vmem>>, vector<1x256xf32>
    %2 = vector.broadcast %1 : vector<1x256xf32> to vector<128x256xf32>
    %3 = arith.mulf %0, %2 : vector<128x256xf32>
    %c0_3 = arith.constant 0 : index
    %c0_4 = arith.constant 0 : index
    %4 = vector.load %arg3[%c0_3, %c0_4] : memref<1x256xf32, #tpu.memory_space<vmem>>, vector<1x256xf32>
    %5 = vector.broadcast %4 : vector<1x256xf32> to vector<128x256xf32>
    %6 = arith.addf %3, %5 : vector<128x256xf32>
    %cst = arith.constant 0.000000e+00 : f32
    %7 = vector.broadcast %cst : f32 to vector<128x256xf32>
    %8 = arith.cmpf oge, %6, %7 : vector<128x256xf32>
    %cst_5 = arith.constant 0.00999999977 : f32
    %9 = vector.broadcast %cst_5 : f32 to vector<128x256xf32>
    %10 = arith.mulf %9, %6 : vector<128x256xf32>
    %11 = arith.select %8, %6, %10 : vector<128x256xi1>, vector<128x256xf32>
    %12 = arith.truncf %11 : vector<128x256xf32> to vector<128x256xbf16>
    %c0_6 = arith.constant 0 : index
    %c0_7 = arith.constant 0 : index
    %13 = vector.load %arg4[%c0_6, %c0_7] : memref<128x256xbf16, #tpu.memory_space<vmem>>, vector<128x256xbf16>
    tpu.vector_store %arg4[%c0_6, %c0_7], %12 {strides = array<i32>} : memref<128x256xbf16, #tpu.memory_space<vmem>>, vector<128x256xbf16>,
    return
  }
  func.func @transform_0(%arg0: i32) -> (i32, i32) {
    %c0_i32 = arith.constant 0 : i32
    %c0_i32_0 = arith.constant 0 : i32
    return %arg0, %c0_i32 : i32, i32
  }
  func.func @transform_1(%arg0: i32) -> (i32, i32) {
    %c0_i32 = arith.constant 0 : i32
    %c0_i32_0 = arith.constant 0 : i32
    %c0_i32_1 = arith.constant 0 : i32
    return %c0_i32, %c0_i32_0 : i32, i32
  }
  func.func @transform_2(%arg0: i32) -> (i32, i32) {
    %c0_i32 = arith.constant 0 : i32
    %c0_i32_0 = arith.constant 0 : i32
    %c0_i32_1 = arith.constant 0 : i32
    return %c0_i32, %c0_i32_0 : i32, i32
  }
  func.func @transform_3(%arg0: i32) -> (i32, i32) {
    %c0_i32 = arith.constant 0 : i32
    %c0_i32_0 = arith.constant 0 : i32
    return %arg0, %c0_i32 : i32, i32
  }
}

module attributes {stable_mosaic.version = 11 : i64} {
  func.func @_conv_sigmoid_kernel(%arg0: i32, %arg1: memref<8x12544xbf16, #tpu.memory_space<vmem>>, %arg2: memref<12544x128xbf16, #tpu.memory_space<vmem>>, %arg3: memref<8x128xf32, #tpu.memory_space<vmem>>) attributes {dimension_semantics = [#tpu.dimension_semantics<arbitrary>], iteration_bounds = array<i64: 1>, scalar_prefetch = 0 : i64, scratch_operands = 0 : i64, tpu.core_type = #tpu.core_type<tc>, window_params = [{pipeline_mode = #tpu.pipeline_mode<synchronous>, transform_indices = @transform_0, window_bounds = array<i64: 8, 12544>}, {pipeline_mode = #tpu.pipeline_mode<synchronous>, transform_indices = @transform_1, window_bounds = array<i64: 12544, 128>}, {pipeline_mode = #tpu.pipeline_mode<synchronous>, transform_indices = @transform_2, window_bounds = array<i64: 8, 128>}]} {
    %c0 = arith.constant 0 : index
    %c0_0 = arith.constant 0 : index
    %0 = vector.load %arg1[%c0, %c0_0] : memref<8x12544xbf16, #tpu.memory_space<vmem>>, vector<8x12544xbf16>
    %c0_1 = arith.constant 0 : index
    %c0_2 = arith.constant 0 : index
    %1 = vector.load %arg2[%c0_1, %c0_2] : memref<12544x128xbf16, #tpu.memory_space<vmem>>, vector<12544x128xbf16>
    %cst = arith.constant dense<0.000000e+00> : vector<8x128xf32>
    %2 = tpu.matmul %0, %1, %cst {dimension_numbers = #tpu.dot_dimension_numbers<[1], [0], [0], [1], [0, 0, 1, 1], [], []>} : vector<8x12544xbf16>, vector<12544x128xbf16>, vector<8x128xf32> -> vector<8x128xf32>
    %cst_3 = arith.constant 0.000000e+00 : f32
    %3 = vector.broadcast %cst_3 : f32 to vector<8x128xf32>
    %4 = arith.subf %3, %2 : vector<8x128xf32>
    %5 = math.exp %4 : vector<8x128xf32>
    %cst_4 = arith.constant 1.000000e+00 : f32
    %6 = vector.broadcast %cst_4 : f32 to vector<8x128xf32>
    %7 = arith.addf %6, %5 : vector<8x128xf32>
    %8 = tpu.reciprocal %7 : vector<8x128xf32> -> vector<8x128xf32>
    %c0_5 = arith.constant 0 : index
    %c0_6 = arith.constant 0 : index
    %9 = vector.load %arg3[%c0_5, %c0_6] : memref<8x128xf32, #tpu.memory_space<vmem>>, vector<8x128xf32>
    tpu.vector_store %arg3[%c0_5, %c0_6], %8 {strides = array<i32>} : memref<8x128xf32, #tpu.memory_space<vmem>>, vector<8x128xf32>,
    return
  }
  func.func @transform_0(%arg0: i32) -> (i32, i32) {
    %c0_i32 = arith.constant 0 : i32
    %c0_i32_0 = arith.constant 0 : i32
    %c0_i32_1 = arith.constant 0 : i32
    return %c0_i32, %c0_i32_0 : i32, i32
  }
  func.func @transform_1(%arg0: i32) -> (i32, i32) {
    %c0_i32 = arith.constant 0 : i32
    %c0_i32_0 = arith.constant 0 : i32
    %c0_i32_1 = arith.constant 0 : i32
    return %c0_i32, %c0_i32_0 : i32, i32
  }
  func.func @transform_2(%arg0: i32) -> (i32, i32) {
    %c0_i32 = arith.constant 0 : i32
    %c0_i32_0 = arith.constant 0 : i32
    %c0_i32_1 = arith.constant 0 : i32
    return %c0_i32, %c0_i32_0 : i32, i32
  }
}

</mosaic_0001>

<llo_original>
// kernel: bla_forward.5
$region0: #{bla_forward.5}
  #allocation0 [shape = 'u32[]', space=smem, size = 0x4, offset = 0x4, fixed_abs, tag = 'smem constant byte address 0x4 - core index']
  #allocation1 [shape = 'u32[144,128]{1,0:T(1,128)}', space=vmem, size = 0x12000, scoped, tag = 'internal scratch']
  %s0 = inlined_call_operand.vmem [shape: bf16[512,64], index: 0, kind: input, shape index: {}]
  %s1 = inlined_call_operand.vmem [shape: bf16[64,128], index: 1, kind: input, shape index: {}]
  %s2 = inlined_call_operand.vmem [shape: f32[512,128], index: 2, kind: output, shape index: {0}]
  %s3 = inlined_call_operand.vmem [shape: f32[4,2,128], index: 3, kind: output, shape index: {1}]
  %4 = xla_tuple %s2, %s3
  %s5 = sld [smem:[#allocation0]]
  $region49: #{bla_forward.5} parent=0
    _
  %s7 = ssub.s32 1, %s5
  %s8 = scalar_select 0, %s7, %s5
  loop: start=0, step=1, limit=6
  $region2: #{bla_forward.5} parent=0 // loop_pre_header
    _
  $region3: #{bla_forward.5} parent=0 // loop_header
    %s10 = sphi 0, %s14
    %p11 = scmp.ge.s32.totalorder %s10, 6
    %s20 = sphi 0, %s22
    %s23 = sphi 0, %s20
    %s24 = sphi 0, %s23
    %s40 = sphi 0, %s24
    %s44 = sphi 0, %s44
    %s46 = sphi 0, %s44
    %s47 = sphi 0, %s46
    %s61 = sphi 0, %s47
    %s67 = sphi 0, %s69
    %s70 = sphi 0, %s67
    %s71 = sphi 0, %s70
    %s87 = sphi 0, %s71
    %s93 = sphi 0, %s95
    %s96 = sphi 0, %s93
    %s97 = sphi 0, %s96
    %s113 = sphi 0, %s97
  $region4: #{bla_forward.5} parent=0 // loop_header_branch
    %13 = sbr.rel (%p11) target = $region8
  $region5: #{bla_forward.5} parent=0 // loop_body
    %s15 = ssub.s32 %s10, 1
    %s16 = ssub.s32 %s10, 2
    %s17 = sadd.s32 %s10, 1
    %s18 = ssub.s32 %s10, %s17
    %p19 = scmp.eq.s32.totalorder %s18, 0
    %s21 = sadd.s32 %s20, 1
    %s22 = scalar_select %p19, %s20, %s21
    %p25 = pneg %p19
    %p26 = scmp.eq.s32.totalorder %s10, 3
    %p27 = por %p25, %p26
    %p28 = scmp.ne.s32.totalorder %s20, %s23
    %p29 = scmp.eq.s32.totalorder %s10, 0
    %p30 = por %p28, %p29
    %p31 = scmp.ne.s32.totalorder %s20, %s23
    %p32 = scmp.eq.s32.totalorder %s15, 3
    %p33 = por %p31, %p32
    %p34 = scmp.ne.s32.totalorder %s23, %s24
    %p35 = scmp.eq.s32.totalorder %s15, 0
    %p36 = por %p34, %p35
    %p37 = scmp.ne.s32.totalorder %s23, %s24
    %p38 = scmp.eq.s32.totalorder %s16, 3
    %p39 = por %p37, %p38
    %p41 = scmp.ne.s32.totalorder %s24, %s40
    %p42 = scmp.eq.s32.totalorder %s16, 0
    %p43 = por %p41, %p42
    %s45 = sadd.s32 %s44, 1
    %p48 = scmp.eq.s32.totalorder %s10, 3
    %p49 = scmp.ne.s32.totalorder %s44, %s46
    %p50 = scmp.eq.s32.totalorder %s10, 0
    %p51 = por %p49, %p50
    %p52 = scmp.ne.s32.totalorder %s44, %s46
    %p53 = scmp.eq.s32.totalorder %s15, 3
    %p54 = por %p52, %p53
    %p55 = scmp.ne.s32.totalorder %s46, %s47
    %p56 = scmp.eq.s32.totalorder %s15, 0
    %p57 = por %p55, %p56
    %p58 = scmp.ne.s32.totalorder %s46, %s47
    %p59 = scmp.eq.s32.totalorder %s16, 3
    %p60 = por %p58, %p59
    %p62 = scmp.ne.s32.totalorder %s47, %s61
    %p63 = scmp.eq.s32.totalorder %s16, 0
    %p64 = por %p62, %p63
    %s65 = ssub.s32 %s10, %s17
    %p66 = scmp.eq.s32.totalorder %s65, 0
    %s68 = sadd.s32 %s67, 1
    %s69 = scalar_select %p66, %s67, %s68
    %p72 = pneg %p66
    %p73 = scmp.eq.s32.totalorder %s10, 3
    %p74 = por %p72, %p73
    %p75 = scmp.ne.s32.totalorder %s67, %s70
    %p76 = scmp.eq.s32.totalorder %s10, 0
    %p77 = por %p75, %p76
    %p78 = scmp.ne.s32.totalorder %s67, %s70
    %p79 = scmp.eq.s32.totalorder %s15, 3
    %p80 = por %p78, %p79
    %p81 = scmp.ne.s32.totalorder %s70, %s71
    %p82 = scmp.eq.s32.totalorder %s15, 0
    %p83 = por %p81, %p82
    %p84 = scmp.ne.s32.totalorder %s70, %s71
    %p85 = scmp.eq.s32.totalorder %s16, 3
    %p86 = por %p84, %p85
    %p88 = scmp.ne.s32.totalorder %s71, %s87
    %p89 = scmp.eq.s32.totalorder %s16, 0
    %p90 = por %p88, %p89
    %s91 = ssub.s32 %s10, %s17
    %p92 = scmp.eq.s32.totalorder %s91, 0
    %s94 = sadd.s32 %s93, 1
    %s95 = scalar_select %p92, %s93, %s94
    %p98 = pneg %p92
    %p99 = scmp.eq.s32.totalorder %s10, 3
    %p100 = por %p98, %p99
    %p101 = scmp.ne.s32.totalorder %s93, %s96
    %p102 = scmp.eq.s32.totalorder %s10, 0
    %p103 = por %p101, %p102
    %p104 = scmp.ne.s32.totalorder %s93, %s96
    %p105 = scmp.eq.s32.totalorder %s15, 3
    %p106 = por %p104, %p105
    %p107 = scmp.ne.s32.totalorder %s96, %s97
    %p108 = scmp.eq.s32.totalorder %s15, 0
    %p109 = por %p107, %p108
    %p110 = scmp.ne.s32.totalorder %s96, %s97
    %p111 = scmp.eq.s32.totalorder %s16, 3
    %p112 = por %p110, %p111
    %p114 = scmp.ne.s32.totalorder %s97, %s113
    %p115 = scmp.eq.s32.totalorder %s16, 0
    %p116 = por %p114, %p115
    %p117 = scmp.le.s32.totalorder 1, %s10
    %p118 = scmp.lt.s32.totalorder %s10, 5
    %p119 = pnand %p117, %p118
    %p120 = pneg %p119
    // Predicated region
    $region9: #{bla_forward.5} parent=5 // pred_check
      _
    $region10: #{bla_forward.5} parent=5 // pred_check_branch
      %122 = sbr.rel (%p119) target = $region12
    $region11: #{bla_forward.5} parent=5 // pred_region
      %s123 = ssub.s32 %s10, 1
      // Predicated region
      $region13: #{bla_forward.5} parent=11 // pred_check
        %p124 = pneg %p57
      $region14: #{bla_forward.5} parent=11 // pred_check_branch
        %126 = sbr.rel (%p124) target = $region16
      $region15: #{bla_forward.5} parent=11 // pred_region
        _
      $region16: #{bla_forward.5} parent=11 // pred_fallthru
        _
    $region12: #{bla_forward.5} parent=5 // pred_fallthru
      _
    %p127 = scmp.lt.s32.totalorder %s10, 4
    // Predicated region
    $region17: #{bla_forward.5} parent=5 // pred_check
      %p128 = pneg %p127
    $region18: #{bla_forward.5} parent=5 // pred_check_branch
      %130 = sbr.rel (%p128) target = $region20
    $region19: #{bla_forward.5} parent=5 // pred_region
      // Predicated region
      $region21: #{bla_forward.5} parent=19 // pred_check
        %p131 = pneg %p30
      $region22: #{bla_forward.5} parent=19 // pred_check_branch
        %133 = sbr.rel (%p131) target = $region24
      $region23: #{bla_forward.5} parent=19 // pred_region
        %s134 = smul.u32 16, %s10
        %p135 = scmp.lt.s32.totalorder %s134, 63
        %s136 = scalar_select %p135, %s134, 63
        %s137 = smul.addr %s136, 4
        %s138 = scalar_lea.vmem %s0, %s137
        %s139 = smul.u32 16, %s10
      $region24: #{bla_forward.5} parent=19 // pred_fallthru
        _
    $region20: #{bla_forward.5} parent=5 // pred_fallthru
      _
    %p140 = scmp.le.s32.totalorder 1, %s10
    %p141 = scmp.lt.s32.totalorder %s10, 5
    %p142 = pnand %p140, %p141
    %p143 = pneg %p142
    // Predicated region
    $region25: #{bla_forward.5} parent=5 // pred_check
      _
    $region26: #{bla_forward.5} parent=5 // pred_check_branch
      %145 = sbr.rel (%p142) target = $region28
    $region27: #{bla_forward.5} parent=5 // pred_region
      %s146 = ssub.s32 %s10, 1
      %s147 = smul.u32 16, %s15
      %p148 = scmp.lt.s32.totalorder %s147, 63
      %s149 = scalar_select %p148, %s147, 63
      %s150 = smul.addr %s149, 4
      %s151 = scalar_lea.vmem %s0, %s150
      %p152 = pneg %p36
      %p153 = pneg %p33
      %p154 = pneg %p57
      %p155 = pneg %p54
      %p156 = pneg %p83
      %p157 = pneg %p80
      %s158 = smul.u32 16, %s15
      %p159 = scmp.lt.s32.totalorder %s158, 63
      %s160 = scalar_select %p159, %s158, 63
      %s161 = smul.addr %s160, 8
      %s162 = scalar_lea.vmem %s2, %s161
      %p163 = pneg %p109
      %p164 = pneg %p106
      %p165 = scmp.lt.s32.totalorder %s15, 3
      %s166 = scalar_select %p165, %s15, 3
      %s167 = smul.addr %s166, 2
      %s168 = scalar_lea.vmem %s3, %s167
      %s169 = smul.u32 16, %s15
      %p170 = scmp.lt.s32.totalorder %s169, 63
      %s171 = scalar_select %p170, %s169, 63
      %s172 = smul.addr %s171, 4
      %s173 = scalar_lea.vmem %s0, %s172
      %s174 = smul.u32 16, %s15
      %s175 = smul.u32 16, %s15
      %p176 = scmp.lt.s32.totalorder %s175, 63
      %s177 = scalar_select %p176, %s175, 63
      %s178 = smul.addr %s177, 8
      %s179 = scalar_lea.vmem %s2, %s178
      %s180 = smul.u32 16, %s15
      %p181 = scmp.lt.s32.totalorder %s15, 3
      %s182 = scalar_select %p181, %s15, 3
      %s183 = smul.addr %s182, 2
      %s184 = scalar_lea.vmem %s3, %s183
      %v186 = vld [vmem:[%s173] sm:$0xf]
      %v187 = vld [vmem:[%s173 + $0x4] sm:$0xf]
      %v188 = vld [vmem:[%s173 + $0x8] sm:$0xf]
      %v189 = vld [vmem:[%s173 + $0xc] sm:$0xf]
      %v190 = vld [vmem:[%s173 + $0x10] sm:$0xf]
      %v191 = vld [vmem:[%s173 + $0x14] sm:$0xf]
      %v192 = vld [vmem:[%s173 + $0x18] sm:$0xf]
      %v193 = vld [vmem:[%s173 + $0x1c] sm:$0xf]
      %v194 = vld [vmem:[%s173 + $0x20] sm:$0xf]
      %v195 = vld [vmem:[%s173 + $0x24] sm:$0xf]
      %v196 = vld [vmem:[%s173 + $0x28] sm:$0xf]
      %v197 = vld [vmem:[%s173 + $0x2c] sm:$0xf]
      %v198 = vld [vmem:[%s173 + $0x30] sm:$0xf]
      %v199 = vld [vmem:[%s173 + $0x34] sm:$0xf]
      %v200 = vld [vmem:[%s173 + $0x38] sm:$0xf]
      %v201 = vld [vmem:[%s173 + $0x3c] sm:$0xf]
      %v202 = vld [vmem:[%s1] sm:$0xf]
      %v203 = vld [vmem:[%s1 + $0x4] sm:$0xf]
      %v204 = vld [vmem:[%s1 + $0x8] sm:$0xf]
      %v205 = vld [vmem:[%s1 + $0xc] sm:$0xf]
      %v206 = vld [vmem:[%s1 + $0x10] sm:$0xf]
      %v207 = vld [vmem:[%s1 + $0x14] sm:$0xf]
      %v208 = vld [vmem:[%s1 + $0x18] sm:$0xf]
      %v209 = vld [vmem:[%s1 + $0x1c] sm:$0xf]
      %v226 = vunpack.c.l.b16 %v186
      %v227 = vunpack.c.l.b16 %v187
      %v228 = vunpack.c.l.b16 %v188
      %v229 = vunpack.c.l.b16 %v189
      %v230 = vunpack.c.l.b16 %v190
      %v231 = vunpack.c.l.b16 %v191
      %v232 = vunpack.c.l.b16 %v192
      %v233 = vunpack.c.l.b16 %v193
      %v234 = vunpack.c.l.b16 %v194
      %v235 = vunpack.c.l.b16 %v195
      %v236 = vunpack.c.l.b16 %v196
      %v237 = vunpack.c.l.b16 %v197
      %v238 = vunpack.c.l.b16 %v198
      %v239 = vunpack.c.l.b16 %v199
      %v240 = vunpack.c.l.b16 %v200
      %v241 = vunpack.c.l.b16 %v201
      %v242 = vpack.c.b16 %v227, %v226
      %v243 = vpack.c.b16 %v229, %v228
      %v244 = vpack.c.b16 %v231, %v230
      %v245 = vpack.c.b16 %v233, %v232
      %v246 = vpack.c.b16 %v235, %v234
      %v247 = vpack.c.b16 %v237, %v236
      %v248 = vpack.c.b16 %v239, %v238
      %v249 = vpack.c.b16 %v241, %v240
      %v258 = vunpack.c.l.b16 %v202
      %v259 = vunpack.c.l.b16 %v203
      %v260 = vunpack.c.l.b16 %v204
      %v261 = vunpack.c.l.b16 %v205
      %v262 = vunpack.c.l.b16 %v206
      %v263 = vunpack.c.l.b16 %v207
      %v264 = vunpack.c.l.b16 %v208
      %v265 = vunpack.c.l.b16 %v209
      %v266 = vpack.c.b16 %v259, %v258
      %v267 = vpack.c.b16 %v261, %v260
      %v268 = vpack.c.b16 %v263, %v262
      %v269 = vpack.c.b16 %v265, %v264
      %vm274 = vcmask 523264
      %v276 = vsel %vm274, %v242, 0
      %v279 = vsel %vm274, %v243, 0
      %v282 = vsel %vm274, %v244, 0
      %v285 = vsel %vm274, %v245, 0
      %v288 = vsel %vm274, %v246, 0
      %v291 = vsel %vm274, %v247, 0
      %v294 = vsel %vm274, %v248, 0
      %v297 = vsel %vm274, %v249, 0
      %299 = vmatprep.subr.bf16.mxu0 0
      %300 = vmatpush1.bf16.msra.mxu0 0
      %301 = vmatprep.subr.bf16.mxu0 0
      %302 = vmatpush1.bf16.msra.mxu0 0
      %303 = vmatprep.subr.bf16.mxu0 0
      %304 = vmatpush1.bf16.msra.mxu0 0
      %305 = vmatprep.subr.bf16.mxu0 0
      %306 = vmatpush1.bf16.msra.mxu0 0
      %307 = vmatprep.subr.bf16.mxu0 0
      %308 = vmatpush1.bf16.msra.mxu0 %v269
      %309 = vmatprep.subr.bf16.mxu0 0
      %310 = vmatpush1.bf16.msra.mxu0 %v268
      %311 = vmatprep.subr.bf16.mxu0 0
      %312 = vmatpush1.bf16.msra.mxu0 %v267
      %313 = vmatprep.subr.bf16.mxu0 0
      %314 = vmatpush1.bf16.msra.mxu0 %v266
      %315 = vmatprep.subr.bf16.mxu0 0
      %316 = vmatpush2.bf16.msra.mxu0 0
      %317 = vmatprep.subr.bf16.mxu0 0
      %318 = vmatpush2.bf16.msra.mxu0 0
      %319 = vmatprep.subr.bf16.mxu0 0
      %320 = vmatpush2.bf16.msra.mxu0 0
      %321 = vmatprep.subr.bf16.mxu0 0
      %322 = vmatpush2.bf16.msra.mxu0 0
      %323 = vmatprep.subr.bf16.mxu0 0
      %324 = vmatpush2.bf16.msra.mxu0 0
      %325 = vmatprep.subr.bf16.mxu0 0
      %326 = vmatpush2.bf16.msra.mxu0 0
      %327 = vmatprep.subr.bf16.mxu0 0
      %328 = vmatpush2.bf16.msra.mxu0 0
      %329 = vmatprep.subr.bf16.mxu0 0
      %330 = vmatpush2.bf16.msra.mxu0 0
      %331 = vmatprep.mubr.bf16.mxu0 0
      %332 = vmatmul.mubr.bf16.gmra.mxu0 %v276
      %v333 = vpop.f32.mrf.mxu0
      %v334 = vadd.f32 0.0, %v333
      %v335 = vpop.f32.mrf.mxu0
      %v336 = vpop.f32.mrf.mxu0
      %v337 = vadd.f32 0.0, %v336
      %v338 = vpop.f32.mrf.mxu0
      %339 = vmatprep.mubr.bf16.mxu0 0
      %340 = vmatmul.mubr.bf16.gmra.mxu0 %v279
      %v341 = vpop.f32.mrf.mxu0
      %v342 = vadd.f32 0.0, %v341
      %v343 = vpop.f32.mrf.mxu0
      %v344 = vpop.f32.mrf.mxu0
      %v345 = vadd.f32 0.0, %v344
      %v346 = vpop.f32.mrf.mxu0
      %347 = vmatprep.mubr.bf16.mxu0 0
      %348 = vmatmul.mubr.bf16.gmra.mxu0 %v282
      %v349 = vpop.f32.mrf.mxu0
      %v350 = vadd.f32 0.0, %v349
      %v351 = vpop.f32.mrf.mxu0
      %v352 = vpop.f32.mrf.mxu0
      %v353 = vadd.f32 0.0, %v352
      %v354 = vpop.f32.mrf.mxu0
      %355 = vmatprep.mubr.bf16.mxu0 0
      %356 = vmatmul.mubr.bf16.gmra.mxu0 %v285
      %v357 = vpop.f32.mrf.mxu0
      %v358 = vadd.f32 0.0, %v357
      %v359 = vpop.f32.mrf.mxu0
      %v360 = vpop.f32.mrf.mxu0
      %v361 = vadd.f32 0.0, %v360
      %v362 = vpop.f32.mrf.mxu0
      %363 = vmatprep.mubr.bf16.mxu0 0
      %364 = vmatmul.mubr.bf16.gmra.mxu0 %v288
      %v365 = vpop.f32.mrf.mxu0
      %v366 = vadd.f32 0.0, %v365
      %v367 = vpop.f32.mrf.mxu0
      %v368 = vpop.f32.mrf.mxu0
      %v369 = vadd.f32 0.0, %v368
      %v370 = vpop.f32.mrf.mxu0
      %371 = vmatprep.mubr.bf16.mxu0 0
      %372 = vmatmul.mubr.bf16.gmra.mxu0 %v291
      %v373 = vpop.f32.mrf.mxu0
      %v374 = vadd.f32 0.0, %v373
      %v375 = vpop.f32.mrf.mxu0
      %v376 = vpop.f32.mrf.mxu0
      %v377 = vadd.f32 0.0, %v376
      %v378 = vpop.f32.mrf.mxu0
      %379 = vmatprep.mubr.bf16.mxu0 0
      %380 = vmatmul.mubr.bf16.gmra.mxu0 %v294
      %v381 = vpop.f32.mrf.mxu0
      %v382 = vadd.f32 0.0, %v381
      %v383 = vpop.f32.mrf.mxu0
      %v384 = vpop.f32.mrf.mxu0
      %v385 = vadd.f32 0.0, %v384
      %v386 = vpop.f32.mrf.mxu0
      %387 = vmatprep.mubr.bf16.mxu0 0
      %388 = vmatmul.mubr.bf16.gmra.mxu0 %v297
      %v389 = vpop.f32.mrf.mxu0
      %v390 = vadd.f32 0.0, %v389
      %v391 = vpop.f32.mrf.mxu0
      %v392 = vpop.f32.mrf.mxu0
      %v393 = vadd.f32 0.0, %v392
      %v394 = vpop.f32.mrf.mxu0
      %395 = vdwg.mxu0
      %396 = vst [vmem:[%s179] sm:$0xff] %v334
      %397 = vst [vmem:[%s179 + $0x8] sm:$0xff] %v337
      %398 = vst [vmem:[%s179 + $0x10] sm:$0xff] %v342
      %399 = vst [vmem:[%s179 + $0x18] sm:$0xff] %v345
      %400 = vst [vmem:[%s179 + $0x20] sm:$0xff] %v350
      %401 = vst [vmem:[%s179 + $0x28] sm:$0xff] %v353
      %402 = vst [vmem:[%s179 + $0x30] sm:$0xff] %v358
      %403 = vst [vmem:[%s179 + $0x38] sm:$0xff] %v361
      %404 = vst [vmem:[%s179 + $0x40] sm:$0xff] %v366
      %405 = vst [vmem:[%s179 + $0x48] sm:$0xff] %v369
      %406 = vst [vmem:[%s179 + $0x50] sm:$0xff] %v374
      %407 = vst [vmem:[%s179 + $0x58] sm:$0xff] %v377
      %408 = vst [vmem:[%s179 + $0x60] sm:$0xff] %v382
      %409 = vst [vmem:[%s179 + $0x68] sm:$0xff] %v385
      %410 = vst [vmem:[%s179 + $0x70] sm:$0xff] %v390
      %411 = vst [vmem:[%s179 + $0x78] sm:$0xff] %v393
      %v412 = vadd.f32 %v334, %v337
      %v413 = vadd.f32 %v412, %v342
      %v414 = vadd.f32 %v413, %v345
      %v415 = vadd.f32 %v414, %v350
      %v416 = vadd.f32 %v415, %v353
      %v417 = vadd.f32 %v416, %v358
      %v418 = vadd.f32 %v417, %v361
      %v419 = vadd.f32 %v418, %v366
      %v420 = vadd.f32 %v419, %v369
      %v421 = vadd.f32 %v420, %v374
      %v422 = vadd.f32 %v421, %v377
      %v423 = vadd.f32 %v422, %v382
      %v424 = vadd.f32 %v423, %v385
      %v425 = vadd.f32 %v424, %v390
      %v426 = vadd.f32 %v425, %v393
      %v427 = vrot.slane %v426, 4
      %v428 = vadd.f32 %v426, %v427
      %v429 = vrot.slane %v428, 2
      %v430 = vadd.f32 %v428, %v429
      %v431 = vrot.slane %v430, 1
      %v432 = vadd.f32 %v430, %v431
      %v433 = vmul.f32 %v334, %v334
      %v434 = vmul.f32 %v337, %v337
      %v435 = vmul.f32 %v342, %v342
      %v436 = vmul.f32 %v345, %v345
      %v437 = vmul.f32 %v350, %v350
      %v438 = vmul.f32 %v353, %v353
      %v439 = vmul.f32 %v358, %v358
      %v440 = vmul.f32 %v361, %v361
      %v441 = vmul.f32 %v366, %v366
      %v442 = vmul.f32 %v369, %v369
      %v443 = vmul.f32 %v374, %v374
      %v444 = vmul.f32 %v377, %v377
      %v445 = vmul.f32 %v382, %v382
      %v446 = vmul.f32 %v385, %v385
      %v447 = vmul.f32 %v390, %v390
      %v448 = vmul.f32 %v393, %v393
      %v449 = vadd.f32 %v433, %v434
      %v450 = vadd.f32 %v449, %v435
      %v451 = vadd.f32 %v450, %v436
      %v452 = vadd.f32 %v451, %v437
      %v453 = vadd.f32 %v452, %v438
      %v454 = vadd.f32 %v453, %v439
      %v455 = vadd.f32 %v454, %v440
      %v456 = vadd.f32 %v455, %v441
      %v457 = vadd.f32 %v456, %v442
      %v458 = vadd.f32 %v457, %v443
      %v459 = vadd.f32 %v458, %v444
      %v460 = vadd.f32 %v459, %v445
      %v461 = vadd.f32 %v460, %v446
      %v462 = vadd.f32 %v461, %v447
      %v463 = vadd.f32 %v462, %v448
      %v464 = vrot.slane %v463, 4
      %v465 = vadd.f32 %v463, %v464
      %v466 = vrot.slane %v465, 2
      %v467 = vadd.f32 %v465, %v466
      %v468 = vrot.slane %v467, 1
      %v469 = vadd.f32 %v467, %v468
      %vm470 = vcmask 1040384
      %v471 = vsel %vm470, %v432, %v469
      %472 = vst [vmem:[%s184] sm:$0x3] %v471
      %s473 = smul.u32 16, %s15
      %p474 = scmp.lt.s32.totalorder %s473, 63
      %s475 = scalar_select %p474, %s473, 63
      %s476 = smul.addr %s475, 8
      %s477 = scalar_lea.vmem %s2, %s476
      %p478 = scmp.lt.s32.totalorder %s15, 3
      %s479 = scalar_select %p478, %s15, 3
      %s480 = smul.addr %s479, 2
      %s481 = scalar_lea.vmem %s3, %s480
      // Predicated region
      $region29: #{bla_forward.5} parent=27 // pred_check
        %p482 = pneg %p80
      $region30: #{bla_forward.5} parent=27 // pred_check_branch
        %484 = sbr.rel (%p482) target = $region32
      $region31: #{bla_forward.5} parent=27 // pred_region
        %s485 = smul.u32 16, %s15
      $region32: #{bla_forward.5} parent=27 // pred_fallthru
        _
      // Predicated region
      $region33: #{bla_forward.5} parent=27 // pred_check
        %p486 = pneg %p106
      $region34: #{bla_forward.5} parent=27 // pred_check_branch
        %488 = sbr.rel (%p486) target = $region36
      $region35: #{bla_forward.5} parent=27 // pred_region
        _
      $region36: #{bla_forward.5} parent=27 // pred_fallthru
        _
    $region28: #{bla_forward.5} parent=5 // pred_fallthru
      _
    %p489 = scmp.le.s32.totalorder 2, %s10
    // Predicated region
    $region37: #{bla_forward.5} parent=5 // pred_check
      %p490 = pneg %p489
    $region38: #{bla_forward.5} parent=5 // pred_check_branch
      %492 = sbr.rel (%p490) target = $region40
    $region39: #{bla_forward.5} parent=5 // pred_region
      %s493 = ssub.s32 %s10, 2
      // Predicated region
      $region41: #{bla_forward.5} parent=39 // pred_check
        %p494 = pneg %p86
      $region42: #{bla_forward.5} parent=39 // pred_check_branch
        %496 = sbr.rel (%p494) target = $region44
      $region43: #{bla_forward.5} parent=39 // pred_region
        %s497 = smul.u32 16, %s16
        %p498 = scmp.lt.s32.totalorder %s497, 63
        %s499 = scalar_select %p498, %s497, 63
        %s500 = smul.addr %s499, 8
        %s501 = scalar_lea.vmem %s2, %s500
      $region44: #{bla_forward.5} parent=39 // pred_fallthru
        _
      // Predicated region
      $region45: #{bla_forward.5} parent=39 // pred_check
        %p502 = pneg %p112
      $region46: #{bla_forward.5} parent=39 // pred_check_branch
        %504 = sbr.rel (%p502) target = $region48
      $region47: #{bla_forward.5} parent=39 // pred_region
        %p505 = scmp.lt.s32.totalorder %s16, 3
        %s506 = scalar_select %p505, %s16, 3
        %s507 = smul.addr %s506, 2
        %s508 = scalar_lea.vmem %s3, %s507
      $region48: #{bla_forward.5} parent=39 // pred_fallthru
        _
    $region40: #{bla_forward.5} parent=5 // pred_fallthru
      _
  $region6: #{bla_forward.5} parent=0 // loop_footer
    %s14 = sadd.s32 1, %s10
  $region7: #{bla_forward.5} parent=0 // loop_footer_branch
    %9 = sbr.rel target = $region3
  $region8: #{bla_forward.5} parent=0 // loop_exit
    _

// kernel: bla_forward.6
$region0: #{bla_forward.6}
  #allocation0 [shape = 'u32[]', space=smem, size = 0x4, offset = 0x4, fixed_abs, tag = 'smem constant byte address 0x4 - core index']
  #allocation1 [shape = 'u32[144,128]{1,0:T(1,128)}', space=vmem, size = 0x12000, scoped, tag = 'internal scratch']
  %s0 = inlined_call_operand.vmem [shape: f32[512,128], index: 0, kind: input, shape index: {}]
  %s1 = inlined_call_operand.vmem [shape: f32[1,128], index: 1, kind: input, shape index: {}]
  %s2 = inlined_call_operand.vmem [shape: f32[1,128], index: 2, kind: input, shape index: {}]
  %s3 = inlined_call_operand.vmem [shape: bf16[512,128], index: 3, kind: output, shape index: {}]
  %s4 = sld [smem:[#allocation0]]
  $region45: #{bla_forward.6} parent=0
    _
  %s6 = ssub.s32 1, %s4
  %s7 = scalar_select 0, %s6, %s4
  loop: start=0, step=1, limit=6
  $region2: #{bla_forward.6} parent=0 // loop_pre_header
    _
  $region3: #{bla_forward.6} parent=0 // loop_header
    %s9 = sphi 0, %s13
    %p10 = scmp.ge.s32.totalorder %s9, 6
    %s19 = sphi 0, %s21
    %s22 = sphi 0, %s19
    %s23 = sphi 0, %s22
    %s39 = sphi 0, %s23
    %s43 = sphi 0, %s43
    %s45 = sphi 0, %s43
    %s46 = sphi 0, %s45
    %s60 = sphi 0, %s46
    %s64 = sphi 0, %s64
    %s66 = sphi 0, %s64
    %s67 = sphi 0, %s66
    %s81 = sphi 0, %s67
    %s87 = sphi 0, %s89
    %s90 = sphi 0, %s87
    %s91 = sphi 0, %s90
    %s107 = sphi 0, %s91
  $region4: #{bla_forward.6} parent=0 // loop_header_branch
    %12 = sbr.rel (%p10) target = $region8
  $region5: #{bla_forward.6} parent=0 // loop_body
    %s14 = ssub.s32 %s9, 1
    %s15 = ssub.s32 %s9, 2
    %s16 = sadd.s32 %s9, 1
    %s17 = ssub.s32 %s9, %s16
    %p18 = scmp.eq.s32.totalorder %s17, 0
    %s20 = sadd.s32 %s19, 1
    %s21 = scalar_select %p18, %s19, %s20
    %p24 = pneg %p18
    %p25 = scmp.eq.s32.totalorder %s9, 3
    %p26 = por %p24, %p25
    %p27 = scmp.ne.s32.totalorder %s19, %s22
    %p28 = scmp.eq.s32.totalorder %s9, 0
    %p29 = por %p27, %p28
    %p30 = scmp.ne.s32.totalorder %s19, %s22
    %p31 = scmp.eq.s32.totalorder %s14, 3
    %p32 = por %p30, %p31
    %p33 = scmp.ne.s32.totalorder %s22, %s23
    %p34 = scmp.eq.s32.totalorder %s14, 0
    %p35 = por %p33, %p34
    %p36 = scmp.ne.s32.totalorder %s22, %s23
    %p37 = scmp.eq.s32.totalorder %s15, 3
    %p38 = por %p36, %p37
    %p40 = scmp.ne.s32.totalorder %s23, %s39
    %p41 = scmp.eq.s32.totalorder %s15, 0
    %p42 = por %p40, %p41
    %s44 = sadd.s32 %s43, 1
    %p47 = scmp.eq.s32.totalorder %s9, 3
    %p48 = scmp.ne.s32.totalorder %s43, %s45
    %p49 = scmp.eq.s32.totalorder %s9, 0
    %p50 = por %p48, %p49
    %p51 = scmp.ne.s32.totalorder %s43, %s45
    %p52 = scmp.eq.s32.totalorder %s14, 3
    %p53 = por %p51, %p52
    %p54 = scmp.ne.s32.totalorder %s45, %s46
    %p55 = scmp.eq.s32.totalorder %s14, 0
    %p56 = por %p54, %p55
    %p57 = scmp.ne.s32.totalorder %s45, %s46
    %p58 = scmp.eq.s32.totalorder %s15, 3
    %p59 = por %p57, %p58
    %p61 = scmp.ne.s32.totalorder %s46, %s60
    %p62 = scmp.eq.s32.totalorder %s15, 0
    %p63 = por %p61, %p62
    %s65 = sadd.s32 %s64, 1
    %p68 = scmp.eq.s32.totalorder %s9, 3
    %p69 = scmp.ne.s32.totalorder %s64, %s66
    %p70 = scmp.eq.s32.totalorder %s9, 0
    %p71 = por %p69, %p70
    %p72 = scmp.ne.s32.totalorder %s64, %s66
    %p73 = scmp.eq.s32.totalorder %s14, 3
    %p74 = por %p72, %p73
    %p75 = scmp.ne.s32.totalorder %s66, %s67
    %p76 = scmp.eq.s32.totalorder %s14, 0
    %p77 = por %p75, %p76
    %p78 = scmp.ne.s32.totalorder %s66, %s67
    %p79 = scmp.eq.s32.totalorder %s15, 3
    %p80 = por %p78, %p79
    %p82 = scmp.ne.s32.totalorder %s67, %s81
    %p83 = scmp.eq.s32.totalorder %s15, 0
    %p84 = por %p82, %p83
    %s85 = ssub.s32 %s9, %s16
    %p86 = scmp.eq.s32.totalorder %s85, 0
    %s88 = sadd.s32 %s87, 1
    %s89 = scalar_select %p86, %s87, %s88
    %p92 = pneg %p86
    %p93 = scmp.eq.s32.totalorder %s9, 3
    %p94 = por %p92, %p93
    %p95 = scmp.ne.s32.totalorder %s87, %s90
    %p96 = scmp.eq.s32.totalorder %s9, 0
    %p97 = por %p95, %p96
    %p98 = scmp.ne.s32.totalorder %s87, %s90
    %p99 = scmp.eq.s32.totalorder %s14, 3
    %p100 = por %p98, %p99
    %p101 = scmp.ne.s32.totalorder %s90, %s91
    %p102 = scmp.eq.s32.totalorder %s14, 0
    %p103 = por %p101, %p102
    %p104 = scmp.ne.s32.totalorder %s90, %s91
    %p105 = scmp.eq.s32.totalorder %s15, 3
    %p106 = por %p104, %p105
    %p108 = scmp.ne.s32.totalorder %s91, %s107
    %p109 = scmp.eq.s32.totalorder %s15, 0
    %p110 = por %p108, %p109
    %p111 = scmp.le.s32.totalorder 1, %s9
    %p112 = scmp.lt.s32.totalorder %s9, 5
    %p113 = pnand %p111, %p112
    %p114 = pneg %p113
    // Predicated region
    $region9: #{bla_forward.6} parent=5 // pred_check
      _
    $region10: #{bla_forward.6} parent=5 // pred_check_branch
      %116 = sbr.rel (%p113) target = $region12
    $region11: #{bla_forward.6} parent=5 // pred_region
      %s117 = ssub.s32 %s9, 1
      // Predicated region
      $region13: #{bla_forward.6} parent=11 // pred_check
        %p118 = pneg %p56
      $region14: #{bla_forward.6} parent=11 // pred_check_branch
        %120 = sbr.rel (%p118) target = $region16
      $region15: #{bla_forward.6} parent=11 // pred_region
        _
      $region16: #{bla_forward.6} parent=11 // pred_fallthru
        _
      // Predicated region
      $region17: #{bla_forward.6} parent=11 // pred_check
        %p121 = pneg %p77
      $region18: #{bla_forward.6} parent=11 // pred_check_branch
        %123 = sbr.rel (%p121) target = $region20
      $region19: #{bla_forward.6} parent=11 // pred_region
        _
      $region20: #{bla_forward.6} parent=11 // pred_fallthru
        _
    $region12: #{bla_forward.6} parent=5 // pred_fallthru
      _
    %p124 = scmp.lt.s32.totalorder %s9, 4
    // Predicated region
    $region21: #{bla_forward.6} parent=5 // pred_check
      %p125 = pneg %p124
    $region22: #{bla_forward.6} parent=5 // pred_check_branch
      %127 = sbr.rel (%p125) target = $region24
    $region23: #{bla_forward.6} parent=5 // pred_region
      // Predicated region
      $region25: #{bla_forward.6} parent=23 // pred_check
        %p128 = pneg %p29
      $region26: #{bla_forward.6} parent=23 // pred_check_branch
        %130 = sbr.rel (%p128) target = $region28
      $region27: #{bla_forward.6} parent=23 // pred_region
        %s131 = smul.u32 16, %s9
        %p132 = scmp.lt.s32.totalorder %s131, 63
        %s133 = scalar_select %p132, %s131, 63
        %s134 = smul.addr %s133, 8
        %s135 = scalar_lea.vmem %s0, %s134
        %s136 = smul.u32 16, %s9
      $region28: #{bla_forward.6} parent=23 // pred_fallthru
        _
    $region24: #{bla_forward.6} parent=5 // pred_fallthru
      _
    %p137 = scmp.le.s32.totalorder 1, %s9
    %p138 = scmp.lt.s32.totalorder %s9, 5
    %p139 = pnand %p137, %p138
    %p140 = pneg %p139
    // Predicated region
    $region29: #{bla_forward.6} parent=5 // pred_check
      _
    $region30: #{bla_forward.6} parent=5 // pred_check_branch
      %142 = sbr.rel (%p139) target = $region32
    $region31: #{bla_forward.6} parent=5 // pred_region
      %s143 = ssub.s32 %s9, 1
      %s144 = smul.u32 16, %s14
      %p145 = scmp.lt.s32.totalorder %s144, 63
      %s146 = scalar_select %p145, %s144, 63
      %s147 = smul.addr %s146, 8
      %s148 = scalar_lea.vmem %s0, %s147
      %p149 = pneg %p35
      %p150 = pneg %p32
      %p151 = pneg %p56
      %p152 = pneg %p53
      %p153 = pneg %p77
      %p154 = pneg %p74
      %p155 = pneg %p103
      %p156 = pneg %p100
      %s157 = smul.u32 16, %s14
      %p158 = scmp.lt.s32.totalorder %s157, 63
      %s159 = scalar_select %p158, %s157, 63
      %s160 = smul.addr %s159, 4
      %s161 = scalar_lea.vmem %s3, %s160
      %s162 = smul.u32 16, %s14
      %p163 = scmp.lt.s32.totalorder %s162, 63
      %s164 = scalar_select %p163, %s162, 63
      %s165 = smul.addr %s164, 8
      %s166 = scalar_lea.vmem %s0, %s165
      %s167 = smul.u32 16, %s14
      %s168 = smul.u32 16, %s14
      %p169 = scmp.lt.s32.totalorder %s168, 63
      %s170 = scalar_select %p169, %s168, 63
      %s171 = smul.addr %s170, 4
      %s172 = scalar_lea.vmem %s3, %s171
      %s173 = smul.u32 16, %s14
      %v174 = vld [vmem:[%s166] sm:$0xff]
      %v175 = vld [vmem:[%s166 + $0x8] sm:$0xff]
      %v176 = vld [vmem:[%s166 + $0x10] sm:$0xff]
      %v177 = vld [vmem:[%s166 + $0x18] sm:$0xff]
      %v178 = vld [vmem:[%s166 + $0x20] sm:$0xff]
      %v179 = vld [vmem:[%s166 + $0x28] sm:$0xff]
      %v180 = vld [vmem:[%s166 + $0x30] sm:$0xff]
      %v181 = vld [vmem:[%s166 + $0x38] sm:$0xff]
      %v182 = vld [vmem:[%s166 + $0x40] sm:$0xff]
      %v183 = vld [vmem:[%s166 + $0x48] sm:$0xff]
      %v184 = vld [vmem:[%s166 + $0x50] sm:$0xff]
      %v185 = vld [vmem:[%s166 + $0x58] sm:$0xff]
      %v186 = vld [vmem:[%s166 + $0x60] sm:$0xff]
      %v187 = vld [vmem:[%s166 + $0x68] sm:$0xff]
      %v188 = vld [vmem:[%s166 + $0x70] sm:$0xff]
      %v189 = vld [vmem:[%s166 + $0x78] sm:$0xff]
      %v190 = vld [vmem:[%s1] sm:$0x1]
      %v192 = vlaneseq
      %v193 = vshrl.u32 %v192, 7
      %v194 = vsub.s32 0, %v193
      %v195 = vrot.slane %v190, %v194
      %v197 = vmul.f32 %v174, %v195
      %v198 = vmul.f32 %v175, %v195
      %v199 = vmul.f32 %v176, %v195
      %v200 = vmul.f32 %v177, %v195
      %v201 = vmul.f32 %v178, %v195
      %v202 = vmul.f32 %v179, %v195
      %v203 = vmul.f32 %v180, %v195
      %v204 = vmul.f32 %v181, %v195
      %v205 = vmul.f32 %v182, %v195
      %v206 = vmul.f32 %v183, %v195
      %v207 = vmul.f32 %v184, %v195
      %v208 = vmul.f32 %v185, %v195
      %v209 = vmul.f32 %v186, %v195
      %v210 = vmul.f32 %v187, %v195
      %v211 = vmul.f32 %v188, %v195
      %v212 = vmul.f32 %v189, %v195
      %v213 = vld [vmem:[%s2] sm:$0x1]
      %v215 = vlaneseq
      %v216 = vshrl.u32 %v215, 7
      %v217 = vsub.s32 0, %v216
      %v218 = vrot.slane %v213, %v217
      %v220 = vadd.f32 %v197, %v218
      %v221 = vadd.f32 %v198, %v218
      %v222 = vadd.f32 %v199, %v218
      %v223 = vadd.f32 %v200, %v218
      %v224 = vadd.f32 %v201, %v218
      %v225 = vadd.f32 %v202, %v218
      %v226 = vadd.f32 %v203, %v218
      %v227 = vadd.f32 %v204, %v218
      %v228 = vadd.f32 %v205, %v218
      %v229 = vadd.f32 %v206, %v218
      %v230 = vadd.f32 %v207, %v218
      %v231 = vadd.f32 %v208, %v218
      %v232 = vadd.f32 %v209, %v218
      %v233 = vadd.f32 %v210, %v218
      %v234 = vadd.f32 %v211, %v218
      %v235 = vadd.f32 %v212, %v218
      %vm236 = vcmp.ge.f32.partialorder %v220, 0.0
      %vm237 = vcmp.ge.f32.partialorder %v221, 0.0
      %vm238 = vcmp.ge.f32.partialorder %v222, 0.0
      %vm239 = vcmp.ge.f32.partialorder %v223, 0.0
      %vm240 = vcmp.ge.f32.partialorder %v224, 0.0
      %vm241 = vcmp.ge.f32.partialorder %v225, 0.0
      %vm242 = vcmp.ge.f32.partialorder %v226, 0.0
      %vm243 = vcmp.ge.f32.partialorder %v227, 0.0
      %vm244 = vcmp.ge.f32.partialorder %v228, 0.0
      %vm245 = vcmp.ge.f32.partialorder %v229, 0.0
      %vm246 = vcmp.ge.f32.partialorder %v230, 0.0
      %vm247 = vcmp.ge.f32.partialorder %v231, 0.0
      %vm248 = vcmp.ge.f32.partialorder %v232, 0.0
      %vm249 = vcmp.ge.f32.partialorder %v233, 0.0
      %vm250 = vcmp.ge.f32.partialorder %v234, 0.0
      %vm251 = vcmp.ge.f32.partialorder %v235, 0.0
      %v252 = vmul.f32 %v220, 0.01
      %v253 = vmul.f32 %v221, 0.01
      %v254 = vmul.f32 %v222, 0.01
      %v255 = vmul.f32 %v223, 0.01
      %v256 = vmul.f32 %v224, 0.01
      %v257 = vmul.f32 %v225, 0.01
      %v258 = vmul.f32 %v226, 0.01
      %v259 = vmul.f32 %v227, 0.01
      %v260 = vmul.f32 %v228, 0.01
      %v261 = vmul.f32 %v229, 0.01
      %v262 = vmul.f32 %v230, 0.01
      %v263 = vmul.f32 %v231, 0.01
      %v264 = vmul.f32 %v232, 0.01
      %v265 = vmul.f32 %v233, 0.01
      %v266 = vmul.f32 %v234, 0.01
      %v267 = vmul.f32 %v235, 0.01
      %v268 = vsel %vm236, %v220, %v252
      %v269 = vsel %vm237, %v221, %v253
      %v270 = vsel %vm238, %v222, %v254
      %v271 = vsel %vm239, %v223, %v255
      %v272 = vsel %vm240, %v224, %v256
      %v273 = vsel %vm241, %v225, %v257
      %v274 = vsel %vm242, %v226, %v258
      %v275 = vsel %vm243, %v227, %v259
      %v276 = vsel %vm244, %v228, %v260
      %v277 = vsel %vm245, %v229, %v261
      %v278 = vsel %vm246, %v230, %v262
      %v279 = vsel %vm247, %v231, %v263
      %v280 = vsel %vm248, %v232, %v264
      %v281 = vsel %vm249, %v233, %v265
      %v282 = vsel %vm250, %v234, %v266
      %v283 = vsel %vm251, %v235, %v267
      %v284 = vpack.c.bf16 %v269, %v268
      %v285 = vpack.c.bf16 %v271, %v270
      %v286 = vpack.c.bf16 %v273, %v272
      %v287 = vpack.c.bf16 %v275, %v274
      %v288 = vpack.c.bf16 %v277, %v276
      %v289 = vpack.c.bf16 %v279, %v278
      %v290 = vpack.c.bf16 %v281, %v280
      %v291 = vpack.c.bf16 %v283, %v282
      %v300 = vunpack.c.l.b16 %v284
      %v301 = vunpack.c.h.b16 %v284
      %v302 = vunpack.c.l.b16 %v285
      %v303 = vunpack.c.h.b16 %v285
      %v304 = vunpack.c.l.b16 %v286
      %v305 = vunpack.c.h.b16 %v286
      %v306 = vunpack.c.l.b16 %v287
      %v307 = vunpack.c.h.b16 %v287
      %v308 = vunpack.c.l.b16 %v288
      %v309 = vunpack.c.h.b16 %v288
      %v310 = vunpack.c.l.b16 %v289
      %v311 = vunpack.c.h.b16 %v289
      %v312 = vunpack.c.l.b16 %v290
      %v313 = vunpack.c.h.b16 %v290
      %v314 = vunpack.c.l.b16 %v291
      %v315 = vunpack.c.h.b16 %v291
      %v316 = vpack.c.b16 %v300, %v300
      %v317 = vpack.c.b16 %v301, %v301
      %v318 = vpack.c.b16 %v302, %v302
      %v319 = vpack.c.b16 %v303, %v303
      %v320 = vpack.c.b16 %v304, %v304
      %v321 = vpack.c.b16 %v305, %v305
      %v322 = vpack.c.b16 %v306, %v306
      %v323 = vpack.c.b16 %v307, %v307
      %v324 = vpack.c.b16 %v308, %v308
      %v325 = vpack.c.b16 %v309, %v309
      %v326 = vpack.c.b16 %v310, %v310
      %v327 = vpack.c.b16 %v311, %v311
      %v328 = vpack.c.b16 %v312, %v312
      %v329 = vpack.c.b16 %v313, %v313
      %v330 = vpack.c.b16 %v314, %v314
      %v331 = vpack.c.b16 %v315, %v315
      %348 = vst [vmem:[%s172] sm:$0xf] %v316
      %349 = vst [vmem:[%s172 + $0x4] sm:$0xf] %v317
      %350 = vst [vmem:[%s172 + $0x8] sm:$0xf] %v318
      %351 = vst [vmem:[%s172 + $0xc] sm:$0xf] %v319
      %352 = vst [vmem:[%s172 + $0x10] sm:$0xf] %v320
      %353 = vst [vmem:[%s172 + $0x14] sm:$0xf] %v321
      %354 = vst [vmem:[%s172 + $0x18] sm:$0xf] %v322
      %355 = vst [vmem:[%s172 + $0x1c] sm:$0xf] %v323
      %356 = vst [vmem:[%s172 + $0x20] sm:$0xf] %v324
      %357 = vst [vmem:[%s172 + $0x24] sm:$0xf] %v325
      %358 = vst [vmem:[%s172 + $0x28] sm:$0xf] %v326
      %359 = vst [vmem:[%s172 + $0x2c] sm:$0xf] %v327
      %360 = vst [vmem:[%s172 + $0x30] sm:$0xf] %v328
      %361 = vst [vmem:[%s172 + $0x34] sm:$0xf] %v329
      %362 = vst [vmem:[%s172 + $0x38] sm:$0xf] %v330
      %363 = vst [vmem:[%s172 + $0x3c] sm:$0xf] %v331
      %s364 = smul.u32 16, %s14
      %p365 = scmp.lt.s32.totalorder %s364, 63
      %s366 = scalar_select %p365, %s364, 63
      %s367 = smul.addr %s366, 4
      %s368 = scalar_lea.vmem %s3, %s367
      // Predicated region
      $region33: #{bla_forward.6} parent=31 // pred_check
        %p369 = pneg %p100
      $region34: #{bla_forward.6} parent=31 // pred_check_branch
        %371 = sbr.rel (%p369) target = $region36
      $region35: #{bla_forward.6} parent=31 // pred_region
        %s372 = smul.u32 16, %s14
      $region36: #{bla_forward.6} parent=31 // pred_fallthru
        _
    $region32: #{bla_forward.6} parent=5 // pred_fallthru
      _
    %p373 = scmp.le.s32.totalorder 2, %s9
    // Predicated region
    $region37: #{bla_forward.6} parent=5 // pred_check
      %p374 = pneg %p373
    $region38: #{bla_forward.6} parent=5 // pred_check_branch
      %376 = sbr.rel (%p374) target = $region40
    $region39: #{bla_forward.6} parent=5 // pred_region
      %s377 = ssub.s32 %s9, 2
      // Predicated region
      $region41: #{bla_forward.6} parent=39 // pred_check
        %p378 = pneg %p106
      $region42: #{bla_forward.6} parent=39 // pred_check_branch
        %380 = sbr.rel (%p378) target = $region44
      $region43: #{bla_forward.6} parent=39 // pred_region
        %s381 = smul.u32 16, %s15
        %p382 = scmp.lt.s32.totalorder %s381, 63
        %s383 = scalar_select %p382, %s381, 63
        %s384 = smul.addr %s383, 4
        %s385 = scalar_lea.vmem %s3, %s384
      $region44: #{bla_forward.6} parent=39 // pred_fallthru
        _
    $region40: #{bla_forward.6} parent=5 // pred_fallthru
      _
  $region6: #{bla_forward.6} parent=0 // loop_footer
    %s13 = sadd.s32 1, %s9
  $region7: #{bla_forward.6} parent=0 // loop_footer_branch
    %8 = sbr.rel target = $region3
  $region8: #{bla_forward.6} parent=0 // loop_exit
    _

// kernel: bla_forward.8
$region0: #{bla_forward.8}
  #allocation0 [shape = 'u32[]', space=smem, size = 0x4, offset = 0x4, fixed_abs, tag = 'smem constant byte address 0x4 - core index']
  #allocation1 [shape = 'u32[144,128]{1,0:T(1,128)}', space=vmem, size = 0x12000, scoped, tag = 'internal scratch']
  %s0 = inlined_call_operand.vmem [shape: f32[128,256], index: 0, kind: input, shape index: {}]
  %s1 = inlined_call_operand.vmem [shape: f32[1,256], index: 1, kind: input, shape index: {}]
  %s2 = inlined_call_operand.vmem [shape: f32[1,256], index: 2, kind: input, shape index: {}]
  %s3 = inlined_call_operand.vmem [shape: bf16[128,256], index: 3, kind: output, shape index: {}]
  %s4 = sld [smem:[#allocation0]]
  $region22: #{bla_forward.8} parent=0
    _
  %s6 = ssub.s32 1, %s4
  %s7 = scalar_select 0, %s6, %s4
  // Predicated region
  $region2: #{bla_forward.8} parent=0 // pred_check
    _
  $region3: #{bla_forward.8} parent=0 // pred_check_branch
    %9 = sbr.rel (0) target = $region5
  $region4: #{bla_forward.8} parent=0 // pred_region
    _
  $region5: #{bla_forward.8} parent=0 // pred_fallthru
    _
  // Predicated region
  $region6: #{bla_forward.8} parent=0 // pred_check
    _
  $region7: #{bla_forward.8} parent=0 // pred_check_branch
    %11 = sbr.rel (0) target = $region9
  $region8: #{bla_forward.8} parent=0 // pred_region
    _
  $region9: #{bla_forward.8} parent=0 // pred_fallthru
    _
  // Predicated region
  $region10: #{bla_forward.8} parent=0 // pred_check
    _
  $region11: #{bla_forward.8} parent=0 // pred_check_branch
    %13 = sbr.rel (0) target = $region13
  $region12: #{bla_forward.8} parent=0 // pred_region
    _
  $region13: #{bla_forward.8} parent=0 // pred_fallthru
    _
  %v14 = vld [vmem:[%s0] sm:$0xff]
  %v15 = vld [vmem:[%s0 + $0x8] sm:$0xff]
  %v16 = vld [vmem:[%s0 + $0x10] sm:$0xff]
  %v17 = vld [vmem:[%s0 + $0x18] sm:$0xff]
  %v18 = vld [vmem:[%s0 + $0x20] sm:$0xff]
  %v19 = vld [vmem:[%s0 + $0x28] sm:$0xff]
  %v20 = vld [vmem:[%s0 + $0x30] sm:$0xff]
  %v21 = vld [vmem:[%s0 + $0x38] sm:$0xff]
  %v22 = vld [vmem:[%s0 + $0x40] sm:$0xff]
  %v23 = vld [vmem:[%s0 + $0x48] sm:$0xff]
  %v24 = vld [vmem:[%s0 + $0x50] sm:$0xff]
  %v25 = vld [vmem:[%s0 + $0x58] sm:$0xff]
  %v26 = vld [vmem:[%s0 + $0x60] sm:$0xff]
  %v27 = vld [vmem:[%s0 + $0x68] sm:$0xff]
  %v28 = vld [vmem:[%s0 + $0x70] sm:$0xff]
  %v29 = vld [vmem:[%s0 + $0x78] sm:$0xff]
  %v30 = vld [vmem:[%s0 + $0x80] sm:$0xff]
  %v31 = vld [vmem:[%s0 + $0x88] sm:$0xff]
  %v32 = vld [vmem:[%s0 + $0x90] sm:$0xff]
  %v33 = vld [vmem:[%s0 + $0x98] sm:$0xff]
  %v34 = vld [vmem:[%s0 + $0xa0] sm:$0xff]
  %v35 = vld [vmem:[%s0 + $0xa8] sm:$0xff]
  %v36 = vld [vmem:[%s0 + $0xb0] sm:$0xff]
  %v37 = vld [vmem:[%s0 + $0xb8] sm:$0xff]
  %v38 = vld [vmem:[%s0 + $0xc0] sm:$0xff]
  %v39 = vld [vmem:[%s0 + $0xc8] sm:$0xff]
  %v40 = vld [vmem:[%s0 + $0xd0] sm:$0xff]
  %v41 = vld [vmem:[%s0 + $0xd8] sm:$0xff]
  %v42 = vld [vmem:[%s0 + $0xe0] sm:$0xff]
  %v43 = vld [vmem:[%s0 + $0xe8] sm:$0xff]
  %v44 = vld [vmem:[%s0 + $0xf0] sm:$0xff]
  %v45 = vld [vmem:[%s0 + $0xf8] sm:$0xff]
  %v46 = vld [vmem:[%s1] sm:$0x3]
  %v48 = vlaneseq
  %v49 = vshrl.u32 %v48, 7
  %v50 = vsub.s32 0, %v49
  %v51 = vrot.slane %v46, %v50
  %v52 = vlaneseq
  %v53 = vshrl.u32 %v52, 7
  %v54 = vsub.s32 1, %v53
  %v55 = vrot.slane %v46, %v54
  %v58 = vmul.f32 %v14, %v51
  %v59 = vmul.f32 %v15, %v55
  %v60 = vmul.f32 %v16, %v51
  %v61 = vmul.f32 %v17, %v55
  %v62 = vmul.f32 %v18, %v51
  %v63 = vmul.f32 %v19, %v55
  %v64 = vmul.f32 %v20, %v51
  %v65 = vmul.f32 %v21, %v55
  %v66 = vmul.f32 %v22, %v51
  %v67 = vmul.f32 %v23, %v55
  %v68 = vmul.f32 %v24, %v51
  %v69 = vmul.f32 %v25, %v55
  %v70 = vmul.f32 %v26, %v51
  %v71 = vmul.f32 %v27, %v55
  %v72 = vmul.f32 %v28, %v51
  %v73 = vmul.f32 %v29, %v55
  %v74 = vmul.f32 %v30, %v51
  %v75 = vmul.f32 %v31, %v55
  %v76 = vmul.f32 %v32, %v51
  %v77 = vmul.f32 %v33, %v55
  %v78 = vmul.f32 %v34, %v51
  %v79 = vmul.f32 %v35, %v55
  %v80 = vmul.f32 %v36, %v51
  %v81 = vmul.f32 %v37, %v55
  %v82 = vmul.f32 %v38, %v51
  %v83 = vmul.f32 %v39, %v55
  %v84 = vmul.f32 %v40, %v51
  %v85 = vmul.f32 %v41, %v55
  %v86 = vmul.f32 %v42, %v51
  %v87 = vmul.f32 %v43, %v55
  %v88 = vmul.f32 %v44, %v51
  %v89 = vmul.f32 %v45, %v55
  %v90 = vld [vmem:[%s2] sm:$0x3]
  %v92 = vlaneseq
  %v93 = vshrl.u32 %v92, 7
  %v94 = vsub.s32 0, %v93
  %v95 = vrot.slane %v90, %v94
  %v96 = vlaneseq
  %v97 = vshrl.u32 %v96, 7
  %v98 = vsub.s32 1, %v97
  %v99 = vrot.slane %v90, %v98
  %v102 = vadd.f32 %v58, %v95
  %v103 = vadd.f32 %v59, %v99
  %v104 = vadd.f32 %v60, %v95
  %v105 = vadd.f32 %v61, %v99
  %v106 = vadd.f32 %v62, %v95
  %v107 = vadd.f32 %v63, %v99
  %v108 = vadd.f32 %v64, %v95
  %v109 = vadd.f32 %v65, %v99
  %v110 = vadd.f32 %v66, %v95
  %v111 = vadd.f32 %v67, %v99
  %v112 = vadd.f32 %v68, %v95
  %v113 = vadd.f32 %v69, %v99
  %v114 = vadd.f32 %v70, %v95
  %v115 = vadd.f32 %v71, %v99
  %v116 = vadd.f32 %v72, %v95
  %v117 = vadd.f32 %v73, %v99
  %v118 = vadd.f32 %v74, %v95
  %v119 = vadd.f32 %v75, %v99
  %v120 = vadd.f32 %v76, %v95
  %v121 = vadd.f32 %v77, %v99
  %v122 = vadd.f32 %v78, %v95
  %v123 = vadd.f32 %v79, %v99
  %v124 = vadd.f32 %v80, %v95
  %v125 = vadd.f32 %v81, %v99
  %v126 = vadd.f32 %v82, %v95
  %v127 = vadd.f32 %v83, %v99
  %v128 = vadd.f32 %v84, %v95
  %v129 = vadd.f32 %v85, %v99
  %v130 = vadd.f32 %v86, %v95
  %v131 = vadd.f32 %v87, %v99
  %v132 = vadd.f32 %v88, %v95
  %v133 = vadd.f32 %v89, %v99
  %vm134 = vcmp.ge.f32.partialorder %v102, 0.0
  %vm135 = vcmp.ge.f32.partialorder %v103, 0.0
  %vm136 = vcmp.ge.f32.partialorder %v104, 0.0
  %vm137 = vcmp.ge.f32.partialorder %v105, 0.0
  %vm138 = vcmp.ge.f32.partialorder %v106, 0.0
  %vm139 = vcmp.ge.f32.partialorder %v107, 0.0
  %vm140 = vcmp.ge.f32.partialorder %v108, 0.0
  %vm141 = vcmp.ge.f32.partialorder %v109, 0.0
  %vm142 = vcmp.ge.f32.partialorder %v110, 0.0
  %vm143 = vcmp.ge.f32.partialorder %v111, 0.0
  %vm144 = vcmp.ge.f32.partialorder %v112, 0.0
  %vm145 = vcmp.ge.f32.partialorder %v113, 0.0
  %vm146 = vcmp.ge.f32.partialorder %v114, 0.0
  %vm147 = vcmp.ge.f32.partialorder %v115, 0.0
  %vm148 = vcmp.ge.f32.partialorder %v116, 0.0
  %vm149 = vcmp.ge.f32.partialorder %v117, 0.0
  %vm150 = vcmp.ge.f32.partialorder %v118, 0.0
  %vm151 = vcmp.ge.f32.partialorder %v119, 0.0
  %vm152 = vcmp.ge.f32.partialorder %v120, 0.0
  %vm153 = vcmp.ge.f32.partialorder %v121, 0.0
  %vm154 = vcmp.ge.f32.partialorder %v122, 0.0
  %vm155 = vcmp.ge.f32.partialorder %v123, 0.0
  %vm156 = vcmp.ge.f32.partialorder %v124, 0.0
  %vm157 = vcmp.ge.f32.partialorder %v125, 0.0
  %vm158 = vcmp.ge.f32.partialorder %v126, 0.0
  %vm159 = vcmp.ge.f32.partialorder %v127, 0.0
  %vm160 = vcmp.ge.f32.partialorder %v128, 0.0
  %vm161 = vcmp.ge.f32.partialorder %v129, 0.0
  %vm162 = vcmp.ge.f32.partialorder %v130, 0.0
  %vm163 = vcmp.ge.f32.partialorder %v131, 0.0
  %vm164 = vcmp.ge.f32.partialorder %v132, 0.0
  %vm165 = vcmp.ge.f32.partialorder %v133, 0.0
  %v166 = vmul.f32 %v102, 0.01
  %v167 = vmul.f32 %v103, 0.01
  %v168 = vmul.f32 %v104, 0.01
  %v169 = vmul.f32 %v105, 0.01
  %v170 = vmul.f32 %v106, 0.01
  %v171 = vmul.f32 %v107, 0.01
  %v172 = vmul.f32 %v108, 0.01
  %v173 = vmul.f32 %v109, 0.01
  %v174 = vmul.f32 %v110, 0.01
  %v175 = vmul.f32 %v111, 0.01
  %v176 = vmul.f32 %v112, 0.01
  %v177 = vmul.f32 %v113, 0.01
  %v178 = vmul.f32 %v114, 0.01
  %v179 = vmul.f32 %v115, 0.01
  %v180 = vmul.f32 %v116, 0.01
  %v181 = vmul.f32 %v117, 0.01
  %v182 = vmul.f32 %v118, 0.01
  %v183 = vmul.f32 %v119, 0.01
  %v184 = vmul.f32 %v120, 0.01
  %v185 = vmul.f32 %v121, 0.01
  %v186 = vmul.f32 %v122, 0.01
  %v187 = vmul.f32 %v123, 0.01
  %v188 = vmul.f32 %v124, 0.01
  %v189 = vmul.f32 %v125, 0.01
  %v190 = vmul.f32 %v126, 0.01
  %v191 = vmul.f32 %v127, 0.01
  %v192 = vmul.f32 %v128, 0.01
  %v193 = vmul.f32 %v129, 0.01
  %v194 = vmul.f32 %v130, 0.01
  %v195 = vmul.f32 %v131, 0.01
  %v196 = vmul.f32 %v132, 0.01
  %v197 = vmul.f32 %v133, 0.01
  %v198 = vsel %vm134, %v102, %v166
  %v199 = vsel %vm135, %v103, %v167
  %v200 = vsel %vm136, %v104, %v168
  %v201 = vsel %vm137, %v105, %v169
  %v202 = vsel %vm138, %v106, %v170
  %v203 = vsel %vm139, %v107, %v171
  %v204 = vsel %vm140, %v108, %v172
  %v205 = vsel %vm141, %v109, %v173
  %v206 = vsel %vm142, %v110, %v174
  %v207 = vsel %vm143, %v111, %v175
  %v208 = vsel %vm144, %v112, %v176
  %v209 = vsel %vm145, %v113, %v177
  %v210 = vsel %vm146, %v114, %v178
  %v211 = vsel %vm147, %v115, %v179
  %v212 = vsel %vm148, %v116, %v180
  %v213 = vsel %vm149, %v117, %v181
  %v214 = vsel %vm150, %v118, %v182
  %v215 = vsel %vm151, %v119, %v183
  %v216 = vsel %vm152, %v120, %v184
  %v217 = vsel %vm153, %v121, %v185
  %v218 = vsel %vm154, %v122, %v186
  %v219 = vsel %vm155, %v123, %v187
  %v220 = vsel %vm156, %v124, %v188
  %v221 = vsel %vm157, %v125, %v189
  %v222 = vsel %vm158, %v126, %v190
  %v223 = vsel %vm159, %v127, %v191
  %v224 = vsel %vm160, %v128, %v192
  %v225 = vsel %vm161, %v129, %v193
  %v226 = vsel %vm162, %v130, %v194
  %v227 = vsel %vm163, %v131, %v195
  %v228 = vsel %vm164, %v132, %v196
  %v229 = vsel %vm165, %v133, %v197
  %v230 = vpack.c.bf16 %v200, %v198
  %v231 = vpack.c.bf16 %v201, %v199
  %v232 = vpack.c.bf16 %v204, %v202
  %v233 = vpack.c.bf16 %v205, %v203
  %v234 = vpack.c.bf16 %v208, %v206
  %v235 = vpack.c.bf16 %v209, %v207
  %v236 = vpack.c.bf16 %v212, %v210
  %v237 = vpack.c.bf16 %v213, %v211
  %v238 = vpack.c.bf16 %v216, %v214
  %v239 = vpack.c.bf16 %v217, %v215
  %v240 = vpack.c.bf16 %v220, %v218
  %v241 = vpack.c.bf16 %v221, %v219
  %v242 = vpack.c.bf16 %v224, %v222
  %v243 = vpack.c.bf16 %v225, %v223
  %v244 = vpack.c.bf16 %v228, %v226
  %v245 = vpack.c.bf16 %v229, %v227
  %v262 = vunpack.c.l.b16 %v230
  %v263 = vunpack.c.l.b16 %v231
  %v264 = vunpack.c.h.b16 %v230
  %v265 = vunpack.c.h.b16 %v231
  %v266 = vunpack.c.l.b16 %v232
  %v267 = vunpack.c.l.b16 %v233
  %v268 = vunpack.c.h.b16 %v232
  %v269 = vunpack.c.h.b16 %v233
  %v270 = vunpack.c.l.b16 %v234
  %v271 = vunpack.c.l.b16 %v235
  %v272 = vunpack.c.h.b16 %v234
  %v273 = vunpack.c.h.b16 %v235
  %v274 = vunpack.c.l.b16 %v236
  %v275 = vunpack.c.l.b16 %v237
  %v276 = vunpack.c.h.b16 %v236
  %v277 = vunpack.c.h.b16 %v237
  %v278 = vunpack.c.l.b16 %v238
  %v279 = vunpack.c.l.b16 %v239
  %v280 = vunpack.c.h.b16 %v238
  %v281 = vunpack.c.h.b16 %v239
  %v282 = vunpack.c.l.b16 %v240
  %v283 = vunpack.c.l.b16 %v241
  %v284 = vunpack.c.h.b16 %v240
  %v285 = vunpack.c.h.b16 %v241
  %v286 = vunpack.c.l.b16 %v242
  %v287 = vunpack.c.l.b16 %v243
  %v288 = vunpack.c.h.b16 %v242
  %v289 = vunpack.c.h.b16 %v243
  %v290 = vunpack.c.l.b16 %v244
  %v291 = vunpack.c.l.b16 %v245
  %v292 = vunpack.c.h.b16 %v244
  %v293 = vunpack.c.h.b16 %v245
  %v294 = vpack.c.b16 %v263, %v262
  %v295 = vpack.c.b16 %v265, %v264
  %v296 = vpack.c.b16 %v267, %v266
  %v297 = vpack.c.b16 %v269, %v268
  %v298 = vpack.c.b16 %v271, %v270
  %v299 = vpack.c.b16 %v273, %v272
  %v300 = vpack.c.b16 %v275, %v274
  %v301 = vpack.c.b16 %v277, %v276
  %v302 = vpack.c.b16 %v279, %v278
  %v303 = vpack.c.b16 %v281, %v280
  %v304 = vpack.c.b16 %v283, %v282
  %v305 = vpack.c.b16 %v285, %v284
  %v306 = vpack.c.b16 %v287, %v286
  %v307 = vpack.c.b16 %v289, %v288
  %v308 = vpack.c.b16 %v291, %v290
  %v309 = vpack.c.b16 %v293, %v292
  %326 = vst [vmem:[%s3] sm:$0xff] %v294
  %327 = vst [vmem:[%s3 + $0x8] sm:$0xff] %v295
  %328 = vst [vmem:[%s3 + $0x10] sm:$0xff] %v296
  %329 = vst [vmem:[%s3 + $0x18] sm:$0xff] %v297
  %330 = vst [vmem:[%s3 + $0x20] sm:$0xff] %v298
  %331 = vst [vmem:[%s3 + $0x28] sm:$0xff] %v299
  %332 = vst [vmem:[%s3 + $0x30] sm:$0xff] %v300
  %333 = vst [vmem:[%s3 + $0x38] sm:$0xff] %v301
  %334 = vst [vmem:[%s3 + $0x40] sm:$0xff] %v302
  %335 = vst [vmem:[%s3 + $0x48] sm:$0xff] %v303
  %336 = vst [vmem:[%s3 + $0x50] sm:$0xff] %v304
  %337 = vst [vmem:[%s3 + $0x58] sm:$0xff] %v305
  %338 = vst [vmem:[%s3 + $0x60] sm:$0xff] %v306
  %339 = vst [vmem:[%s3 + $0x68] sm:$0xff] %v307
  %340 = vst [vmem:[%s3 + $0x70] sm:$0xff] %v308
  %341 = vst [vmem:[%s3 + $0x78] sm:$0xff] %v309
  // Predicated region
  $region14: #{bla_forward.8} parent=0 // pred_check
    _
  $region15: #{bla_forward.8} parent=0 // pred_check_branch
    %343 = sbr.rel (0) target = $region17
  $region16: #{bla_forward.8} parent=0 // pred_region
    _
  $region17: #{bla_forward.8} parent=0 // pred_fallthru
    _
  // Predicated region
  $region18: #{bla_forward.8} parent=0 // pred_check
    _
  $region19: #{bla_forward.8} parent=0 // pred_check_branch
    %345 = sbr.rel (0) target = $region21
  $region20: #{bla_forward.8} parent=0 // pred_region
    _
  $region21: #{bla_forward.8} parent=0 // pred_fallthru
    _

// kernel: bla_forward.7
$region0: #{bla_forward.7}
  #allocation0 [shape = 'u32[]', space=smem, size = 0x4, offset = 0x4, fixed_abs, tag = 'smem constant byte address 0x4 - core index']
  #allocation1 [shape = 'u32[144,128]{1,0:T(1,128)}', space=vmem, size = 0x12000, scoped, tag = 'internal scratch']
  %s0 = inlined_call_operand.vmem [shape: bf16[128,2048], index: 0, kind: input, shape index: {}]
  %s1 = inlined_call_operand.vmem [shape: bf16[2048,256], index: 1, kind: input, shape index: {}]
  %s2 = inlined_call_operand.vmem [shape: f32[128,256], index: 2, kind: output, shape index: {0}]
  %s3 = inlined_call_operand.vmem [shape: f32[1,2,256], index: 3, kind: output, shape index: {1}]
  %4 = xla_tuple %s2, %s3
  %s5 = sld [smem:[#allocation0]]
  $region26: #{bla_forward.7} parent=0
    _
  %s7 = ssub.s32 1, %s5
  %s8 = scalar_select 0, %s7, %s5
  // Predicated region
  $region2: #{bla_forward.7} parent=0 // pred_check
    _
  $region3: #{bla_forward.7} parent=0 // pred_check_branch
    %10 = sbr.rel (0) target = $region5
  $region4: #{bla_forward.7} parent=0 // pred_region
    _
  $region5: #{bla_forward.7} parent=0 // pred_fallthru
    _
  // Predicated region
  $region6: #{bla_forward.7} parent=0 // pred_check
    _
  $region7: #{bla_forward.7} parent=0 // pred_check_branch
    %12 = sbr.rel (0) target = $region9
  $region8: #{bla_forward.7} parent=0 // pred_region
    _
  $region9: #{bla_forward.7} parent=0 // pred_fallthru
    _
  %v13 = vld [vmem:[%s0] sm:$0xff]
  %v14 = vld [vmem:[%s0 + $0x8] sm:$0xff]
  %v15 = vld [vmem:[%s0 + $0x10] sm:$0xff]
  %v16 = vld [vmem:[%s0 + $0x18] sm:$0xff]
  %v17 = vld [vmem:[%s0 + $0x20] sm:$0xff]
  %v18 = vld [vmem:[%s0 + $0x28] sm:$0xff]
  %v19 = vld [vmem:[%s0 + $0x30] sm:$0xff]
  %v20 = vld [vmem:[%s0 + $0x38] sm:$0xff]
  %v21 = vld [vmem:[%s0 + $0x40] sm:$0xff]
  %v22 = vld [vmem:[%s0 + $0x48] sm:$0xff]
  %v23 = vld [vmem:[%s0 + $0x50] sm:$0xff]
  %v24 = vld [vmem:[%s0 + $0x58] sm:$0xff]
  %v25 = vld [vmem:[%s0 + $0x60] sm:$0xff]
  %v26 = vld [vmem:[%s0 + $0x68] sm:$0xff]
  %v27 = vld [vmem:[%s0 + $0x70] sm:$0xff]
  %v28 = vld [vmem:[%s0 + $0x78] sm:$0xff]
  %v29 = vld [vmem:[%s0 + $0x80] sm:$0xff]
  %v30 = vld [vmem:[%s0 + $0x88] sm:$0xff]
  %v31 = vld [vmem:[%s0 + $0x90] sm:$0xff]
  %v32 = vld [vmem:[%s0 + $0x98] sm:$0xff]
  %v33 = vld [vmem:[%s0 + $0xa0] sm:$0xff]
  %v34 = vld [vmem:[%s0 + $0xa8] sm:$0xff]
  %v35 = vld [vmem:[%s0 + $0xb0] sm:$0xff]
  %v36 = vld [vmem:[%s0 + $0xb8] sm:$0xff]
  %v37 = vld [vmem:[%s0 + $0xc0] sm:$0xff]
  %v38 = vld [vmem:[%s0 + $0xc8] sm:$0xff]
  %v39 = vld [vmem:[%s0 + $0xd0] sm:$0xff]
  %v40 = vld [vmem:[%s0 + $0xd8] sm:$0xff]
  %v41 = vld [vmem:[%s0 + $0xe0] sm:$0xff]
  %v42 = vld [vmem:[%s0 + $0xe8] sm:$0xff]
  %v43 = vld [vmem:[%s0 + $0xf0] sm:$0xff]
  %v44 = vld [vmem:[%s0 + $0xf8] sm:$0xff]
  %v45 = vld [vmem:[%s0 + $0x100] sm:$0xff]
  %v46 = vld [vmem:[%s0 + $0x108] sm:$0xff]
  %v47 = vld [vmem:[%s0 + $0x110] sm:$0xff]
  %v48 = vld [vmem:[%s0 + $0x118] sm:$0xff]
  %v49 = vld [vmem:[%s0 + $0x120] sm:$0xff]
  %v50 = vld [vmem:[%s0 + $0x128] sm:$0xff]
  %v51 = vld [vmem:[%s0 + $0x130] sm:$0xff]
  %v52 = vld [vmem:[%s0 + $0x138] sm:$0xff]
  %v53 = vld [vmem:[%s0 + $0x140] sm:$0xff]
  %v54 = vld [vmem:[%s0 + $0x148] sm:$0xff]
  %v55 = vld [vmem:[%s0 + $0x150] sm:$0xff]
  %v56 = vld [vmem:[%s0 + $0x158] sm:$0xff]
  %v57 = vld [vmem:[%s0 + $0x160] sm:$0xff]
  %v58 = vld [vmem:[%s0 + $0x168] sm:$0xff]
  %v59 = vld [vmem:[%s0 + $0x170] sm:$0xff]
  %v60 = vld [vmem:[%s0 + $0x178] sm:$0xff]
  %v61 = vld [vmem:[%s0 + $0x180] sm:$0xff]
  %v62 = vld [vmem:[%s0 + $0x188] sm:$0xff]
  %v63 = vld [vmem:[%s0 + $0x190] sm:$0xff]
  %v64 = vld [vmem:[%s0 + $0x198] sm:$0xff]
  %v65 = vld [vmem:[%s0 + $0x1a0] sm:$0xff]
  %v66 = vld [vmem:[%s0 + $0x1a8] sm:$0xff]
  %v67 = vld [vmem:[%s0 + $0x1b0] sm:$0xff]
  %v68 = vld [vmem:[%s0 + $0x1b8] sm:$0xff]
  %v69 = vld [vmem:[%s0 + $0x1c0] sm:$0xff]
  %v70 = vld [vmem:[%s0 + $0x1c8] sm:$0xff]
  %v71 = vld [vmem:[%s0 + $0x1d0] sm:$0xff]
  %v72 = vld [vmem:[%s0 + $0x1d8] sm:$0xff]
  %v73 = vld [vmem:[%s0 + $0x1e0] sm:$0xff]
  %v74 = vld [vmem:[%s0 + $0x1e8] sm:$0xff]
  %v75 = vld [vmem:[%s0 + $0x1f0] sm:$0xff]
  %v76 = vld [vmem:[%s0 + $0x1f8] sm:$0xff]
  %v77 = vld [vmem:[%s0 + $0x200] sm:$0xff]
  %v78 = vld [vmem:[%s0 + $0x208] sm:$0xff]
  %v79 = vld [vmem:[%s0 + $0x210] sm:$0xff]
  %v80 = vld [vmem:[%s0 + $0x218] sm:$0xff]
  %v81 = vld [vmem:[%s0 + $0x220] sm:$0xff]
  %v82 = vld [vmem:[%s0 + $0x228] sm:$0xff]
  %v83 = vld [vmem:[%s0 + $0x230] sm:$0xff]
  %v84 = vld [vmem:[%s0 + $0x238] sm:$0xff]
  %v85 = vld [vmem:[%s0 + $0x240] sm:$0xff]
  %v86 = vld [vmem:[%s0 + $0x248] sm:$0xff]
  %v87 = vld [vmem:[%s0 + $0x250] sm:$0xff]
  %v88 = vld [vmem:[%s0 + $0x258] sm:$0xff]
  %v89 = vld [vmem:[%s0 + $0x260] sm:$0xff]
  %v90 = vld [vmem:[%s0 + $0x268] sm:$0xff]
  %v91 = vld [vmem:[%s0 + $0x270] sm:$0xff]
  %v92 = vld [vmem:[%s0 + $0x278] sm:$0xff]
  %v93 = vld [vmem:[%s0 + $0x280] sm:$0xff]
  %v94 = vld [vmem:[%s0 + $0x288] sm:$0xff]
  %v95 = vld [vmem:[%s0 + $0x290] sm:$0xff]
  %v96 = vld [vmem:[%s0 + $0x298] sm:$0xff]
  %v97 = vld [vmem:[%s0 + $0x2a0] sm:$0xff]
  %v98 = vld [vmem:[%s0 + $0x2a8] sm:$0xff]
  %v99 = vld [vmem:[%s0 + $0x2b0] sm:$0xff]
  %v100 = vld [vmem:[%s0 + $0x2b8] sm:$0xff]
  %v101 = vld [vmem:[%s0 + $0x2c0] sm:$0xff]
  %v102 = vld [vmem:[%s0 + $0x2c8] sm:$0xff]
  %v103 = vld [vmem:[%s0 + $0x2d0] sm:$0xff]
  %v104 = vld [vmem:[%s0 + $0x2d8] sm:$0xff]
  %v105 = vld [vmem:[%s0 + $0x2e0] sm:$0xff]
  %v106 = vld [vmem:[%s0 + $0x2e8] sm:$0xff]
  %v107 = vld [vmem:[%s0 + $0x2f0] sm:$0xff]
  %v108 = vld [vmem:[%s0 + $0x2f8] sm:$0xff]
  %v109 = vld [vmem:[%s0 + $0x300] sm:$0xff]
  %v110 = vld [vmem:[%s0 + $0x308] sm:$0xff]
  %v111 = vld [vmem:[%s0 + $0x310] sm:$0xff]
  %v112 = vld [vmem:[%s0 + $0x318] sm:$0xff]
  %v113 = vld [vmem:[%s0 + $0x320] sm:$0xff]
  %v114 = vld [vmem:[%s0 + $0x328] sm:$0xff]
  %v115 = vld [vmem:[%s0 + $0x330] sm:$0xff]
  %v116 = vld [vmem:[%s0 + $0x338] sm:$0xff]
  %v117 = vld [vmem:[%s0 + $0x340] sm:$0xff]
  %v118 = vld [vmem:[%s0 + $0x348] sm:$0xff]
  %v119 = vld [vmem:[%s0 + $0x350] sm:$0xff]
  %v120 = vld [vmem:[%s0 + $0x358] sm:$0xff]
  %v121 = vld [vmem:[%s0 + $0x360] sm:$0xff]
  %v122 = vld [vmem:[%s0 + $0x368] sm:$0xff]
  %v123 = vld [vmem:[%s0 + $0x370] sm:$0xff]
  %v124 = vld [vmem:[%s0 + $0x378] sm:$0xff]
  %v125 = vld [vmem:[%s0 + $0x380] sm:$0xff]
  %v126 = vld [vmem:[%s0 + $0x388] sm:$0xff]
  %v127 = vld [vmem:[%s0 + $0x390] sm:$0xff]
  %v128 = vld [vmem:[%s0 + $0x398] sm:$0xff]
  %v129 = vld [vmem:[%s0 + $0x3a0] sm:$0xff]
  %v130 = vld [vmem:[%s0 + $0x3a8] sm:$0xff]
  %v131 = vld [vmem:[%s0 + $0x3b0] sm:$0xff]
  %v132 = vld [vmem:[%s0 + $0x3b8] sm:$0xff]
  %v133 = vld [vmem:[%s0 + $0x3c0] sm:$0xff]
  %v134 = vld [vmem:[%s0 + $0x3c8] sm:$0xff]
  %v135 = vld [vmem:[%s0 + $0x3d0] sm:$0xff]
  %v136 = vld [vmem:[%s0 + $0x3d8] sm:$0xff]
  %v137 = vld [vmem:[%s0 + $0x3e0] sm:$0xff]
  %v138 = vld [vmem:[%s0 + $0x3e8] sm:$0xff]
  %v139 = vld [vmem:[%s0 + $0x3f0] sm:$0xff]
  %v140 = vld [vmem:[%s0 + $0x3f8] sm:$0xff]
  %v141 = vld [vmem:[%s1] sm:$0xff]
  %v142 = vld [vmem:[%s1 + $0x8] sm:$0xff]
  %v143 = vld [vmem:[%s1 + $0x10] sm:$0xff]
  %v144 = vld [vmem:[%s1 + $0x18] sm:$0xff]
  %v145 = vld [vmem:[%s1 + $0x20] sm:$0xff]
  %v146 = vld [vmem:[%s1 + $0x28] sm:$0xff]
  %v147 = vld [vmem:[%s1 + $0x30] sm:$0xff]
  %v148 = vld [vmem:[%s1 + $0x38] sm:$0xff]
  %v149 = vld [vmem:[%s1 + $0x40] sm:$0xff]
  %v150 = vld [vmem:[%s1 + $0x48] sm:$0xff]
  %v151 = vld [vmem:[%s1 + $0x50] sm:$0xff]
  %v152 = vld [vmem:[%s1 + $0x58] sm:$0xff]
  %v153 = vld [vmem:[%s1 + $0x60] sm:$0xff]
  %v154 = vld [vmem:[%s1 + $0x68] sm:$0xff]
  %v155 = vld [vmem:[%s1 + $0x70] sm:$0xff]
  %v156 = vld [vmem:[%s1 + $0x78] sm:$0xff]
  %v157 = vld [vmem:[%s1 + $0x80] sm:$0xff]
  %v158 = vld [vmem:[%s1 + $0x88] sm:$0xff]
  %v159 = vld [vmem:[%s1 + $0x90] sm:$0xff]
  %v160 = vld [vmem:[%s1 + $0x98] sm:$0xff]
  %v161 = vld [vmem:[%s1 + $0xa0] sm:$0xff]
  %v162 = vld [vmem:[%s1 + $0xa8] sm:$0xff]
  %v163 = vld [vmem:[%s1 + $0xb0] sm:$0xff]
  %v164 = vld [vmem:[%s1 + $0xb8] sm:$0xff]
  %v165 = vld [vmem:[%s1 + $0xc0] sm:$0xff]
  %v166 = vld [vmem:[%s1 + $0xc8] sm:$0xff]
  %v167 = vld [vmem:[%s1 + $0xd0] sm:$0xff]
  %v168 = vld [vmem:[%s1 + $0xd8] sm:$0xff]
  %v169 = vld [vmem:[%s1 + $0xe0] sm:$0xff]
  %v170 = vld [vmem:[%s1 + $0xe8] sm:$0xff]
  %v171 = vld [vmem:[%s1 + $0xf0] sm:$0xff]
  %v172 = vld [vmem:[%s1 + $0xf8] sm:$0xff]
  %v173 = vld [vmem:[%s1 + $0x100] sm:$0xff]
  %v174 = vld [vmem:[%s1 + $0x108] sm:$0xff]
  %v175 = vld [vmem:[%s1 + $0x110] sm:$0xff]
  %v176 = vld [vmem:[%s1 + $0x118] sm:$0xff]
  %v177 = vld [vmem:[%s1 + $0x120] sm:$0xff]
  %v178 = vld [vmem:[%s1 + $0x128] sm:$0xff]
  %v179 = vld [vmem:[%s1 + $0x130] sm:$0xff]
  %v180 = vld [vmem:[%s1 + $0x138] sm:$0xff]
  %v181 = vld [vmem:[%s1 + $0x140] sm:$0xff]
  %v182 = vld [vmem:[%s1 + $0x148] sm:$0xff]
  %v183 = vld [vmem:[%s1 + $0x150] sm:$0xff]
  %v184 = vld [vmem:[%s1 + $0x158] sm:$0xff]
  %v185 = vld [vmem:[%s1 + $0x160] sm:$0xff]
  %v186 = vld [vmem:[%s1 + $0x168] sm:$0xff]
  %v187 = vld [vmem:[%s1 + $0x170] sm:$0xff]
  %v188 = vld [vmem:[%s1 + $0x178] sm:$0xff]
  %v189 = vld [vmem:[%s1 + $0x180] sm:$0xff]
  %v190 = vld [vmem:[%s1 + $0x188] sm:$0xff]
  %v191 = vld [vmem:[%s1 + $0x190] sm:$0xff]
  %v192 = vld [vmem:[%s1 + $0x198] sm:$0xff]
  %v193 = vld [vmem:[%s1 + $0x1a0] sm:$0xff]
  %v194 = vld [vmem:[%s1 + $0x1a8] sm:$0xff]
  %v195 = vld [vmem:[%s1 + $0x1b0] sm:$0xff]
  %v196 = vld [vmem:[%s1 + $0x1b8] sm:$0xff]
  %v197 = vld [vmem:[%s1 + $0x1c0] sm:$0xff]
  %v198 = vld [vmem:[%s1 + $0x1c8] sm:$0xff]
  %v199 = vld [vmem:[%s1 + $0x1d0] sm:$0xff]
  %v200 = vld [vmem:[%s1 + $0x1d8] sm:$0xff]
  %v201 = vld [vmem:[%s1 + $0x1e0] sm:$0xff]
  %v202 = vld [vmem:[%s1 + $0x1e8] sm:$0xff]
  %v203 = vld [vmem:[%s1 + $0x1f0] sm:$0xff]
  %v204 = vld [vmem:[%s1 + $0x1f8] sm:$0xff]
  %v205 = vld [vmem:[%s1 + $0x200] sm:$0xff]
  %v206 = vld [vmem:[%s1 + $0x208] sm:$0xff]
  %v207 = vld [vmem:[%s1 + $0x210] sm:$0xff]
  %v208 = vld [vmem:[%s1 + $0x218] sm:$0xff]
  %v209 = vld [vmem:[%s1 + $0x220] sm:$0xff]
  %v210 = vld [vmem:[%s1 + $0x228] sm:$0xff]
  %v211 = vld [vmem:[%s1 + $0x230] sm:$0xff]
  %v212 = vld [vmem:[%s1 + $0x238] sm:$0xff]
  %v213 = vld [vmem:[%s1 + $0x240] sm:$0xff]
  %v214 = vld [vmem:[%s1 + $0x248] sm:$0xff]
  %v215 = vld [vmem:[%s1 + $0x250] sm:$0xff]
  %v216 = vld [vmem:[%s1 + $0x258] sm:$0xff]
  %v217 = vld [vmem:[%s1 + $0x260] sm:$0xff]
  %v218 = vld [vmem:[%s1 + $0x268] sm:$0xff]
  %v219 = vld [vmem:[%s1 + $0x270] sm:$0xff]
  %v220 = vld [vmem:[%s1 + $0x278] sm:$0xff]
  %v221 = vld [vmem:[%s1 + $0x280] sm:$0xff]
  %v222 = vld [vmem:[%s1 + $0x288] sm:$0xff]
  %v223 = vld [vmem:[%s1 + $0x290] sm:$0xff]
  %v224 = vld [vmem:[%s1 + $0x298] sm:$0xff]
  %v225 = vld [vmem:[%s1 + $0x2a0] sm:$0xff]
  %v226 = vld [vmem:[%s1 + $0x2a8] sm:$0xff]
  %v227 = vld [vmem:[%s1 + $0x2b0] sm:$0xff]
  %v228 = vld [vmem:[%s1 + $0x2b8] sm:$0xff]
  %v229 = vld [vmem:[%s1 + $0x2c0] sm:$0xff]
  %v230 = vld [vmem:[%s1 + $0x2c8] sm:$0xff]
  %v231 = vld [vmem:[%s1 + $0x2d0] sm:$0xff]
  %v232 = vld [vmem:[%s1 + $0x2d8] sm:$0xff]
  %v233 = vld [vmem:[%s1 + $0x2e0] sm:$0xff]
  %v234 = vld [vmem:[%s1 + $0x2e8] sm:$0xff]
  %v235 = vld [vmem:[%s1 + $0x2f0] sm:$0xff]
  %v236 = vld [vmem:[%s1 + $0x2f8] sm:$0xff]
  %v237 = vld [vmem:[%s1 + $0x300] sm:$0xff]
  %v238 = vld [vmem:[%s1 + $0x308] sm:$0xff]
  %v239 = vld [vmem:[%s1 + $0x310] sm:$0xff]
  %v240 = vld [vmem:[%s1 + $0x318] sm:$0xff]
  %v241 = vld [vmem:[%s1 + $0x320] sm:$0xff]
  %v242 = vld [vmem:[%s1 + $0x328] sm:$0xff]
  %v243 = vld [vmem:[%s1 + $0x330] sm:$0xff]
  %v244 = vld [vmem:[%s1 + $0x338] sm:$0xff]
  %v245 = vld [vmem:[%s1 + $0x340] sm:$0xff]
  %v246 = vld [vmem:[%s1 + $0x348] sm:$0xff]
  %v247 = vld [vmem:[%s1 + $0x350] sm:$0xff]
  %v248 = vld [vmem:[%s1 + $0x358] sm:$0xff]
  %v249 = vld [vmem:[%s1 + $0x360] sm:$0xff]
  %v250 = vld [vmem:[%s1 + $0x368] sm:$0xff]
  %v251 = vld [vmem:[%s1 + $0x370] sm:$0xff]
  %v252 = vld [vmem:[%s1 + $0x378] sm:$0xff]
  %v253 = vld [vmem:[%s1 + $0x380] sm:$0xff]
  %v254 = vld [vmem:[%s1 + $0x388] sm:$0xff]
  %v255 = vld [vmem:[%s1 + $0x390] sm:$0xff]
  %v256 = vld [vmem:[%s1 + $0x398] sm:$0xff]
  %v257 = vld [vmem:[%s1 + $0x3a0] sm:$0xff]
  %v258 = vld [vmem:[%s1 + $0x3a8] sm:$0xff]
  %v259 = vld [vmem:[%s1 + $0x3b0] sm:$0xff]
  %v260 = vld [vmem:[%s1 + $0x3b8] sm:$0xff]
  %v261 = vld [vmem:[%s1 + $0x3c0] sm:$0xff]
  %v262 = vld [vmem:[%s1 + $0x3c8] sm:$0xff]
  %v263 = vld [vmem:[%s1 + $0x3d0] sm:$0xff]
  %v264 = vld [vmem:[%s1 + $0x3d8] sm:$0xff]
  %v265 = vld [vmem:[%s1 + $0x3e0] sm:$0xff]
  %v266 = vld [vmem:[%s1 + $0x3e8] sm:$0xff]
  %v267 = vld [vmem:[%s1 + $0x3f0] sm:$0xff]
  %v268 = vld [vmem:[%s1 + $0x3f8] sm:$0xff]
  %v269 = vld [vmem:[%s1 + $0x400] sm:$0xff]
  %v270 = vld [vmem:[%s1 + $0x408] sm:$0xff]
  %v271 = vld [vmem:[%s1 + $0x410] sm:$0xff]
  %v272 = vld [vmem:[%s1 + $0x418] sm:$0xff]
  %v273 = vld [vmem:[%s1 + $0x420] sm:$0xff]
  %v274 = vld [vmem:[%s1 + $0x428] sm:$0xff]
  %v275 = vld [vmem:[%s1 + $0x430] sm:$0xff]
  %v276 = vld [vmem:[%s1 + $0x438] sm:$0xff]
  %v277 = vld [vmem:[%s1 + $0x440] sm:$0xff]
  %v278 = vld [vmem:[%s1 + $0x448] sm:$0xff]
  %v279 = vld [vmem:[%s1 + $0x450] sm:$0xff]
  %v280 = vld [vmem:[%s1 + $0x458] sm:$0xff]
  %v281 = vld [vmem:[%s1 + $0x460] sm:$0xff]
  %v282 = vld [vmem:[%s1 + $0x468] sm:$0xff]
  %v283 = vld [vmem:[%s1 + $0x470] sm:$0xff]
  %v284 = vld [vmem:[%s1 + $0x478] sm:$0xff]
  %v285 = vld [vmem:[%s1 + $0x480] sm:$0xff]
  %v286 = vld [vmem:[%s1 + $0x488] sm:$0xff]
  %v287 = vld [vmem:[%s1 + $0x490] sm:$0xff]
  %v288 = vld [vmem:[%s1 + $0x498] sm:$0xff]
  %v289 = vld [vmem:[%s1 + $0x4a0] sm:$0xff]
  %v290 = vld [vmem:[%s1 + $0x4a8] sm:$0xff]
  %v291 = vld [vmem:[%s1 + $0x4b0] sm:$0xff]
  %v292 = vld [vmem:[%s1 + $0x4b8] sm:$0xff]
  %v293 = vld [vmem:[%s1 + $0x4c0] sm:$0xff]
  %v294 = vld [vmem:[%s1 + $0x4c8] sm:$0xff]
  %v295 = vld [vmem:[%s1 + $0x4d0] sm:$0xff]
  %v296 = vld [vmem:[%s1 + $0x4d8] sm:$0xff]
  %v297 = vld [vmem:[%s1 + $0x4e0] sm:$0xff]
  %v298 = vld [vmem:[%s1 + $0x4e8] sm:$0xff]
  %v299 = vld [vmem:[%s1 + $0x4f0] sm:$0xff]
  %v300 = vld [vmem:[%s1 + $0x4f8] sm:$0xff]
  %v301 = vld [vmem:[%s1 + $0x500] sm:$0xff]
  %v302 = vld [vmem:[%s1 + $0x508] sm:$0xff]
  %v303 = vld [vmem:[%s1 + $0x510] sm:$0xff]
  %v304 = vld [vmem:[%s1 + $0x518] sm:$0xff]
  %v305 = vld [vmem:[%s1 + $0x520] sm:$0xff]
  %v306 = vld [vmem:[%s1 + $0x528] sm:$0xff]
  %v307 = vld [vmem:[%s1 + $0x530] sm:$0xff]
  %v308 = vld [vmem:[%s1 + $0x538] sm:$0xff]
  %v309 = vld [vmem:[%s1 + $0x540] sm:$0xff]
  %v310 = vld [vmem:[%s1 + $0x548] sm:$0xff]
  %v311 = vld [vmem:[%s1 + $0x550] sm:$0xff]
  %v312 = vld [vmem:[%s1 + $0x558] sm:$0xff]
  %v313 = vld [vmem:[%s1 + $0x560] sm:$0xff]
  %v314 = vld [vmem:[%s1 + $0x568] sm:$0xff]
  %v315 = vld [vmem:[%s1 + $0x570] sm:$0xff]
  %v316 = vld [vmem:[%s1 + $0x578] sm:$0xff]
  %v317 = vld [vmem:[%s1 + $0x580] sm:$0xff]
  %v318 = vld [vmem:[%s1 + $0x588] sm:$0xff]
  %v319 = vld [vmem:[%s1 + $0x590] sm:$0xff]
  %v320 = vld [vmem:[%s1 + $0x598] sm:$0xff]
  %v321 = vld [vmem:[%s1 + $0x5a0] sm:$0xff]
  %v322 = vld [vmem:[%s1 + $0x5a8] sm:$0xff]
  %v323 = vld [vmem:[%s1 + $0x5b0] sm:$0xff]
  %v324 = vld [vmem:[%s1 + $0x5b8] sm:$0xff]
  %v325 = vld [vmem:[%s1 + $0x5c0] sm:$0xff]
  %v326 = vld [vmem:[%s1 + $0x5c8] sm:$0xff]
  %v327 = vld [vmem:[%s1 + $0x5d0] sm:$0xff]
  %v328 = vld [vmem:[%s1 + $0x5d8] sm:$0xff]
  %v329 = vld [vmem:[%s1 + $0x5e0] sm:$0xff]
  %v330 = vld [vmem:[%s1 + $0x5e8] sm:$0xff]
  %v331 = vld [vmem:[%s1 + $0x5f0] sm:$0xff]
  %v332 = vld [vmem:[%s1 + $0x5f8] sm:$0xff]
  %v333 = vld [vmem:[%s1 + $0x600] sm:$0xff]
  %v334 = vld [vmem:[%s1 + $0x608] sm:$0xff]
  %v335 = vld [vmem:[%s1 + $0x610] sm:$0xff]
  %v336 = vld [vmem:[%s1 + $0x618] sm:$0xff]
  %v337 = vld [vmem:[%s1 + $0x620] sm:$0xff]
  %v338 = vld [vmem:[%s1 + $0x628] sm:$0xff]
  %v339 = vld [vmem:[%s1 + $0x630] sm:$0xff]
  %v340 = vld [vmem:[%s1 + $0x638] sm:$0xff]
  %v341 = vld [vmem:[%s1 + $0x640] sm:$0xff]
  %v342 = vld [vmem:[%s1 + $0x648] sm:$0xff]
  %v343 = vld [vmem:[%s1 + $0x650] sm:$0xff]
  %v344 = vld [vmem:[%s1 + $0x658] sm:$0xff]
  %v345 = vld [vmem:[%s1 + $0x660] sm:$0xff]
  %v346 = vld [vmem:[%s1 + $0x668] sm:$0xff]
  %v347 = vld [vmem:[%s1 + $0x670] sm:$0xff]
  %v348 = vld [vmem:[%s1 + $0x678] sm:$0xff]
  %v349 = vld [vmem:[%s1 + $0x680] sm:$0xff]
  %v350 = vld [vmem:[%s1 + $0x688] sm:$0xff]
  %v351 = vld [vmem:[%s1 + $0x690] sm:$0xff]
  %v352 = vld [vmem:[%s1 + $0x698] sm:$0xff]
  %v353 = vld [vmem:[%s1 + $0x6a0] sm:$0xff]
  %v354 = vld [vmem:[%s1 + $0x6a8] sm:$0xff]
  %v355 = vld [vmem:[%s1 + $0x6b0] sm:$0xff]
  %v356 = vld [vmem:[%s1 + $0x6b8] sm:$0xff]
  %v357 = vld [vmem:[%s1 + $0x6c0] sm:$0xff]
  %v358 = vld [vmem:[%s1 + $0x6c8] sm:$0xff]
  %v359 = vld [vmem:[%s1 + $0x6d0] sm:$0xff]
  %v360 = vld [vmem:[%s1 + $0x6d8] sm:$0xff]
  %v361 = vld [vmem:[%s1 + $0x6e0] sm:$0xff]
  %v362 = vld [vmem:[%s1 + $0x6e8] sm:$0xff]
  %v363 = vld [vmem:[%s1 + $0x6f0] sm:$0xff]
  %v364 = vld [vmem:[%s1 + $0x6f8] sm:$0xff]
  %v365 = vld [vmem:[%s1 + $0x700] sm:$0xff]
  %v366 = vld [vmem:[%s1 + $0x708] sm:$0xff]
  %v367 = vld [vmem:[%s1 + $0x710] sm:$0xff]
  %v368 = vld [vmem:[%s1 + $0x718] sm:$0xff]
  %v369 = vld [vmem:[%s1 + $0x720] sm:$0xff]
  %v370 = vld [vmem:[%s1 + $0x728] sm:$0xff]
  %v371 = vld [vmem:[%s1 + $0x730] sm:$0xff]
  %v372 = vld [vmem:[%s1 + $0x738] sm:$0xff]
  %v373 = vld [vmem:[%s1 + $0x740] sm:$0xff]
  %v374 = vld [vmem:[%s1 + $0x748] sm:$0xff]
  %v375 = vld [vmem:[%s1 + $0x750] sm:$0xff]
  %v376 = vld [vmem:[%s1 + $0x758] sm:$0xff]
  %v377 = vld [vmem:[%s1 + $0x760] sm:$0xff]
  %v378 = vld [vmem:[%s1 + $0x768] sm:$0xff]
  %v379 = vld [vmem:[%s1 + $0x770] sm:$0xff]
  %v380 = vld [vmem:[%s1 + $0x778] sm:$0xff]
  %v381 = vld [vmem:[%s1 + $0x780] sm:$0xff]
  %v382 = vld [vmem:[%s1 + $0x788] sm:$0xff]
  %v383 = vld [vmem:[%s1 + $0x790] sm:$0xff]
  %v384 = vld [vmem:[%s1 + $0x798] sm:$0xff]
  %v385 = vld [vmem:[%s1 + $0x7a0] sm:$0xff]
  %v386 = vld [vmem:[%s1 + $0x7a8] sm:$0xff]
  %v387 = vld [vmem:[%s1 + $0x7b0] sm:$0xff]
  %v388 = vld [vmem:[%s1 + $0x7b8] sm:$0xff]
  %v389 = vld [vmem:[%s1 + $0x7c0] sm:$0xff]
  %v390 = vld [vmem:[%s1 + $0x7c8] sm:$0xff]
  %v391 = vld [vmem:[%s1 + $0x7d0] sm:$0xff]
  %v392 = vld [vmem:[%s1 + $0x7d8] sm:$0xff]
  %v393 = vld [vmem:[%s1 + $0x7e0] sm:$0xff]
  %v394 = vld [vmem:[%s1 + $0x7e8] sm:$0xff]
  %v395 = vld [vmem:[%s1 + $0x7f0] sm:$0xff]
  %v396 = vld [vmem:[%s1 + $0x7f8] sm:$0xff]
  %v525 = vunpack.c.l.b16 %v13
  %v526 = vunpack.c.h.b16 %v13
  %v527 = vunpack.c.l.b16 %v14
  %v528 = vunpack.c.h.b16 %v14
  %v529 = vunpack.c.l.b16 %v15
  %v530 = vunpack.c.h.b16 %v15
  %v531 = vunpack.c.l.b16 %v16
  %v532 = vunpack.c.h.b16 %v16
  %v533 = vunpack.c.l.b16 %v17
  %v534 = vunpack.c.h.b16 %v17
  %v535 = vunpack.c.l.b16 %v18
  %v536 = vunpack.c.h.b16 %v18
  %v537 = vunpack.c.l.b16 %v19
  %v538 = vunpack.c.h.b16 %v19
  %v539 = vunpack.c.l.b16 %v20
  %v540 = vunpack.c.h.b16 %v20
  %v541 = vunpack.c.l.b16 %v21
  %v542 = vunpack.c.h.b16 %v21
  %v543 = vunpack.c.l.b16 %v22
  %v544 = vunpack.c.h.b16 %v22
  %v545 = vunpack.c.l.b16 %v23
  %v546 = vunpack.c.h.b16 %v23
  %v547 = vunpack.c.l.b16 %v24
  %v548 = vunpack.c.h.b16 %v24
  %v549 = vunpack.c.l.b16 %v25
  %v550 = vunpack.c.h.b16 %v25
  %v551 = vunpack.c.l.b16 %v26
  %v552 = vunpack.c.h.b16 %v26
  %v553 = vunpack.c.l.b16 %v27
  %v554 = vunpack.c.h.b16 %v27
  %v555 = vunpack.c.l.b16 %v28
  %v556 = vunpack.c.h.b16 %v28
  %v557 = vunpack.c.l.b16 %v29
  %v558 = vunpack.c.h.b16 %v29
  %v559 = vunpack.c.l.b16 %v30
  %v560 = vunpack.c.h.b16 %v30
  %v561 = vunpack.c.l.b16 %v31
  %v562 = vunpack.c.h.b16 %v31
  %v563 = vunpack.c.l.b16 %v32
  %v564 = vunpack.c.h.b16 %v32
  %v565 = vunpack.c.l.b16 %v33
  %v566 = vunpack.c.h.b16 %v33
  %v567 = vunpack.c.l.b16 %v34
  %v568 = vunpack.c.h.b16 %v34
  %v569 = vunpack.c.l.b16 %v35
  %v570 = vunpack.c.h.b16 %v35
  %v571 = vunpack.c.l.b16 %v36
  %v572 = vunpack.c.h.b16 %v36
  %v573 = vunpack.c.l.b16 %v37
  %v574 = vunpack.c.h.b16 %v37
  %v575 = vunpack.c.l.b16 %v38
  %v576 = vunpack.c.h.b16 %v38
  %v577 = vunpack.c.l.b16 %v39
  %v578 = vunpack.c.h.b16 %v39
  %v579 = vunpack.c.l.b16 %v40
  %v580 = vunpack.c.h.b16 %v40
  %v581 = vunpack.c.l.b16 %v41
  %v582 = vunpack.c.h.b16 %v41
  %v583 = vunpack.c.l.b16 %v42
  %v584 = vunpack.c.h.b16 %v42
  %v585 = vunpack.c.l.b16 %v43
  %v586 = vunpack.c.h.b16 %v43
  %v587 = vunpack.c.l.b16 %v44
  %v588 = vunpack.c.h.b16 %v44
  %v589 = vunpack.c.l.b16 %v45
  %v590 = vunpack.c.h.b16 %v45
  %v591 = vunpack.c.l.b16 %v46
  %v592 = vunpack.c.h.b16 %v46
  %v593 = vunpack.c.l.b16 %v47
  %v594 = vunpack.c.h.b16 %v47
  %v595 = vunpack.c.l.b16 %v48
  %v596 = vunpack.c.h.b16 %v48
  %v597 = vunpack.c.l.b16 %v49
  %v598 = vunpack.c.h.b16 %v49
  %v599 = vunpack.c.l.b16 %v50
  %v600 = vunpack.c.h.b16 %v50
  %v601 = vunpack.c.l.b16 %v51
  %v602 = vunpack.c.h.b16 %v51
  %v603 = vunpack.c.l.b16 %v52
  %v604 = vunpack.c.h.b16 %v52
  %v605 = vunpack.c.l.b16 %v53
  %v606 = vunpack.c.h.b16 %v53
  %v607 = vunpack.c.l.b16 %v54
  %v608 = vunpack.c.h.b16 %v54
  %v609 = vunpack.c.l.b16 %v55
  %v610 = vunpack.c.h.b16 %v55
  %v611 = vunpack.c.l.b16 %v56
  %v612 = vunpack.c.h.b16 %v56
  %v613 = vunpack.c.l.b16 %v57
  %v614 = vunpack.c.h.b16 %v57
  %v615 = vunpack.c.l.b16 %v58
  %v616 = vunpack.c.h.b16 %v58
  %v617 = vunpack.c.l.b16 %v59
  %v618 = vunpack.c.h.b16 %v59
  %v619 = vunpack.c.l.b16 %v60
  %v620 = vunpack.c.h.b16 %v60
  %v621 = vunpack.c.l.b16 %v61
  %v622 = vunpack.c.h.b16 %v61
  %v623 = vunpack.c.l.b16 %v62
  %v624 = vunpack.c.h.b16 %v62
  %v625 = vunpack.c.l.b16 %v63
  %v626 = vunpack.c.h.b16 %v63
  %v627 = vunpack.c.l.b16 %v64
  %v628 = vunpack.c.h.b16 %v64
  %v629 = vunpack.c.l.b16 %v65
  %v630 = vunpack.c.h.b16 %v65
  %v631 = vunpack.c.l.b16 %v66
  %v632 = vunpack.c.h.b16 %v66
  %v633 = vunpack.c.l.b16 %v67
  %v634 = vunpack.c.h.b16 %v67
  %v635 = vunpack.c.l.b16 %v68
  %v636 = vunpack.c.h.b16 %v68
  %v637 = vunpack.c.l.b16 %v69
  %v638 = vunpack.c.h.b16 %v69
  %v639 = vunpack.c.l.b16 %v70
  %v640 = vunpack.c.h.b16 %v70
  %v641 = vunpack.c.l.b16 %v71
  %v642 = vunpack.c.h.b16 %v71
  %v643 = vunpack.c.l.b16 %v72
  %v644 = vunpack.c.h.b16 %v72
  %v645 = vunpack.c.l.b16 %v73
  %v646 = vunpack.c.h.b16 %v73
  %v647 = vunpack.c.l.b16 %v74
  %v648 = vunpack.c.h.b16 %v74
  %v649 = vunpack.c.l.b16 %v75
  %v650 = vunpack.c.h.b16 %v75
  %v651 = vunpack.c.l.b16 %v76
  %v652 = vunpack.c.h.b16 %v76
  %v653 = vunpack.c.l.b16 %v77
  %v654 = vunpack.c.h.b16 %v77
  %v655 = vunpack.c.l.b16 %v78
  %v656 = vunpack.c.h.b16 %v78
  %v657 = vunpack.c.l.b16 %v79
  %v658 = vunpack.c.h.b16 %v79
  %v659 = vunpack.c.l.b16 %v80
  %v660 = vunpack.c.h.b16 %v80
  %v661 = vunpack.c.l.b16 %v81
  %v662 = vunpack.c.h.b16 %v81
  %v663 = vunpack.c.l.b16 %v82
  %v664 = vunpack.c.h.b16 %v82
  %v665 = vunpack.c.l.b16 %v83
  %v666 = vunpack.c.h.b16 %v83
  %v667 = vunpack.c.l.b16 %v84
  %v668 = vunpack.c.h.b16 %v84
  %v669 = vunpack.c.l.b16 %v85
  %v670 = vunpack.c.h.b16 %v85
  %v671 = vunpack.c.l.b16 %v86
  %v672 = vunpack.c.h.b16 %v86
  %v673 = vunpack.c.l.b16 %v87
  %v674 = vunpack.c.h.b16 %v87
  %v675 = vunpack.c.l.b16 %v88
  %v676 = vunpack.c.h.b16 %v88
  %v677 = vunpack.c.l.b16 %v89
  %v678 = vunpack.c.h.b16 %v89
  %v679 = vunpack.c.l.b16 %v90
  %v680 = vunpack.c.h.b16 %v90
  %v681 = vunpack.c.l.b16 %v91
  %v682 = vunpack.c.h.b16 %v91
  %v683 = vunpack.c.l.b16 %v92
  %v684 = vunpack.c.h.b16 %v92
  %v685 = vunpack.c.l.b16 %v93
  %v686 = vunpack.c.h.b16 %v93
  %v687 = vunpack.c.l.b16 %v94
  %v688 = vunpack.c.h.b16 %v94
  %v689 = vunpack.c.l.b16 %v95
  %v690 = vunpack.c.h.b16 %v95
  %v691 = vunpack.c.l.b16 %v96
  %v692 = vunpack.c.h.b16 %v96
  %v693 = vunpack.c.l.b16 %v97
  %v694 = vunpack.c.h.b16 %v97
  %v695 = vunpack.c.l.b16 %v98
  %v696 = vunpack.c.h.b16 %v98
  %v697 = vunpack.c.l.b16 %v99
  %v698 = vunpack.c.h.b16 %v99
  %v699 = vunpack.c.l.b16 %v100
  %v700 = vunpack.c.h.b16 %v100
  %v701 = vunpack.c.l.b16 %v101
  %v702 = vunpack.c.h.b16 %v101
  %v703 = vunpack.c.l.b16 %v102
  %v704 = vunpack.c.h.b16 %v102
  %v705 = vunpack.c.l.b16 %v103
  %v706 = vunpack.c.h.b16 %v103
  %v707 = vunpack.c.l.b16 %v104
  %v708 = vunpack.c.h.b16 %v104
  %v709 = vunpack.c.l.b16 %v105
  %v710 = vunpack.c.h.b16 %v105
  %v711 = vunpack.c.l.b16 %v106
  %v712 = vunpack.c.h.b16 %v106
  %v713 = vunpack.c.l.b16 %v107
  %v714 = vunpack.c.h.b16 %v107
  %v715 = vunpack.c.l.b16 %v108
  %v716 = vunpack.c.h.b16 %v108
  %v717 = vunpack.c.l.b16 %v109
  %v718 = vunpack.c.h.b16 %v109
  %v719 = vunpack.c.l.b16 %v110
  %v720 = vunpack.c.h.b16 %v110
  %v721 = vunpack.c.l.b16 %v111
  %v722 = vunpack.c.h.b16 %v111
  %v723 = vunpack.c.l.b16 %v112
  %v724 = vunpack.c.h.b16 %v112
  %v725 = vunpack.c.l.b16 %v113
  %v726 = vunpack.c.h.b16 %v113
  %v727 = vunpack.c.l.b16 %v114
  %v728 = vunpack.c.h.b16 %v114
  %v729 = vunpack.c.l.b16 %v115
  %v730 = vunpack.c.h.b16 %v115
  %v731 = vunpack.c.l.b16 %v116
  %v732 = vunpack.c.h.b16 %v116
  %v733 = vunpack.c.l.b16 %v117
  %v734 = vunpack.c.h.b16 %v117
  %v735 = vunpack.c.l.b16 %v118
  %v736 = vunpack.c.h.b16 %v118
  %v737 = vunpack.c.l.b16 %v119
  %v738 = vunpack.c.h.b16 %v119
  %v739 = vunpack.c.l.b16 %v120
  %v740 = vunpack.c.h.b16 %v120
  %v741 = vunpack.c.l.b16 %v121
  %v742 = vunpack.c.h.b16 %v121
  %v743 = vunpack.c.l.b16 %v122
  %v744 = vunpack.c.h.b16 %v122
  %v745 = vunpack.c.l.b16 %v123
  %v746 = vunpack.c.h.b16 %v123
  %v747 = vunpack.c.l.b16 %v124
  %v748 = vunpack.c.h.b16 %v124
  %v749 = vunpack.c.l.b16 %v125
  %v750 = vunpack.c.h.b16 %v125
  %v751 = vunpack.c.l.b16 %v126
  %v752 = vunpack.c.h.b16 %v126
  %v753 = vunpack.c.l.b16 %v127
  %v754 = vunpack.c.h.b16 %v127
  %v755 = vunpack.c.l.b16 %v128
  %v756 = vunpack.c.h.b16 %v128
  %v757 = vunpack.c.l.b16 %v129
  %v758 = vunpack.c.h.b16 %v129
  %v759 = vunpack.c.l.b16 %v130
  %v760 = vunpack.c.h.b16 %v130
  %v761 = vunpack.c.l.b16 %v131
  %v762 = vunpack.c.h.b16 %v131
  %v763 = vunpack.c.l.b16 %v132
  %v764 = vunpack.c.h.b16 %v132
  %v765 = vunpack.c.l.b16 %v133
  %v766 = vunpack.c.h.b16 %v133
  %v767 = vunpack.c.l.b16 %v134
  %v768 = vunpack.c.h.b16 %v134
  %v769 = vunpack.c.l.b16 %v135
  %v770 = vunpack.c.h.b16 %v135
  %v771 = vunpack.c.l.b16 %v136
  %v772 = vunpack.c.h.b16 %v136
  %v773 = vunpack.c.l.b16 %v137
  %v774 = vunpack.c.h.b16 %v137
  %v775 = vunpack.c.l.b16 %v138
  %v776 = vunpack.c.h.b16 %v138
  %v777 = vunpack.c.l.b16 %v139
  %v778 = vunpack.c.h.b16 %v139
  %v779 = vunpack.c.l.b16 %v140
  %v780 = vunpack.c.h.b16 %v140
  %v781 = vpack.c.b16 %v541, %v525
  %v782 = vpack.c.b16 %v542, %v526
  %v783 = vpack.c.b16 %v543, %v527
  %v784 = vpack.c.b16 %v544, %v528
  %v785 = vpack.c.b16 %v545, %v529
  %v786 = vpack.c.b16 %v546, %v530
  %v787 = vpack.c.b16 %v547, %v531
  %v788 = vpack.c.b16 %v548, %v532
  %v789 = vpack.c.b16 %v549, %v533
  %v790 = vpack.c.b16 %v550, %v534
  %v791 = vpack.c.b16 %v551, %v535
  %v792 = vpack.c.b16 %v552, %v536
  %v793 = vpack.c.b16 %v553, %v537
  %v794 = vpack.c.b16 %v554, %v538
  %v795 = vpack.c.b16 %v555, %v539
  %v796 = vpack.c.b16 %v556, %v540
  %v797 = vpack.c.b16 %v573, %v557
  %v798 = vpack.c.b16 %v574, %v558
  %v799 = vpack.c.b16 %v575, %v559
  %v800 = vpack.c.b16 %v576, %v560
  %v801 = vpack.c.b16 %v577, %v561
  %v802 = vpack.c.b16 %v578, %v562
  %v803 = vpack.c.b16 %v579, %v563
  %v804 = vpack.c.b16 %v580, %v564
  %v805 = vpack.c.b16 %v581, %v565
  %v806 = vpack.c.b16 %v582, %v566
  %v807 = vpack.c.b16 %v583, %v567
  %v808 = vpack.c.b16 %v584, %v568
  %v809 = vpack.c.b16 %v585, %v569
  %v810 = vpack.c.b16 %v586, %v570
  %v811 = vpack.c.b16 %v587, %v571
  %v812 = vpack.c.b16 %v588, %v572
  %v813 = vpack.c.b16 %v605, %v589
  %v814 = vpack.c.b16 %v606, %v590
  %v815 = vpack.c.b16 %v607, %v591
  %v816 = vpack.c.b16 %v608, %v592
  %v817 = vpack.c.b16 %v609, %v593
  %v818 = vpack.c.b16 %v610, %v594
  %v819 = vpack.c.b16 %v611, %v595
  %v820 = vpack.c.b16 %v612, %v596
  %v821 = vpack.c.b16 %v613, %v597
  %v822 = vpack.c.b16 %v614, %v598
  %v823 = vpack.c.b16 %v615, %v599
  %v824 = vpack.c.b16 %v616, %v600
  %v825 = vpack.c.b16 %v617, %v601
  %v826 = vpack.c.b16 %v618, %v602
  %v827 = vpack.c.b16 %v619, %v603
  %v828 = vpack.c.b16 %v620, %v604
  %v829 = vpack.c.b16 %v637, %v621
  %v830 = vpack.c.b16 %v638, %v622
  %v831 = vpack.c.b16 %v639, %v623
  %v832 = vpack.c.b16 %v640, %v624
  %v833 = vpack.c.b16 %v641, %v625
  %v834 = vpack.c.b16 %v642, %v626
  %v835 = vpack.c.b16 %v643, %v627
  %v836 = vpack.c.b16 %v644, %v628
  %v837 = vpack.c.b16 %v645, %v629
  %v838 = vpack.c.b16 %v646, %v630
  %v839 = vpack.c.b16 %v647, %v631
  %v840 = vpack.c.b16 %v648, %v632
  %v841 = vpack.c.b16 %v649, %v633
  %v842 = vpack.c.b16 %v650, %v634
  %v843 = vpack.c.b16 %v651, %v635
  %v844 = vpack.c.b16 %v652, %v636
  %v845 = vpack.c.b16 %v669, %v653
  %v846 = vpack.c.b16 %v670, %v654
  %v847 = vpack.c.b16 %v671, %v655
  %v848 = vpack.c.b16 %v672, %v656
  %v849 = vpack.c.b16 %v673, %v657
  %v850 = vpack.c.b16 %v674, %v658
  %v851 = vpack.c.b16 %v675, %v659
  %v852 = vpack.c.b16 %v676, %v660
  %v853 = vpack.c.b16 %v677, %v661
  %v854 = vpack.c.b16 %v678, %v662
  %v855 = vpack.c.b16 %v679, %v663
  %v856 = vpack.c.b16 %v680, %v664
  %v857 = vpack.c.b16 %v681, %v665
  %v858 = vpack.c.b16 %v682, %v666
  %v859 = vpack.c.b16 %v683, %v667
  %v860 = vpack.c.b16 %v684, %v668
  %v861 = vpack.c.b16 %v701, %v685
  %v862 = vpack.c.b16 %v702, %v686
  %v863 = vpack.c.b16 %v703, %v687
  %v864 = vpack.c.b16 %v704, %v688
  %v865 = vpack.c.b16 %v705, %v689
  %v866 = vpack.c.b16 %v706, %v690
  %v867 = vpack.c.b16 %v707, %v691
  %v868 = vpack.c.b16 %v708, %v692
  %v869 = vpack.c.b16 %v709, %v693
  %v870 = vpack.c.b16 %v710, %v694
  %v871 = vpack.c.b16 %v711, %v695
  %v872 = vpack.c.b16 %v712, %v696
  %v873 = vpack.c.b16 %v713, %v697
  %v874 = vpack.c.b16 %v714, %v698
  %v875 = vpack.c.b16 %v715, %v699
  %v876 = vpack.c.b16 %v716, %v700
  %v877 = vpack.c.b16 %v733, %v717
  %v878 = vpack.c.b16 %v734, %v718
  %v879 = vpack.c.b16 %v735, %v719
  %v880 = vpack.c.b16 %v736, %v720
  %v881 = vpack.c.b16 %v737, %v721
  %v882 = vpack.c.b16 %v738, %v722
  %v883 = vpack.c.b16 %v739, %v723
  %v884 = vpack.c.b16 %v740, %v724
  %v885 = vpack.c.b16 %v741, %v725
  %v886 = vpack.c.b16 %v742, %v726
  %v887 = vpack.c.b16 %v743, %v727
  %v888 = vpack.c.b16 %v744, %v728
  %v889 = vpack.c.b16 %v745, %v729
  %v890 = vpack.c.b16 %v746, %v730
  %v891 = vpack.c.b16 %v747, %v731
  %v892 = vpack.c.b16 %v748, %v732
  %v893 = vpack.c.b16 %v765, %v749
  %v894 = vpack.c.b16 %v766, %v750
  %v895 = vpack.c.b16 %v767, %v751
  %v896 = vpack.c.b16 %v768, %v752
  %v897 = vpack.c.b16 %v769, %v753
  %v898 = vpack.c.b16 %v770, %v754
  %v899 = vpack.c.b16 %v771, %v755
  %v900 = vpack.c.b16 %v772, %v756
  %v901 = vpack.c.b16 %v773, %v757
  %v902 = vpack.c.b16 %v774, %v758
  %v903 = vpack.c.b16 %v775, %v759
  %v904 = vpack.c.b16 %v776, %v760
  %v905 = vpack.c.b16 %v777, %v761
  %v906 = vpack.c.b16 %v778, %v762
  %v907 = vpack.c.b16 %v779, %v763
  %v908 = vpack.c.b16 %v780, %v764
  %v1293 = vunpack.c.l.b16 %v141
  %v1294 = vunpack.c.h.b16 %v141
  %v1295 = vunpack.c.l.b16 %v142
  %v1296 = vunpack.c.h.b16 %v142
  %v1297 = vunpack.c.l.b16 %v143
  %v1298 = vunpack.c.h.b16 %v143
  %v1299 = vunpack.c.l.b16 %v144
  %v1300 = vunpack.c.h.b16 %v144
  %v1301 = vunpack.c.l.b16 %v145
  %v1302 = vunpack.c.h.b16 %v145
  %v1303 = vunpack.c.l.b16 %v146
  %v1304 = vunpack.c.h.b16 %v146
  %v1305 = vunpack.c.l.b16 %v147
  %v1306 = vunpack.c.h.b16 %v147
  %v1307 = vunpack.c.l.b16 %v148
  %v1308 = vunpack.c.h.b16 %v148
  %v1309 = vunpack.c.l.b16 %v149
  %v1310 = vunpack.c.h.b16 %v149
  %v1311 = vunpack.c.l.b16 %v150
  %v1312 = vunpack.c.h.b16 %v150
  %v1313 = vunpack.c.l.b16 %v151
  %v1314 = vunpack.c.h.b16 %v151
  %v1315 = vunpack.c.l.b16 %v152
  %v1316 = vunpack.c.h.b16 %v152
  %v1317 = vunpack.c.l.b16 %v153
  %v1318 = vunpack.c.h.b16 %v153
  %v1319 = vunpack.c.l.b16 %v154
  %v1320 = vunpack.c.h.b16 %v154
  %v1321 = vunpack.c.l.b16 %v155
  %v1322 = vunpack.c.h.b16 %v155
  %v1323 = vunpack.c.l.b16 %v156
  %v1324 = vunpack.c.h.b16 %v156
  %v1325 = vunpack.c.l.b16 %v157
  %v1326 = vunpack.c.h.b16 %v157
  %v1327 = vunpack.c.l.b16 %v158
  %v1328 = vunpack.c.h.b16 %v158
  %v1329 = vunpack.c.l.b16 %v159
  %v1330 = vunpack.c.h.b16 %v159
  %v1331 = vunpack.c.l.b16 %v160
  %v1332 = vunpack.c.h.b16 %v160
  %v1333 = vunpack.c.l.b16 %v161
  %v1334 = vunpack.c.h.b16 %v161
  %v1335 = vunpack.c.l.b16 %v162
  %v1336 = vunpack.c.h.b16 %v162
  %v1337 = vunpack.c.l.b16 %v163
  %v1338 = vunpack.c.h.b16 %v163
  %v1339 = vunpack.c.l.b16 %v164
  %v1340 = vunpack.c.h.b16 %v164
  %v1341 = vunpack.c.l.b16 %v165
  %v1342 = vunpack.c.h.b16 %v165
  %v1343 = vunpack.c.l.b16 %v166
  %v1344 = vunpack.c.h.b16 %v166
  %v1345 = vunpack.c.l.b16 %v167
  %v1346 = vunpack.c.h.b16 %v167
  %v1347 = vunpack.c.l.b16 %v168
  %v1348 = vunpack.c.h.b16 %v168
  %v1349 = vunpack.c.l.b16 %v169
  %v1350 = vunpack.c.h.b16 %v169
  %v1351 = vunpack.c.l.b16 %v170
  %v1352 = vunpack.c.h.b16 %v170
  %v1353 = vunpack.c.l.b16 %v171
  %v1354 = vunpack.c.h.b16 %v171
  %v1355 = vunpack.c.l.b16 %v172
  %v1356 = vunpack.c.h.b16 %v172
  %v1357 = vunpack.c.l.b16 %v173
  %v1358 = vunpack.c.h.b16 %v173
  %v1359 = vunpack.c.l.b16 %v174
  %v1360 = vunpack.c.h.b16 %v174
  %v1361 = vunpack.c.l.b16 %v175
  %v1362 = vunpack.c.h.b16 %v175
  %v1363 = vunpack.c.l.b16 %v176
  %v1364 = vunpack.c.h.b16 %v176
  %v1365 = vunpack.c.l.b16 %v177
  %v1366 = vunpack.c.h.b16 %v177
  %v1367 = vunpack.c.l.b16 %v178
  %v1368 = vunpack.c.h.b16 %v178
  %v1369 = vunpack.c.l.b16 %v179
  %v1370 = vunpack.c.h.b16 %v179
  %v1371 = vunpack.c.l.b16 %v180
  %v1372 = vunpack.c.h.b16 %v180
  %v1373 = vunpack.c.l.b16 %v181
  %v1374 = vunpack.c.h.b16 %v181
  %v1375 = vunpack.c.l.b16 %v182
  %v1376 = vunpack.c.h.b16 %v182
  %v1377 = vunpack.c.l.b16 %v183
  %v1378 = vunpack.c.h.b16 %v183
  %v1379 = vunpack.c.l.b16 %v184
  %v1380 = vunpack.c.h.b16 %v184
  %v1381 = vunpack.c.l.b16 %v185
  %v1382 = vunpack.c.h.b16 %v185
  %v1383 = vunpack.c.l.b16 %v186
  %v1384 = vunpack.c.h.b16 %v186
  %v1385 = vunpack.c.l.b16 %v187
  %v1386 = vunpack.c.h.b16 %v187
  %v1387 = vunpack.c.l.b16 %v188
  %v1388 = vunpack.c.h.b16 %v188
  %v1389 = vunpack.c.l.b16 %v189
  %v1390 = vunpack.c.h.b16 %v189
  %v1391 = vunpack.c.l.b16 %v190
  %v1392 = vunpack.c.h.b16 %v190
  %v1393 = vunpack.c.l.b16 %v191
  %v1394 = vunpack.c.h.b16 %v191
  %v1395 = vunpack.c.l.b16 %v192
  %v1396 = vunpack.c.h.b16 %v192
  %v1397 = vunpack.c.l.b16 %v193
  %v1398 = vunpack.c.h.b16 %v193
  %v1399 = vunpack.c.l.b16 %v194
  %v1400 = vunpack.c.h.b16 %v194
  %v1401 = vunpack.c.l.b16 %v195
  %v1402 = vunpack.c.h.b16 %v195
  %v1403 = vunpack.c.l.b16 %v196
  %v1404 = vunpack.c.h.b16 %v196
  %v1405 = vunpack.c.l.b16 %v197
  %v1406 = vunpack.c.h.b16 %v197
  %v1407 = vunpack.c.l.b16 %v198
  %v1408 = vunpack.c.h.b16 %v198
  %v1409 = vunpack.c.l.b16 %v199
  %v1410 = vunpack.c.h.b16 %v199
  %v1411 = vunpack.c.l.b16 %v200
  %v1412 = vunpack.c.h.b16 %v200
  %v1413 = vunpack.c.l.b16 %v201
  %v1414 = vunpack.c.h.b16 %v201
  %v1415 = vunpack.c.l.b16 %v202
  %v1416 = vunpack.c.h.b16 %v202
  %v1417 = vunpack.c.l.b16 %v203
  %v1418 = vunpack.c.h.b16 %v203
  %v1419 = vunpack.c.l.b16 %v204
  %v1420 = vunpack.c.h.b16 %v204
  %v1421 = vunpack.c.l.b16 %v205
  %v1422 = vunpack.c.h.b16 %v205
  %v1423 = vunpack.c.l.b16 %v206
  %v1424 = vunpack.c.h.b16 %v206
  %v1425 = vunpack.c.l.b16 %v207
  %v1426 = vunpack.c.h.b16 %v207
  %v1427 = vunpack.c.l.b16 %v208
  %v1428 = vunpack.c.h.b16 %v208
  %v1429 = vunpack.c.l.b16 %v209
  %v1430 = vunpack.c.h.b16 %v209
  %v1431 = vunpack.c.l.b16 %v210
  %v1432 = vunpack.c.h.b16 %v210
  %v1433 = vunpack.c.l.b16 %v211
  %v1434 = vunpack.c.h.b16 %v211
  %v1435 = vunpack.c.l.b16 %v212
  %v1436 = vunpack.c.h.b16 %v212
  %v1437 = vunpack.c.l.b16 %v213
  %v1438 = vunpack.c.h.b16 %v213
  %v1439 = vunpack.c.l.b16 %v214
  %v1440 = vunpack.c.h.b16 %v214
  %v1441 = vunpack.c.l.b16 %v215
  %v1442 = vunpack.c.h.b16 %v215
  %v1443 = vunpack.c.l.b16 %v216
  %v1444 = vunpack.c.h.b16 %v216
  %v1445 = vunpack.c.l.b16 %v217
  %v1446 = vunpack.c.h.b16 %v217
  %v1447 = vunpack.c.l.b16 %v218
  %v1448 = vunpack.c.h.b16 %v218
  %v1449 = vunpack.c.l.b16 %v219
  %v1450 = vunpack.c.h.b16 %v219
  %v1451 = vunpack.c.l.b16 %v220
  %v1452 = vunpack.c.h.b16 %v220
  %v1453 = vunpack.c.l.b16 %v221
  %v1454 = vunpack.c.h.b16 %v221
  %v1455 = vunpack.c.l.b16 %v222
  %v1456 = vunpack.c.h.b16 %v222
  %v1457 = vunpack.c.l.b16 %v223
  %v1458 = vunpack.c.h.b16 %v223
  %v1459 = vunpack.c.l.b16 %v224
  %v1460 = vunpack.c.h.b16 %v224
  %v1461 = vunpack.c.l.b16 %v225
  %v1462 = vunpack.c.h.b16 %v225
  %v1463 = vunpack.c.l.b16 %v226
  %v1464 = vunpack.c.h.b16 %v226
  %v1465 = vunpack.c.l.b16 %v227
  %v1466 = vunpack.c.h.b16 %v227
  %v1467 = vunpack.c.l.b16 %v228
  %v1468 = vunpack.c.h.b16 %v228
  %v1469 = vunpack.c.l.b16 %v229
  %v1470 = vunpack.c.h.b16 %v229
  %v1471 = vunpack.c.l.b16 %v230
  %v1472 = vunpack.c.h.b16 %v230
  %v1473 = vunpack.c.l.b16 %v231
  %v1474 = vunpack.c.h.b16 %v231
  %v1475 = vunpack.c.l.b16 %v232
  %v1476 = vunpack.c.h.b16 %v232
  %v1477 = vunpack.c.l.b16 %v233
  %v1478 = vunpack.c.h.b16 %v233
  %v1479 = vunpack.c.l.b16 %v234
  %v1480 = vunpack.c.h.b16 %v234
  %v1481 = vunpack.c.l.b16 %v235
  %v1482 = vunpack.c.h.b16 %v235
  %v1483 = vunpack.c.l.b16 %v236
  %v1484 = vunpack.c.h.b16 %v236
  %v1485 = vunpack.c.l.b16 %v237
  %v1486 = vunpack.c.h.b16 %v237
  %v1487 = vunpack.c.l.b16 %v238
  %v1488 = vunpack.c.h.b16 %v238
  %v1489 = vunpack.c.l.b16 %v239
  %v1490 = vunpack.c.h.b16 %v239
  %v1491 = vunpack.c.l.b16 %v240
  %v1492 = vunpack.c.h.b16 %v240
  %v1493 = vunpack.c.l.b16 %v241
  %v1494 = vunpack.c.h.b16 %v241
  %v1495 = vunpack.c.l.b16 %v242
  %v1496 = vunpack.c.h.b16 %v242
  %v1497 = vunpack.c.l.b16 %v243
  %v1498 = vunpack.c.h.b16 %v243
  %v1499 = vunpack.c.l.b16 %v244
  %v1500 = vunpack.c.h.b16 %v244
  %v1501 = vunpack.c.l.b16 %v245
  %v1502 = vunpack.c.h.b16 %v245
  %v1503 = vunpack.c.l.b16 %v246
  %v1504 = vunpack.c.h.b16 %v246
  %v1505 = vunpack.c.l.b16 %v247
  %v1506 = vunpack.c.h.b16 %v247
  %v1507 = vunpack.c.l.b16 %v248
  %v1508 = vunpack.c.h.b16 %v248
  %v1509 = vunpack.c.l.b16 %v249
  %v1510 = vunpack.c.h.b16 %v249
  %v1511 = vunpack.c.l.b16 %v250
  %v1512 = vunpack.c.h.b16 %v250
  %v1513 = vunpack.c.l.b16 %v251
  %v1514 = vunpack.c.h.b16 %v251
  %v1515 = vunpack.c.l.b16 %v252
  %v1516 = vunpack.c.h.b16 %v252
  %v1517 = vunpack.c.l.b16 %v253
  %v1518 = vunpack.c.h.b16 %v253
  %v1519 = vunpack.c.l.b16 %v254
  %v1520 = vunpack.c.h.b16 %v254
  %v1521 = vunpack.c.l.b16 %v255
  %v1522 = vunpack.c.h.b16 %v255
  %v1523 = vunpack.c.l.b16 %v256
  %v1524 = vunpack.c.h.b16 %v256
  %v1525 = vunpack.c.l.b16 %v257
  %v1526 = vunpack.c.h.b16 %v257
  %v1527 = vunpack.c.l.b16 %v258
  %v1528 = vunpack.c.h.b16 %v258
  %v1529 = vunpack.c.l.b16 %v259
  %v1530 = vunpack.c.h.b16 %v259
  %v1531 = vunpack.c.l.b16 %v260
  %v1532 = vunpack.c.h.b16 %v260
  %v1533 = vunpack.c.l.b16 %v261
  %v1534 = vunpack.c.h.b16 %v261
  %v1535 = vunpack.c.l.b16 %v262
  %v1536 = vunpack.c.h.b16 %v262
  %v1537 = vunpack.c.l.b16 %v263
  %v1538 = vunpack.c.h.b16 %v263
  %v1539 = vunpack.c.l.b16 %v264
  %v1540 = vunpack.c.h.b16 %v264
  %v1541 = vunpack.c.l.b16 %v265
  %v1542 = vunpack.c.h.b16 %v265
  %v1543 = vunpack.c.l.b16 %v266
  %v1544 = vunpack.c.h.b16 %v266
  %v1545 = vunpack.c.l.b16 %v267
  %v1546 = vunpack.c.h.b16 %v267
  %v1547 = vunpack.c.l.b16 %v268
  %v1548 = vunpack.c.h.b16 %v268
  %v1549 = vunpack.c.l.b16 %v269
  %v1550 = vunpack.c.h.b16 %v269
  %v1551 = vunpack.c.l.b16 %v270
  %v1552 = vunpack.c.h.b16 %v270
  %v1553 = vunpack.c.l.b16 %v271
  %v1554 = vunpack.c.h.b16 %v271
  %v1555 = vunpack.c.l.b16 %v272
  %v1556 = vunpack.c.h.b16 %v272
  %v1557 = vunpack.c.l.b16 %v273
  %v1558 = vunpack.c.h.b16 %v273
  %v1559 = vunpack.c.l.b16 %v274
  %v1560 = vunpack.c.h.b16 %v274
  %v1561 = vunpack.c.l.b16 %v275
  %v1562 = vunpack.c.h.b16 %v275
  %v1563 = vunpack.c.l.b16 %v276
  %v1564 = vunpack.c.h.b16 %v276
  %v1565 = vunpack.c.l.b16 %v277
  %v1566 = vunpack.c.h.b16 %v277
  %v1567 = vunpack.c.l.b16 %v278
  %v1568 = vunpack.c.h.b16 %v278
  %v1569 = vunpack.c.l.b16 %v279
  %v1570 = vunpack.c.h.b16 %v279
  %v1571 = vunpack.c.l.b16 %v280
  %v1572 = vunpack.c.h.b16 %v280
  %v1573 = vunpack.c.l.b16 %v281
  %v1574 = vunpack.c.h.b16 %v281
  %v1575 = vunpack.c.l.b16 %v282
  %v1576 = vunpack.c.h.b16 %v282
  %v1577 = vunpack.c.l.b16 %v283
  %v1578 = vunpack.c.h.b16 %v283
  %v1579 = vunpack.c.l.b16 %v284
  %v1580 = vunpack.c.h.b16 %v284
  %v1581 = vunpack.c.l.b16 %v285
  %v1582 = vunpack.c.h.b16 %v285
  %v1583 = vunpack.c.l.b16 %v286
  %v1584 = vunpack.c.h.b16 %v286
  %v1585 = vunpack.c.l.b16 %v287
  %v1586 = vunpack.c.h.b16 %v287
  %v1587 = vunpack.c.l.b16 %v288
  %v1588 = vunpack.c.h.b16 %v288
  %v1589 = vunpack.c.l.b16 %v289
  %v1590 = vunpack.c.h.b16 %v289
  %v1591 = vunpack.c.l.b16 %v290
  %v1592 = vunpack.c.h.b16 %v290
  %v1593 = vunpack.c.l.b16 %v291
  %v1594 = vunpack.c.h.b16 %v291
  %v1595 = vunpack.c.l.b16 %v292
  %v1596 = vunpack.c.h.b16 %v292
  %v1597 = vunpack.c.l.b16 %v293
  %v1598 = vunpack.c.h.b16 %v293
  %v1599 = vunpack.c.l.b16 %v294
  %v1600 = vunpack.c.h.b16 %v294
  %v1601 = vunpack.c.l.b16 %v295
  %v1602 = vunpack.c.h.b16 %v295
  %v1603 = vunpack.c.l.b16 %v296
  %v1604 = vunpack.c.h.b16 %v296
  %v1605 = vunpack.c.l.b16 %v297
  %v1606 = vunpack.c.h.b16 %v297
  %v1607 = vunpack.c.l.b16 %v298
  %v1608 = vunpack.c.h.b16 %v298
  %v1609 = vunpack.c.l.b16 %v299
  %v1610 = vunpack.c.h.b16 %v299
  %v1611 = vunpack.c.l.b16 %v300
  %v1612 = vunpack.c.h.b16 %v300
  %v1613 = vunpack.c.l.b16 %v301
  %v1614 = vunpack.c.h.b16 %v301
  %v1615 = vunpack.c.l.b16 %v302
  %v1616 = vunpack.c.h.b16 %v302
  %v1617 = vunpack.c.l.b16 %v303
  %v1618 = vunpack.c.h.b16 %v303
  %v1619 = vunpack.c.l.b16 %v304
  %v1620 = vunpack.c.h.b16 %v304
  %v1621 = vunpack.c.l.b16 %v305
  %v1622 = vunpack.c.h.b16 %v305
  %v1623 = vunpack.c.l.b16 %v306
  %v1624 = vunpack.c.h.b16 %v306
  %v1625 = vunpack.c.l.b16 %v307
  %v1626 = vunpack.c.h.b16 %v307
  %v1627 = vunpack.c.l.b16 %v308
  %v1628 = vunpack.c.h.b16 %v308
  %v1629 = vunpack.c.l.b16 %v309
  %v1630 = vunpack.c.h.b16 %v309
  %v1631 = vunpack.c.l.b16 %v310
  %v1632 = vunpack.c.h.b16 %v310
  %v1633 = vunpack.c.l.b16 %v311
  %v1634 = vunpack.c.h.b16 %v311
  %v1635 = vunpack.c.l.b16 %v312
  %v1636 = vunpack.c.h.b16 %v312
  %v1637 = vunpack.c.l.b16 %v313
  %v1638 = vunpack.c.h.b16 %v313
  %v1639 = vunpack.c.l.b16 %v314
  %v1640 = vunpack.c.h.b16 %v314
  %v1641 = vunpack.c.l.b16 %v315
  %v1642 = vunpack.c.h.b16 %v315
  %v1643 = vunpack.c.l.b16 %v316
  %v1644 = vunpack.c.h.b16 %v316
  %v1645 = vunpack.c.l.b16 %v317
  %v1646 = vunpack.c.h.b16 %v317
  %v1647 = vunpack.c.l.b16 %v318
  %v1648 = vunpack.c.h.b16 %v318
  %v1649 = vunpack.c.l.b16 %v319
  %v1650 = vunpack.c.h.b16 %v319
  %v1651 = vunpack.c.l.b16 %v320
  %v1652 = vunpack.c.h.b16 %v320
  %v1653 = vunpack.c.l.b16 %v321
  %v1654 = vunpack.c.h.b16 %v321
  %v1655 = vunpack.c.l.b16 %v322
  %v1656 = vunpack.c.h.b16 %v322
  %v1657 = vunpack.c.l.b16 %v323
  %v1658 = vunpack.c.h.b16 %v323
  %v1659 = vunpack.c.l.b16 %v324
  %v1660 = vunpack.c.h.b16 %v324
  %v1661 = vunpack.c.l.b16 %v325
  %v1662 = vunpack.c.h.b16 %v325
  %v1663 = vunpack.c.l.b16 %v326
  %v1664 = vunpack.c.h.b16 %v326
  %v1665 = vunpack.c.l.b16 %v327
  %v1666 = vunpack.c.h.b16 %v327
  %v1667 = vunpack.c.l.b16 %v328
  %v1668 = vunpack.c.h.b16 %v328
  %v1669 = vunpack.c.l.b16 %v329
  %v1670 = vunpack.c.h.b16 %v329
  %v1671 = vunpack.c.l.b16 %v330
  %v1672 = vunpack.c.h.b16 %v330
  %v1673 = vunpack.c.l.b16 %v331
  %v1674 = vunpack.c.h.b16 %v331
  %v1675 = vunpack.c.l.b16 %v332
  %v1676 = vunpack.c.h.b16 %v332
  %v1677 = vunpack.c.l.b16 %v333
  %v1678 = vunpack.c.h.b16 %v333
  %v1679 = vunpack.c.l.b16 %v334
  %v1680 = vunpack.c.h.b16 %v334
  %v1681 = vunpack.c.l.b16 %v335
  %v1682 = vunpack.c.h.b16 %v335
  %v1683 = vunpack.c.l.b16 %v336
  %v1684 = vunpack.c.h.b16 %v336
  %v1685 = vunpack.c.l.b16 %v337
  %v1686 = vunpack.c.h.b16 %v337
  %v1687 = vunpack.c.l.b16 %v338
  %v1688 = vunpack.c.h.b16 %v338
  %v1689 = vunpack.c.l.b16 %v339
  %v1690 = vunpack.c.h.b16 %v339
  %v1691 = vunpack.c.l.b16 %v340
  %v1692 = vunpack.c.h.b16 %v340
  %v1693 = vunpack.c.l.b16 %v341
  %v1694 = vunpack.c.h.b16 %v341
  %v1695 = vunpack.c.l.b16 %v342
  %v1696 = vunpack.c.h.b16 %v342
  %v1697 = vunpack.c.l.b16 %v343
  %v1698 = vunpack.c.h.b16 %v343
  %v1699 = vunpack.c.l.b16 %v344
  %v1700 = vunpack.c.h.b16 %v344
  %v1701 = vunpack.c.l.b16 %v345
  %v1702 = vunpack.c.h.b16 %v345
  %v1703 = vunpack.c.l.b16 %v346
  %v1704 = vunpack.c.h.b16 %v346
  %v1705 = vunpack.c.l.b16 %v347
  %v1706 = vunpack.c.h.b16 %v347
  %v1707 = vunpack.c.l.b16 %v348
  %v1708 = vunpack.c.h.b16 %v348
  %v1709 = vunpack.c.l.b16 %v349
  %v1710 = vunpack.c.h.b16 %v349
  %v1711 = vunpack.c.l.b16 %v350
  %v1712 = vunpack.c.h.b16 %v350
  %v1713 = vunpack.c.l.b16 %v351
  %v1714 = vunpack.c.h.b16 %v351
  %v1715 = vunpack.c.l.b16 %v352
  %v1716 = vunpack.c.h.b16 %v352
  %v1717 = vunpack.c.l.b16 %v353
  %v1718 = vunpack.c.h.b16 %v353
  %v1719 = vunpack.c.l.b16 %v354
  %v1720 = vunpack.c.h.b16 %v354
  %v1721 = vunpack.c.l.b16 %v355
  %v1722 = vunpack.c.h.b16 %v355
  %v1723 = vunpack.c.l.b16 %v356
  %v1724 = vunpack.c.h.b16 %v356
  %v1725 = vunpack.c.l.b16 %v357
  %v1726 = vunpack.c.h.b16 %v357
  %v1727 = vunpack.c.l.b16 %v358
  %v1728 = vunpack.c.h.b16 %v358
  %v1729 = vunpack.c.l.b16 %v359
  %v1730 = vunpack.c.h.b16 %v359
  %v1731 = vunpack.c.l.b16 %v360
  %v1732 = vunpack.c.h.b16 %v360
  %v1733 = vunpack.c.l.b16 %v361
  %v1734 = vunpack.c.h.b16 %v361
  %v1735 = vunpack.c.l.b16 %v362
  %v1736 = vunpack.c.h.b16 %v362
  %v1737 = vunpack.c.l.b16 %v363
  %v1738 = vunpack.c.h.b16 %v363
  %v1739 = vunpack.c.l.b16 %v364
  %v1740 = vunpack.c.h.b16 %v364
  %v1741 = vunpack.c.l.b16 %v365
  %v1742 = vunpack.c.h.b16 %v365
  %v1743 = vunpack.c.l.b16 %v366
  %v1744 = vunpack.c.h.b16 %v366
  %v1745 = vunpack.c.l.b16 %v367
  %v1746 = vunpack.c.h.b16 %v367
  %v1747 = vunpack.c.l.b16 %v368
  %v1748 = vunpack.c.h.b16 %v368
  %v1749 = vunpack.c.l.b16 %v369
  %v1750 = vunpack.c.h.b16 %v369
  %v1751 = vunpack.c.l.b16 %v370
  %v1752 = vunpack.c.h.b16 %v370
  %v1753 = vunpack.c.l.b16 %v371
  %v1754 = vunpack.c.h.b16 %v371
  %v1755 = vunpack.c.l.b16 %v372
  %v1756 = vunpack.c.h.b16 %v372
  %v1757 = vunpack.c.l.b16 %v373
  %v1758 = vunpack.c.h.b16 %v373
  %v1759 = vunpack.c.l.b16 %v374
  %v1760 = vunpack.c.h.b16 %v374
  %v1761 = vunpack.c.l.b16 %v375
  %v1762 = vunpack.c.h.b16 %v375
  %v1763 = vunpack.c.l.b16 %v376
  %v1764 = vunpack.c.h.b16 %v376
  %v1765 = vunpack.c.l.b16 %v377
  %v1766 = vunpack.c.h.b16 %v377
  %v1767 = vunpack.c.l.b16 %v378
  %v1768 = vunpack.c.h.b16 %v378
  %v1769 = vunpack.c.l.b16 %v379
  %v1770 = vunpack.c.h.b16 %v379
  %v1771 = vunpack.c.l.b16 %v380
  %v1772 = vunpack.c.h.b16 %v380
  %v1773 = vunpack.c.l.b16 %v381
  %v1774 = vunpack.c.h.b16 %v381
  %v1775 = vunpack.c.l.b16 %v382
  %v1776 = vunpack.c.h.b16 %v382
  %v1777 = vunpack.c.l.b16 %v383
  %v1778 = vunpack.c.h.b16 %v383
  %v1779 = vunpack.c.l.b16 %v384
  %v1780 = vunpack.c.h.b16 %v384
  %v1781 = vunpack.c.l.b16 %v385
  %v1782 = vunpack.c.h.b16 %v385
  %v1783 = vunpack.c.l.b16 %v386
  %v1784 = vunpack.c.h.b16 %v386
  %v1785 = vunpack.c.l.b16 %v387
  %v1786 = vunpack.c.h.b16 %v387
  %v1787 = vunpack.c.l.b16 %v388
  %v1788 = vunpack.c.h.b16 %v388
  %v1789 = vunpack.c.l.b16 %v389
  %v1790 = vunpack.c.h.b16 %v389
  %v1791 = vunpack.c.l.b16 %v390
  %v1792 = vunpack.c.h.b16 %v390
  %v1793 = vunpack.c.l.b16 %v391
  %v1794 = vunpack.c.h.b16 %v391
  %v1795 = vunpack.c.l.b16 %v392
  %v1796 = vunpack.c.h.b16 %v392
  %v1797 = vunpack.c.l.b16 %v393
  %v1798 = vunpack.c.h.b16 %v393
  %v1799 = vunpack.c.l.b16 %v394
  %v1800 = vunpack.c.h.b16 %v394
  %v1801 = vunpack.c.l.b16 %v395
  %v1802 = vunpack.c.h.b16 %v395
  %v1803 = vunpack.c.l.b16 %v396
  %v1804 = vunpack.c.h.b16 %v396
  %v1805 = vpack.c.b16 %v1295, %v1293
  %v1806 = vpack.c.b16 %v1296, %v1294
  %v1807 = vpack.c.b16 %v1299, %v1297
  %v1808 = vpack.c.b16 %v1300, %v1298
  %v1809 = vpack.c.b16 %v1303, %v1301
  %v1810 = vpack.c.b16 %v1304, %v1302
  %v1811 = vpack.c.b16 %v1307, %v1305
  %v1812 = vpack.c.b16 %v1308, %v1306
  %v1813 = vpack.c.b16 %v1311, %v1309
  %v1814 = vpack.c.b16 %v1312, %v1310
  %v1815 = vpack.c.b16 %v1315, %v1313
  %v1816 = vpack.c.b16 %v1316, %v1314
  %v1817 = vpack.c.b16 %v1319, %v1317
  %v1818 = vpack.c.b16 %v1320, %v1318
  %v1819 = vpack.c.b16 %v1323, %v1321
  %v1820 = vpack.c.b16 %v1324, %v1322
  %v1821 = vpack.c.b16 %v1327, %v1325
  %v1822 = vpack.c.b16 %v1328, %v1326
  %v1823 = vpack.c.b16 %v1331, %v1329
  %v1824 = vpack.c.b16 %v1332, %v1330
  %v1825 = vpack.c.b16 %v1335, %v1333
  %v1826 = vpack.c.b16 %v1336, %v1334
  %v1827 = vpack.c.b16 %v1339, %v1337
  %v1828 = vpack.c.b16 %v1340, %v1338
  %v1829 = vpack.c.b16 %v1343, %v1341
  %v1830 = vpack.c.b16 %v1344, %v1342
  %v1831 = vpack.c.b16 %v1347, %v1345
  %v1832 = vpack.c.b16 %v1348, %v1346
  %v1833 = vpack.c.b16 %v1351, %v1349
  %v1834 = vpack.c.b16 %v1352, %v1350
  %v1835 = vpack.c.b16 %v1355, %v1353
  %v1836 = vpack.c.b16 %v1356, %v1354
  %v1837 = vpack.c.b16 %v1359, %v1357
  %v1838 = vpack.c.b16 %v1360, %v1358
  %v1839 = vpack.c.b16 %v1363, %v1361
  %v1840 = vpack.c.b16 %v1364, %v1362
  %v1841 = vpack.c.b16 %v1367, %v1365
  %v1842 = vpack.c.b16 %v1368, %v1366
  %v1843 = vpack.c.b16 %v1371, %v1369
  %v1844 = vpack.c.b16 %v1372, %v1370
  %v1845 = vpack.c.b16 %v1375, %v1373
  %v1846 = vpack.c.b16 %v1376, %v1374
  %v1847 = vpack.c.b16 %v1379, %v1377
  %v1848 = vpack.c.b16 %v1380, %v1378
  %v1849 = vpack.c.b16 %v1383, %v1381
  %v1850 = vpack.c.b16 %v1384, %v1382
  %v1851 = vpack.c.b16 %v1387, %v1385
  %v1852 = vpack.c.b16 %v1388, %v1386
  %v1853 = vpack.c.b16 %v1391, %v1389
  %v1854 = vpack.c.b16 %v1392, %v1390
  %v1855 = vpack.c.b16 %v1395, %v1393
  %v1856 = vpack.c.b16 %v1396, %v1394
  %v1857 = vpack.c.b16 %v1399, %v1397
  %v1858 = vpack.c.b16 %v1400, %v1398
  %v1859 = vpack.c.b16 %v1403, %v1401
  %v1860 = vpack.c.b16 %v1404, %v1402
  %v1861 = vpack.c.b16 %v1407, %v1405
  %v1862 = vpack.c.b16 %v1408, %v1406
  %v1863 = vpack.c.b16 %v1411, %v1409
  %v1864 = vpack.c.b16 %v1412, %v1410
  %v1865 = vpack.c.b16 %v1415, %v1413
  %v1866 = vpack.c.b16 %v1416, %v1414
  %v1867 = vpack.c.b16 %v1419, %v1417
  %v1868 = vpack.c.b16 %v1420, %v1418
  %v1869 = vpack.c.b16 %v1423, %v1421
  %v1870 = vpack.c.b16 %v1424, %v1422
  %v1871 = vpack.c.b16 %v1427, %v1425
  %v1872 = vpack.c.b16 %v1428, %v1426
  %v1873 = vpack.c.b16 %v1431, %v1429
  %v1874 = vpack.c.b16 %v1432, %v1430
  %v1875 = vpack.c.b16 %v1435, %v1433
  %v1876 = vpack.c.b16 %v1436, %v1434
  %v1877 = vpack.c.b16 %v1439, %v1437
  %v1878 = vpack.c.b16 %v1440, %v1438
  %v1879 = vpack.c.b16 %v1443, %v1441
  %v1880 = vpack.c.b16 %v1444, %v1442
  %v1881 = vpack.c.b16 %v1447, %v1445
  %v1882 = vpack.c.b16 %v1448, %v1446
  %v1883 = vpack.c.b16 %v1451, %v1449
  %v1884 = vpack.c.b16 %v1452, %v1450
  %v1885 = vpack.c.b16 %v1455, %v1453
  %v1886 = vpack.c.b16 %v1456, %v1454
  %v1887 = vpack.c.b16 %v1459, %v1457
  %v1888 = vpack.c.b16 %v1460, %v1458
  %v1889 = vpack.c.b16 %v1463, %v1461
  %v1890 = vpack.c.b16 %v1464, %v1462
  %v1891 = vpack.c.b16 %v1467, %v1465
  %v1892 = vpack.c.b16 %v1468, %v1466
  %v1893 = vpack.c.b16 %v1471, %v1469
  %v1894 = vpack.c.b16 %v1472, %v1470
  %v1895 = vpack.c.b16 %v1475, %v1473
  %v1896 = vpack.c.b16 %v1476, %v1474
  %v1897 = vpack.c.b16 %v1479, %v1477
  %v1898 = vpack.c.b16 %v1480, %v1478
  %v1899 = vpack.c.b16 %v1483, %v1481
  %v1900 = vpack.c.b16 %v1484, %v1482
  %v1901 = vpack.c.b16 %v1487, %v1485
  %v1902 = vpack.c.b16 %v1488, %v1486
  %v1903 = vpack.c.b16 %v1491, %v1489
  %v1904 = vpack.c.b16 %v1492, %v1490
  %v1905 = vpack.c.b16 %v1495, %v1493
  %v1906 = vpack.c.b16 %v1496, %v1494
  %v1907 = vpack.c.b16 %v1499, %v1497
  %v1908 = vpack.c.b16 %v1500, %v1498
  %v1909 = vpack.c.b16 %v1503, %v1501
  %v1910 = vpack.c.b16 %v1504, %v1502
  %v1911 = vpack.c.b16 %v1507, %v1505
  %v1912 = vpack.c.b16 %v1508, %v1506
  %v1913 = vpack.c.b16 %v1511, %v1509
  %v1914 = vpack.c.b16 %v1512, %v1510
  %v1915 = vpack.c.b16 %v1515, %v1513
  %v1916 = vpack.c.b16 %v1516, %v1514
  %v1917 = vpack.c.b16 %v1519, %v1517
  %v1918 = vpack.c.b16 %v1520, %v1518
  %v1919 = vpack.c.b16 %v1523, %v1521
  %v1920 = vpack.c.b16 %v1524, %v1522
  %v1921 = vpack.c.b16 %v1527, %v1525
  %v1922 = vpack.c.b16 %v1528, %v1526
  %v1923 = vpack.c.b16 %v1531, %v1529
  %v1924 = vpack.c.b16 %v1532, %v1530
  %v1925 = vpack.c.b16 %v1535, %v1533
  %v1926 = vpack.c.b16 %v1536, %v1534
  %v1927 = vpack.c.b16 %v1539, %v1537
  %v1928 = vpack.c.b16 %v1540, %v1538
  %v1929 = vpack.c.b16 %v1543, %v1541
  %v1930 = vpack.c.b16 %v1544, %v1542
  %v1931 = vpack.c.b16 %v1547, %v1545
  %v1932 = vpack.c.b16 %v1548, %v1546
  %v1933 = vpack.c.b16 %v1551, %v1549
  %v1934 = vpack.c.b16 %v1552, %v1550
  %v1935 = vpack.c.b16 %v1555, %v1553
  %v1936 = vpack.c.b16 %v1556, %v1554
  %v1937 = vpack.c.b16 %v1559, %v1557
  %v1938 = vpack.c.b16 %v1560, %v1558
  %v1939 = vpack.c.b16 %v1563, %v1561
  %v1940 = vpack.c.b16 %v1564, %v1562
  %v1941 = vpack.c.b16 %v1567, %v1565
  %v1942 = vpack.c.b16 %v1568, %v1566
  %v1943 = vpack.c.b16 %v1571, %v1569
  %v1944 = vpack.c.b16 %v1572, %v1570
  %v1945 = vpack.c.b16 %v1575, %v1573
  %v1946 = vpack.c.b16 %v1576, %v1574
  %v1947 = vpack.c.b16 %v1579, %v1577
  %v1948 = vpack.c.b16 %v1580, %v1578
  %v1949 = vpack.c.b16 %v1583, %v1581
  %v1950 = vpack.c.b16 %v1584, %v1582
  %v1951 = vpack.c.b16 %v1587, %v1585
  %v1952 = vpack.c.b16 %v1588, %v1586
  %v1953 = vpack.c.b16 %v1591, %v1589
  %v1954 = vpack.c.b16 %v1592, %v1590
  %v1955 = vpack.c.b16 %v1595, %v1593
  %v1956 = vpack.c.b16 %v1596, %v1594
  %v1957 = vpack.c.b16 %v1599, %v1597
  %v1958 = vpack.c.b16 %v1600, %v1598
  %v1959 = vpack.c.b16 %v1603, %v1601
  %v1960 = vpack.c.b16 %v1604, %v1602
  %v1961 = vpack.c.b16 %v1607, %v1605
  %v1962 = vpack.c.b16 %v1608, %v1606
  %v1963 = vpack.c.b16 %v1611, %v1609
  %v1964 = vpack.c.b16 %v1612, %v1610
  %v1965 = vpack.c.b16 %v1615, %v1613
  %v1966 = vpack.c.b16 %v1616, %v1614
  %v1967 = vpack.c.b16 %v1619, %v1617
  %v1968 = vpack.c.b16 %v1620, %v1618
  %v1969 = vpack.c.b16 %v1623, %v1621
  %v1970 = vpack.c.b16 %v1624, %v1622
  %v1971 = vpack.c.b16 %v1627, %v1625
  %v1972 = vpack.c.b16 %v1628, %v1626
  %v1973 = vpack.c.b16 %v1631, %v1629
  %v1974 = vpack.c.b16 %v1632, %v1630
  %v1975 = vpack.c.b16 %v1635, %v1633
  %v1976 = vpack.c.b16 %v1636, %v1634
  %v1977 = vpack.c.b16 %v1639, %v1637
  %v1978 = vpack.c.b16 %v1640, %v1638
  %v1979 = vpack.c.b16 %v1643, %v1641
  %v1980 = vpack.c.b16 %v1644, %v1642
  %v1981 = vpack.c.b16 %v1647, %v1645
  %v1982 = vpack.c.b16 %v1648, %v1646
  %v1983 = vpack.c.b16 %v1651, %v1649
  %v1984 = vpack.c.b16 %v1652, %v1650
  %v1985 = vpack.c.b16 %v1655, %v1653
  %v1986 = vpack.c.b16 %v1656, %v1654
  %v1987 = vpack.c.b16 %v1659, %v1657
  %v1988 = vpack.c.b16 %v1660, %v1658
  %v1989 = vpack.c.b16 %v1663, %v1661
  %v1990 = vpack.c.b16 %v1664, %v1662
  %v1991 = vpack.c.b16 %v1667, %v1665
  %v1992 = vpack.c.b16 %v1668, %v1666
  %v1993 = vpack.c.b16 %v1671, %v1669
  %v1994 = vpack.c.b16 %v1672, %v1670
  %v1995 = vpack.c.b16 %v1675, %v1673
  %v1996 = vpack.c.b16 %v1676, %v1674
  %v1997 = vpack.c.b16 %v1679, %v1677
  %v1998 = vpack.c.b16 %v1680, %v1678
  %v1999 = vpack.c.b16 %v1683, %v1681
  %v2000 = vpack.c.b16 %v1684, %v1682
  %v2001 = vpack.c.b16 %v1687, %v1685
  %v2002 = vpack.c.b16 %v1688, %v1686
  %v2003 = vpack.c.b16 %v1691, %v1689
  %v2004 = vpack.c.b16 %v1692, %v1690
  %v2005 = vpack.c.b16 %v1695, %v1693
  %v2006 = vpack.c.b16 %v1696, %v1694
  %v2007 = vpack.c.b16 %v1699, %v1697
  %v2008 = vpack.c.b16 %v1700, %v1698
  %v2009 = vpack.c.b16 %v1703, %v1701
  %v2010 = vpack.c.b16 %v1704, %v1702
  %v2011 = vpack.c.b16 %v1707, %v1705
  %v2012 = vpack.c.b16 %v1708, %v1706
  %v2013 = vpack.c.b16 %v1711, %v1709
  %v2014 = vpack.c.b16 %v1712, %v1710
  %v2015 = vpack.c.b16 %v1715, %v1713
  %v2016 = vpack.c.b16 %v1716, %v1714
  %v2017 = vpack.c.b16 %v1719, %v1717
  %v2018 = vpack.c.b16 %v1720, %v1718
  %v2019 = vpack.c.b16 %v1723, %v1721
  %v2020 = vpack.c.b16 %v1724, %v1722
  %v2021 = vpack.c.b16 %v1727, %v1725
  %v2022 = vpack.c.b16 %v1728, %v1726
  %v2023 = vpack.c.b16 %v1731, %v1729
  %v2024 = vpack.c.b16 %v1732, %v1730
  %v2025 = vpack.c.b16 %v1735, %v1733
  %v2026 = vpack.c.b16 %v1736, %v1734
  %v2027 = vpack.c.b16 %v1739, %v1737
  %v2028 = vpack.c.b16 %v1740, %v1738
  %v2029 = vpack.c.b16 %v1743, %v1741
  %v2030 = vpack.c.b16 %v1744, %v1742
  %v2031 = vpack.c.b16 %v1747, %v1745
  %v2032 = vpack.c.b16 %v1748, %v1746
  %v2033 = vpack.c.b16 %v1751, %v1749
  %v2034 = vpack.c.b16 %v1752, %v1750
  %v2035 = vpack.c.b16 %v1755, %v1753
  %v2036 = vpack.c.b16 %v1756, %v1754
  %v2037 = vpack.c.b16 %v1759, %v1757
  %v2038 = vpack.c.b16 %v1760, %v1758
  %v2039 = vpack.c.b16 %v1763, %v1761
  %v2040 = vpack.c.b16 %v1764, %v1762
  %v2041 = vpack.c.b16 %v1767, %v1765
  %v2042 = vpack.c.b16 %v1768, %v1766
  %v2043 = vpack.c.b16 %v1771, %v1769
  %v2044 = vpack.c.b16 %v1772, %v1770
  %v2045 = vpack.c.b16 %v1775, %v1773
  %v2046 = vpack.c.b16 %v1776, %v1774
  %v2047 = vpack.c.b16 %v1779, %v1777
  %v2048 = vpack.c.b16 %v1780, %v1778
  %v2049 = vpack.c.b16 %v1783, %v1781
  %v2050 = vpack.c.b16 %v1784, %v1782
  %v2051 = vpack.c.b16 %v1787, %v1785
  %v2052 = vpack.c.b16 %v1788, %v1786
  %v2053 = vpack.c.b16 %v1791, %v1789
  %v2054 = vpack.c.b16 %v1792, %v1790
  %v2055 = vpack.c.b16 %v1795, %v1793
  %v2056 = vpack.c.b16 %v1796, %v1794
  %v2057 = vpack.c.b16 %v1799, %v1797
  %v2058 = vpack.c.b16 %v1800, %v1798
  %v2059 = vpack.c.b16 %v1803, %v1801
  %v2060 = vpack.c.b16 %v1804, %v1802
  %2317 = vmatprep.subr.bf16.mxu0 %v1820
  %2318 = vmatpush1.bf16.msra.mxu0 %v1819
  %2319 = vmatprep.subr.bf16.mxu0 %v1818
  %2320 = vmatpush1.bf16.msra.mxu0 %v1817
  %2321 = vmatprep.subr.bf16.mxu0 %v1816
  %2322 = vmatpush1.bf16.msra.mxu0 %v1815
  %2323 = vmatprep.subr.bf16.mxu0 %v1814
  %2324 = vmatpush1.bf16.msra.mxu0 %v1813
  %2325 = vmatprep.subr.bf16.mxu0 %v1812
  %2326 = vmatpush1.bf16.msra.mxu0 %v1811
  %2327 = vmatprep.subr.bf16.mxu0 %v1810
  %2328 = vmatpush1.bf16.msra.mxu0 %v1809
  %2329 = vmatprep.subr.bf16.mxu0 %v1808
  %2330 = vmatpush1.bf16.msra.mxu0 %v1807
  %2331 = vmatprep.subr.bf16.mxu0 %v1806
  %2332 = vmatpush1.bf16.msra.mxu0 %v1805
  %2333 = vmatprep.subr.bf16.mxu0 %v1836
  %2334 = vmatpush2.bf16.msra.mxu0 %v1835
  %2335 = vmatprep.subr.bf16.mxu0 %v1834
  %2336 = vmatpush2.bf16.msra.mxu0 %v1833
  %2337 = vmatprep.subr.bf16.mxu0 %v1832
  %2338 = vmatpush2.bf16.msra.mxu0 %v1831
  %2339 = vmatprep.subr.bf16.mxu0 %v1830
  %2340 = vmatpush2.bf16.msra.mxu0 %v1829
  %2341 = vmatprep.subr.bf16.mxu0 %v1828
  %2342 = vmatpush2.bf16.msra.mxu0 %v1827
  %2343 = vmatprep.subr.bf16.mxu0 %v1826
  %2344 = vmatpush2.bf16.msra.mxu0 %v1825
  %2345 = vmatprep.subr.bf16.mxu0 %v1824
  %2346 = vmatpush2.bf16.msra.mxu0 %v1823
  %2347 = vmatprep.subr.bf16.mxu0 %v1822
  %2348 = vmatpush2.bf16.msra.mxu0 %v1821
  %2349 = vmatprep.mubr.bf16.mxu0 %v782
  %2350 = vmatmul.mubr.bf16.gmra.mxu0 %v781
  %v2351 = vpop.f32.mrf.mxu0
  %v2352 = vadd.f32 0.0, %v2351
  %v2353 = vpop.f32.mrf.mxu0
  %v2354 = vadd.f32 0.0, %v2353
  %v2355 = vpop.f32.mrf.mxu0
  %v2356 = vadd.f32 0.0, %v2355
  %v2357 = vpop.f32.mrf.mxu0
  %v2358 = vadd.f32 0.0, %v2357
  %2359 = vmatprep.mubr.bf16.mxu0 %v798
  %2360 = vmatmul.mubr.bf16.gmra.mxu0 %v797
  %v2361 = vpop.f32.mrf.mxu0
  %v2362 = vadd.f32 0.0, %v2361
  %v2363 = vpop.f32.mrf.mxu0
  %v2364 = vadd.f32 0.0, %v2363
  %v2365 = vpop.f32.mrf.mxu0
  %v2366 = vadd.f32 0.0, %v2365
  %v2367 = vpop.f32.mrf.mxu0
  %v2368 = vadd.f32 0.0, %v2367
  %2369 = vmatprep.mubr.bf16.mxu0 %v814
  %2370 = vmatmul.mubr.bf16.gmra.mxu0 %v813
  %v2371 = vpop.f32.mrf.mxu0
  %v2372 = vadd.f32 0.0, %v2371
  %v2373 = vpop.f32.mrf.mxu0
  %v2374 = vadd.f32 0.0, %v2373
  %v2375 = vpop.f32.mrf.mxu0
  %v2376 = vadd.f32 0.0, %v2375
  %v2377 = vpop.f32.mrf.mxu0
  %v2378 = vadd.f32 0.0, %v2377
  %2379 = vmatprep.mubr.bf16.mxu0 %v830
  %2380 = vmatmul.mubr.bf16.gmra.mxu0 %v829
  %v2381 = vpop.f32.mrf.mxu0
  %v2382 = vadd.f32 0.0, %v2381
  %v2383 = vpop.f32.mrf.mxu0
  %v2384 = vadd.f32 0.0, %v2383
  %v2385 = vpop.f32.mrf.mxu0
  %v2386 = vadd.f32 0.0, %v2385
  %v2387 = vpop.f32.mrf.mxu0
  %v2388 = vadd.f32 0.0, %v2387
  %2389 = vmatprep.mubr.bf16.mxu0 %v846
  %2390 = vmatmul.mubr.bf16.gmra.mxu0 %v845
  %v2391 = vpop.f32.mrf.mxu0
  %v2392 = vadd.f32 0.0, %v2391
  %v2393 = vpop.f32.mrf.mxu0
  %v2394 = vadd.f32 0.0, %v2393
  %v2395 = vpop.f32.mrf.mxu0
  %v2396 = vadd.f32 0.0, %v2395
  %v2397 = vpop.f32.mrf.mxu0
  %v2398 = vadd.f32 0.0, %v2397
  %2399 = vmatprep.mubr.bf16.mxu0 %v862
  %2400 = vmatmul.mubr.bf16.gmra.mxu0 %v861
  %v2401 = vpop.f32.mrf.mxu0
  %v2402 = vadd.f32 0.0, %v2401
  %v2403 = vpop.f32.mrf.mxu0
  %v2404 = vadd.f32 0.0, %v2403
  %v2405 = vpop.f32.mrf.mxu0
  %v2406 = vadd.f32 0.0, %v2405
  %v2407 = vpop.f32.mrf.mxu0
  %v2408 = vadd.f32 0.0, %v2407
  %2409 = vmatprep.mubr.bf16.mxu0 %v878
  %2410 = vmatmul.mubr.bf16.gmra.mxu0 %v877
  %v2411 = vpop.f32.mrf.mxu0
  %v2412 = vadd.f32 0.0, %v2411
  %v2413 = vpop.f32.mrf.mxu0
  %v2414 = vadd.f32 0.0, %v2413
  %v2415 = vpop.f32.mrf.mxu0
  %v2416 = vadd.f32 0.0, %v2415
  %v2417 = vpop.f32.mrf.mxu0
  %v2418 = vadd.f32 0.0, %v2417
  %2419 = vmatprep.mubr.bf16.mxu0 %v894
  %2420 = vmatmul.mubr.bf16.gmra.mxu0 %v893
  %v2421 = vpop.f32.mrf.mxu0
  %v2422 = vadd.f32 0.0, %v2421
  %v2423 = vpop.f32.mrf.mxu0
  %v2424 = vadd.f32 0.0, %v2423
  %v2425 = vpop.f32.mrf.mxu0
  %v2426 = vadd.f32 0.0, %v2425
  %v2427 = vpop.f32.mrf.mxu0
  %v2428 = vadd.f32 0.0, %v2427
  %2429 = vdwg.mxu0
  %2430 = vmatprep.subr.bf16.mxu0 %v1852
  %2431 = vmatpush1.bf16.msra.mxu0 %v1851
  %2432 = vmatprep.subr.bf16.mxu0 %v1850
  %2433 = vmatpush1.bf16.msra.mxu0 %v1849
  %2434 = vmatprep.subr.bf16.mxu0 %v1848
  %2435 = vmatpush1.bf16.msra.mxu0 %v1847
  %2436 = vmatprep.subr.bf16.mxu0 %v1846
  %2437 = vmatpush1.bf16.msra.mxu0 %v1845
  %2438 = vmatprep.subr.bf16.mxu0 %v1844
  %2439 = vmatpush1.bf16.msra.mxu0 %v1843
  %2440 = vmatprep.subr.bf16.mxu0 %v1842
  %2441 = vmatpush1.bf16.msra.mxu0 %v1841
  %2442 = vmatprep.subr.bf16.mxu0 %v1840
  %2443 = vmatpush1.bf16.msra.mxu0 %v1839
  %2444 = vmatprep.subr.bf16.mxu0 %v1838
  %2445 = vmatpush1.bf16.msra.mxu0 %v1837
  %2446 = vmatprep.subr.bf16.mxu0 %v1868
  %2447 = vmatpush2.bf16.msra.mxu0 %v1867
  %2448 = vmatprep.subr.bf16.mxu0 %v1866
  %2449 = vmatpush2.bf16.msra.mxu0 %v1865
  %2450 = vmatprep.subr.bf16.mxu0 %v1864
  %2451 = vmatpush2.bf16.msra.mxu0 %v1863
  %2452 = vmatprep.subr.bf16.mxu0 %v1862
  %2453 = vmatpush2.bf16.msra.mxu0 %v1861
  %2454 = vmatprep.subr.bf16.mxu0 %v1860
  %2455 = vmatpush2.bf16.msra.mxu0 %v1859
  %2456 = vmatprep.subr.bf16.mxu0 %v1858
  %2457 = vmatpush2.bf16.msra.mxu0 %v1857
  %2458 = vmatprep.subr.bf16.mxu0 %v1856
  %2459 = vmatpush2.bf16.msra.mxu0 %v1855
  %2460 = vmatprep.subr.bf16.mxu0 %v1854
  %2461 = vmatpush2.bf16.msra.mxu0 %v1853
  %2462 = vmatprep.mubr.bf16.mxu0 %v784
  %2463 = vmatmul.mubr.bf16.gmra.mxu0 %v783
  %v2464 = vpop.f32.mrf.mxu0
  %v2465 = vadd.f32 %v2352, %v2464
  %v2466 = vpop.f32.mrf.mxu0
  %v2467 = vadd.f32 %v2354, %v2466
  %v2468 = vpop.f32.mrf.mxu0
  %v2469 = vadd.f32 %v2356, %v2468
  %v2470 = vpop.f32.mrf.mxu0
  %v2471 = vadd.f32 %v2358, %v2470
  %2472 = vmatprep.mubr.bf16.mxu0 %v800
  %2473 = vmatmul.mubr.bf16.gmra.mxu0 %v799
  %v2474 = vpop.f32.mrf.mxu0
  %v2475 = vadd.f32 %v2362, %v2474
  %v2476 = vpop.f32.mrf.mxu0
  %v2477 = vadd.f32 %v2364, %v2476
  %v2478 = vpop.f32.mrf.mxu0
  %v2479 = vadd.f32 %v2366, %v2478
  %v2480 = vpop.f32.mrf.mxu0
  %v2481 = vadd.f32 %v2368, %v2480
  %2482 = vmatprep.mubr.bf16.mxu0 %v816
  %2483 = vmatmul.mubr.bf16.gmra.mxu0 %v815
  %v2484 = vpop.f32.mrf.mxu0
  %v2485 = vadd.f32 %v2372, %v2484
  %v2486 = vpop.f32.mrf.mxu0
  %v2487 = vadd.f32 %v2374, %v2486
  %v2488 = vpop.f32.mrf.mxu0
  %v2489 = vadd.f32 %v2376, %v2488
  %v2490 = vpop.f32.mrf.mxu0
  %v2491 = vadd.f32 %v2378, %v2490
  %2492 = vmatprep.mubr.bf16.mxu0 %v832
  %2493 = vmatmul.mubr.bf16.gmra.mxu0 %v831
  %v2494 = vpop.f32.mrf.mxu0
  %v2495 = vadd.f32 %v2382, %v2494
  %v2496 = vpop.f32.mrf.mxu0
  %v2497 = vadd.f32 %v2384, %v2496
  %v2498 = vpop.f32.mrf.mxu0
  %v2499 = vadd.f32 %v2386, %v2498
  %v2500 = vpop.f32.mrf.mxu0
  %v2501 = vadd.f32 %v2388, %v2500
  %2502 = vmatprep.mubr.bf16.mxu0 %v848
  %2503 = vmatmul.mubr.bf16.gmra.mxu0 %v847
  %v2504 = vpop.f32.mrf.mxu0
  %v2505 = vadd.f32 %v2392, %v2504
  %v2506 = vpop.f32.mrf.mxu0
  %v2507 = vadd.f32 %v2394, %v2506
  %v2508 = vpop.f32.mrf.mxu0
  %v2509 = vadd.f32 %v2396, %v2508
  %v2510 = vpop.f32.mrf.mxu0
  %v2511 = vadd.f32 %v2398, %v2510
  %2512 = vmatprep.mubr.bf16.mxu0 %v864
  %2513 = vmatmul.mubr.bf16.gmra.mxu0 %v863
  %v2514 = vpop.f32.mrf.mxu0
  %v2515 = vadd.f32 %v2402, %v2514
  %v2516 = vpop.f32.mrf.mxu0
  %v2517 = vadd.f32 %v2404, %v2516
  %v2518 = vpop.f32.mrf.mxu0
  %v2519 = vadd.f32 %v2406, %v2518
  %v2520 = vpop.f32.mrf.mxu0
  %v2521 = vadd.f32 %v2408, %v2520
  %2522 = vmatprep.mubr.bf16.mxu0 %v880
  %2523 = vmatmul.mubr.bf16.gmra.mxu0 %v879
  %v2524 = vpop.f32.mrf.mxu0
  %v2525 = vadd.f32 %v2412, %v2524
  %v2526 = vpop.f32.mrf.mxu0
  %v2527 = vadd.f32 %v2414, %v2526
  %v2528 = vpop.f32.mrf.mxu0
  %v2529 = vadd.f32 %v2416, %v2528
  %v2530 = vpop.f32.mrf.mxu0
  %v2531 = vadd.f32 %v2418, %v2530
  %2532 = vmatprep.mubr.bf16.mxu0 %v896
  %2533 = vmatmul.mubr.bf16.gmra.mxu0 %v895
  %v2534 = vpop.f32.mrf.mxu0
  %v2535 = vadd.f32 %v2422, %v2534
  %v2536 = vpop.f32.mrf.mxu0
  %v2537 = vadd.f32 %v2424, %v2536
  %v2538 = vpop.f32.mrf.mxu0
  %v2539 = vadd.f32 %v2426, %v2538
  %v2540 = vpop.f32.mrf.mxu0
  %v2541 = vadd.f32 %v2428, %v2540
  %2542 = vdwg.mxu0
  %2543 = vmatprep.subr.bf16.mxu0 %v1884
  %2544 = vmatpush1.bf16.msra.mxu0 %v1883
  %2545 = vmatprep.subr.bf16.mxu0 %v1882
  %2546 = vmatpush1.bf16.msra.mxu0 %v1881
  %2547 = vmatprep.subr.bf16.mxu0 %v1880
  %2548 = vmatpush1.bf16.msra.mxu0 %v1879
  %2549 = vmatprep.subr.bf16.mxu0 %v1878
  %2550 = vmatpush1.bf16.msra.mxu0 %v1877
  %2551 = vmatprep.subr.bf16.mxu0 %v1876
  %2552 = vmatpush1.bf16.msra.mxu0 %v1875
  %2553 = vmatprep.subr.bf16.mxu0 %v1874
  %2554 = vmatpush1.bf16.msra.mxu0 %v1873
  %2555 = vmatprep.subr.bf16.mxu0 %v1872
  %2556 = vmatpush1.bf16.msra.mxu0 %v1871
  %2557 = vmatprep.subr.bf16.mxu0 %v1870
  %2558 = vmatpush1.bf16.msra.mxu0 %v1869
  %2559 = vmatprep.subr.bf16.mxu0 %v1900
  %2560 = vmatpush2.bf16.msra.mxu0 %v1899
  %2561 = vmatprep.subr.bf16.mxu0 %v1898
  %2562 = vmatpush2.bf16.msra.mxu0 %v1897
  %2563 = vmatprep.subr.bf16.mxu0 %v1896
  %2564 = vmatpush2.bf16.msra.mxu0 %v1895
  %2565 = vmatprep.subr.bf16.mxu0 %v1894
  %2566 = vmatpush2.bf16.msra.mxu0 %v1893
  %2567 = vmatprep.subr.bf16.mxu0 %v1892
  %2568 = vmatpush2.bf16.msra.mxu0 %v1891
  %2569 = vmatprep.subr.bf16.mxu0 %v1890
  %2570 = vmatpush2.bf16.msra.mxu0 %v1889
  %2571 = vmatprep.subr.bf16.mxu0 %v1888
  %2572 = vmatpush2.bf16.msra.mxu0 %v1887
  %2573 = vmatprep.subr.bf16.mxu0 %v1886
  %2574 = vmatpush2.bf16.msra.mxu0 %v1885
  %2575 = vmatprep.mubr.bf16.mxu0 %v786
  %2576 = vmatmul.mubr.bf16.gmra.mxu0 %v785
  %v2577 = vpop.f32.mrf.mxu0
  %v2578 = vadd.f32 %v2465, %v2577
  %v2579 = vpop.f32.mrf.mxu0
  %v2580 = vadd.f32 %v2467, %v2579
  %v2581 = vpop.f32.mrf.mxu0
  %v2582 = vadd.f32 %v2469, %v2581
  %v2583 = vpop.f32.mrf.mxu0
  %v2584 = vadd.f32 %v2471, %v2583
  %2585 = vmatprep.mubr.bf16.mxu0 %v802
  %2586 = vmatmul.mubr.bf16.gmra.mxu0 %v801
  %v2587 = vpop.f32.mrf.mxu0
  %v2588 = vadd.f32 %v2475, %v2587
  %v2589 = vpop.f32.mrf.mxu0
  %v2590 = vadd.f32 %v2477, %v2589
  %v2591 = vpop.f32.mrf.mxu0
  %v2592 = vadd.f32 %v2479, %v2591
  %v2593 = vpop.f32.mrf.mxu0
  %v2594 = vadd.f32 %v2481, %v2593
  %2595 = vmatprep.mubr.bf16.mxu0 %v818
  %2596 = vmatmul.mubr.bf16.gmra.mxu0 %v817
  %v2597 = vpop.f32.mrf.mxu0
  %v2598 = vadd.f32 %v2485, %v2597
  %v2599 = vpop.f32.mrf.mxu0
  %v2600 = vadd.f32 %v2487, %v2599
  %v2601 = vpop.f32.mrf.mxu0
  %v2602 = vadd.f32 %v2489, %v2601
  %v2603 = vpop.f32.mrf.mxu0
  %v2604 = vadd.f32 %v2491, %v2603
  %2605 = vmatprep.mubr.bf16.mxu0 %v834
  %2606 = vmatmul.mubr.bf16.gmra.mxu0 %v833
  %v2607 = vpop.f32.mrf.mxu0
  %v2608 = vadd.f32 %v2495, %v2607
  %v2609 = vpop.f32.mrf.mxu0
  %v2610 = vadd.f32 %v2497, %v2609
  %v2611 = vpop.f32.mrf.mxu0
  %v2612 = vadd.f32 %v2499, %v2611
  %v2613 = vpop.f32.mrf.mxu0
  %v2614 = vadd.f32 %v2501, %v2613
  %2615 = vmatprep.mubr.bf16.mxu0 %v850
  %2616 = vmatmul.mubr.bf16.gmra.mxu0 %v849
  %v2617 = vpop.f32.mrf.mxu0
  %v2618 = vadd.f32 %v2505, %v2617
  %v2619 = vpop.f32.mrf.mxu0
  %v2620 = vadd.f32 %v2507, %v2619
  %v2621 = vpop.f32.mrf.mxu0
  %v2622 = vadd.f32 %v2509, %v2621
  %v2623 = vpop.f32.mrf.mxu0
  %v2624 = vadd.f32 %v2511, %v2623
  %2625 = vmatprep.mubr.bf16.mxu0 %v866
  %2626 = vmatmul.mubr.bf16.gmra.mxu0 %v865
  %v2627 = vpop.f32.mrf.mxu0
  %v2628 = vadd.f32 %v2515, %v2627
  %v2629 = vpop.f32.mrf.mxu0
  %v2630 = vadd.f32 %v2517, %v2629
  %v2631 = vpop.f32.mrf.mxu0
  %v2632 = vadd.f32 %v2519, %v2631
  %v2633 = vpop.f32.mrf.mxu0
  %v2634 = vadd.f32 %v2521, %v2633
  %2635 = vmatprep.mubr.bf16.mxu0 %v882
  %2636 = vmatmul.mubr.bf16.gmra.mxu0 %v881
  %v2637 = vpop.f32.mrf.mxu0
  %v2638 = vadd.f32 %v2525, %v2637
  %v2639 = vpop.f32.mrf.mxu0
  %v2640 = vadd.f32 %v2527, %v2639
  %v2641 = vpop.f32.mrf.mxu0
  %v2642 = vadd.f32 %v2529, %v2641
  %v2643 = vpop.f32.mrf.mxu0
  %v2644 = vadd.f32 %v2531, %v2643
  %2645 = vmatprep.mubr.bf16.mxu0 %v898
  %2646 = vmatmul.mubr.bf16.gmra.mxu0 %v897
  %v2647 = vpop.f32.mrf.mxu0
  %v2648 = vadd.f32 %v2535, %v2647
  %v2649 = vpop.f32.mrf.mxu0
  %v2650 = vadd.f32 %v2537, %v2649
  %v2651 = vpop.f32.mrf.mxu0
  %v2652 = vadd.f32 %v2539, %v2651
  %v2653 = vpop.f32.mrf.mxu0
  %v2654 = vadd.f32 %v2541, %v2653
  %2655 = vdwg.mxu0
  %2656 = vmatprep.subr.bf16.mxu0 %v1916
  %2657 = vmatpush1.bf16.msra.mxu0 %v1915
  %2658 = vmatprep.subr.bf16.mxu0 %v1914
  %2659 = vmatpush1.bf16.msra.mxu0 %v1913
  %2660 = vmatprep.subr.bf16.mxu0 %v1912
  %2661 = vmatpush1.bf16.msra.mxu0 %v1911
  %2662 = vmatprep.subr.bf16.mxu0 %v1910
  %2663 = vmatpush1.bf16.msra.mxu0 %v1909
  %2664 = vmatprep.subr.bf16.mxu0 %v1908
  %2665 = vmatpush1.bf16.msra.mxu0 %v1907
  %2666 = vmatprep.subr.bf16.mxu0 %v1906
  %2667 = vmatpush1.bf16.msra.mxu0 %v1905
  %2668 = vmatprep.subr.bf16.mxu0 %v1904
  %2669 = vmatpush1.bf16.msra.mxu0 %v1903
  %2670 = vmatprep.subr.bf16.mxu0 %v1902
  %2671 = vmatpush1.bf16.msra.mxu0 %v1901
  %2672 = vmatprep.subr.bf16.mxu0 %v1932
  %2673 = vmatpush2.bf16.msra.mxu0 %v1931
  %2674 = vmatprep.subr.bf16.mxu0 %v1930
  %2675 = vmatpush2.bf16.msra.mxu0 %v1929
  %2676 = vmatprep.subr.bf16.mxu0 %v1928
  %2677 = vmatpush2.bf16.msra.mxu0 %v1927
  %2678 = vmatprep.subr.bf16.mxu0 %v1926
  %2679 = vmatpush2.bf16.msra.mxu0 %v1925
  %2680 = vmatprep.subr.bf16.mxu0 %v1924
  %2681 = vmatpush2.bf16.msra.mxu0 %v1923
  %2682 = vmatprep.subr.bf16.mxu0 %v1922
  %2683 = vmatpush2.bf16.msra.mxu0 %v1921
  %2684 = vmatprep.subr.bf16.mxu0 %v1920
  %2685 = vmatpush2.bf16.msra.mxu0 %v1919
  %2686 = vmatprep.subr.bf16.mxu0 %v1918
  %2687 = vmatpush2.bf16.msra.mxu0 %v1917
  %2688 = vmatprep.mubr.bf16.mxu0 %v788
  %2689 = vmatmul.mubr.bf16.gmra.mxu0 %v787
  %v2690 = vpop.f32.mrf.mxu0
  %v2691 = vadd.f32 %v2578, %v2690
  %v2692 = vpop.f32.mrf.mxu0
  %v2693 = vadd.f32 %v2580, %v2692
  %v2694 = vpop.f32.mrf.mxu0
  %v2695 = vadd.f32 %v2582, %v2694
  %v2696 = vpop.f32.mrf.mxu0
  %v2697 = vadd.f32 %v2584, %v2696
  %2698 = vmatprep.mubr.bf16.mxu0 %v804
  %2699 = vmatmul.mubr.bf16.gmra.mxu0 %v803
  %v2700 = vpop.f32.mrf.mxu0
  %v2701 = vadd.f32 %v2588, %v2700
  %v2702 = vpop.f32.mrf.mxu0
  %v2703 = vadd.f32 %v2590, %v2702
  %v2704 = vpop.f32.mrf.mxu0
  %v2705 = vadd.f32 %v2592, %v2704
  %v2706 = vpop.f32.mrf.mxu0
  %v2707 = vadd.f32 %v2594, %v2706
  %2708 = vmatprep.mubr.bf16.mxu0 %v820
  %2709 = vmatmul.mubr.bf16.gmra.mxu0 %v819
  %v2710 = vpop.f32.mrf.mxu0
  %v2711 = vadd.f32 %v2598, %v2710
  %v2712 = vpop.f32.mrf.mxu0
  %v2713 = vadd.f32 %v2600, %v2712
  %v2714 = vpop.f32.mrf.mxu0
  %v2715 = vadd.f32 %v2602, %v2714
  %v2716 = vpop.f32.mrf.mxu0
  %v2717 = vadd.f32 %v2604, %v2716
  %2718 = vmatprep.mubr.bf16.mxu0 %v836
  %2719 = vmatmul.mubr.bf16.gmra.mxu0 %v835
  %v2720 = vpop.f32.mrf.mxu0
  %v2721 = vadd.f32 %v2608, %v2720
  %v2722 = vpop.f32.mrf.mxu0
  %v2723 = vadd.f32 %v2610, %v2722
  %v2724 = vpop.f32.mrf.mxu0
  %v2725 = vadd.f32 %v2612, %v2724
  %v2726 = vpop.f32.mrf.mxu0
  %v2727 = vadd.f32 %v2614, %v2726
  %2728 = vmatprep.mubr.bf16.mxu0 %v852
  %2729 = vmatmul.mubr.bf16.gmra.mxu0 %v851
  %v2730 = vpop.f32.mrf.mxu0
  %v2731 = vadd.f32 %v2618, %v2730
  %v2732 = vpop.f32.mrf.mxu0
  %v2733 = vadd.f32 %v2620, %v2732
  %v2734 = vpop.f32.mrf.mxu0
  %v2735 = vadd.f32 %v2622, %v2734
  %v2736 = vpop.f32.mrf.mxu0
  %v2737 = vadd.f32 %v2624, %v2736
  %2738 = vmatprep.mubr.bf16.mxu0 %v868
  %2739 = vmatmul.mubr.bf16.gmra.mxu0 %v867
  %v2740 = vpop.f32.mrf.mxu0
  %v2741 = vadd.f32 %v2628, %v2740
  %v2742 = vpop.f32.mrf.mxu0
  %v2743 = vadd.f32 %v2630, %v2742
  %v2744 = vpop.f32.mrf.mxu0
  %v2745 = vadd.f32 %v2632, %v2744
  %v2746 = vpop.f32.mrf.mxu0
  %v2747 = vadd.f32 %v2634, %v2746
  %2748 = vmatprep.mubr.bf16.mxu0 %v884
  %2749 = vmatmul.mubr.bf16.gmra.mxu0 %v883
  %v2750 = vpop.f32.mrf.mxu0
  %v2751 = vadd.f32 %v2638, %v2750
  %v2752 = vpop.f32.mrf.mxu0
  %v2753 = vadd.f32 %v2640, %v2752
  %v2754 = vpop.f32.mrf.mxu0
  %v2755 = vadd.f32 %v2642, %v2754
  %v2756 = vpop.f32.mrf.mxu0
  %v2757 = vadd.f32 %v2644, %v2756
  %2758 = vmatprep.mubr.bf16.mxu0 %v900
  %2759 = vmatmul.mubr.bf16.gmra.mxu0 %v899
  %v2760 = vpop.f32.mrf.mxu0
  %v2761 = vadd.f32 %v2648, %v2760
  %v2762 = vpop.f32.mrf.mxu0
  %v2763 = vadd.f32 %v2650, %v2762
  %v2764 = vpop.f32.mrf.mxu0
  %v2765 = vadd.f32 %v2652, %v2764
  %v2766 = vpop.f32.mrf.mxu0
  %v2767 = vadd.f32 %v2654, %v2766
  %2768 = vdwg.mxu0
  %2769 = vmatprep.subr.bf16.mxu0 %v1948
  %2770 = vmatpush1.bf16.msra.mxu0 %v1947
  %2771 = vmatprep.subr.bf16.mxu0 %v1946
  %2772 = vmatpush1.bf16.msra.mxu0 %v1945
  %2773 = vmatprep.subr.bf16.mxu0 %v1944
  %2774 = vmatpush1.bf16.msra.mxu0 %v1943
  %2775 = vmatprep.subr.bf16.mxu0 %v1942
  %2776 = vmatpush1.bf16.msra.mxu0 %v1941
  %2777 = vmatprep.subr.bf16.mxu0 %v1940
  %2778 = vmatpush1.bf16.msra.mxu0 %v1939
  %2779 = vmatprep.subr.bf16.mxu0 %v1938
  %2780 = vmatpush1.bf16.msra.mxu0 %v1937
  %2781 = vmatprep.subr.bf16.mxu0 %v1936
  %2782 = vmatpush1.bf16.msra.mxu0 %v1935
  %2783 = vmatprep.subr.bf16.mxu0 %v1934
  %2784 = vmatpush1.bf16.msra.mxu0 %v1933
  %2785 = vmatprep.subr.bf16.mxu0 %v1964
  %2786 = vmatpush2.bf16.msra.mxu0 %v1963
  %2787 = vmatprep.subr.bf16.mxu0 %v1962
  %2788 = vmatpush2.bf16.msra.mxu0 %v1961
  %2789 = vmatprep.subr.bf16.mxu0 %v1960
  %2790 = vmatpush2.bf16.msra.mxu0 %v1959
  %2791 = vmatprep.subr.bf16.mxu0 %v1958
  %2792 = vmatpush2.bf16.msra.mxu0 %v1957
  %2793 = vmatprep.subr.bf16.mxu0 %v1956
  %2794 = vmatpush2.bf16.msra.mxu0 %v1955
  %2795 = vmatprep.subr.bf16.mxu0 %v1954
  %2796 = vmatpush2.bf16.msra.mxu0 %v1953
  %2797 = vmatprep.subr.bf16.mxu0 %v1952
  %2798 = vmatpush2.bf16.msra.mxu0 %v1951
  %2799 = vmatprep.subr.bf16.mxu0 %v1950
  %2800 = vmatpush2.bf16.msra.mxu0 %v1949
  %2801 = vmatprep.mubr.bf16.mxu0 %v790
  %2802 = vmatmul.mubr.bf16.gmra.mxu0 %v789
  %v2803 = vpop.f32.mrf.mxu0
  %v2804 = vadd.f32 %v2691, %v2803
  %v2805 = vpop.f32.mrf.mxu0
  %v2806 = vadd.f32 %v2693, %v2805
  %v2807 = vpop.f32.mrf.mxu0
  %v2808 = vadd.f32 %v2695, %v2807
  %v2809 = vpop.f32.mrf.mxu0
  %v2810 = vadd.f32 %v2697, %v2809
  %2811 = vmatprep.mubr.bf16.mxu0 %v806
  %2812 = vmatmul.mubr.bf16.gmra.mxu0 %v805
  %v2813 = vpop.f32.mrf.mxu0
  %v2814 = vadd.f32 %v2701, %v2813
  %v2815 = vpop.f32.mrf.mxu0
  %v2816 = vadd.f32 %v2703, %v2815
  %v2817 = vpop.f32.mrf.mxu0
  %v2818 = vadd.f32 %v2705, %v2817
  %v2819 = vpop.f32.mrf.mxu0
  %v2820 = vadd.f32 %v2707, %v2819
  %2821 = vmatprep.mubr.bf16.mxu0 %v822
  %2822 = vmatmul.mubr.bf16.gmra.mxu0 %v821
  %v2823 = vpop.f32.mrf.mxu0
  %v2824 = vadd.f32 %v2711, %v2823
  %v2825 = vpop.f32.mrf.mxu0
  %v2826 = vadd.f32 %v2713, %v2825
  %v2827 = vpop.f32.mrf.mxu0
  %v2828 = vadd.f32 %v2715, %v2827
  %v2829 = vpop.f32.mrf.mxu0
  %v2830 = vadd.f32 %v2717, %v2829
  %2831 = vmatprep.mubr.bf16.mxu0 %v838
  %2832 = vmatmul.mubr.bf16.gmra.mxu0 %v837
  %v2833 = vpop.f32.mrf.mxu0
  %v2834 = vadd.f32 %v2721, %v2833
  %v2835 = vpop.f32.mrf.mxu0
  %v2836 = vadd.f32 %v2723, %v2835
  %v2837 = vpop.f32.mrf.mxu0
  %v2838 = vadd.f32 %v2725, %v2837
  %v2839 = vpop.f32.mrf.mxu0
  %v2840 = vadd.f32 %v2727, %v2839
  %2841 = vmatprep.mubr.bf16.mxu0 %v854
  %2842 = vmatmul.mubr.bf16.gmra.mxu0 %v853
  %v2843 = vpop.f32.mrf.mxu0
  %v2844 = vadd.f32 %v2731, %v2843
  %v2845 = vpop.f32.mrf.mxu0
  %v2846 = vadd.f32 %v2733, %v2845
  %v2847 = vpop.f32.mrf.mxu0
  %v2848 = vadd.f32 %v2735, %v2847
  %v2849 = vpop.f32.mrf.mxu0
  %v2850 = vadd.f32 %v2737, %v2849
  %2851 = vmatprep.mubr.bf16.mxu0 %v870
  %2852 = vmatmul.mubr.bf16.gmra.mxu0 %v869
  %v2853 = vpop.f32.mrf.mxu0
  %v2854 = vadd.f32 %v2741, %v2853
  %v2855 = vpop.f32.mrf.mxu0
  %v2856 = vadd.f32 %v2743, %v2855
  %v2857 = vpop.f32.mrf.mxu0
  %v2858 = vadd.f32 %v2745, %v2857
  %v2859 = vpop.f32.mrf.mxu0
  %v2860 = vadd.f32 %v2747, %v2859
  %2861 = vmatprep.mubr.bf16.mxu0 %v886
  %2862 = vmatmul.mubr.bf16.gmra.mxu0 %v885
  %v2863 = vpop.f32.mrf.mxu0
  %v2864 = vadd.f32 %v2751, %v2863
  %v2865 = vpop.f32.mrf.mxu0
  %v2866 = vadd.f32 %v2753, %v2865
  %v2867 = vpop.f32.mrf.mxu0
  %v2868 = vadd.f32 %v2755, %v2867
  %v2869 = vpop.f32.mrf.mxu0
  %v2870 = vadd.f32 %v2757, %v2869
  %2871 = vmatprep.mubr.bf16.mxu0 %v902
  %2872 = vmatmul.mubr.bf16.gmra.mxu0 %v901
  %v2873 = vpop.f32.mrf.mxu0
  %v2874 = vadd.f32 %v2761, %v2873
  %v2875 = vpop.f32.mrf.mxu0
  %v2876 = vadd.f32 %v2763, %v2875
  %v2877 = vpop.f32.mrf.mxu0
  %v2878 = vadd.f32 %v2765, %v2877
  %v2879 = vpop.f32.mrf.mxu0
  %v2880 = vadd.f32 %v2767, %v2879
  %2881 = vdwg.mxu0
  %2882 = vmatprep.subr.bf16.mxu0 %v1980
  %2883 = vmatpush1.bf16.msra.mxu0 %v1979
  %2884 = vmatprep.subr.bf16.mxu0 %v1978
  %2885 = vmatpush1.bf16.msra.mxu0 %v1977
  %2886 = vmatprep.subr.bf16.mxu0 %v1976
  %2887 = vmatpush1.bf16.msra.mxu0 %v1975
  %2888 = vmatprep.subr.bf16.mxu0 %v1974
  %2889 = vmatpush1.bf16.msra.mxu0 %v1973
  %2890 = vmatprep.subr.bf16.mxu0 %v1972
  %2891 = vmatpush1.bf16.msra.mxu0 %v1971
  %2892 = vmatprep.subr.bf16.mxu0 %v1970
  %2893 = vmatpush1.bf16.msra.mxu0 %v1969
  %2894 = vmatprep.subr.bf16.mxu0 %v1968
  %2895 = vmatpush1.bf16.msra.mxu0 %v1967
  %2896 = vmatprep.subr.bf16.mxu0 %v1966
  %2897 = vmatpush1.bf16.msra.mxu0 %v1965
  %2898 = vmatprep.subr.bf16.mxu0 %v1996
  %2899 = vmatpush2.bf16.msra.mxu0 %v1995
  %2900 = vmatprep.subr.bf16.mxu0 %v1994
  %2901 = vmatpush2.bf16.msra.mxu0 %v1993
  %2902 = vmatprep.subr.bf16.mxu0 %v1992
  %2903 = vmatpush2.bf16.msra.mxu0 %v1991
  %2904 = vmatprep.subr.bf16.mxu0 %v1990
  %2905 = vmatpush2.bf16.msra.mxu0 %v1989
  %2906 = vmatprep.subr.bf16.mxu0 %v1988
  %2907 = vmatpush2.bf16.msra.mxu0 %v1987
  %2908 = vmatprep.subr.bf16.mxu0 %v1986
  %2909 = vmatpush2.bf16.msra.mxu0 %v1985
  %2910 = vmatprep.subr.bf16.mxu0 %v1984
  %2911 = vmatpush2.bf16.msra.mxu0 %v1983
  %2912 = vmatprep.subr.bf16.mxu0 %v1982
  %2913 = vmatpush2.bf16.msra.mxu0 %v1981
  %2914 = vmatprep.mubr.bf16.mxu0 %v792
  %2915 = vmatmul.mubr.bf16.gmra.mxu0 %v791
  %v2916 = vpop.f32.mrf.mxu0
  %v2917 = vadd.f32 %v2804, %v2916
  %v2918 = vpop.f32.mrf.mxu0
  %v2919 = vadd.f32 %v2806, %v2918
  %v2920 = vpop.f32.mrf.mxu0
  %v2921 = vadd.f32 %v2808, %v2920
  %v2922 = vpop.f32.mrf.mxu0
  %v2923 = vadd.f32 %v2810, %v2922
  %2924 = vmatprep.mubr.bf16.mxu0 %v808
  %2925 = vmatmul.mubr.bf16.gmra.mxu0 %v807
  %v2926 = vpop.f32.mrf.mxu0
  %v2927 = vadd.f32 %v2814, %v2926
  %v2928 = vpop.f32.mrf.mxu0
  %v2929 = vadd.f32 %v2816, %v2928
  %v2930 = vpop.f32.mrf.mxu0
  %v2931 = vadd.f32 %v2818, %v2930
  %v2932 = vpop.f32.mrf.mxu0
  %v2933 = vadd.f32 %v2820, %v2932
  %2934 = vmatprep.mubr.bf16.mxu0 %v824
  %2935 = vmatmul.mubr.bf16.gmra.mxu0 %v823
  %v2936 = vpop.f32.mrf.mxu0
  %v2937 = vadd.f32 %v2824, %v2936
  %v2938 = vpop.f32.mrf.mxu0
  %v2939 = vadd.f32 %v2826, %v2938
  %v2940 = vpop.f32.mrf.mxu0
  %v2941 = vadd.f32 %v2828, %v2940
  %v2942 = vpop.f32.mrf.mxu0
  %v2943 = vadd.f32 %v2830, %v2942
  %2944 = vmatprep.mubr.bf16.mxu0 %v840
  %2945 = vmatmul.mubr.bf16.gmra.mxu0 %v839
  %v2946 = vpop.f32.mrf.mxu0
  %v2947 = vadd.f32 %v2834, %v2946
  %v2948 = vpop.f32.mrf.mxu0
  %v2949 = vadd.f32 %v2836, %v2948
  %v2950 = vpop.f32.mrf.mxu0
  %v2951 = vadd.f32 %v2838, %v2950
  %v2952 = vpop.f32.mrf.mxu0
  %v2953 = vadd.f32 %v2840, %v2952
  %2954 = vmatprep.mubr.bf16.mxu0 %v856
  %2955 = vmatmul.mubr.bf16.gmra.mxu0 %v855
  %v2956 = vpop.f32.mrf.mxu0
  %v2957 = vadd.f32 %v2844, %v2956
  %v2958 = vpop.f32.mrf.mxu0
  %v2959 = vadd.f32 %v2846, %v2958
  %v2960 = vpop.f32.mrf.mxu0
  %v2961 = vadd.f32 %v2848, %v2960
  %v2962 = vpop.f32.mrf.mxu0
  %v2963 = vadd.f32 %v2850, %v2962
  %2964 = vmatprep.mubr.bf16.mxu0 %v872
  %2965 = vmatmul.mubr.bf16.gmra.mxu0 %v871
  %v2966 = vpop.f32.mrf.mxu0
  %v2967 = vadd.f32 %v2854, %v2966
  %v2968 = vpop.f32.mrf.mxu0
  %v2969 = vadd.f32 %v2856, %v2968
  %v2970 = vpop.f32.mrf.mxu0
  %v2971 = vadd.f32 %v2858, %v2970
  %v2972 = vpop.f32.mrf.mxu0
  %v2973 = vadd.f32 %v2860, %v2972
  %2974 = vmatprep.mubr.bf16.mxu0 %v888
  %2975 = vmatmul.mubr.bf16.gmra.mxu0 %v887
  %v2976 = vpop.f32.mrf.mxu0
  %v2977 = vadd.f32 %v2864, %v2976
  %v2978 = vpop.f32.mrf.mxu0
  %v2979 = vadd.f32 %v2866, %v2978
  %v2980 = vpop.f32.mrf.mxu0
  %v2981 = vadd.f32 %v2868, %v2980
  %v2982 = vpop.f32.mrf.mxu0
  %v2983 = vadd.f32 %v2870, %v2982
  %2984 = vmatprep.mubr.bf16.mxu0 %v904
  %2985 = vmatmul.mubr.bf16.gmra.mxu0 %v903
  %v2986 = vpop.f32.mrf.mxu0
  %v2987 = vadd.f32 %v2874, %v2986
  %v2988 = vpop.f32.mrf.mxu0
  %v2989 = vadd.f32 %v2876, %v2988
  %v2990 = vpop.f32.mrf.mxu0
  %v2991 = vadd.f32 %v2878, %v2990
  %v2992 = vpop.f32.mrf.mxu0
  %v2993 = vadd.f32 %v2880, %v2992
  %2994 = vdwg.mxu0
  %2995 = vmatprep.subr.bf16.mxu0 %v2012
  %2996 = vmatpush1.bf16.msra.mxu0 %v2011
  %2997 = vmatprep.subr.bf16.mxu0 %v2010
  %2998 = vmatpush1.bf16.msra.mxu0 %v2009
  %2999 = vmatprep.subr.bf16.mxu0 %v2008
  %3000 = vmatpush1.bf16.msra.mxu0 %v2007
  %3001 = vmatprep.subr.bf16.mxu0 %v2006
  %3002 = vmatpush1.bf16.msra.mxu0 %v2005
  %3003 = vmatprep.subr.bf16.mxu0 %v2004
  %3004 = vmatpush1.bf16.msra.mxu0 %v2003
  %3005 = vmatprep.subr.bf16.mxu0 %v2002
  %3006 = vmatpush1.bf16.msra.mxu0 %v2001
  %3007 = vmatprep.subr.bf16.mxu0 %v2000
  %3008 = vmatpush1.bf16.msra.mxu0 %v1999
  %3009 = vmatprep.subr.bf16.mxu0 %v1998
  %3010 = vmatpush1.bf16.msra.mxu0 %v1997
  %3011 = vmatprep.subr.bf16.mxu0 %v2028
  %3012 = vmatpush2.bf16.msra.mxu0 %v2027
  %3013 = vmatprep.subr.bf16.mxu0 %v2026
  %3014 = vmatpush2.bf16.msra.mxu0 %v2025
  %3015 = vmatprep.subr.bf16.mxu0 %v2024
  %3016 = vmatpush2.bf16.msra.mxu0 %v2023
  %3017 = vmatprep.subr.bf16.mxu0 %v2022
  %3018 = vmatpush2.bf16.msra.mxu0 %v2021
  %3019 = vmatprep.subr.bf16.mxu0 %v2020
  %3020 = vmatpush2.bf16.msra.mxu0 %v2019
  %3021 = vmatprep.subr.bf16.mxu0 %v2018
  %3022 = vmatpush2.bf16.msra.mxu0 %v2017
  %3023 = vmatprep.subr.bf16.mxu0 %v2016
  %3024 = vmatpush2.bf16.msra.mxu0 %v2015
  %3025 = vmatprep.subr.bf16.mxu0 %v2014
  %3026 = vmatpush2.bf16.msra.mxu0 %v2013
  %3027 = vmatprep.mubr.bf16.mxu0 %v794
  %3028 = vmatmul.mubr.bf16.gmra.mxu0 %v793
  %v3029 = vpop.f32.mrf.mxu0
  %v3030 = vadd.f32 %v2917, %v3029
  %v3031 = vpop.f32.mrf.mxu0
  %v3032 = vadd.f32 %v2919, %v3031
  %v3033 = vpop.f32.mrf.mxu0
  %v3034 = vadd.f32 %v2921, %v3033
  %v3035 = vpop.f32.mrf.mxu0
  %v3036 = vadd.f32 %v2923, %v3035
  %3037 = vmatprep.mubr.bf16.mxu0 %v810
  %3038 = vmatmul.mubr.bf16.gmra.mxu0 %v809
  %v3039 = vpop.f32.mrf.mxu0
  %v3040 = vadd.f32 %v2927, %v3039
  %v3041 = vpop.f32.mrf.mxu0
  %v3042 = vadd.f32 %v2929, %v3041
  %v3043 = vpop.f32.mrf.mxu0
  %v3044 = vadd.f32 %v2931, %v3043
  %v3045 = vpop.f32.mrf.mxu0
  %v3046 = vadd.f32 %v2933, %v3045
  %3047 = vmatprep.mubr.bf16.mxu0 %v826
  %3048 = vmatmul.mubr.bf16.gmra.mxu0 %v825
  %v3049 = vpop.f32.mrf.mxu0
  %v3050 = vadd.f32 %v2937, %v3049
  %v3051 = vpop.f32.mrf.mxu0
  %v3052 = vadd.f32 %v2939, %v3051
  %v3053 = vpop.f32.mrf.mxu0
  %v3054 = vadd.f32 %v2941, %v3053
  %v3055 = vpop.f32.mrf.mxu0
  %v3056 = vadd.f32 %v2943, %v3055
  %3057 = vmatprep.mubr.bf16.mxu0 %v842
  %3058 = vmatmul.mubr.bf16.gmra.mxu0 %v841
  %v3059 = vpop.f32.mrf.mxu0
  %v3060 = vadd.f32 %v2947, %v3059
  %v3061 = vpop.f32.mrf.mxu0
  %v3062 = vadd.f32 %v2949, %v3061
  %v3063 = vpop.f32.mrf.mxu0
  %v3064 = vadd.f32 %v2951, %v3063
  %v3065 = vpop.f32.mrf.mxu0
  %v3066 = vadd.f32 %v2953, %v3065
  %3067 = vmatprep.mubr.bf16.mxu0 %v858
  %3068 = vmatmul.mubr.bf16.gmra.mxu0 %v857
  %v3069 = vpop.f32.mrf.mxu0
  %v3070 = vadd.f32 %v2957, %v3069
  %v3071 = vpop.f32.mrf.mxu0
  %v3072 = vadd.f32 %v2959, %v3071
  %v3073 = vpop.f32.mrf.mxu0
  %v3074 = vadd.f32 %v2961, %v3073
  %v3075 = vpop.f32.mrf.mxu0
  %v3076 = vadd.f32 %v2963, %v3075
  %3077 = vmatprep.mubr.bf16.mxu0 %v874
  %3078 = vmatmul.mubr.bf16.gmra.mxu0 %v873
  %v3079 = vpop.f32.mrf.mxu0
  %v3080 = vadd.f32 %v2967, %v3079
  %v3081 = vpop.f32.mrf.mxu0
  %v3082 = vadd.f32 %v2969, %v3081
  %v3083 = vpop.f32.mrf.mxu0
  %v3084 = vadd.f32 %v2971, %v3083
  %v3085 = vpop.f32.mrf.mxu0
  %v3086 = vadd.f32 %v2973, %v3085
  %3087 = vmatprep.mubr.bf16.mxu0 %v890
  %3088 = vmatmul.mubr.bf16.gmra.mxu0 %v889
  %v3089 = vpop.f32.mrf.mxu0
  %v3090 = vadd.f32 %v2977, %v3089
  %v3091 = vpop.f32.mrf.mxu0
  %v3092 = vadd.f32 %v2979, %v3091
  %v3093 = vpop.f32.mrf.mxu0
  %v3094 = vadd.f32 %v2981, %v3093
  %v3095 = vpop.f32.mrf.mxu0
  %v3096 = vadd.f32 %v2983, %v3095
  %3097 = vmatprep.mubr.bf16.mxu0 %v906
  %3098 = vmatmul.mubr.bf16.gmra.mxu0 %v905
  %v3099 = vpop.f32.mrf.mxu0
  %v3100 = vadd.f32 %v2987, %v3099
  %v3101 = vpop.f32.mrf.mxu0
  %v3102 = vadd.f32 %v2989, %v3101
  %v3103 = vpop.f32.mrf.mxu0
  %v3104 = vadd.f32 %v2991, %v3103
  %v3105 = vpop.f32.mrf.mxu0
  %v3106 = vadd.f32 %v2993, %v3105
  %3107 = vdwg.mxu0
  %3108 = vmatprep.subr.bf16.mxu0 %v2044
  %3109 = vmatpush1.bf16.msra.mxu0 %v2043
  %3110 = vmatprep.subr.bf16.mxu0 %v2042
  %3111 = vmatpush1.bf16.msra.mxu0 %v2041
  %3112 = vmatprep.subr.bf16.mxu0 %v2040
  %3113 = vmatpush1.bf16.msra.mxu0 %v2039
  %3114 = vmatprep.subr.bf16.mxu0 %v2038
  %3115 = vmatpush1.bf16.msra.mxu0 %v2037
  %3116 = vmatprep.subr.bf16.mxu0 %v2036
  %3117 = vmatpush1.bf16.msra.mxu0 %v2035
  %3118 = vmatprep.subr.bf16.mxu0 %v2034
  %3119 = vmatpush1.bf16.msra.mxu0 %v2033
  %3120 = vmatprep.subr.bf16.mxu0 %v2032
  %3121 = vmatpush1.bf16.msra.mxu0 %v2031
  %3122 = vmatprep.subr.bf16.mxu0 %v2030
  %3123 = vmatpush1.bf16.msra.mxu0 %v2029
  %3124 = vmatprep.subr.bf16.mxu0 %v2060
  %3125 = vmatpush2.bf16.msra.mxu0 %v2059
  %3126 = vmatprep.subr.bf16.mxu0 %v2058
  %3127 = vmatpush2.bf16.msra.mxu0 %v2057
  %3128 = vmatprep.subr.bf16.mxu0 %v2056
  %3129 = vmatpush2.bf16.msra.mxu0 %v2055
  %3130 = vmatprep.subr.bf16.mxu0 %v2054
  %3131 = vmatpush2.bf16.msra.mxu0 %v2053
  %3132 = vmatprep.subr.bf16.mxu0 %v2052
  %3133 = vmatpush2.bf16.msra.mxu0 %v2051
  %3134 = vmatprep.subr.bf16.mxu0 %v2050
  %3135 = vmatpush2.bf16.msra.mxu0 %v2049
  %3136 = vmatprep.subr.bf16.mxu0 %v2048
  %3137 = vmatpush2.bf16.msra.mxu0 %v2047
  %3138 = vmatprep.subr.bf16.mxu0 %v2046
  %3139 = vmatpush2.bf16.msra.mxu0 %v2045
  %3140 = vmatprep.mubr.bf16.mxu0 %v796
  %3141 = vmatmul.mubr.bf16.gmra.mxu0 %v795
  %v3142 = vpop.f32.mrf.mxu0
  %v3143 = vadd.f32 %v3030, %v3142
  %v3144 = vpop.f32.mrf.mxu0
  %v3145 = vadd.f32 %v3032, %v3144
  %v3146 = vpop.f32.mrf.mxu0
  %v3147 = vadd.f32 %v3034, %v3146
  %v3148 = vpop.f32.mrf.mxu0
  %v3149 = vadd.f32 %v3036, %v3148
  %3150 = vmatprep.mubr.bf16.mxu0 %v812
  %3151 = vmatmul.mubr.bf16.gmra.mxu0 %v811
  %v3152 = vpop.f32.mrf.mxu0
  %v3153 = vadd.f32 %v3040, %v3152
  %v3154 = vpop.f32.mrf.mxu0
  %v3155 = vadd.f32 %v3042, %v3154
  %v3156 = vpop.f32.mrf.mxu0
  %v3157 = vadd.f32 %v3044, %v3156
  %v3158 = vpop.f32.mrf.mxu0
  %v3159 = vadd.f32 %v3046, %v3158
  %3160 = vmatprep.mubr.bf16.mxu0 %v828
  %3161 = vmatmul.mubr.bf16.gmra.mxu0 %v827
  %v3162 = vpop.f32.mrf.mxu0
  %v3163 = vadd.f32 %v3050, %v3162
  %v3164 = vpop.f32.mrf.mxu0
  %v3165 = vadd.f32 %v3052, %v3164
  %v3166 = vpop.f32.mrf.mxu0
  %v3167 = vadd.f32 %v3054, %v3166
  %v3168 = vpop.f32.mrf.mxu0
  %v3169 = vadd.f32 %v3056, %v3168
  %3170 = vmatprep.mubr.bf16.mxu0 %v844
  %3171 = vmatmul.mubr.bf16.gmra.mxu0 %v843
  %v3172 = vpop.f32.mrf.mxu0
  %v3173 = vadd.f32 %v3060, %v3172
  %v3174 = vpop.f32.mrf.mxu0
  %v3175 = vadd.f32 %v3062, %v3174
  %v3176 = vpop.f32.mrf.mxu0
  %v3177 = vadd.f32 %v3064, %v3176
  %v3178 = vpop.f32.mrf.mxu0
  %v3179 = vadd.f32 %v3066, %v3178
  %3180 = vmatprep.mubr.bf16.mxu0 %v860
  %3181 = vmatmul.mubr.bf16.gmra.mxu0 %v859
  %v3182 = vpop.f32.mrf.mxu0
  %v3183 = vadd.f32 %v3070, %v3182
  %v3184 = vpop.f32.mrf.mxu0
  %v3185 = vadd.f32 %v3072, %v3184
  %v3186 = vpop.f32.mrf.mxu0
  %v3187 = vadd.f32 %v3074, %v3186
  %v3188 = vpop.f32.mrf.mxu0
  %v3189 = vadd.f32 %v3076, %v3188
  %3190 = vmatprep.mubr.bf16.mxu0 %v876
  %3191 = vmatmul.mubr.bf16.gmra.mxu0 %v875
  %v3192 = vpop.f32.mrf.mxu0
  %v3193 = vadd.f32 %v3080, %v3192
  %v3194 = vpop.f32.mrf.mxu0
  %v3195 = vadd.f32 %v3082, %v3194
  %v3196 = vpop.f32.mrf.mxu0
  %v3197 = vadd.f32 %v3084, %v3196
  %v3198 = vpop.f32.mrf.mxu0
  %v3199 = vadd.f32 %v3086, %v3198
  %3200 = vmatprep.mubr.bf16.mxu0 %v892
  %3201 = vmatmul.mubr.bf16.gmra.mxu0 %v891
  %v3202 = vpop.f32.mrf.mxu0
  %v3203 = vadd.f32 %v3090, %v3202
  %v3204 = vpop.f32.mrf.mxu0
  %v3205 = vadd.f32 %v3092, %v3204
  %v3206 = vpop.f32.mrf.mxu0
  %v3207 = vadd.f32 %v3094, %v3206
  %v3208 = vpop.f32.mrf.mxu0
  %v3209 = vadd.f32 %v3096, %v3208
  %3210 = vmatprep.mubr.bf16.mxu0 %v908
  %3211 = vmatmul.mubr.bf16.gmra.mxu0 %v907
  %v3212 = vpop.f32.mrf.mxu0
  %v3213 = vadd.f32 %v3100, %v3212
  %v3214 = vpop.f32.mrf.mxu0
  %v3215 = vadd.f32 %v3102, %v3214
  %v3216 = vpop.f32.mrf.mxu0
  %v3217 = vadd.f32 %v3104, %v3216
  %v3218 = vpop.f32.mrf.mxu0
  %v3219 = vadd.f32 %v3106, %v3218
  %3220 = vdwg.mxu0
  %3221 = vst [vmem:[%s2] sm:$0xff] %v3143
  %3222 = vst [vmem:[%s2 + $0x8] sm:$0xff] %v3145
  %3223 = vst [vmem:[%s2 + $0x10] sm:$0xff] %v3147
  %3224 = vst [vmem:[%s2 + $0x18] sm:$0xff] %v3149
  %3225 = vst [vmem:[%s2 + $0x20] sm:$0xff] %v3153
  %3226 = vst [vmem:[%s2 + $0x28] sm:$0xff] %v3155
  %3227 = vst [vmem:[%s2 + $0x30] sm:$0xff] %v3157
  %3228 = vst [vmem:[%s2 + $0x38] sm:$0xff] %v3159
  %3229 = vst [vmem:[%s2 + $0x40] sm:$0xff] %v3163
  %3230 = vst [vmem:[%s2 + $0x48] sm:$0xff] %v3165
  %3231 = vst [vmem:[%s2 + $0x50] sm:$0xff] %v3167
  %3232 = vst [vmem:[%s2 + $0x58] sm:$0xff] %v3169
  %3233 = vst [vmem:[%s2 + $0x60] sm:$0xff] %v3173
  %3234 = vst [vmem:[%s2 + $0x68] sm:$0xff] %v3175
  %3235 = vst [vmem:[%s2 + $0x70] sm:$0xff] %v3177
  %3236 = vst [vmem:[%s2 + $0x78] sm:$0xff] %v3179
  %3237 = vst [vmem:[%s2 + $0x80] sm:$0xff] %v3183
  %3238 = vst [vmem:[%s2 + $0x88] sm:$0xff] %v3185
  %3239 = vst [vmem:[%s2 + $0x90] sm:$0xff] %v3187
  %3240 = vst [vmem:[%s2 + $0x98] sm:$0xff] %v3189
  %3241 = vst [vmem:[%s2 + $0xa0] sm:$0xff] %v3193
  %3242 = vst [vmem:[%s2 + $0xa8] sm:$0xff] %v3195
  %3243 = vst [vmem:[%s2 + $0xb0] sm:$0xff] %v3197
  %3244 = vst [vmem:[%s2 + $0xb8] sm:$0xff] %v3199
  %3245 = vst [vmem:[%s2 + $0xc0] sm:$0xff] %v3203
  %3246 = vst [vmem:[%s2 + $0xc8] sm:$0xff] %v3205
  %3247 = vst [vmem:[%s2 + $0xd0] sm:$0xff] %v3207
  %3248 = vst [vmem:[%s2 + $0xd8] sm:$0xff] %v3209
  %3249 = vst [vmem:[%s2 + $0xe0] sm:$0xff] %v3213
  %3250 = vst [vmem:[%s2 + $0xe8] sm:$0xff] %v3215
  %3251 = vst [vmem:[%s2 + $0xf0] sm:$0xff] %v3217
  %3252 = vst [vmem:[%s2 + $0xf8] sm:$0xff] %v3219
  %v3253 = vadd.f32 %v3143, %v3147
  %v3254 = vadd.f32 %v3253, %v3153
  %v3255 = vadd.f32 %v3254, %v3157
  %v3256 = vadd.f32 %v3255, %v3163
  %v3257 = vadd.f32 %v3256, %v3167
  %v3258 = vadd.f32 %v3257, %v3173
  %v3259 = vadd.f32 %v3258, %v3177
  %v3260 = vadd.f32 %v3259, %v3183
  %v3261 = vadd.f32 %v3260, %v3187
  %v3262 = vadd.f32 %v3261, %v3193
  %v3263 = vadd.f32 %v3262, %v3197
  %v3264 = vadd.f32 %v3263, %v3203
  %v3265 = vadd.f32 %v3264, %v3207
  %v3266 = vadd.f32 %v3265, %v3213
  %v3267 = vadd.f32 %v3266, %v3217
  %v3268 = vrot.slane %v3267, 4
  %v3269 = vadd.f32 %v3267, %v3268
  %v3270 = vrot.slane %v3269, 2
  %v3271 = vadd.f32 %v3269, %v3270
  %v3272 = vrot.slane %v3271, 1
  %v3273 = vadd.f32 %v3271, %v3272
  %v3274 = vadd.f32 %v3145, %v3149
  %v3275 = vadd.f32 %v3274, %v3155
  %v3276 = vadd.f32 %v3275, %v3159
  %v3277 = vadd.f32 %v3276, %v3165
  %v3278 = vadd.f32 %v3277, %v3169
  %v3279 = vadd.f32 %v3278, %v3175
  %v3280 = vadd.f32 %v3279, %v3179
  %v3281 = vadd.f32 %v3280, %v3185
  %v3282 = vadd.f32 %v3281, %v3189
  %v3283 = vadd.f32 %v3282, %v3195
  %v3284 = vadd.f32 %v3283, %v3199
  %v3285 = vadd.f32 %v3284, %v3205
  %v3286 = vadd.f32 %v3285, %v3209
  %v3287 = vadd.f32 %v3286, %v3215
  %v3288 = vadd.f32 %v3287, %v3219
  %v3289 = vrot.slane %v3288, 4
  %v3290 = vadd.f32 %v3288, %v3289
  %v3291 = vrot.slane %v3290, 2
  %v3292 = vadd.f32 %v3290, %v3291
  %v3293 = vrot.slane %v3292, 1
  %v3294 = vadd.f32 %v3292, %v3293
  %v3295 = vmul.f32 %v3143, %v3143
  %v3296 = vmul.f32 %v3145, %v3145
  %v3297 = vmul.f32 %v3147, %v3147
  %v3298 = vmul.f32 %v3149, %v3149
  %v3299 = vmul.f32 %v3153, %v3153
  %v3300 = vmul.f32 %v3155, %v3155
  %v3301 = vmul.f32 %v3157, %v3157
  %v3302 = vmul.f32 %v3159, %v3159
  %v3303 = vmul.f32 %v3163, %v3163
  %v3304 = vmul.f32 %v3165, %v3165
  %v3305 = vmul.f32 %v3167, %v3167
  %v3306 = vmul.f32 %v3169, %v3169
  %v3307 = vmul.f32 %v3173, %v3173
  %v3308 = vmul.f32 %v3175, %v3175
  %v3309 = vmul.f32 %v3177, %v3177
  %v3310 = vmul.f32 %v3179, %v3179
  %v3311 = vmul.f32 %v3183, %v3183
  %v3312 = vmul.f32 %v3185, %v3185
  %v3313 = vmul.f32 %v3187, %v3187
  %v3314 = vmul.f32 %v3189, %v3189
  %v3315 = vmul.f32 %v3193, %v3193
  %v3316 = vmul.f32 %v3195, %v3195
  %v3317 = vmul.f32 %v3197, %v3197
  %v3318 = vmul.f32 %v3199, %v3199
  %v3319 = vmul.f32 %v3203, %v3203
  %v3320 = vmul.f32 %v3205, %v3205
  %v3321 = vmul.f32 %v3207, %v3207
  %v3322 = vmul.f32 %v3209, %v3209
  %v3323 = vmul.f32 %v3213, %v3213
  %v3324 = vmul.f32 %v3215, %v3215
  %v3325 = vmul.f32 %v3217, %v3217
  %v3326 = vmul.f32 %v3219, %v3219
  %v3327 = vadd.f32 %v3295, %v3297
  %v3328 = vadd.f32 %v3327, %v3299
  %v3329 = vadd.f32 %v3328, %v3301
  %v3330 = vadd.f32 %v3329, %v3303
  %v3331 = vadd.f32 %v3330, %v3305
  %v3332 = vadd.f32 %v3331, %v3307
  %v3333 = vadd.f32 %v3332, %v3309
  %v3334 = vadd.f32 %v3333, %v3311
  %v3335 = vadd.f32 %v3334, %v3313
  %v3336 = vadd.f32 %v3335, %v3315
  %v3337 = vadd.f32 %v3336, %v3317
  %v3338 = vadd.f32 %v3337, %v3319
  %v3339 = vadd.f32 %v3338, %v3321
  %v3340 = vadd.f32 %v3339, %v3323
  %v3341 = vadd.f32 %v3340, %v3325
  %v3342 = vrot.slane %v3341, 4
  %v3343 = vadd.f32 %v3341, %v3342
  %v3344 = vrot.slane %v3343, 2
  %v3345 = vadd.f32 %v3343, %v3344
  %v3346 = vrot.slane %v3345, 1
  %v3347 = vadd.f32 %v3345, %v3346
  %v3348 = vadd.f32 %v3296, %v3298
  %v3349 = vadd.f32 %v3348, %v3300
  %v3350 = vadd.f32 %v3349, %v3302
  %v3351 = vadd.f32 %v3350, %v3304
  %v3352 = vadd.f32 %v3351, %v3306
  %v3353 = vadd.f32 %v3352, %v3308
  %v3354 = vadd.f32 %v3353, %v3310
  %v3355 = vadd.f32 %v3354, %v3312
  %v3356 = vadd.f32 %v3355, %v3314
  %v3357 = vadd.f32 %v3356, %v3316
  %v3358 = vadd.f32 %v3357, %v3318
  %v3359 = vadd.f32 %v3358, %v3320
  %v3360 = vadd.f32 %v3359, %v3322
  %v3361 = vadd.f32 %v3360, %v3324
  %v3362 = vadd.f32 %v3361, %v3326
  %v3363 = vrot.slane %v3362, 4
  %v3364 = vadd.f32 %v3362, %v3363
  %v3365 = vrot.slane %v3364, 2
  %v3366 = vadd.f32 %v3364, %v3365
  %v3367 = vrot.slane %v3366, 1
  %v3368 = vadd.f32 %v3366, %v3367
  %vm3369 = vcmask 1040384
  %v3370 = vsel %vm3369, %v3273, %v3347
  %v3371 = vsel %vm3369, %v3294, %v3368
  %v3374 = vcombine.low %v3370, %v3371
  %v3376 = vunpack.c.l.s4 1983009808
  %v3377 = vunpack.c.0.s8 %v3376
  %v3378 = vlaneseq
  %v3379 = vshrl.u32 %v3378, 7
  %v3380 = vsub.s32 %v3377, %v3379
  %v3381 = vrot.slane %v3374, %v3380
  %3383 = vst [vmem:[%s3] sm:$0xf] %v3381
  // Predicated region
  $region10: #{bla_forward.7} parent=0 // pred_check
    _
  $region11: #{bla_forward.7} parent=0 // pred_check_branch
    %3385 = sbr.rel (0) target = $region13
  $region12: #{bla_forward.7} parent=0 // pred_region
    _
  $region13: #{bla_forward.7} parent=0 // pred_fallthru
    _
  // Predicated region
  $region14: #{bla_forward.7} parent=0 // pred_check
    _
  $region15: #{bla_forward.7} parent=0 // pred_check_branch
    %3387 = sbr.rel (0) target = $region17
  $region16: #{bla_forward.7} parent=0 // pred_region
    _
  $region17: #{bla_forward.7} parent=0 // pred_fallthru
    _
  // Predicated region
  $region18: #{bla_forward.7} parent=0 // pred_check
    _
  $region19: #{bla_forward.7} parent=0 // pred_check_branch
    %3389 = sbr.rel (0) target = $region21
  $region20: #{bla_forward.7} parent=0 // pred_region
    _
  $region21: #{bla_forward.7} parent=0 // pred_fallthru
    _
  // Predicated region
  $region22: #{bla_forward.7} parent=0 // pred_check
    _
  $region23: #{bla_forward.7} parent=0 // pred_check_branch
    %3391 = sbr.rel (0) target = $region25
  $region24: #{bla_forward.7} parent=0 // pred_region
    _
  $region25: #{bla_forward.7} parent=0 // pred_fallthru
    _

// kernel: bla_forward.9
$region0: #{bla_forward.9}
  #allocation0 [shape = 'u32[]', space=smem, size = 0x4, offset = 0x4, fixed_abs, tag = 'smem constant byte address 0x4 - core index']
  #allocation1 [shape = 'u32[144,128]{1,0:T(1,128)}', space=vmem, size = 0x12000, scoped, tag = 'internal scratch']
  %s0 = inlined_call_operand.vmem [shape: bf16[8,12544], index: 0, kind: input, shape index: {}]
  %s1 = inlined_call_operand.vmem [shape: bf16[12544,128], index: 1, kind: input, shape index: {}]
  %s2 = inlined_call_operand.vmem [shape: f32[8,128], index: 2, kind: output, shape index: {}]
  %s3 = sld [smem:[#allocation0]]
  $region18: #{bla_forward.9} parent=0
    _
  %s5 = ssub.s32 1, %s3
  %s6 = scalar_select 0, %s5, %s3
  // Predicated region
  $region2: #{bla_forward.9} parent=0 // pred_check
    _
  $region3: #{bla_forward.9} parent=0 // pred_check_branch
    %8 = sbr.rel (0) target = $region5
  $region4: #{bla_forward.9} parent=0 // pred_region
    _
  $region5: #{bla_forward.9} parent=0 // pred_fallthru
    _
  // Predicated region
  $region6: #{bla_forward.9} parent=0 // pred_check
    _
  $region7: #{bla_forward.9} parent=0 // pred_check_branch
    %10 = sbr.rel (0) target = $region9
  $region8: #{bla_forward.9} parent=0 // pred_region
    _
  $region9: #{bla_forward.9} parent=0 // pred_fallthru
    _
  %v12 = vld [vmem:[%s0] sm:$0xff]
  %v13 = vld [vmem:[%s0 + $0x8] sm:$0xff]
  %v14 = vld [vmem:[%s0 + $0x10] sm:$0xff]
  %v15 = vld [vmem:[%s0 + $0x18] sm:$0xff]
  %v16 = vld [vmem:[%s0 + $0x20] sm:$0xff]
  %v17 = vld [vmem:[%s0 + $0x28] sm:$0xff]
  %v18 = vld [vmem:[%s0 + $0x30] sm:$0xff]
  %v19 = vld [vmem:[%s0 + $0x38] sm:$0xff]
  %v20 = vld [vmem:[%s0 + $0x40] sm:$0xff]
  %v21 = vld [vmem:[%s0 + $0x48] sm:$0xff]
  %v22 = vld [vmem:[%s0 + $0x50] sm:$0xff]
  %v23 = vld [vmem:[%s0 + $0x58] sm:$0xff]
  %v24 = vld [vmem:[%s0 + $0x60] sm:$0xff]
  %v25 = vld [vmem:[%s0 + $0x68] sm:$0xff]
  %v26 = vld [vmem:[%s0 + $0x70] sm:$0xff]
  %v27 = vld [vmem:[%s0 + $0x78] sm:$0xff]
  %v28 = vld [vmem:[%s0 + $0x80] sm:$0xff]
  %v29 = vld [vmem:[%s0 + $0x88] sm:$0xff]
  %v30 = vld [vmem:[%s0 + $0x90] sm:$0xff]
  %v31 = vld [vmem:[%s0 + $0x98] sm:$0xff]
  %v32 = vld [vmem:[%s0 + $0xa0] sm:$0xff]
  %v33 = vld [vmem:[%s0 + $0xa8] sm:$0xff]
  %v34 = vld [vmem:[%s0 + $0xb0] sm:$0xff]
  %v35 = vld [vmem:[%s0 + $0xb8] sm:$0xff]
  %v36 = vld [vmem:[%s0 + $0xc0] sm:$0xff]
  %v37 = vld [vmem:[%s0 + $0xc8] sm:$0xff]
  %v38 = vld [vmem:[%s0 + $0xd0] sm:$0xff]
  %v39 = vld [vmem:[%s0 + $0xd8] sm:$0xff]
  %v40 = vld [vmem:[%s0 + $0xe0] sm:$0xff]
  %v41 = vld [vmem:[%s0 + $0xe8] sm:$0xff]
  %v42 = vld [vmem:[%s0 + $0xf0] sm:$0xff]
  %v43 = vld [vmem:[%s0 + $0xf8] sm:$0xff]
  %v44 = vld [vmem:[%s0 + $0x100] sm:$0xff]
  %v45 = vld [vmem:[%s0 + $0x108] sm:$0xff]
  %v46 = vld [vmem:[%s0 + $0x110] sm:$0xff]
  %v47 = vld [vmem:[%s0 + $0x118] sm:$0xff]
  %v48 = vld [vmem:[%s0 + $0x120] sm:$0xff]
  %v49 = vld [vmem:[%s0 + $0x128] sm:$0xff]
  %v50 = vld [vmem:[%s0 + $0x130] sm:$0xff]
  %v51 = vld [vmem:[%s0 + $0x138] sm:$0xff]
  %v52 = vld [vmem:[%s0 + $0x140] sm:$0xff]
  %v53 = vld [vmem:[%s0 + $0x148] sm:$0xff]
  %v54 = vld [vmem:[%s0 + $0x150] sm:$0xff]
  %v55 = vld [vmem:[%s0 + $0x158] sm:$0xff]
  %v56 = vld [vmem:[%s0 + $0x160] sm:$0xff]
  %v57 = vld [vmem:[%s0 + $0x168] sm:$0xff]
  %v58 = vld [vmem:[%s0 + $0x170] sm:$0xff]
  %v59 = vld [vmem:[%s0 + $0x178] sm:$0xff]
  %v60 = vld [vmem:[%s0 + $0x180] sm:$0xff]
  %v61 = vld [vmem:[%s1] sm:$0xf]
  %v62 = vld [vmem:[%s1 + $0x4] sm:$0xf]
  %v63 = vld [vmem:[%s1 + $0x8] sm:$0xf]
  %v64 = vld [vmem:[%s1 + $0xc] sm:$0xf]
  %v65 = vld [vmem:[%s1 + $0x10] sm:$0xf]
  %v66 = vld [vmem:[%s1 + $0x14] sm:$0xf]
  %v67 = vld [vmem:[%s1 + $0x18] sm:$0xf]
  %v68 = vld [vmem:[%s1 + $0x1c] sm:$0xf]
  %v69 = vld [vmem:[%s1 + $0x20] sm:$0xf]
  %v70 = vld [vmem:[%s1 + $0x24] sm:$0xf]
  %v71 = vld [vmem:[%s1 + $0x28] sm:$0xf]
  %v72 = vld [vmem:[%s1 + $0x2c] sm:$0xf]
  %v73 = vld [vmem:[%s1 + $0x30] sm:$0xf]
  %v74 = vld [vmem:[%s1 + $0x34] sm:$0xf]
  %v75 = vld [vmem:[%s1 + $0x38] sm:$0xf]
  %v76 = vld [vmem:[%s1 + $0x3c] sm:$0xf]
  %v77 = vld [vmem:[%s1 + $0x40] sm:$0xf]
  %v78 = vld [vmem:[%s1 + $0x44] sm:$0xf]
  %v79 = vld [vmem:[%s1 + $0x48] sm:$0xf]
  %v80 = vld [vmem:[%s1 + $0x4c] sm:$0xf]
  %v81 = vld [vmem:[%s1 + $0x50] sm:$0xf]
  %v82 = vld [vmem:[%s1 + $0x54] sm:$0xf]
  %v83 = vld [vmem:[%s1 + $0x58] sm:$0xf]
  %v84 = vld [vmem:[%s1 + $0x5c] sm:$0xf]
  %v85 = vld [vmem:[%s1 + $0x60] sm:$0xf]
  %v86 = vld [vmem:[%s1 + $0x64] sm:$0xf]
  %v87 = vld [vmem:[%s1 + $0x68] sm:$0xf]
  %v88 = vld [vmem:[%s1 + $0x6c] sm:$0xf]
  %v89 = vld [vmem:[%s1 + $0x70] sm:$0xf]
  %v90 = vld [vmem:[%s1 + $0x74] sm:$0xf]
  %v91 = vld [vmem:[%s1 + $0x78] sm:$0xf]
  %v92 = vld [vmem:[%s1 + $0x7c] sm:$0xf]
  %v93 = vld [vmem:[%s1 + $0x80] sm:$0xf]
  %v94 = vld [vmem:[%s1 + $0x84] sm:$0xf]
  %v95 = vld [vmem:[%s1 + $0x88] sm:$0xf]
  %v96 = vld [vmem:[%s1 + $0x8c] sm:$0xf]
  %v97 = vld [vmem:[%s1 + $0x90] sm:$0xf]
  %v98 = vld [vmem:[%s1 + $0x94] sm:$0xf]
  %v99 = vld [vmem:[%s1 + $0x98] sm:$0xf]
  %v100 = vld [vmem:[%s1 + $0x9c] sm:$0xf]
  %v101 = vld [vmem:[%s1 + $0xa0] sm:$0xf]
  %v102 = vld [vmem:[%s1 + $0xa4] sm:$0xf]
  %v103 = vld [vmem:[%s1 + $0xa8] sm:$0xf]
  %v104 = vld [vmem:[%s1 + $0xac] sm:$0xf]
  %v105 = vld [vmem:[%s1 + $0xb0] sm:$0xf]
  %v106 = vld [vmem:[%s1 + $0xb4] sm:$0xf]
  %v107 = vld [vmem:[%s1 + $0xb8] sm:$0xf]
  %v108 = vld [vmem:[%s1 + $0xbc] sm:$0xf]
  %v109 = vld [vmem:[%s1 + $0xc0] sm:$0xf]
  %v110 = vld [vmem:[%s1 + $0xc4] sm:$0xf]
  %v111 = vld [vmem:[%s1 + $0xc8] sm:$0xf]
  %v112 = vld [vmem:[%s1 + $0xcc] sm:$0xf]
  %v113 = vld [vmem:[%s1 + $0xd0] sm:$0xf]
  %v114 = vld [vmem:[%s1 + $0xd4] sm:$0xf]
  %v115 = vld [vmem:[%s1 + $0xd8] sm:$0xf]
  %v116 = vld [vmem:[%s1 + $0xdc] sm:$0xf]
  %v117 = vld [vmem:[%s1 + $0xe0] sm:$0xf]
  %v118 = vld [vmem:[%s1 + $0xe4] sm:$0xf]
  %v119 = vld [vmem:[%s1 + $0xe8] sm:$0xf]
  %v120 = vld [vmem:[%s1 + $0xec] sm:$0xf]
  %v121 = vld [vmem:[%s1 + $0xf0] sm:$0xf]
  %v122 = vld [vmem:[%s1 + $0xf4] sm:$0xf]
  %v123 = vld [vmem:[%s1 + $0xf8] sm:$0xf]
  %v124 = vld [vmem:[%s1 + $0xfc] sm:$0xf]
  %v125 = vld [vmem:[%s1 + $0x100] sm:$0xf]
  %v126 = vld [vmem:[%s1 + $0x104] sm:$0xf]
  %v127 = vld [vmem:[%s1 + $0x108] sm:$0xf]
  %v128 = vld [vmem:[%s1 + $0x10c] sm:$0xf]
  %v129 = vld [vmem:[%s1 + $0x110] sm:$0xf]
  %v130 = vld [vmem:[%s1 + $0x114] sm:$0xf]
  %v131 = vld [vmem:[%s1 + $0x118] sm:$0xf]
  %v132 = vld [vmem:[%s1 + $0x11c] sm:$0xf]
  %v133 = vld [vmem:[%s1 + $0x120] sm:$0xf]
  %v134 = vld [vmem:[%s1 + $0x124] sm:$0xf]
  %v135 = vld [vmem:[%s1 + $0x128] sm:$0xf]
  %v136 = vld [vmem:[%s1 + $0x12c] sm:$0xf]
  %v137 = vld [vmem:[%s1 + $0x130] sm:$0xf]
  %v138 = vld [vmem:[%s1 + $0x134] sm:$0xf]
  %v139 = vld [vmem:[%s1 + $0x138] sm:$0xf]
  %v140 = vld [vmem:[%s1 + $0x13c] sm:$0xf]
  %v141 = vld [vmem:[%s1 + $0x140] sm:$0xf]
  %v142 = vld [vmem:[%s1 + $0x144] sm:$0xf]
  %v143 = vld [vmem:[%s1 + $0x148] sm:$0xf]
  %v144 = vld [vmem:[%s1 + $0x14c] sm:$0xf]
  %v145 = vld [vmem:[%s1 + $0x150] sm:$0xf]
  %v146 = vld [vmem:[%s1 + $0x154] sm:$0xf]
  %v147 = vld [vmem:[%s1 + $0x158] sm:$0xf]
  %v148 = vld [vmem:[%s1 + $0x15c] sm:$0xf]
  %v149 = vld [vmem:[%s1 + $0x160] sm:$0xf]
  %v150 = vld [vmem:[%s1 + $0x164] sm:$0xf]
  %v151 = vld [vmem:[%s1 + $0x168] sm:$0xf]
  %v152 = vld [vmem:[%s1 + $0x16c] sm:$0xf]
  %v153 = vld [vmem:[%s1 + $0x170] sm:$0xf]
  %v154 = vld [vmem:[%s1 + $0x174] sm:$0xf]
  %v155 = vld [vmem:[%s1 + $0x178] sm:$0xf]
  %v156 = vld [vmem:[%s1 + $0x17c] sm:$0xf]
  %v157 = vld [vmem:[%s1 + $0x180] sm:$0xf]
  %v158 = vld [vmem:[%s1 + $0x184] sm:$0xf]
  %v159 = vld [vmem:[%s1 + $0x188] sm:$0xf]
  %v160 = vld [vmem:[%s1 + $0x18c] sm:$0xf]
  %v161 = vld [vmem:[%s1 + $0x190] sm:$0xf]
  %v162 = vld [vmem:[%s1 + $0x194] sm:$0xf]
  %v163 = vld [vmem:[%s1 + $0x198] sm:$0xf]
  %v164 = vld [vmem:[%s1 + $0x19c] sm:$0xf]
  %v165 = vld [vmem:[%s1 + $0x1a0] sm:$0xf]
  %v166 = vld [vmem:[%s1 + $0x1a4] sm:$0xf]
  %v167 = vld [vmem:[%s1 + $0x1a8] sm:$0xf]
  %v168 = vld [vmem:[%s1 + $0x1ac] sm:$0xf]
  %v169 = vld [vmem:[%s1 + $0x1b0] sm:$0xf]
  %v170 = vld [vmem:[%s1 + $0x1b4] sm:$0xf]
  %v171 = vld [vmem:[%s1 + $0x1b8] sm:$0xf]
  %v172 = vld [vmem:[%s1 + $0x1bc] sm:$0xf]
  %v173 = vld [vmem:[%s1 + $0x1c0] sm:$0xf]
  %v174 = vld [vmem:[%s1 + $0x1c4] sm:$0xf]
  %v175 = vld [vmem:[%s1 + $0x1c8] sm:$0xf]
  %v176 = vld [vmem:[%s1 + $0x1cc] sm:$0xf]
  %v177 = vld [vmem:[%s1 + $0x1d0] sm:$0xf]
  %v178 = vld [vmem:[%s1 + $0x1d4] sm:$0xf]
  %v179 = vld [vmem:[%s1 + $0x1d8] sm:$0xf]
  %v180 = vld [vmem:[%s1 + $0x1dc] sm:$0xf]
  %v181 = vld [vmem:[%s1 + $0x1e0] sm:$0xf]
  %v182 = vld [vmem:[%s1 + $0x1e4] sm:$0xf]
  %v183 = vld [vmem:[%s1 + $0x1e8] sm:$0xf]
  %v184 = vld [vmem:[%s1 + $0x1ec] sm:$0xf]
  %v185 = vld [vmem:[%s1 + $0x1f0] sm:$0xf]
  %v186 = vld [vmem:[%s1 + $0x1f4] sm:$0xf]
  %v187 = vld [vmem:[%s1 + $0x1f8] sm:$0xf]
  %v188 = vld [vmem:[%s1 + $0x1fc] sm:$0xf]
  %v189 = vld [vmem:[%s1 + $0x200] sm:$0xf]
  %v190 = vld [vmem:[%s1 + $0x204] sm:$0xf]
  %v191 = vld [vmem:[%s1 + $0x208] sm:$0xf]
  %v192 = vld [vmem:[%s1 + $0x20c] sm:$0xf]
  %v193 = vld [vmem:[%s1 + $0x210] sm:$0xf]
  %v194 = vld [vmem:[%s1 + $0x214] sm:$0xf]
  %v195 = vld [vmem:[%s1 + $0x218] sm:$0xf]
  %v196 = vld [vmem:[%s1 + $0x21c] sm:$0xf]
  %v197 = vld [vmem:[%s1 + $0x220] sm:$0xf]
  %v198 = vld [vmem:[%s1 + $0x224] sm:$0xf]
  %v199 = vld [vmem:[%s1 + $0x228] sm:$0xf]
  %v200 = vld [vmem:[%s1 + $0x22c] sm:$0xf]
  %v201 = vld [vmem:[%s1 + $0x230] sm:$0xf]
  %v202 = vld [vmem:[%s1 + $0x234] sm:$0xf]
  %v203 = vld [vmem:[%s1 + $0x238] sm:$0xf]
  %v204 = vld [vmem:[%s1 + $0x23c] sm:$0xf]
  %v205 = vld [vmem:[%s1 + $0x240] sm:$0xf]
  %v206 = vld [vmem:[%s1 + $0x244] sm:$0xf]
  %v207 = vld [vmem:[%s1 + $0x248] sm:$0xf]
  %v208 = vld [vmem:[%s1 + $0x24c] sm:$0xf]
  %v209 = vld [vmem:[%s1 + $0x250] sm:$0xf]
  %v210 = vld [vmem:[%s1 + $0x254] sm:$0xf]
  %v211 = vld [vmem:[%s1 + $0x258] sm:$0xf]
  %v212 = vld [vmem:[%s1 + $0x25c] sm:$0xf]
  %v213 = vld [vmem:[%s1 + $0x260] sm:$0xf]
  %v214 = vld [vmem:[%s1 + $0x264] sm:$0xf]
  %v215 = vld [vmem:[%s1 + $0x268] sm:$0xf]
  %v216 = vld [vmem:[%s1 + $0x26c] sm:$0xf]
  %v217 = vld [vmem:[%s1 + $0x270] sm:$0xf]
  %v218 = vld [vmem:[%s1 + $0x274] sm:$0xf]
  %v219 = vld [vmem:[%s1 + $0x278] sm:$0xf]
  %v220 = vld [vmem:[%s1 + $0x27c] sm:$0xf]
  %v221 = vld [vmem:[%s1 + $0x280] sm:$0xf]
  %v222 = vld [vmem:[%s1 + $0x284] sm:$0xf]
  %v223 = vld [vmem:[%s1 + $0x288] sm:$0xf]
  %v224 = vld [vmem:[%s1 + $0x28c] sm:$0xf]
  %v225 = vld [vmem:[%s1 + $0x290] sm:$0xf]
  %v226 = vld [vmem:[%s1 + $0x294] sm:$0xf]
  %v227 = vld [vmem:[%s1 + $0x298] sm:$0xf]
  %v228 = vld [vmem:[%s1 + $0x29c] sm:$0xf]
  %v229 = vld [vmem:[%s1 + $0x2a0] sm:$0xf]
  %v230 = vld [vmem:[%s1 + $0x2a4] sm:$0xf]
  %v231 = vld [vmem:[%s1 + $0x2a8] sm:$0xf]
  %v232 = vld [vmem:[%s1 + $0x2ac] sm:$0xf]
  %v233 = vld [vmem:[%s1 + $0x2b0] sm:$0xf]
  %v234 = vld [vmem:[%s1 + $0x2b4] sm:$0xf]
  %v235 = vld [vmem:[%s1 + $0x2b8] sm:$0xf]
  %v236 = vld [vmem:[%s1 + $0x2bc] sm:$0xf]
  %v237 = vld [vmem:[%s1 + $0x2c0] sm:$0xf]
  %v238 = vld [vmem:[%s1 + $0x2c4] sm:$0xf]
  %v239 = vld [vmem:[%s1 + $0x2c8] sm:$0xf]
  %v240 = vld [vmem:[%s1 + $0x2cc] sm:$0xf]
  %v241 = vld [vmem:[%s1 + $0x2d0] sm:$0xf]
  %v242 = vld [vmem:[%s1 + $0x2d4] sm:$0xf]
  %v243 = vld [vmem:[%s1 + $0x2d8] sm:$0xf]
  %v244 = vld [vmem:[%s1 + $0x2dc] sm:$0xf]
  %v245 = vld [vmem:[%s1 + $0x2e0] sm:$0xf]
  %v246 = vld [vmem:[%s1 + $0x2e4] sm:$0xf]
  %v247 = vld [vmem:[%s1 + $0x2e8] sm:$0xf]
  %v248 = vld [vmem:[%s1 + $0x2ec] sm:$0xf]
  %v249 = vld [vmem:[%s1 + $0x2f0] sm:$0xf]
  %v250 = vld [vmem:[%s1 + $0x2f4] sm:$0xf]
  %v251 = vld [vmem:[%s1 + $0x2f8] sm:$0xf]
  %v252 = vld [vmem:[%s1 + $0x2fc] sm:$0xf]
  %v253 = vld [vmem:[%s1 + $0x300] sm:$0xf]
  %v254 = vld [vmem:[%s1 + $0x304] sm:$0xf]
  %v255 = vld [vmem:[%s1 + $0x308] sm:$0xf]
  %v256 = vld [vmem:[%s1 + $0x30c] sm:$0xf]
  %v257 = vld [vmem:[%s1 + $0x310] sm:$0xf]
  %v258 = vld [vmem:[%s1 + $0x314] sm:$0xf]
  %v259 = vld [vmem:[%s1 + $0x318] sm:$0xf]
  %v260 = vld [vmem:[%s1 + $0x31c] sm:$0xf]
  %v261 = vld [vmem:[%s1 + $0x320] sm:$0xf]
  %v262 = vld [vmem:[%s1 + $0x324] sm:$0xf]
  %v263 = vld [vmem:[%s1 + $0x328] sm:$0xf]
  %v264 = vld [vmem:[%s1 + $0x32c] sm:$0xf]
  %v265 = vld [vmem:[%s1 + $0x330] sm:$0xf]
  %v266 = vld [vmem:[%s1 + $0x334] sm:$0xf]
  %v267 = vld [vmem:[%s1 + $0x338] sm:$0xf]
  %v268 = vld [vmem:[%s1 + $0x33c] sm:$0xf]
  %v269 = vld [vmem:[%s1 + $0x340] sm:$0xf]
  %v270 = vld [vmem:[%s1 + $0x344] sm:$0xf]
  %v271 = vld [vmem:[%s1 + $0x348] sm:$0xf]
  %v272 = vld [vmem:[%s1 + $0x34c] sm:$0xf]
  %v273 = vld [vmem:[%s1 + $0x350] sm:$0xf]
  %v274 = vld [vmem:[%s1 + $0x354] sm:$0xf]
  %v275 = vld [vmem:[%s1 + $0x358] sm:$0xf]
  %v276 = vld [vmem:[%s1 + $0x35c] sm:$0xf]
  %v277 = vld [vmem:[%s1 + $0x360] sm:$0xf]
  %v278 = vld [vmem:[%s1 + $0x364] sm:$0xf]
  %v279 = vld [vmem:[%s1 + $0x368] sm:$0xf]
  %v280 = vld [vmem:[%s1 + $0x36c] sm:$0xf]
  %v281 = vld [vmem:[%s1 + $0x370] sm:$0xf]
  %v282 = vld [vmem:[%s1 + $0x374] sm:$0xf]
  %v283 = vld [vmem:[%s1 + $0x378] sm:$0xf]
  %v284 = vld [vmem:[%s1 + $0x37c] sm:$0xf]
  %v285 = vld [vmem:[%s1 + $0x380] sm:$0xf]
  %v286 = vld [vmem:[%s1 + $0x384] sm:$0xf]
  %v287 = vld [vmem:[%s1 + $0x388] sm:$0xf]
  %v288 = vld [vmem:[%s1 + $0x38c] sm:$0xf]
  %v289 = vld [vmem:[%s1 + $0x390] sm:$0xf]
  %v290 = vld [vmem:[%s1 + $0x394] sm:$0xf]
  %v291 = vld [vmem:[%s1 + $0x398] sm:$0xf]
  %v292 = vld [vmem:[%s1 + $0x39c] sm:$0xf]
  %v293 = vld [vmem:[%s1 + $0x3a0] sm:$0xf]
  %v294 = vld [vmem:[%s1 + $0x3a4] sm:$0xf]
  %v295 = vld [vmem:[%s1 + $0x3a8] sm:$0xf]
  %v296 = vld [vmem:[%s1 + $0x3ac] sm:$0xf]
  %v297 = vld [vmem:[%s1 + $0x3b0] sm:$0xf]
  %v298 = vld [vmem:[%s1 + $0x3b4] sm:$0xf]
  %v299 = vld [vmem:[%s1 + $0x3b8] sm:$0xf]
  %v300 = vld [vmem:[%s1 + $0x3bc] sm:$0xf]
  %v301 = vld [vmem:[%s1 + $0x3c0] sm:$0xf]
  %v302 = vld [vmem:[%s1 + $0x3c4] sm:$0xf]
  %v303 = vld [vmem:[%s1 + $0x3c8] sm:$0xf]
  %v304 = vld [vmem:[%s1 + $0x3cc] sm:$0xf]
  %v305 = vld [vmem:[%s1 + $0x3d0] sm:$0xf]
  %v306 = vld [vmem:[%s1 + $0x3d4] sm:$0xf]
  %v307 = vld [vmem:[%s1 + $0x3d8] sm:$0xf]
  %v308 = vld [vmem:[%s1 + $0x3dc] sm:$0xf]
  %v309 = vld [vmem:[%s1 + $0x3e0] sm:$0xf]
  %v310 = vld [vmem:[%s1 + $0x3e4] sm:$0xf]
  %v311 = vld [vmem:[%s1 + $0x3e8] sm:$0xf]
  %v312 = vld [vmem:[%s1 + $0x3ec] sm:$0xf]
  %v313 = vld [vmem:[%s1 + $0x3f0] sm:$0xf]
  %v314 = vld [vmem:[%s1 + $0x3f4] sm:$0xf]
  %v315 = vld [vmem:[%s1 + $0x3f8] sm:$0xf]
  %v316 = vld [vmem:[%s1 + $0x3fc] sm:$0xf]
  %v317 = vld [vmem:[%s1 + $0x400] sm:$0xf]
  %v318 = vld [vmem:[%s1 + $0x404] sm:$0xf]
  %v319 = vld [vmem:[%s1 + $0x408] sm:$0xf]
  %v320 = vld [vmem:[%s1 + $0x40c] sm:$0xf]
  %v321 = vld [vmem:[%s1 + $0x410] sm:$0xf]
  %v322 = vld [vmem:[%s1 + $0x414] sm:$0xf]
  %v323 = vld [vmem:[%s1 + $0x418] sm:$0xf]
  %v324 = vld [vmem:[%s1 + $0x41c] sm:$0xf]
  %v325 = vld [vmem:[%s1 + $0x420] sm:$0xf]
  %v326 = vld [vmem:[%s1 + $0x424] sm:$0xf]
  %v327 = vld [vmem:[%s1 + $0x428] sm:$0xf]
  %v328 = vld [vmem:[%s1 + $0x42c] sm:$0xf]
  %v329 = vld [vmem:[%s1 + $0x430] sm:$0xf]
  %v330 = vld [vmem:[%s1 + $0x434] sm:$0xf]
  %v331 = vld [vmem:[%s1 + $0x438] sm:$0xf]
  %v332 = vld [vmem:[%s1 + $0x43c] sm:$0xf]
  %v333 = vld [vmem:[%s1 + $0x440] sm:$0xf]
  %v334 = vld [vmem:[%s1 + $0x444] sm:$0xf]
  %v335 = vld [vmem:[%s1 + $0x448] sm:$0xf]
  %v336 = vld [vmem:[%s1 + $0x44c] sm:$0xf]
  %v337 = vld [vmem:[%s1 + $0x450] sm:$0xf]
  %v338 = vld [vmem:[%s1 + $0x454] sm:$0xf]
  %v339 = vld [vmem:[%s1 + $0x458] sm:$0xf]
  %v340 = vld [vmem:[%s1 + $0x45c] sm:$0xf]
  %v341 = vld [vmem:[%s1 + $0x460] sm:$0xf]
  %v342 = vld [vmem:[%s1 + $0x464] sm:$0xf]
  %v343 = vld [vmem:[%s1 + $0x468] sm:$0xf]
  %v344 = vld [vmem:[%s1 + $0x46c] sm:$0xf]
  %v345 = vld [vmem:[%s1 + $0x470] sm:$0xf]
  %v346 = vld [vmem:[%s1 + $0x474] sm:$0xf]
  %v347 = vld [vmem:[%s1 + $0x478] sm:$0xf]
  %v348 = vld [vmem:[%s1 + $0x47c] sm:$0xf]
  %v349 = vld [vmem:[%s1 + $0x480] sm:$0xf]
  %v350 = vld [vmem:[%s1 + $0x484] sm:$0xf]
  %v351 = vld [vmem:[%s1 + $0x488] sm:$0xf]
  %v352 = vld [vmem:[%s1 + $0x48c] sm:$0xf]
  %v353 = vld [vmem:[%s1 + $0x490] sm:$0xf]
  %v354 = vld [vmem:[%s1 + $0x494] sm:$0xf]
  %v355 = vld [vmem:[%s1 + $0x498] sm:$0xf]
  %v356 = vld [vmem:[%s1 + $0x49c] sm:$0xf]
  %v357 = vld [vmem:[%s1 + $0x4a0] sm:$0xf]
  %v358 = vld [vmem:[%s1 + $0x4a4] sm:$0xf]
  %v359 = vld [vmem:[%s1 + $0x4a8] sm:$0xf]
  %v360 = vld [vmem:[%s1 + $0x4ac] sm:$0xf]
  %v361 = vld [vmem:[%s1 + $0x4b0] sm:$0xf]
  %v362 = vld [vmem:[%s1 + $0x4b4] sm:$0xf]
  %v363 = vld [vmem:[%s1 + $0x4b8] sm:$0xf]
  %v364 = vld [vmem:[%s1 + $0x4bc] sm:$0xf]
  %v365 = vld [vmem:[%s1 + $0x4c0] sm:$0xf]
  %v366 = vld [vmem:[%s1 + $0x4c4] sm:$0xf]
  %v367 = vld [vmem:[%s1 + $0x4c8] sm:$0xf]
  %v368 = vld [vmem:[%s1 + $0x4cc] sm:$0xf]
  %v369 = vld [vmem:[%s1 + $0x4d0] sm:$0xf]
  %v370 = vld [vmem:[%s1 + $0x4d4] sm:$0xf]
  %v371 = vld [vmem:[%s1 + $0x4d8] sm:$0xf]
  %v372 = vld [vmem:[%s1 + $0x4dc] sm:$0xf]
  %v373 = vld [vmem:[%s1 + $0x4e0] sm:$0xf]
  %v374 = vld [vmem:[%s1 + $0x4e4] sm:$0xf]
  %v375 = vld [vmem:[%s1 + $0x4e8] sm:$0xf]
  %v376 = vld [vmem:[%s1 + $0x4ec] sm:$0xf]
  %v377 = vld [vmem:[%s1 + $0x4f0] sm:$0xf]
  %v378 = vld [vmem:[%s1 + $0x4f4] sm:$0xf]
  %v379 = vld [vmem:[%s1 + $0x4f8] sm:$0xf]
  %v380 = vld [vmem:[%s1 + $0x4fc] sm:$0xf]
  %v381 = vld [vmem:[%s1 + $0x500] sm:$0xf]
  %v382 = vld [vmem:[%s1 + $0x504] sm:$0xf]
  %v383 = vld [vmem:[%s1 + $0x508] sm:$0xf]
  %v384 = vld [vmem:[%s1 + $0x50c] sm:$0xf]
  %v385 = vld [vmem:[%s1 + $0x510] sm:$0xf]
  %v386 = vld [vmem:[%s1 + $0x514] sm:$0xf]
  %v387 = vld [vmem:[%s1 + $0x518] sm:$0xf]
  %v388 = vld [vmem:[%s1 + $0x51c] sm:$0xf]
  %v389 = vld [vmem:[%s1 + $0x520] sm:$0xf]
  %v390 = vld [vmem:[%s1 + $0x524] sm:$0xf]
  %v391 = vld [vmem:[%s1 + $0x528] sm:$0xf]
  %v392 = vld [vmem:[%s1 + $0x52c] sm:$0xf]
  %v393 = vld [vmem:[%s1 + $0x530] sm:$0xf]
  %v394 = vld [vmem:[%s1 + $0x534] sm:$0xf]
  %v395 = vld [vmem:[%s1 + $0x538] sm:$0xf]
  %v396 = vld [vmem:[%s1 + $0x53c] sm:$0xf]
  %v397 = vld [vmem:[%s1 + $0x540] sm:$0xf]
  %v398 = vld [vmem:[%s1 + $0x544] sm:$0xf]
  %v399 = vld [vmem:[%s1 + $0x548] sm:$0xf]
  %v400 = vld [vmem:[%s1 + $0x54c] sm:$0xf]
  %v401 = vld [vmem:[%s1 + $0x550] sm:$0xf]
  %v402 = vld [vmem:[%s1 + $0x554] sm:$0xf]
  %v403 = vld [vmem:[%s1 + $0x558] sm:$0xf]
  %v404 = vld [vmem:[%s1 + $0x55c] sm:$0xf]
  %v405 = vld [vmem:[%s1 + $0x560] sm:$0xf]
  %v406 = vld [vmem:[%s1 + $0x564] sm:$0xf]
  %v407 = vld [vmem:[%s1 + $0x568] sm:$0xf]
  %v408 = vld [vmem:[%s1 + $0x56c] sm:$0xf]
  %v409 = vld [vmem:[%s1 + $0x570] sm:$0xf]
  %v410 = vld [vmem:[%s1 + $0x574] sm:$0xf]
  %v411 = vld [vmem:[%s1 + $0x578] sm:$0xf]
  %v412 = vld [vmem:[%s1 + $0x57c] sm:$0xf]
  %v413 = vld [vmem:[%s1 + $0x580] sm:$0xf]
  %v414 = vld [vmem:[%s1 + $0x584] sm:$0xf]
  %v415 = vld [vmem:[%s1 + $0x588] sm:$0xf]
  %v416 = vld [vmem:[%s1 + $0x58c] sm:$0xf]
  %v417 = vld [vmem:[%s1 + $0x590] sm:$0xf]
  %v418 = vld [vmem:[%s1 + $0x594] sm:$0xf]
  %v419 = vld [vmem:[%s1 + $0x598] sm:$0xf]
  %v420 = vld [vmem:[%s1 + $0x59c] sm:$0xf]
  %v421 = vld [vmem:[%s1 + $0x5a0] sm:$0xf]
  %v422 = vld [vmem:[%s1 + $0x5a4] sm:$0xf]
  %v423 = vld [vmem:[%s1 + $0x5a8] sm:$0xf]
  %v424 = vld [vmem:[%s1 + $0x5ac] sm:$0xf]
  %v425 = vld [vmem:[%s1 + $0x5b0] sm:$0xf]
  %v426 = vld [vmem:[%s1 + $0x5b4] sm:$0xf]
  %v427 = vld [vmem:[%s1 + $0x5b8] sm:$0xf]
  %v428 = vld [vmem:[%s1 + $0x5bc] sm:$0xf]
  %v429 = vld [vmem:[%s1 + $0x5c0] sm:$0xf]
  %v430 = vld [vmem:[%s1 + $0x5c4] sm:$0xf]
  %v431 = vld [vmem:[%s1 + $0x5c8] sm:$0xf]
  %v432 = vld [vmem:[%s1 + $0x5cc] sm:$0xf]
  %v433 = vld [vmem:[%s1 + $0x5d0] sm:$0xf]
  %v434 = vld [vmem:[%s1 + $0x5d4] sm:$0xf]
  %v435 = vld [vmem:[%s1 + $0x5d8] sm:$0xf]
  %v436 = vld [vmem:[%s1 + $0x5dc] sm:$0xf]
  %v437 = vld [vmem:[%s1 + $0x5e0] sm:$0xf]
  %v438 = vld [vmem:[%s1 + $0x5e4] sm:$0xf]
  %v439 = vld [vmem:[%s1 + $0x5e8] sm:$0xf]
  %v440 = vld [vmem:[%s1 + $0x5ec] sm:$0xf]
  %v441 = vld [vmem:[%s1 + $0x5f0] sm:$0xf]
  %v442 = vld [vmem:[%s1 + $0x5f4] sm:$0xf]
  %v443 = vld [vmem:[%s1 + $0x5f8] sm:$0xf]
  %v444 = vld [vmem:[%s1 + $0x5fc] sm:$0xf]
  %v445 = vld [vmem:[%s1 + $0x600] sm:$0xf]
  %v446 = vld [vmem:[%s1 + $0x604] sm:$0xf]
  %v447 = vld [vmem:[%s1 + $0x608] sm:$0xf]
  %v448 = vld [vmem:[%s1 + $0x60c] sm:$0xf]
  %v449 = vld [vmem:[%s1 + $0x610] sm:$0xf]
  %v450 = vld [vmem:[%s1 + $0x614] sm:$0xf]
  %v451 = vld [vmem:[%s1 + $0x618] sm:$0xf]
  %v452 = vld [vmem:[%s1 + $0x61c] sm:$0xf]
  %v453 = vld [vmem:[%s1 + $0x620] sm:$0xf]
  %v454 = vld [vmem:[%s1 + $0x624] sm:$0xf]
  %v455 = vld [vmem:[%s1 + $0x628] sm:$0xf]
  %v456 = vld [vmem:[%s1 + $0x62c] sm:$0xf]
  %v457 = vld [vmem:[%s1 + $0x630] sm:$0xf]
  %v458 = vld [vmem:[%s1 + $0x634] sm:$0xf]
  %v459 = vld [vmem:[%s1 + $0x638] sm:$0xf]
  %v460 = vld [vmem:[%s1 + $0x63c] sm:$0xf]
  %v461 = vld [vmem:[%s1 + $0x640] sm:$0xf]
  %v462 = vld [vmem:[%s1 + $0x644] sm:$0xf]
  %v463 = vld [vmem:[%s1 + $0x648] sm:$0xf]
  %v464 = vld [vmem:[%s1 + $0x64c] sm:$0xf]
  %v465 = vld [vmem:[%s1 + $0x650] sm:$0xf]
  %v466 = vld [vmem:[%s1 + $0x654] sm:$0xf]
  %v467 = vld [vmem:[%s1 + $0x658] sm:$0xf]
  %v468 = vld [vmem:[%s1 + $0x65c] sm:$0xf]
  %v469 = vld [vmem:[%s1 + $0x660] sm:$0xf]
  %v470 = vld [vmem:[%s1 + $0x664] sm:$0xf]
  %v471 = vld [vmem:[%s1 + $0x668] sm:$0xf]
  %v472 = vld [vmem:[%s1 + $0x66c] sm:$0xf]
  %v473 = vld [vmem:[%s1 + $0x670] sm:$0xf]
  %v474 = vld [vmem:[%s1 + $0x674] sm:$0xf]
  %v475 = vld [vmem:[%s1 + $0x678] sm:$0xf]
  %v476 = vld [vmem:[%s1 + $0x67c] sm:$0xf]
  %v477 = vld [vmem:[%s1 + $0x680] sm:$0xf]
  %v478 = vld [vmem:[%s1 + $0x684] sm:$0xf]
  %v479 = vld [vmem:[%s1 + $0x688] sm:$0xf]
  %v480 = vld [vmem:[%s1 + $0x68c] sm:$0xf]
  %v481 = vld [vmem:[%s1 + $0x690] sm:$0xf]
  %v482 = vld [vmem:[%s1 + $0x694] sm:$0xf]
  %v483 = vld [vmem:[%s1 + $0x698] sm:$0xf]
  %v484 = vld [vmem:[%s1 + $0x69c] sm:$0xf]
  %v485 = vld [vmem:[%s1 + $0x6a0] sm:$0xf]
  %v486 = vld [vmem:[%s1 + $0x6a4] sm:$0xf]
  %v487 = vld [vmem:[%s1 + $0x6a8] sm:$0xf]
  %v488 = vld [vmem:[%s1 + $0x6ac] sm:$0xf]
  %v489 = vld [vmem:[%s1 + $0x6b0] sm:$0xf]
  %v490 = vld [vmem:[%s1 + $0x6b4] sm:$0xf]
  %v491 = vld [vmem:[%s1 + $0x6b8] sm:$0xf]
  %v492 = vld [vmem:[%s1 + $0x6bc] sm:$0xf]
  %v493 = vld [vmem:[%s1 + $0x6c0] sm:$0xf]
  %v494 = vld [vmem:[%s1 + $0x6c4] sm:$0xf]
  %v495 = vld [vmem:[%s1 + $0x6c8] sm:$0xf]
  %v496 = vld [vmem:[%s1 + $0x6cc] sm:$0xf]
  %v497 = vld [vmem:[%s1 + $0x6d0] sm:$0xf]
  %v498 = vld [vmem:[%s1 + $0x6d4] sm:$0xf]
  %v499 = vld [vmem:[%s1 + $0x6d8] sm:$0xf]
  %v500 = vld [vmem:[%s1 + $0x6dc] sm:$0xf]
  %v501 = vld [vmem:[%s1 + $0x6e0] sm:$0xf]
  %v502 = vld [vmem:[%s1 + $0x6e4] sm:$0xf]
  %v503 = vld [vmem:[%s1 + $0x6e8] sm:$0xf]
  %v504 = vld [vmem:[%s1 + $0x6ec] sm:$0xf]
  %v505 = vld [vmem:[%s1 + $0x6f0] sm:$0xf]
  %v506 = vld [vmem:[%s1 + $0x6f4] sm:$0xf]
  %v507 = vld [vmem:[%s1 + $0x6f8] sm:$0xf]
  %v508 = vld [vmem:[%s1 + $0x6fc] sm:$0xf]
  %v509 = vld [vmem:[%s1 + $0x700] sm:$0xf]
  %v510 = vld [vmem:[%s1 + $0x704] sm:$0xf]
  %v511 = vld [vmem:[%s1 + $0x708] sm:$0xf]
  %v512 = vld [vmem:[%s1 + $0x70c] sm:$0xf]
  %v513 = vld [vmem:[%s1 + $0x710] sm:$0xf]
  %v514 = vld [vmem:[%s1 + $0x714] sm:$0xf]
  %v515 = vld [vmem:[%s1 + $0x718] sm:$0xf]
  %v516 = vld [vmem:[%s1 + $0x71c] sm:$0xf]
  %v517 = vld [vmem:[%s1 + $0x720] sm:$0xf]
  %v518 = vld [vmem:[%s1 + $0x724] sm:$0xf]
  %v519 = vld [vmem:[%s1 + $0x728] sm:$0xf]
  %v520 = vld [vmem:[%s1 + $0x72c] sm:$0xf]
  %v521 = vld [vmem:[%s1 + $0x730] sm:$0xf]
  %v522 = vld [vmem:[%s1 + $0x734] sm:$0xf]
  %v523 = vld [vmem:[%s1 + $0x738] sm:$0xf]
  %v524 = vld [vmem:[%s1 + $0x73c] sm:$0xf]
  %v525 = vld [vmem:[%s1 + $0x740] sm:$0xf]
  %v526 = vld [vmem:[%s1 + $0x744] sm:$0xf]
  %v527 = vld [vmem:[%s1 + $0x748] sm:$0xf]
  %v528 = vld [vmem:[%s1 + $0x74c] sm:$0xf]
  %v529 = vld [vmem:[%s1 + $0x750] sm:$0xf]
  %v530 = vld [vmem:[%s1 + $0x754] sm:$0xf]
  %v531 = vld [vmem:[%s1 + $0x758] sm:$0xf]
  %v532 = vld [vmem:[%s1 + $0x75c] sm:$0xf]
  %v533 = vld [vmem:[%s1 + $0x760] sm:$0xf]
  %v534 = vld [vmem:[%s1 + $0x764] sm:$0xf]
  %v535 = vld [vmem:[%s1 + $0x768] sm:$0xf]
  %v536 = vld [vmem:[%s1 + $0x76c] sm:$0xf]
  %v537 = vld [vmem:[%s1 + $0x770] sm:$0xf]
  %v538 = vld [vmem:[%s1 + $0x774] sm:$0xf]
  %v539 = vld [vmem:[%s1 + $0x778] sm:$0xf]
  %v540 = vld [vmem:[%s1 + $0x77c] sm:$0xf]
  %v541 = vld [vmem:[%s1 + $0x780] sm:$0xf]
  %v542 = vld [vmem:[%s1 + $0x784] sm:$0xf]
  %v543 = vld [vmem:[%s1 + $0x788] sm:$0xf]
  %v544 = vld [vmem:[%s1 + $0x78c] sm:$0xf]
  %v545 = vld [vmem:[%s1 + $0x790] sm:$0xf]
  %v546 = vld [vmem:[%s1 + $0x794] sm:$0xf]
  %v547 = vld [vmem:[%s1 + $0x798] sm:$0xf]
  %v548 = vld [vmem:[%s1 + $0x79c] sm:$0xf]
  %v549 = vld [vmem:[%s1 + $0x7a0] sm:$0xf]
  %v550 = vld [vmem:[%s1 + $0x7a4] sm:$0xf]
  %v551 = vld [vmem:[%s1 + $0x7a8] sm:$0xf]
  %v552 = vld [vmem:[%s1 + $0x7ac] sm:$0xf]
  %v553 = vld [vmem:[%s1 + $0x7b0] sm:$0xf]
  %v554 = vld [vmem:[%s1 + $0x7b4] sm:$0xf]
  %v555 = vld [vmem:[%s1 + $0x7b8] sm:$0xf]
  %v556 = vld [vmem:[%s1 + $0x7bc] sm:$0xf]
  %v557 = vld [vmem:[%s1 + $0x7c0] sm:$0xf]
  %v558 = vld [vmem:[%s1 + $0x7c4] sm:$0xf]
  %v559 = vld [vmem:[%s1 + $0x7c8] sm:$0xf]
  %v560 = vld [vmem:[%s1 + $0x7cc] sm:$0xf]
  %v561 = vld [vmem:[%s1 + $0x7d0] sm:$0xf]
  %v562 = vld [vmem:[%s1 + $0x7d4] sm:$0xf]
  %v563 = vld [vmem:[%s1 + $0x7d8] sm:$0xf]
  %v564 = vld [vmem:[%s1 + $0x7dc] sm:$0xf]
  %v565 = vld [vmem:[%s1 + $0x7e0] sm:$0xf]
  %v566 = vld [vmem:[%s1 + $0x7e4] sm:$0xf]
  %v567 = vld [vmem:[%s1 + $0x7e8] sm:$0xf]
  %v568 = vld [vmem:[%s1 + $0x7ec] sm:$0xf]
  %v569 = vld [vmem:[%s1 + $0x7f0] sm:$0xf]
  %v570 = vld [vmem:[%s1 + $0x7f4] sm:$0xf]
  %v571 = vld [vmem:[%s1 + $0x7f8] sm:$0xf]
  %v572 = vld [vmem:[%s1 + $0x7fc] sm:$0xf]
  %v573 = vld [vmem:[%s1 + $0x800] sm:$0xf]
  %v574 = vld [vmem:[%s1 + $0x804] sm:$0xf]
  %v575 = vld [vmem:[%s1 + $0x808] sm:$0xf]
  %v576 = vld [vmem:[%s1 + $0x80c] sm:$0xf]
  %v577 = vld [vmem:[%s1 + $0x810] sm:$0xf]
  %v578 = vld [vmem:[%s1 + $0x814] sm:$0xf]
  %v579 = vld [vmem:[%s1 + $0x818] sm:$0xf]
  %v580 = vld [vmem:[%s1 + $0x81c] sm:$0xf]
  %v581 = vld [vmem:[%s1 + $0x820] sm:$0xf]
  %v582 = vld [vmem:[%s1 + $0x824] sm:$0xf]
  %v583 = vld [vmem:[%s1 + $0x828] sm:$0xf]
  %v584 = vld [vmem:[%s1 + $0x82c] sm:$0xf]
  %v585 = vld [vmem:[%s1 + $0x830] sm:$0xf]
  %v586 = vld [vmem:[%s1 + $0x834] sm:$0xf]
  %v587 = vld [vmem:[%s1 + $0x838] sm:$0xf]
  %v588 = vld [vmem:[%s1 + $0x83c] sm:$0xf]
  %v589 = vld [vmem:[%s1 + $0x840] sm:$0xf]
  %v590 = vld [vmem:[%s1 + $0x844] sm:$0xf]
  %v591 = vld [vmem:[%s1 + $0x848] sm:$0xf]
  %v592 = vld [vmem:[%s1 + $0x84c] sm:$0xf]
  %v593 = vld [vmem:[%s1 + $0x850] sm:$0xf]
  %v594 = vld [vmem:[%s1 + $0x854] sm:$0xf]
  %v595 = vld [vmem:[%s1 + $0x858] sm:$0xf]
  %v596 = vld [vmem:[%s1 + $0x85c] sm:$0xf]
  %v597 = vld [vmem:[%s1 + $0x860] sm:$0xf]
  %v598 = vld [vmem:[%s1 + $0x864] sm:$0xf]
  %v599 = vld [vmem:[%s1 + $0x868] sm:$0xf]
  %v600 = vld [vmem:[%s1 + $0x86c] sm:$0xf]
  %v601 = vld [vmem:[%s1 + $0x870] sm:$0xf]
  %v602 = vld [vmem:[%s1 + $0x874] sm:$0xf]
  %v603 = vld [vmem:[%s1 + $0x878] sm:$0xf]
  %v604 = vld [vmem:[%s1 + $0x87c] sm:$0xf]
  %v605 = vld [vmem:[%s1 + $0x880] sm:$0xf]
  %v606 = vld [vmem:[%s1 + $0x884] sm:$0xf]
  %v607 = vld [vmem:[%s1 + $0x888] sm:$0xf]
  %v608 = vld [vmem:[%s1 + $0x88c] sm:$0xf]
  %v609 = vld [vmem:[%s1 + $0x890] sm:$0xf]
  %v610 = vld [vmem:[%s1 + $0x894] sm:$0xf]
  %v611 = vld [vmem:[%s1 + $0x898] sm:$0xf]
  %v612 = vld [vmem:[%s1 + $0x89c] sm:$0xf]
  %v613 = vld [vmem:[%s1 + $0x8a0] sm:$0xf]
  %v614 = vld [vmem:[%s1 + $0x8a4] sm:$0xf]
  %v615 = vld [vmem:[%s1 + $0x8a8] sm:$0xf]
  %v616 = vld [vmem:[%s1 + $0x8ac] sm:$0xf]
  %v617 = vld [vmem:[%s1 + $0x8b0] sm:$0xf]
  %v618 = vld [vmem:[%s1 + $0x8b4] sm:$0xf]
  %v619 = vld [vmem:[%s1 + $0x8b8] sm:$0xf]
  %v620 = vld [vmem:[%s1 + $0x8bc] sm:$0xf]
  %v621 = vld [vmem:[%s1 + $0x8c0] sm:$0xf]
  %v622 = vld [vmem:[%s1 + $0x8c4] sm:$0xf]
  %v623 = vld [vmem:[%s1 + $0x8c8] sm:$0xf]
  %v624 = vld [vmem:[%s1 + $0x8cc] sm:$0xf]
  %v625 = vld [vmem:[%s1 + $0x8d0] sm:$0xf]
  %v626 = vld [vmem:[%s1 + $0x8d4] sm:$0xf]
  %v627 = vld [vmem:[%s1 + $0x8d8] sm:$0xf]
  %v628 = vld [vmem:[%s1 + $0x8dc] sm:$0xf]
  %v629 = vld [vmem:[%s1 + $0x8e0] sm:$0xf]
  %v630 = vld [vmem:[%s1 + $0x8e4] sm:$0xf]
  %v631 = vld [vmem:[%s1 + $0x8e8] sm:$0xf]
  %v632 = vld [vmem:[%s1 + $0x8ec] sm:$0xf]
  %v633 = vld [vmem:[%s1 + $0x8f0] sm:$0xf]
  %v634 = vld [vmem:[%s1 + $0x8f4] sm:$0xf]
  %v635 = vld [vmem:[%s1 + $0x8f8] sm:$0xf]
  %v636 = vld [vmem:[%s1 + $0x8fc] sm:$0xf]
  %v637 = vld [vmem:[%s1 + $0x900] sm:$0xf]
  %v638 = vld [vmem:[%s1 + $0x904] sm:$0xf]
  %v639 = vld [vmem:[%s1 + $0x908] sm:$0xf]
  %v640 = vld [vmem:[%s1 + $0x90c] sm:$0xf]
  %v641 = vld [vmem:[%s1 + $0x910] sm:$0xf]
  %v642 = vld [vmem:[%s1 + $0x914] sm:$0xf]
  %v643 = vld [vmem:[%s1 + $0x918] sm:$0xf]
  %v644 = vld [vmem:[%s1 + $0x91c] sm:$0xf]
  %v645 = vld [vmem:[%s1 + $0x920] sm:$0xf]
  %v646 = vld [vmem:[%s1 + $0x924] sm:$0xf]
  %v647 = vld [vmem:[%s1 + $0x928] sm:$0xf]
  %v648 = vld [vmem:[%s1 + $0x92c] sm:$0xf]
  %v649 = vld [vmem:[%s1 + $0x930] sm:$0xf]
  %v650 = vld [vmem:[%s1 + $0x934] sm:$0xf]
  %v651 = vld [vmem:[%s1 + $0x938] sm:$0xf]
  %v652 = vld [vmem:[%s1 + $0x93c] sm:$0xf]
  %v653 = vld [vmem:[%s1 + $0x940] sm:$0xf]
  %v654 = vld [vmem:[%s1 + $0x944] sm:$0xf]
  %v655 = vld [vmem:[%s1 + $0x948] sm:$0xf]
  %v656 = vld [vmem:[%s1 + $0x94c] sm:$0xf]
  %v657 = vld [vmem:[%s1 + $0x950] sm:$0xf]
  %v658 = vld [vmem:[%s1 + $0x954] sm:$0xf]
  %v659 = vld [vmem:[%s1 + $0x958] sm:$0xf]
  %v660 = vld [vmem:[%s1 + $0x95c] sm:$0xf]
  %v661 = vld [vmem:[%s1 + $0x960] sm:$0xf]
  %v662 = vld [vmem:[%s1 + $0x964] sm:$0xf]
  %v663 = vld [vmem:[%s1 + $0x968] sm:$0xf]
  %v664 = vld [vmem:[%s1 + $0x96c] sm:$0xf]
  %v665 = vld [vmem:[%s1 + $0x970] sm:$0xf]
  %v666 = vld [vmem:[%s1 + $0x974] sm:$0xf]
  %v667 = vld [vmem:[%s1 + $0x978] sm:$0xf]
  %v668 = vld [vmem:[%s1 + $0x97c] sm:$0xf]
  %v669 = vld [vmem:[%s1 + $0x980] sm:$0xf]
  %v670 = vld [vmem:[%s1 + $0x984] sm:$0xf]
  %v671 = vld [vmem:[%s1 + $0x988] sm:$0xf]
  %v672 = vld [vmem:[%s1 + $0x98c] sm:$0xf]
  %v673 = vld [vmem:[%s1 + $0x990] sm:$0xf]
  %v674 = vld [vmem:[%s1 + $0x994] sm:$0xf]
  %v675 = vld [vmem:[%s1 + $0x998] sm:$0xf]
  %v676 = vld [vmem:[%s1 + $0x99c] sm:$0xf]
  %v677 = vld [vmem:[%s1 + $0x9a0] sm:$0xf]
  %v678 = vld [vmem:[%s1 + $0x9a4] sm:$0xf]
  %v679 = vld [vmem:[%s1 + $0x9a8] sm:$0xf]
  %v680 = vld [vmem:[%s1 + $0x9ac] sm:$0xf]
  %v681 = vld [vmem:[%s1 + $0x9b0] sm:$0xf]
  %v682 = vld [vmem:[%s1 + $0x9b4] sm:$0xf]
  %v683 = vld [vmem:[%s1 + $0x9b8] sm:$0xf]
  %v684 = vld [vmem:[%s1 + $0x9bc] sm:$0xf]
  %v685 = vld [vmem:[%s1 + $0x9c0] sm:$0xf]
  %v686 = vld [vmem:[%s1 + $0x9c4] sm:$0xf]
  %v687 = vld [vmem:[%s1 + $0x9c8] sm:$0xf]
  %v688 = vld [vmem:[%s1 + $0x9cc] sm:$0xf]
  %v689 = vld [vmem:[%s1 + $0x9d0] sm:$0xf]
  %v690 = vld [vmem:[%s1 + $0x9d4] sm:$0xf]
  %v691 = vld [vmem:[%s1 + $0x9d8] sm:$0xf]
  %v692 = vld [vmem:[%s1 + $0x9dc] sm:$0xf]
  %v693 = vld [vmem:[%s1 + $0x9e0] sm:$0xf]
  %v694 = vld [vmem:[%s1 + $0x9e4] sm:$0xf]
  %v695 = vld [vmem:[%s1 + $0x9e8] sm:$0xf]
  %v696 = vld [vmem:[%s1 + $0x9ec] sm:$0xf]
  %v697 = vld [vmem:[%s1 + $0x9f0] sm:$0xf]
  %v698 = vld [vmem:[%s1 + $0x9f4] sm:$0xf]
  %v699 = vld [vmem:[%s1 + $0x9f8] sm:$0xf]
  %v700 = vld [vmem:[%s1 + $0x9fc] sm:$0xf]
  %v701 = vld [vmem:[%s1 + $0xa00] sm:$0xf]
  %v702 = vld [vmem:[%s1 + $0xa04] sm:$0xf]
  %v703 = vld [vmem:[%s1 + $0xa08] sm:$0xf]
  %v704 = vld [vmem:[%s1 + $0xa0c] sm:$0xf]
  %v705 = vld [vmem:[%s1 + $0xa10] sm:$0xf]
  %v706 = vld [vmem:[%s1 + $0xa14] sm:$0xf]
  %v707 = vld [vmem:[%s1 + $0xa18] sm:$0xf]
  %v708 = vld [vmem:[%s1 + $0xa1c] sm:$0xf]
  %v709 = vld [vmem:[%s1 + $0xa20] sm:$0xf]
  %v710 = vld [vmem:[%s1 + $0xa24] sm:$0xf]
  %v711 = vld [vmem:[%s1 + $0xa28] sm:$0xf]
  %v712 = vld [vmem:[%s1 + $0xa2c] sm:$0xf]
  %v713 = vld [vmem:[%s1 + $0xa30] sm:$0xf]
  %v714 = vld [vmem:[%s1 + $0xa34] sm:$0xf]
  %v715 = vld [vmem:[%s1 + $0xa38] sm:$0xf]
  %v716 = vld [vmem:[%s1 + $0xa3c] sm:$0xf]
  %v717 = vld [vmem:[%s1 + $0xa40] sm:$0xf]
  %v718 = vld [vmem:[%s1 + $0xa44] sm:$0xf]
  %v719 = vld [vmem:[%s1 + $0xa48] sm:$0xf]
  %v720 = vld [vmem:[%s1 + $0xa4c] sm:$0xf]
  %v721 = vld [vmem:[%s1 + $0xa50] sm:$0xf]
  %v722 = vld [vmem:[%s1 + $0xa54] sm:$0xf]
  %v723 = vld [vmem:[%s1 + $0xa58] sm:$0xf]
  %v724 = vld [vmem:[%s1 + $0xa5c] sm:$0xf]
  %v725 = vld [vmem:[%s1 + $0xa60] sm:$0xf]
  %v726 = vld [vmem:[%s1 + $0xa64] sm:$0xf]
  %v727 = vld [vmem:[%s1 + $0xa68] sm:$0xf]
  %v728 = vld [vmem:[%s1 + $0xa6c] sm:$0xf]
  %v729 = vld [vmem:[%s1 + $0xa70] sm:$0xf]
  %v730 = vld [vmem:[%s1 + $0xa74] sm:$0xf]
  %v731 = vld [vmem:[%s1 + $0xa78] sm:$0xf]
  %v732 = vld [vmem:[%s1 + $0xa7c] sm:$0xf]
  %v733 = vld [vmem:[%s1 + $0xa80] sm:$0xf]
  %v734 = vld [vmem:[%s1 + $0xa84] sm:$0xf]
  %v735 = vld [vmem:[%s1 + $0xa88] sm:$0xf]
  %v736 = vld [vmem:[%s1 + $0xa8c] sm:$0xf]
  %v737 = vld [vmem:[%s1 + $0xa90] sm:$0xf]
  %v738 = vld [vmem:[%s1 + $0xa94] sm:$0xf]
  %v739 = vld [vmem:[%s1 + $0xa98] sm:$0xf]
  %v740 = vld [vmem:[%s1 + $0xa9c] sm:$0xf]
  %v741 = vld [vmem:[%s1 + $0xaa0] sm:$0xf]
  %v742 = vld [vmem:[%s1 + $0xaa4] sm:$0xf]
  %v743 = vld [vmem:[%s1 + $0xaa8] sm:$0xf]
  %v744 = vld [vmem:[%s1 + $0xaac] sm:$0xf]
  %v745 = vld [vmem:[%s1 + $0xab0] sm:$0xf]
  %v746 = vld [vmem:[%s1 + $0xab4] sm:$0xf]
  %v747 = vld [vmem:[%s1 + $0xab8] sm:$0xf]
  %v748 = vld [vmem:[%s1 + $0xabc] sm:$0xf]
  %v749 = vld [vmem:[%s1 + $0xac0] sm:$0xf]
  %v750 = vld [vmem:[%s1 + $0xac4] sm:$0xf]
  %v751 = vld [vmem:[%s1 + $0xac8] sm:$0xf]
  %v752 = vld [vmem:[%s1 + $0xacc] sm:$0xf]
  %v753 = vld [vmem:[%s1 + $0xad0] sm:$0xf]
  %v754 = vld [vmem:[%s1 + $0xad4] sm:$0xf]
  %v755 = vld [vmem:[%s1 + $0xad8] sm:$0xf]
  %v756 = vld [vmem:[%s1 + $0xadc] sm:$0xf]
  %v757 = vld [vmem:[%s1 + $0xae0] sm:$0xf]
  %v758 = vld [vmem:[%s1 + $0xae4] sm:$0xf]
  %v759 = vld [vmem:[%s1 + $0xae8] sm:$0xf]
  %v760 = vld [vmem:[%s1 + $0xaec] sm:$0xf]
  %v761 = vld [vmem:[%s1 + $0xaf0] sm:$0xf]
  %v762 = vld [vmem:[%s1 + $0xaf4] sm:$0xf]
  %v763 = vld [vmem:[%s1 + $0xaf8] sm:$0xf]
  %v764 = vld [vmem:[%s1 + $0xafc] sm:$0xf]
  %v765 = vld [vmem:[%s1 + $0xb00] sm:$0xf]
  %v766 = vld [vmem:[%s1 + $0xb04] sm:$0xf]
  %v767 = vld [vmem:[%s1 + $0xb08] sm:$0xf]
  %v768 = vld [vmem:[%s1 + $0xb0c] sm:$0xf]
  %v769 = vld [vmem:[%s1 + $0xb10] sm:$0xf]
  %v770 = vld [vmem:[%s1 + $0xb14] sm:$0xf]
  %v771 = vld [vmem:[%s1 + $0xb18] sm:$0xf]
  %v772 = vld [vmem:[%s1 + $0xb1c] sm:$0xf]
  %v773 = vld [vmem:[%s1 + $0xb20] sm:$0xf]
  %v774 = vld [vmem:[%s1 + $0xb24] sm:$0xf]
  %v775 = vld [vmem:[%s1 + $0xb28] sm:$0xf]
  %v776 = vld [vmem:[%s1 + $0xb2c] sm:$0xf]
  %v777 = vld [vmem:[%s1 + $0xb30] sm:$0xf]
  %v778 = vld [vmem:[%s1 + $0xb34] sm:$0xf]
  %v779 = vld [vmem:[%s1 + $0xb38] sm:$0xf]
  %v780 = vld [vmem:[%s1 + $0xb3c] sm:$0xf]
  %v781 = vld [vmem:[%s1 + $0xb40] sm:$0xf]
  %v782 = vld [vmem:[%s1 + $0xb44] sm:$0xf]
  %v783 = vld [vmem:[%s1 + $0xb48] sm:$0xf]
  %v784 = vld [vmem:[%s1 + $0xb4c] sm:$0xf]
  %v785 = vld [vmem:[%s1 + $0xb50] sm:$0xf]
  %v786 = vld [vmem:[%s1 + $0xb54] sm:$0xf]
  %v787 = vld [vmem:[%s1 + $0xb58] sm:$0xf]
  %v788 = vld [vmem:[%s1 + $0xb5c] sm:$0xf]
  %v789 = vld [vmem:[%s1 + $0xb60] sm:$0xf]
  %v790 = vld [vmem:[%s1 + $0xb64] sm:$0xf]
  %v791 = vld [vmem:[%s1 + $0xb68] sm:$0xf]
  %v792 = vld [vmem:[%s1 + $0xb6c] sm:$0xf]
  %v793 = vld [vmem:[%s1 + $0xb70] sm:$0xf]
  %v794 = vld [vmem:[%s1 + $0xb74] sm:$0xf]
  %v795 = vld [vmem:[%s1 + $0xb78] sm:$0xf]
  %v796 = vld [vmem:[%s1 + $0xb7c] sm:$0xf]
  %v797 = vld [vmem:[%s1 + $0xb80] sm:$0xf]
  %v798 = vld [vmem:[%s1 + $0xb84] sm:$0xf]
  %v799 = vld [vmem:[%s1 + $0xb88] sm:$0xf]
  %v800 = vld [vmem:[%s1 + $0xb8c] sm:$0xf]
  %v801 = vld [vmem:[%s1 + $0xb90] sm:$0xf]
  %v802 = vld [vmem:[%s1 + $0xb94] sm:$0xf]
  %v803 = vld [vmem:[%s1 + $0xb98] sm:$0xf]
  %v804 = vld [vmem:[%s1 + $0xb9c] sm:$0xf]
  %v805 = vld [vmem:[%s1 + $0xba0] sm:$0xf]
  %v806 = vld [vmem:[%s1 + $0xba4] sm:$0xf]
  %v807 = vld [vmem:[%s1 + $0xba8] sm:$0xf]
  %v808 = vld [vmem:[%s1 + $0xbac] sm:$0xf]
  %v809 = vld [vmem:[%s1 + $0xbb0] sm:$0xf]
  %v810 = vld [vmem:[%s1 + $0xbb4] sm:$0xf]
  %v811 = vld [vmem:[%s1 + $0xbb8] sm:$0xf]
  %v812 = vld [vmem:[%s1 + $0xbbc] sm:$0xf]
  %v813 = vld [vmem:[%s1 + $0xbc0] sm:$0xf]
  %v814 = vld [vmem:[%s1 + $0xbc4] sm:$0xf]
  %v815 = vld [vmem:[%s1 + $0xbc8] sm:$0xf]
  %v816 = vld [vmem:[%s1 + $0xbcc] sm:$0xf]
  %v817 = vld [vmem:[%s1 + $0xbd0] sm:$0xf]
  %v818 = vld [vmem:[%s1 + $0xbd4] sm:$0xf]
  %v819 = vld [vmem:[%s1 + $0xbd8] sm:$0xf]
  %v820 = vld [vmem:[%s1 + $0xbdc] sm:$0xf]
  %v821 = vld [vmem:[%s1 + $0xbe0] sm:$0xf]
  %v822 = vld [vmem:[%s1 + $0xbe4] sm:$0xf]
  %v823 = vld [vmem:[%s1 + $0xbe8] sm:$0xf]
  %v824 = vld [vmem:[%s1 + $0xbec] sm:$0xf]
  %v825 = vld [vmem:[%s1 + $0xbf0] sm:$0xf]
  %v826 = vld [vmem:[%s1 + $0xbf4] sm:$0xf]
  %v827 = vld [vmem:[%s1 + $0xbf8] sm:$0xf]
  %v828 = vld [vmem:[%s1 + $0xbfc] sm:$0xf]
  %v829 = vld [vmem:[%s1 + $0xc00] sm:$0xf]
  %v830 = vld [vmem:[%s1 + $0xc04] sm:$0xf]
  %v831 = vld [vmem:[%s1 + $0xc08] sm:$0xf]
  %v832 = vld [vmem:[%s1 + $0xc0c] sm:$0xf]
  %v833 = vld [vmem:[%s1 + $0xc10] sm:$0xf]
  %v834 = vld [vmem:[%s1 + $0xc14] sm:$0xf]
  %v835 = vld [vmem:[%s1 + $0xc18] sm:$0xf]
  %v836 = vld [vmem:[%s1 + $0xc1c] sm:$0xf]
  %v837 = vld [vmem:[%s1 + $0xc20] sm:$0xf]
  %v838 = vld [vmem:[%s1 + $0xc24] sm:$0xf]
  %v839 = vld [vmem:[%s1 + $0xc28] sm:$0xf]
  %v840 = vld [vmem:[%s1 + $0xc2c] sm:$0xf]
  %v841 = vld [vmem:[%s1 + $0xc30] sm:$0xf]
  %v842 = vld [vmem:[%s1 + $0xc34] sm:$0xf]
  %v843 = vld [vmem:[%s1 + $0xc38] sm:$0xf]
  %v844 = vld [vmem:[%s1 + $0xc3c] sm:$0xf]
  %v845 = vld [vmem:[%s1 + $0xc40] sm:$0xf]
  %v846 = vld [vmem:[%s1 + $0xc44] sm:$0xf]
  %v847 = vld [vmem:[%s1 + $0xc48] sm:$0xf]
  %v848 = vld [vmem:[%s1 + $0xc4c] sm:$0xf]
  %v849 = vld [vmem:[%s1 + $0xc50] sm:$0xf]
  %v850 = vld [vmem:[%s1 + $0xc54] sm:$0xf]
  %v851 = vld [vmem:[%s1 + $0xc58] sm:$0xf]
  %v852 = vld [vmem:[%s1 + $0xc5c] sm:$0xf]
  %v853 = vld [vmem:[%s1 + $0xc60] sm:$0xf]
  %v854 = vld [vmem:[%s1 + $0xc64] sm:$0xf]
  %v855 = vld [vmem:[%s1 + $0xc68] sm:$0xf]
  %v856 = vld [vmem:[%s1 + $0xc6c] sm:$0xf]
  %v857 = vld [vmem:[%s1 + $0xc70] sm:$0xf]
  %v858 = vld [vmem:[%s1 + $0xc74] sm:$0xf]
  %v859 = vld [vmem:[%s1 + $0xc78] sm:$0xf]
  %v860 = vld [vmem:[%s1 + $0xc7c] sm:$0xf]
  %v861 = vld [vmem:[%s1 + $0xc80] sm:$0xf]
  %v862 = vld [vmem:[%s1 + $0xc84] sm:$0xf]
  %v863 = vld [vmem:[%s1 + $0xc88] sm:$0xf]
  %v864 = vld [vmem:[%s1 + $0xc8c] sm:$0xf]
  %v865 = vld [vmem:[%s1 + $0xc90] sm:$0xf]
  %v866 = vld [vmem:[%s1 + $0xc94] sm:$0xf]
  %v867 = vld [vmem:[%s1 + $0xc98] sm:$0xf]
  %v868 = vld [vmem:[%s1 + $0xc9c] sm:$0xf]
  %v869 = vld [vmem:[%s1 + $0xca0] sm:$0xf]
  %v870 = vld [vmem:[%s1 + $0xca4] sm:$0xf]
  %v871 = vld [vmem:[%s1 + $0xca8] sm:$0xf]
  %v872 = vld [vmem:[%s1 + $0xcac] sm:$0xf]
  %v873 = vld [vmem:[%s1 + $0xcb0] sm:$0xf]
  %v874 = vld [vmem:[%s1 + $0xcb4] sm:$0xf]
  %v875 = vld [vmem:[%s1 + $0xcb8] sm:$0xf]
  %v876 = vld [vmem:[%s1 + $0xcbc] sm:$0xf]
  %v877 = vld [vmem:[%s1 + $0xcc0] sm:$0xf]
  %v878 = vld [vmem:[%s1 + $0xcc4] sm:$0xf]
  %v879 = vld [vmem:[%s1 + $0xcc8] sm:$0xf]
  %v880 = vld [vmem:[%s1 + $0xccc] sm:$0xf]
  %v881 = vld [vmem:[%s1 + $0xcd0] sm:$0xf]
  %v882 = vld [vmem:[%s1 + $0xcd4] sm:$0xf]
  %v883 = vld [vmem:[%s1 + $0xcd8] sm:$0xf]
  %v884 = vld [vmem:[%s1 + $0xcdc] sm:$0xf]
  %v885 = vld [vmem:[%s1 + $0xce0] sm:$0xf]
  %v886 = vld [vmem:[%s1 + $0xce4] sm:$0xf]
  %v887 = vld [vmem:[%s1 + $0xce8] sm:$0xf]
  %v888 = vld [vmem:[%s1 + $0xcec] sm:$0xf]
  %v889 = vld [vmem:[%s1 + $0xcf0] sm:$0xf]
  %v890 = vld [vmem:[%s1 + $0xcf4] sm:$0xf]
  %v891 = vld [vmem:[%s1 + $0xcf8] sm:$0xf]
  %v892 = vld [vmem:[%s1 + $0xcfc] sm:$0xf]
  %v893 = vld [vmem:[%s1 + $0xd00] sm:$0xf]
  %v894 = vld [vmem:[%s1 + $0xd04] sm:$0xf]
  %v895 = vld [vmem:[%s1 + $0xd08] sm:$0xf]
  %v896 = vld [vmem:[%s1 + $0xd0c] sm:$0xf]
  %v897 = vld [vmem:[%s1 + $0xd10] sm:$0xf]
  %v898 = vld [vmem:[%s1 + $0xd14] sm:$0xf]
  %v899 = vld [vmem:[%s1 + $0xd18] sm:$0xf]
  %v900 = vld [vmem:[%s1 + $0xd1c] sm:$0xf]
  %v901 = vld [vmem:[%s1 + $0xd20] sm:$0xf]
  %v902 = vld [vmem:[%s1 + $0xd24] sm:$0xf]
  %v903 = vld [vmem:[%s1 + $0xd28] sm:$0xf]
  %v904 = vld [vmem:[%s1 + $0xd2c] sm:$0xf]
  %v905 = vld [vmem:[%s1 + $0xd30] sm:$0xf]
  %v906 = vld [vmem:[%s1 + $0xd34] sm:$0xf]
  %v907 = vld [vmem:[%s1 + $0xd38] sm:$0xf]
  %v908 = vld [vmem:[%s1 + $0xd3c] sm:$0xf]
  %v909 = vld [vmem:[%s1 + $0xd40] sm:$0xf]
  %v910 = vld [vmem:[%s1 + $0xd44] sm:$0xf]
  %v911 = vld [vmem:[%s1 + $0xd48] sm:$0xf]
  %v912 = vld [vmem:[%s1 + $0xd4c] sm:$0xf]
  %v913 = vld [vmem:[%s1 + $0xd50] sm:$0xf]
  %v914 = vld [vmem:[%s1 + $0xd54] sm:$0xf]
  %v915 = vld [vmem:[%s1 + $0xd58] sm:$0xf]
  %v916 = vld [vmem:[%s1 + $0xd5c] sm:$0xf]
  %v917 = vld [vmem:[%s1 + $0xd60] sm:$0xf]
  %v918 = vld [vmem:[%s1 + $0xd64] sm:$0xf]
  %v919 = vld [vmem:[%s1 + $0xd68] sm:$0xf]
  %v920 = vld [vmem:[%s1 + $0xd6c] sm:$0xf]
  %v921 = vld [vmem:[%s1 + $0xd70] sm:$0xf]
  %v922 = vld [vmem:[%s1 + $0xd74] sm:$0xf]
  %v923 = vld [vmem:[%s1 + $0xd78] sm:$0xf]
  %v924 = vld [vmem:[%s1 + $0xd7c] sm:$0xf]
  %v925 = vld [vmem:[%s1 + $0xd80] sm:$0xf]
  %v926 = vld [vmem:[%s1 + $0xd84] sm:$0xf]
  %v927 = vld [vmem:[%s1 + $0xd88] sm:$0xf]
  %v928 = vld [vmem:[%s1 + $0xd8c] sm:$0xf]
  %v929 = vld [vmem:[%s1 + $0xd90] sm:$0xf]
  %v930 = vld [vmem:[%s1 + $0xd94] sm:$0xf]
  %v931 = vld [vmem:[%s1 + $0xd98] sm:$0xf]
  %v932 = vld [vmem:[%s1 + $0xd9c] sm:$0xf]
  %v933 = vld [vmem:[%s1 + $0xda0] sm:$0xf]
  %v934 = vld [vmem:[%s1 + $0xda4] sm:$0xf]
  %v935 = vld [vmem:[%s1 + $0xda8] sm:$0xf]
  %v936 = vld [vmem:[%s1 + $0xdac] sm:$0xf]
  %v937 = vld [vmem:[%s1 + $0xdb0] sm:$0xf]
  %v938 = vld [vmem:[%s1 + $0xdb4] sm:$0xf]
  %v939 = vld [vmem:[%s1 + $0xdb8] sm:$0xf]
  %v940 = vld [vmem:[%s1 + $0xdbc] sm:$0xf]
  %v941 = vld [vmem:[%s1 + $0xdc0] sm:$0xf]
  %v942 = vld [vmem:[%s1 + $0xdc4] sm:$0xf]
  %v943 = vld [vmem:[%s1 + $0xdc8] sm:$0xf]
  %v944 = vld [vmem:[%s1 + $0xdcc] sm:$0xf]
  %v945 = vld [vmem:[%s1 + $0xdd0] sm:$0xf]
  %v946 = vld [vmem:[%s1 + $0xdd4] sm:$0xf]
  %v947 = vld [vmem:[%s1 + $0xdd8] sm:$0xf]
  %v948 = vld [vmem:[%s1 + $0xddc] sm:$0xf]
  %v949 = vld [vmem:[%s1 + $0xde0] sm:$0xf]
  %v950 = vld [vmem:[%s1 + $0xde4] sm:$0xf]
  %v951 = vld [vmem:[%s1 + $0xde8] sm:$0xf]
  %v952 = vld [vmem:[%s1 + $0xdec] sm:$0xf]
  %v953 = vld [vmem:[%s1 + $0xdf0] sm:$0xf]
  %v954 = vld [vmem:[%s1 + $0xdf4] sm:$0xf]
  %v955 = vld [vmem:[%s1 + $0xdf8] sm:$0xf]
  %v956 = vld [vmem:[%s1 + $0xdfc] sm:$0xf]
  %v957 = vld [vmem:[%s1 + $0xe00] sm:$0xf]
  %v958 = vld [vmem:[%s1 + $0xe04] sm:$0xf]
  %v959 = vld [vmem:[%s1 + $0xe08] sm:$0xf]
  %v960 = vld [vmem:[%s1 + $0xe0c] sm:$0xf]
  %v961 = vld [vmem:[%s1 + $0xe10] sm:$0xf]
  %v962 = vld [vmem:[%s1 + $0xe14] sm:$0xf]
  %v963 = vld [vmem:[%s1 + $0xe18] sm:$0xf]
  %v964 = vld [vmem:[%s1 + $0xe1c] sm:$0xf]
  %v965 = vld [vmem:[%s1 + $0xe20] sm:$0xf]
  %v966 = vld [vmem:[%s1 + $0xe24] sm:$0xf]
  %v967 = vld [vmem:[%s1 + $0xe28] sm:$0xf]
  %v968 = vld [vmem:[%s1 + $0xe2c] sm:$0xf]
  %v969 = vld [vmem:[%s1 + $0xe30] sm:$0xf]
  %v970 = vld [vmem:[%s1 + $0xe34] sm:$0xf]
  %v971 = vld [vmem:[%s1 + $0xe38] sm:$0xf]
  %v972 = vld [vmem:[%s1 + $0xe3c] sm:$0xf]
  %v973 = vld [vmem:[%s1 + $0xe40] sm:$0xf]
  %v974 = vld [vmem:[%s1 + $0xe44] sm:$0xf]
  %v975 = vld [vmem:[%s1 + $0xe48] sm:$0xf]
  %v976 = vld [vmem:[%s1 + $0xe4c] sm:$0xf]
  %v977 = vld [vmem:[%s1 + $0xe50] sm:$0xf]
  %v978 = vld [vmem:[%s1 + $0xe54] sm:$0xf]
  %v979 = vld [vmem:[%s1 + $0xe58] sm:$0xf]
  %v980 = vld [vmem:[%s1 + $0xe5c] sm:$0xf]
  %v981 = vld [vmem:[%s1 + $0xe60] sm:$0xf]
  %v982 = vld [vmem:[%s1 + $0xe64] sm:$0xf]
  %v983 = vld [vmem:[%s1 + $0xe68] sm:$0xf]
  %v984 = vld [vmem:[%s1 + $0xe6c] sm:$0xf]
  %v985 = vld [vmem:[%s1 + $0xe70] sm:$0xf]
  %v986 = vld [vmem:[%s1 + $0xe74] sm:$0xf]
  %v987 = vld [vmem:[%s1 + $0xe78] sm:$0xf]
  %v988 = vld [vmem:[%s1 + $0xe7c] sm:$0xf]
  %v989 = vld [vmem:[%s1 + $0xe80] sm:$0xf]
  %v990 = vld [vmem:[%s1 + $0xe84] sm:$0xf]
  %v991 = vld [vmem:[%s1 + $0xe88] sm:$0xf]
  %v992 = vld [vmem:[%s1 + $0xe8c] sm:$0xf]
  %v993 = vld [vmem:[%s1 + $0xe90] sm:$0xf]
  %v994 = vld [vmem:[%s1 + $0xe94] sm:$0xf]
  %v995 = vld [vmem:[%s1 + $0xe98] sm:$0xf]
  %v996 = vld [vmem:[%s1 + $0xe9c] sm:$0xf]
  %v997 = vld [vmem:[%s1 + $0xea0] sm:$0xf]
  %v998 = vld [vmem:[%s1 + $0xea4] sm:$0xf]
  %v999 = vld [vmem:[%s1 + $0xea8] sm:$0xf]
  %v1000 = vld [vmem:[%s1 + $0xeac] sm:$0xf]
  %v1001 = vld [vmem:[%s1 + $0xeb0] sm:$0xf]
  %v1002 = vld [vmem:[%s1 + $0xeb4] sm:$0xf]
  %v1003 = vld [vmem:[%s1 + $0xeb8] sm:$0xf]
  %v1004 = vld [vmem:[%s1 + $0xebc] sm:$0xf]
  %v1005 = vld [vmem:[%s1 + $0xec0] sm:$0xf]
  %v1006 = vld [vmem:[%s1 + $0xec4] sm:$0xf]
  %v1007 = vld [vmem:[%s1 + $0xec8] sm:$0xf]
  %v1008 = vld [vmem:[%s1 + $0xecc] sm:$0xf]
  %v1009 = vld [vmem:[%s1 + $0xed0] sm:$0xf]
  %v1010 = vld [vmem:[%s1 + $0xed4] sm:$0xf]
  %v1011 = vld [vmem:[%s1 + $0xed8] sm:$0xf]
  %v1012 = vld [vmem:[%s1 + $0xedc] sm:$0xf]
  %v1013 = vld [vmem:[%s1 + $0xee0] sm:$0xf]
  %v1014 = vld [vmem:[%s1 + $0xee4] sm:$0xf]
  %v1015 = vld [vmem:[%s1 + $0xee8] sm:$0xf]
  %v1016 = vld [vmem:[%s1 + $0xeec] sm:$0xf]
  %v1017 = vld [vmem:[%s1 + $0xef0] sm:$0xf]
  %v1018 = vld [vmem:[%s1 + $0xef4] sm:$0xf]
  %v1019 = vld [vmem:[%s1 + $0xef8] sm:$0xf]
  %v1020 = vld [vmem:[%s1 + $0xefc] sm:$0xf]
  %v1021 = vld [vmem:[%s1 + $0xf00] sm:$0xf]
  %v1022 = vld [vmem:[%s1 + $0xf04] sm:$0xf]
  %v1023 = vld [vmem:[%s1 + $0xf08] sm:$0xf]
  %v1024 = vld [vmem:[%s1 + $0xf0c] sm:$0xf]
  %v1025 = vld [vmem:[%s1 + $0xf10] sm:$0xf]
  %v1026 = vld [vmem:[%s1 + $0xf14] sm:$0xf]
  %v1027 = vld [vmem:[%s1 + $0xf18] sm:$0xf]
  %v1028 = vld [vmem:[%s1 + $0xf1c] sm:$0xf]
  %v1029 = vld [vmem:[%s1 + $0xf20] sm:$0xf]
  %v1030 = vld [vmem:[%s1 + $0xf24] sm:$0xf]
  %v1031 = vld [vmem:[%s1 + $0xf28] sm:$0xf]
  %v1032 = vld [vmem:[%s1 + $0xf2c] sm:$0xf]
  %v1033 = vld [vmem:[%s1 + $0xf30] sm:$0xf]
  %v1034 = vld [vmem:[%s1 + $0xf34] sm:$0xf]
  %v1035 = vld [vmem:[%s1 + $0xf38] sm:$0xf]
  %v1036 = vld [vmem:[%s1 + $0xf3c] sm:$0xf]
  %v1037 = vld [vmem:[%s1 + $0xf40] sm:$0xf]
  %v1038 = vld [vmem:[%s1 + $0xf44] sm:$0xf]
  %v1039 = vld [vmem:[%s1 + $0xf48] sm:$0xf]
  %v1040 = vld [vmem:[%s1 + $0xf4c] sm:$0xf]
  %v1041 = vld [vmem:[%s1 + $0xf50] sm:$0xf]
  %v1042 = vld [vmem:[%s1 + $0xf54] sm:$0xf]
  %v1043 = vld [vmem:[%s1 + $0xf58] sm:$0xf]
  %v1044 = vld [vmem:[%s1 + $0xf5c] sm:$0xf]
  %v1045 = vld [vmem:[%s1 + $0xf60] sm:$0xf]
  %v1046 = vld [vmem:[%s1 + $0xf64] sm:$0xf]
  %v1047 = vld [vmem:[%s1 + $0xf68] sm:$0xf]
  %v1048 = vld [vmem:[%s1 + $0xf6c] sm:$0xf]
  %v1049 = vld [vmem:[%s1 + $0xf70] sm:$0xf]
  %v1050 = vld [vmem:[%s1 + $0xf74] sm:$0xf]
  %v1051 = vld [vmem:[%s1 + $0xf78] sm:$0xf]
  %v1052 = vld [vmem:[%s1 + $0xf7c] sm:$0xf]
  %v1053 = vld [vmem:[%s1 + $0xf80] sm:$0xf]
  %v1054 = vld [vmem:[%s1 + $0xf84] sm:$0xf]
  %v1055 = vld [vmem:[%s1 + $0xf88] sm:$0xf]
  %v1056 = vld [vmem:[%s1 + $0xf8c] sm:$0xf]
  %v1057 = vld [vmem:[%s1 + $0xf90] sm:$0xf]
  %v1058 = vld [vmem:[%s1 + $0xf94] sm:$0xf]
  %v1059 = vld [vmem:[%s1 + $0xf98] sm:$0xf]
  %v1060 = vld [vmem:[%s1 + $0xf9c] sm:$0xf]
  %v1061 = vld [vmem:[%s1 + $0xfa0] sm:$0xf]
  %v1062 = vld [vmem:[%s1 + $0xfa4] sm:$0xf]
  %v1063 = vld [vmem:[%s1 + $0xfa8] sm:$0xf]
  %v1064 = vld [vmem:[%s1 + $0xfac] sm:$0xf]
  %v1065 = vld [vmem:[%s1 + $0xfb0] sm:$0xf]
  %v1066 = vld [vmem:[%s1 + $0xfb4] sm:$0xf]
  %v1067 = vld [vmem:[%s1 + $0xfb8] sm:$0xf]
  %v1068 = vld [vmem:[%s1 + $0xfbc] sm:$0xf]
  %v1069 = vld [vmem:[%s1 + $0xfc0] sm:$0xf]
  %v1070 = vld [vmem:[%s1 + $0xfc4] sm:$0xf]
  %v1071 = vld [vmem:[%s1 + $0xfc8] sm:$0xf]
  %v1072 = vld [vmem:[%s1 + $0xfcc] sm:$0xf]
  %v1073 = vld [vmem:[%s1 + $0xfd0] sm:$0xf]
  %v1074 = vld [vmem:[%s1 + $0xfd4] sm:$0xf]
  %v1075 = vld [vmem:[%s1 + $0xfd8] sm:$0xf]
  %v1076 = vld [vmem:[%s1 + $0xfdc] sm:$0xf]
  %v1077 = vld [vmem:[%s1 + $0xfe0] sm:$0xf]
  %v1078 = vld [vmem:[%s1 + $0xfe4] sm:$0xf]
  %v1079 = vld [vmem:[%s1 + $0xfe8] sm:$0xf]
  %v1080 = vld [vmem:[%s1 + $0xfec] sm:$0xf]
  %v1081 = vld [vmem:[%s1 + $0xff0] sm:$0xf]
  %v1082 = vld [vmem:[%s1 + $0xff4] sm:$0xf]
  %v1083 = vld [vmem:[%s1 + $0xff8] sm:$0xf]
  %v1084 = vld [vmem:[%s1 + $0xffc] sm:$0xf]
  %v1085 = vld [vmem:[%s1 + $0x1000] sm:$0xf]
  %v1086 = vld [vmem:[%s1 + $0x1004] sm:$0xf]
  %v1087 = vld [vmem:[%s1 + $0x1008] sm:$0xf]
  %v1088 = vld [vmem:[%s1 + $0x100c] sm:$0xf]
  %v1089 = vld [vmem:[%s1 + $0x1010] sm:$0xf]
  %v1090 = vld [vmem:[%s1 + $0x1014] sm:$0xf]
  %v1091 = vld [vmem:[%s1 + $0x1018] sm:$0xf]
  %v1092 = vld [vmem:[%s1 + $0x101c] sm:$0xf]
  %v1093 = vld [vmem:[%s1 + $0x1020] sm:$0xf]
  %v1094 = vld [vmem:[%s1 + $0x1024] sm:$0xf]
  %v1095 = vld [vmem:[%s1 + $0x1028] sm:$0xf]
  %v1096 = vld [vmem:[%s1 + $0x102c] sm:$0xf]
  %v1097 = vld [vmem:[%s1 + $0x1030] sm:$0xf]
  %v1098 = vld [vmem:[%s1 + $0x1034] sm:$0xf]
  %v1099 = vld [vmem:[%s1 + $0x1038] sm:$0xf]
  %v1100 = vld [vmem:[%s1 + $0x103c] sm:$0xf]
  %v1101 = vld [vmem:[%s1 + $0x1040] sm:$0xf]
  %v1102 = vld [vmem:[%s1 + $0x1044] sm:$0xf]
  %v1103 = vld [vmem:[%s1 + $0x1048] sm:$0xf]
  %v1104 = vld [vmem:[%s1 + $0x104c] sm:$0xf]
  %v1105 = vld [vmem:[%s1 + $0x1050] sm:$0xf]
  %v1106 = vld [vmem:[%s1 + $0x1054] sm:$0xf]
  %v1107 = vld [vmem:[%s1 + $0x1058] sm:$0xf]
  %v1108 = vld [vmem:[%s1 + $0x105c] sm:$0xf]
  %v1109 = vld [vmem:[%s1 + $0x1060] sm:$0xf]
  %v1110 = vld [vmem:[%s1 + $0x1064] sm:$0xf]
  %v1111 = vld [vmem:[%s1 + $0x1068] sm:$0xf]
  %v1112 = vld [vmem:[%s1 + $0x106c] sm:$0xf]
  %v1113 = vld [vmem:[%s1 + $0x1070] sm:$0xf]
  %v1114 = vld [vmem:[%s1 + $0x1074] sm:$0xf]
  %v1115 = vld [vmem:[%s1 + $0x1078] sm:$0xf]
  %v1116 = vld [vmem:[%s1 + $0x107c] sm:$0xf]
  %v1117 = vld [vmem:[%s1 + $0x1080] sm:$0xf]
  %v1118 = vld [vmem:[%s1 + $0x1084] sm:$0xf]
  %v1119 = vld [vmem:[%s1 + $0x1088] sm:$0xf]
  %v1120 = vld [vmem:[%s1 + $0x108c] sm:$0xf]
  %v1121 = vld [vmem:[%s1 + $0x1090] sm:$0xf]
  %v1122 = vld [vmem:[%s1 + $0x1094] sm:$0xf]
  %v1123 = vld [vmem:[%s1 + $0x1098] sm:$0xf]
  %v1124 = vld [vmem:[%s1 + $0x109c] sm:$0xf]
  %v1125 = vld [vmem:[%s1 + $0x10a0] sm:$0xf]
  %v1126 = vld [vmem:[%s1 + $0x10a4] sm:$0xf]
  %v1127 = vld [vmem:[%s1 + $0x10a8] sm:$0xf]
  %v1128 = vld [vmem:[%s1 + $0x10ac] sm:$0xf]
  %v1129 = vld [vmem:[%s1 + $0x10b0] sm:$0xf]
  %v1130 = vld [vmem:[%s1 + $0x10b4] sm:$0xf]
  %v1131 = vld [vmem:[%s1 + $0x10b8] sm:$0xf]
  %v1132 = vld [vmem:[%s1 + $0x10bc] sm:$0xf]
  %v1133 = vld [vmem:[%s1 + $0x10c0] sm:$0xf]
  %v1134 = vld [vmem:[%s1 + $0x10c4] sm:$0xf]
  %v1135 = vld [vmem:[%s1 + $0x10c8] sm:$0xf]
  %v1136 = vld [vmem:[%s1 + $0x10cc] sm:$0xf]
  %v1137 = vld [vmem:[%s1 + $0x10d0] sm:$0xf]
  %v1138 = vld [vmem:[%s1 + $0x10d4] sm:$0xf]
  %v1139 = vld [vmem:[%s1 + $0x10d8] sm:$0xf]
  %v1140 = vld [vmem:[%s1 + $0x10dc] sm:$0xf]
  %v1141 = vld [vmem:[%s1 + $0x10e0] sm:$0xf]
  %v1142 = vld [vmem:[%s1 + $0x10e4] sm:$0xf]
  %v1143 = vld [vmem:[%s1 + $0x10e8] sm:$0xf]
  %v1144 = vld [vmem:[%s1 + $0x10ec] sm:$0xf]
  %v1145 = vld [vmem:[%s1 + $0x10f0] sm:$0xf]
  %v1146 = vld [vmem:[%s1 + $0x10f4] sm:$0xf]
  %v1147 = vld [vmem:[%s1 + $0x10f8] sm:$0xf]
  %v1148 = vld [vmem:[%s1 + $0x10fc] sm:$0xf]
  %v1149 = vld [vmem:[%s1 + $0x1100] sm:$0xf]
  %v1150 = vld [vmem:[%s1 + $0x1104] sm:$0xf]
  %v1151 = vld [vmem:[%s1 + $0x1108] sm:$0xf]
  %v1152 = vld [vmem:[%s1 + $0x110c] sm:$0xf]
  %v1153 = vld [vmem:[%s1 + $0x1110] sm:$0xf]
  %v1154 = vld [vmem:[%s1 + $0x1114] sm:$0xf]
  %v1155 = vld [vmem:[%s1 + $0x1118] sm:$0xf]
  %v1156 = vld [vmem:[%s1 + $0x111c] sm:$0xf]
  %v1157 = vld [vmem:[%s1 + $0x1120] sm:$0xf]
  %v1158 = vld [vmem:[%s1 + $0x1124] sm:$0xf]
  %v1159 = vld [vmem:[%s1 + $0x1128] sm:$0xf]
  %v1160 = vld [vmem:[%s1 + $0x112c] sm:$0xf]
  %v1161 = vld [vmem:[%s1 + $0x1130] sm:$0xf]
  %v1162 = vld [vmem:[%s1 + $0x1134] sm:$0xf]
  %v1163 = vld [vmem:[%s1 + $0x1138] sm:$0xf]
  %v1164 = vld [vmem:[%s1 + $0x113c] sm:$0xf]
  %v1165 = vld [vmem:[%s1 + $0x1140] sm:$0xf]
  %v1166 = vld [vmem:[%s1 + $0x1144] sm:$0xf]
  %v1167 = vld [vmem:[%s1 + $0x1148] sm:$0xf]
  %v1168 = vld [vmem:[%s1 + $0x114c] sm:$0xf]
  %v1169 = vld [vmem:[%s1 + $0x1150] sm:$0xf]
  %v1170 = vld [vmem:[%s1 + $0x1154] sm:$0xf]
  %v1171 = vld [vmem:[%s1 + $0x1158] sm:$0xf]
  %v1172 = vld [vmem:[%s1 + $0x115c] sm:$0xf]
  %v1173 = vld [vmem:[%s1 + $0x1160] sm:$0xf]
  %v1174 = vld [vmem:[%s1 + $0x1164] sm:$0xf]
  %v1175 = vld [vmem:[%s1 + $0x1168] sm:$0xf]
  %v1176 = vld [vmem:[%s1 + $0x116c] sm:$0xf]
  %v1177 = vld [vmem:[%s1 + $0x1170] sm:$0xf]
  %v1178 = vld [vmem:[%s1 + $0x1174] sm:$0xf]
  %v1179 = vld [vmem:[%s1 + $0x1178] sm:$0xf]
  %v1180 = vld [vmem:[%s1 + $0x117c] sm:$0xf]
  %v1181 = vld [vmem:[%s1 + $0x1180] sm:$0xf]
  %v1182 = vld [vmem:[%s1 + $0x1184] sm:$0xf]
  %v1183 = vld [vmem:[%s1 + $0x1188] sm:$0xf]
  %v1184 = vld [vmem:[%s1 + $0x118c] sm:$0xf]
  %v1185 = vld [vmem:[%s1 + $0x1190] sm:$0xf]
  %v1186 = vld [vmem:[%s1 + $0x1194] sm:$0xf]
  %v1187 = vld [vmem:[%s1 + $0x1198] sm:$0xf]
  %v1188 = vld [vmem:[%s1 + $0x119c] sm:$0xf]
  %v1189 = vld [vmem:[%s1 + $0x11a0] sm:$0xf]
  %v1190 = vld [vmem:[%s1 + $0x11a4] sm:$0xf]
  %v1191 = vld [vmem:[%s1 + $0x11a8] sm:$0xf]
  %v1192 = vld [vmem:[%s1 + $0x11ac] sm:$0xf]
  %v1193 = vld [vmem:[%s1 + $0x11b0] sm:$0xf]
  %v1194 = vld [vmem:[%s1 + $0x11b4] sm:$0xf]
  %v1195 = vld [vmem:[%s1 + $0x11b8] sm:$0xf]
  %v1196 = vld [vmem:[%s1 + $0x11bc] sm:$0xf]
  %v1197 = vld [vmem:[%s1 + $0x11c0] sm:$0xf]
  %v1198 = vld [vmem:[%s1 + $0x11c4] sm:$0xf]
  %v1199 = vld [vmem:[%s1 + $0x11c8] sm:$0xf]
  %v1200 = vld [vmem:[%s1 + $0x11cc] sm:$0xf]
  %v1201 = vld [vmem:[%s1 + $0x11d0] sm:$0xf]
  %v1202 = vld [vmem:[%s1 + $0x11d4] sm:$0xf]
  %v1203 = vld [vmem:[%s1 + $0x11d8] sm:$0xf]
  %v1204 = vld [vmem:[%s1 + $0x11dc] sm:$0xf]
  %v1205 = vld [vmem:[%s1 + $0x11e0] sm:$0xf]
  %v1206 = vld [vmem:[%s1 + $0x11e4] sm:$0xf]
  %v1207 = vld [vmem:[%s1 + $0x11e8] sm:$0xf]
  %v1208 = vld [vmem:[%s1 + $0x11ec] sm:$0xf]
  %v1209 = vld [vmem:[%s1 + $0x11f0] sm:$0xf]
  %v1210 = vld [vmem:[%s1 + $0x11f4] sm:$0xf]
  %v1211 = vld [vmem:[%s1 + $0x11f8] sm:$0xf]
  %v1212 = vld [vmem:[%s1 + $0x11fc] sm:$0xf]
  %v1213 = vld [vmem:[%s1 + $0x1200] sm:$0xf]
  %v1214 = vld [vmem:[%s1 + $0x1204] sm:$0xf]
  %v1215 = vld [vmem:[%s1 + $0x1208] sm:$0xf]
  %v1216 = vld [vmem:[%s1 + $0x120c] sm:$0xf]
  %v1217 = vld [vmem:[%s1 + $0x1210] sm:$0xf]
  %v1218 = vld [vmem:[%s1 + $0x1214] sm:$0xf]
  %v1219 = vld [vmem:[%s1 + $0x1218] sm:$0xf]
  %v1220 = vld [vmem:[%s1 + $0x121c] sm:$0xf]
  %v1221 = vld [vmem:[%s1 + $0x1220] sm:$0xf]
  %v1222 = vld [vmem:[%s1 + $0x1224] sm:$0xf]
  %v1223 = vld [vmem:[%s1 + $0x1228] sm:$0xf]
  %v1224 = vld [vmem:[%s1 + $0x122c] sm:$0xf]
  %v1225 = vld [vmem:[%s1 + $0x1230] sm:$0xf]
  %v1226 = vld [vmem:[%s1 + $0x1234] sm:$0xf]
  %v1227 = vld [vmem:[%s1 + $0x1238] sm:$0xf]
  %v1228 = vld [vmem:[%s1 + $0x123c] sm:$0xf]
  %v1229 = vld [vmem:[%s1 + $0x1240] sm:$0xf]
  %v1230 = vld [vmem:[%s1 + $0x1244] sm:$0xf]
  %v1231 = vld [vmem:[%s1 + $0x1248] sm:$0xf]
  %v1232 = vld [vmem:[%s1 + $0x124c] sm:$0xf]
  %v1233 = vld [vmem:[%s1 + $0x1250] sm:$0xf]
  %v1234 = vld [vmem:[%s1 + $0x1254] sm:$0xf]
  %v1235 = vld [vmem:[%s1 + $0x1258] sm:$0xf]
  %v1236 = vld [vmem:[%s1 + $0x125c] sm:$0xf]
  %v1237 = vld [vmem:[%s1 + $0x1260] sm:$0xf]
  %v1238 = vld [vmem:[%s1 + $0x1264] sm:$0xf]
  %v1239 = vld [vmem:[%s1 + $0x1268] sm:$0xf]
  %v1240 = vld [vmem:[%s1 + $0x126c] sm:$0xf]
  %v1241 = vld [vmem:[%s1 + $0x1270] sm:$0xf]
  %v1242 = vld [vmem:[%s1 + $0x1274] sm:$0xf]
  %v1243 = vld [vmem:[%s1 + $0x1278] sm:$0xf]
  %v1244 = vld [vmem:[%s1 + $0x127c] sm:$0xf]
  %v1245 = vld [vmem:[%s1 + $0x1280] sm:$0xf]
  %v1246 = vld [vmem:[%s1 + $0x1284] sm:$0xf]
  %v1247 = vld [vmem:[%s1 + $0x1288] sm:$0xf]
  %v1248 = vld [vmem:[%s1 + $0x128c] sm:$0xf]
  %v1249 = vld [vmem:[%s1 + $0x1290] sm:$0xf]
  %v1250 = vld [vmem:[%s1 + $0x1294] sm:$0xf]
  %v1251 = vld [vmem:[%s1 + $0x1298] sm:$0xf]
  %v1252 = vld [vmem:[%s1 + $0x129c] sm:$0xf]
  %v1253 = vld [vmem:[%s1 + $0x12a0] sm:$0xf]
  %v1254 = vld [vmem:[%s1 + $0x12a4] sm:$0xf]
  %v1255 = vld [vmem:[%s1 + $0x12a8] sm:$0xf]
  %v1256 = vld [vmem:[%s1 + $0x12ac] sm:$0xf]
  %v1257 = vld [vmem:[%s1 + $0x12b0] sm:$0xf]
  %v1258 = vld [vmem:[%s1 + $0x12b4] sm:$0xf]
  %v1259 = vld [vmem:[%s1 + $0x12b8] sm:$0xf]
  %v1260 = vld [vmem:[%s1 + $0x12bc] sm:$0xf]
  %v1261 = vld [vmem:[%s1 + $0x12c0] sm:$0xf]
  %v1262 = vld [vmem:[%s1 + $0x12c4] sm:$0xf]
  %v1263 = vld [vmem:[%s1 + $0x12c8] sm:$0xf]
  %v1264 = vld [vmem:[%s1 + $0x12cc] sm:$0xf]
  %v1265 = vld [vmem:[%s1 + $0x12d0] sm:$0xf]
  %v1266 = vld [vmem:[%s1 + $0x12d4] sm:$0xf]
  %v1267 = vld [vmem:[%s1 + $0x12d8] sm:$0xf]
  %v1268 = vld [vmem:[%s1 + $0x12dc] sm:$0xf]
  %v1269 = vld [vmem:[%s1 + $0x12e0] sm:$0xf]
  %v1270 = vld [vmem:[%s1 + $0x12e4] sm:$0xf]
  %v1271 = vld [vmem:[%s1 + $0x12e8] sm:$0xf]
  %v1272 = vld [vmem:[%s1 + $0x12ec] sm:$0xf]
  %v1273 = vld [vmem:[%s1 + $0x12f0] sm:$0xf]
  %v1274 = vld [vmem:[%s1 + $0x12f4] sm:$0xf]
  %v1275 = vld [vmem:[%s1 + $0x12f8] sm:$0xf]
  %v1276 = vld [vmem:[%s1 + $0x12fc] sm:$0xf]
  %v1277 = vld [vmem:[%s1 + $0x1300] sm:$0xf]
  %v1278 = vld [vmem:[%s1 + $0x1304] sm:$0xf]
  %v1279 = vld [vmem:[%s1 + $0x1308] sm:$0xf]
  %v1280 = vld [vmem:[%s1 + $0x130c] sm:$0xf]
  %v1281 = vld [vmem:[%s1 + $0x1310] sm:$0xf]
  %v1282 = vld [vmem:[%s1 + $0x1314] sm:$0xf]
  %v1283 = vld [vmem:[%s1 + $0x1318] sm:$0xf]
  %v1284 = vld [vmem:[%s1 + $0x131c] sm:$0xf]
  %v1285 = vld [vmem:[%s1 + $0x1320] sm:$0xf]
  %v1286 = vld [vmem:[%s1 + $0x1324] sm:$0xf]
  %v1287 = vld [vmem:[%s1 + $0x1328] sm:$0xf]
  %v1288 = vld [vmem:[%s1 + $0x132c] sm:$0xf]
  %v1289 = vld [vmem:[%s1 + $0x1330] sm:$0xf]
  %v1290 = vld [vmem:[%s1 + $0x1334] sm:$0xf]
  %v1291 = vld [vmem:[%s1 + $0x1338] sm:$0xf]
  %v1292 = vld [vmem:[%s1 + $0x133c] sm:$0xf]
  %v1293 = vld [vmem:[%s1 + $0x1340] sm:$0xf]
  %v1294 = vld [vmem:[%s1 + $0x1344] sm:$0xf]
  %v1295 = vld [vmem:[%s1 + $0x1348] sm:$0xf]
  %v1296 = vld [vmem:[%s1 + $0x134c] sm:$0xf]
  %v1297 = vld [vmem:[%s1 + $0x1350] sm:$0xf]
  %v1298 = vld [vmem:[%s1 + $0x1354] sm:$0xf]
  %v1299 = vld [vmem:[%s1 + $0x1358] sm:$0xf]
  %v1300 = vld [vmem:[%s1 + $0x135c] sm:$0xf]
  %v1301 = vld [vmem:[%s1 + $0x1360] sm:$0xf]
  %v1302 = vld [vmem:[%s1 + $0x1364] sm:$0xf]
  %v1303 = vld [vmem:[%s1 + $0x1368] sm:$0xf]
  %v1304 = vld [vmem:[%s1 + $0x136c] sm:$0xf]
  %v1305 = vld [vmem:[%s1 + $0x1370] sm:$0xf]
  %v1306 = vld [vmem:[%s1 + $0x1374] sm:$0xf]
  %v1307 = vld [vmem:[%s1 + $0x1378] sm:$0xf]
  %v1308 = vld [vmem:[%s1 + $0x137c] sm:$0xf]
  %v1309 = vld [vmem:[%s1 + $0x1380] sm:$0xf]
  %v1310 = vld [vmem:[%s1 + $0x1384] sm:$0xf]
  %v1311 = vld [vmem:[%s1 + $0x1388] sm:$0xf]
  %v1312 = vld [vmem:[%s1 + $0x138c] sm:$0xf]
  %v1313 = vld [vmem:[%s1 + $0x1390] sm:$0xf]
  %v1314 = vld [vmem:[%s1 + $0x1394] sm:$0xf]
  %v1315 = vld [vmem:[%s1 + $0x1398] sm:$0xf]
  %v1316 = vld [vmem:[%s1 + $0x139c] sm:$0xf]
  %v1317 = vld [vmem:[%s1 + $0x13a0] sm:$0xf]
  %v1318 = vld [vmem:[%s1 + $0x13a4] sm:$0xf]
  %v1319 = vld [vmem:[%s1 + $0x13a8] sm:$0xf]
  %v1320 = vld [vmem:[%s1 + $0x13ac] sm:$0xf]
  %v1321 = vld [vmem:[%s1 + $0x13b0] sm:$0xf]
  %v1322 = vld [vmem:[%s1 + $0x13b4] sm:$0xf]
  %v1323 = vld [vmem:[%s1 + $0x13b8] sm:$0xf]
  %v1324 = vld [vmem:[%s1 + $0x13bc] sm:$0xf]
  %v1325 = vld [vmem:[%s1 + $0x13c0] sm:$0xf]
  %v1326 = vld [vmem:[%s1 + $0x13c4] sm:$0xf]
  %v1327 = vld [vmem:[%s1 + $0x13c8] sm:$0xf]
  %v1328 = vld [vmem:[%s1 + $0x13cc] sm:$0xf]
  %v1329 = vld [vmem:[%s1 + $0x13d0] sm:$0xf]
  %v1330 = vld [vmem:[%s1 + $0x13d4] sm:$0xf]
  %v1331 = vld [vmem:[%s1 + $0x13d8] sm:$0xf]
  %v1332 = vld [vmem:[%s1 + $0x13dc] sm:$0xf]
  %v1333 = vld [vmem:[%s1 + $0x13e0] sm:$0xf]
  %v1334 = vld [vmem:[%s1 + $0x13e4] sm:$0xf]
  %v1335 = vld [vmem:[%s1 + $0x13e8] sm:$0xf]
  %v1336 = vld [vmem:[%s1 + $0x13ec] sm:$0xf]
  %v1337 = vld [vmem:[%s1 + $0x13f0] sm:$0xf]
  %v1338 = vld [vmem:[%s1 + $0x13f4] sm:$0xf]
  %v1339 = vld [vmem:[%s1 + $0x13f8] sm:$0xf]
  %v1340 = vld [vmem:[%s1 + $0x13fc] sm:$0xf]
  %v1341 = vld [vmem:[%s1 + $0x1400] sm:$0xf]
  %v1342 = vld [vmem:[%s1 + $0x1404] sm:$0xf]
  %v1343 = vld [vmem:[%s1 + $0x1408] sm:$0xf]
  %v1344 = vld [vmem:[%s1 + $0x140c] sm:$0xf]
  %v1345 = vld [vmem:[%s1 + $0x1410] sm:$0xf]
  %v1346 = vld [vmem:[%s1 + $0x1414] sm:$0xf]
  %v1347 = vld [vmem:[%s1 + $0x1418] sm:$0xf]
  %v1348 = vld [vmem:[%s1 + $0x141c] sm:$0xf]
  %v1349 = vld [vmem:[%s1 + $0x1420] sm:$0xf]
  %v1350 = vld [vmem:[%s1 + $0x1424] sm:$0xf]
  %v1351 = vld [vmem:[%s1 + $0x1428] sm:$0xf]
  %v1352 = vld [vmem:[%s1 + $0x142c] sm:$0xf]
  %v1353 = vld [vmem:[%s1 + $0x1430] sm:$0xf]
  %v1354 = vld [vmem:[%s1 + $0x1434] sm:$0xf]
  %v1355 = vld [vmem:[%s1 + $0x1438] sm:$0xf]
  %v1356 = vld [vmem:[%s1 + $0x143c] sm:$0xf]
  %v1357 = vld [vmem:[%s1 + $0x1440] sm:$0xf]
  %v1358 = vld [vmem:[%s1 + $0x1444] sm:$0xf]
  %v1359 = vld [vmem:[%s1 + $0x1448] sm:$0xf]
  %v1360 = vld [vmem:[%s1 + $0x144c] sm:$0xf]
  %v1361 = vld [vmem:[%s1 + $0x1450] sm:$0xf]
  %v1362 = vld [vmem:[%s1 + $0x1454] sm:$0xf]
  %v1363 = vld [vmem:[%s1 + $0x1458] sm:$0xf]
  %v1364 = vld [vmem:[%s1 + $0x145c] sm:$0xf]
  %v1365 = vld [vmem:[%s1 + $0x1460] sm:$0xf]
  %v1366 = vld [vmem:[%s1 + $0x1464] sm:$0xf]
  %v1367 = vld [vmem:[%s1 + $0x1468] sm:$0xf]
  %v1368 = vld [vmem:[%s1 + $0x146c] sm:$0xf]
  %v1369 = vld [vmem:[%s1 + $0x1470] sm:$0xf]
  %v1370 = vld [vmem:[%s1 + $0x1474] sm:$0xf]
  %v1371 = vld [vmem:[%s1 + $0x1478] sm:$0xf]
  %v1372 = vld [vmem:[%s1 + $0x147c] sm:$0xf]
  %v1373 = vld [vmem:[%s1 + $0x1480] sm:$0xf]
  %v1374 = vld [vmem:[%s1 + $0x1484] sm:$0xf]
  %v1375 = vld [vmem:[%s1 + $0x1488] sm:$0xf]
  %v1376 = vld [vmem:[%s1 + $0x148c] sm:$0xf]
  %v1377 = vld [vmem:[%s1 + $0x1490] sm:$0xf]
  %v1378 = vld [vmem:[%s1 + $0x1494] sm:$0xf]
  %v1379 = vld [vmem:[%s1 + $0x1498] sm:$0xf]
  %v1380 = vld [vmem:[%s1 + $0x149c] sm:$0xf]
  %v1381 = vld [vmem:[%s1 + $0x14a0] sm:$0xf]
  %v1382 = vld [vmem:[%s1 + $0x14a4] sm:$0xf]
  %v1383 = vld [vmem:[%s1 + $0x14a8] sm:$0xf]
  %v1384 = vld [vmem:[%s1 + $0x14ac] sm:$0xf]
  %v1385 = vld [vmem:[%s1 + $0x14b0] sm:$0xf]
  %v1386 = vld [vmem:[%s1 + $0x14b4] sm:$0xf]
  %v1387 = vld [vmem:[%s1 + $0x14b8] sm:$0xf]
  %v1388 = vld [vmem:[%s1 + $0x14bc] sm:$0xf]
  %v1389 = vld [vmem:[%s1 + $0x14c0] sm:$0xf]
  %v1390 = vld [vmem:[%s1 + $0x14c4] sm:$0xf]
  %v1391 = vld [vmem:[%s1 + $0x14c8] sm:$0xf]
  %v1392 = vld [vmem:[%s1 + $0x14cc] sm:$0xf]
  %v1393 = vld [vmem:[%s1 + $0x14d0] sm:$0xf]
  %v1394 = vld [vmem:[%s1 + $0x14d4] sm:$0xf]
  %v1395 = vld [vmem:[%s1 + $0x14d8] sm:$0xf]
  %v1396 = vld [vmem:[%s1 + $0x14dc] sm:$0xf]
  %v1397 = vld [vmem:[%s1 + $0x14e0] sm:$0xf]
  %v1398 = vld [vmem:[%s1 + $0x14e4] sm:$0xf]
  %v1399 = vld [vmem:[%s1 + $0x14e8] sm:$0xf]
  %v1400 = vld [vmem:[%s1 + $0x14ec] sm:$0xf]
  %v1401 = vld [vmem:[%s1 + $0x14f0] sm:$0xf]
  %v1402 = vld [vmem:[%s1 + $0x14f4] sm:$0xf]
  %v1403 = vld [vmem:[%s1 + $0x14f8] sm:$0xf]
  %v1404 = vld [vmem:[%s1 + $0x14fc] sm:$0xf]
  %v1405 = vld [vmem:[%s1 + $0x1500] sm:$0xf]
  %v1406 = vld [vmem:[%s1 + $0x1504] sm:$0xf]
  %v1407 = vld [vmem:[%s1 + $0x1508] sm:$0xf]
  %v1408 = vld [vmem:[%s1 + $0x150c] sm:$0xf]
  %v1409 = vld [vmem:[%s1 + $0x1510] sm:$0xf]
  %v1410 = vld [vmem:[%s1 + $0x1514] sm:$0xf]
  %v1411 = vld [vmem:[%s1 + $0x1518] sm:$0xf]
  %v1412 = vld [vmem:[%s1 + $0x151c] sm:$0xf]
  %v1413 = vld [vmem:[%s1 + $0x1520] sm:$0xf]
  %v1414 = vld [vmem:[%s1 + $0x1524] sm:$0xf]
  %v1415 = vld [vmem:[%s1 + $0x1528] sm:$0xf]
  %v1416 = vld [vmem:[%s1 + $0x152c] sm:$0xf]
  %v1417 = vld [vmem:[%s1 + $0x1530] sm:$0xf]
  %v1418 = vld [vmem:[%s1 + $0x1534] sm:$0xf]
  %v1419 = vld [vmem:[%s1 + $0x1538] sm:$0xf]
  %v1420 = vld [vmem:[%s1 + $0x153c] sm:$0xf]
  %v1421 = vld [vmem:[%s1 + $0x1540] sm:$0xf]
  %v1422 = vld [vmem:[%s1 + $0x1544] sm:$0xf]
  %v1423 = vld [vmem:[%s1 + $0x1548] sm:$0xf]
  %v1424 = vld [vmem:[%s1 + $0x154c] sm:$0xf]
  %v1425 = vld [vmem:[%s1 + $0x1550] sm:$0xf]
  %v1426 = vld [vmem:[%s1 + $0x1554] sm:$0xf]
  %v1427 = vld [vmem:[%s1 + $0x1558] sm:$0xf]
  %v1428 = vld [vmem:[%s1 + $0x155c] sm:$0xf]
  %v1429 = vld [vmem:[%s1 + $0x1560] sm:$0xf]
  %v1430 = vld [vmem:[%s1 + $0x1564] sm:$0xf]
  %v1431 = vld [vmem:[%s1 + $0x1568] sm:$0xf]
  %v1432 = vld [vmem:[%s1 + $0x156c] sm:$0xf]
  %v1433 = vld [vmem:[%s1 + $0x1570] sm:$0xf]
  %v1434 = vld [vmem:[%s1 + $0x1574] sm:$0xf]
  %v1435 = vld [vmem:[%s1 + $0x1578] sm:$0xf]
  %v1436 = vld [vmem:[%s1 + $0x157c] sm:$0xf]
  %v1437 = vld [vmem:[%s1 + $0x1580] sm:$0xf]
  %v1438 = vld [vmem:[%s1 + $0x1584] sm:$0xf]
  %v1439 = vld [vmem:[%s1 + $0x1588] sm:$0xf]
  %v1440 = vld [vmem:[%s1 + $0x158c] sm:$0xf]
  %v1441 = vld [vmem:[%s1 + $0x1590] sm:$0xf]
  %v1442 = vld [vmem:[%s1 + $0x1594] sm:$0xf]
  %v1443 = vld [vmem:[%s1 + $0x1598] sm:$0xf]
  %v1444 = vld [vmem:[%s1 + $0x159c] sm:$0xf]
  %v1445 = vld [vmem:[%s1 + $0x15a0] sm:$0xf]
  %v1446 = vld [vmem:[%s1 + $0x15a4] sm:$0xf]
  %v1447 = vld [vmem:[%s1 + $0x15a8] sm:$0xf]
  %v1448 = vld [vmem:[%s1 + $0x15ac] sm:$0xf]
  %v1449 = vld [vmem:[%s1 + $0x15b0] sm:$0xf]
  %v1450 = vld [vmem:[%s1 + $0x15b4] sm:$0xf]
  %v1451 = vld [vmem:[%s1 + $0x15b8] sm:$0xf]
  %v1452 = vld [vmem:[%s1 + $0x15bc] sm:$0xf]
  %v1453 = vld [vmem:[%s1 + $0x15c0] sm:$0xf]
  %v1454 = vld [vmem:[%s1 + $0x15c4] sm:$0xf]
  %v1455 = vld [vmem:[%s1 + $0x15c8] sm:$0xf]
  %v1456 = vld [vmem:[%s1 + $0x15cc] sm:$0xf]
  %v1457 = vld [vmem:[%s1 + $0x15d0] sm:$0xf]
  %v1458 = vld [vmem:[%s1 + $0x15d4] sm:$0xf]
  %v1459 = vld [vmem:[%s1 + $0x15d8] sm:$0xf]
  %v1460 = vld [vmem:[%s1 + $0x15dc] sm:$0xf]
  %v1461 = vld [vmem:[%s1 + $0x15e0] sm:$0xf]
  %v1462 = vld [vmem:[%s1 + $0x15e4] sm:$0xf]
  %v1463 = vld [vmem:[%s1 + $0x15e8] sm:$0xf]
  %v1464 = vld [vmem:[%s1 + $0x15ec] sm:$0xf]
  %v1465 = vld [vmem:[%s1 + $0x15f0] sm:$0xf]
  %v1466 = vld [vmem:[%s1 + $0x15f4] sm:$0xf]
  %v1467 = vld [vmem:[%s1 + $0x15f8] sm:$0xf]
  %v1468 = vld [vmem:[%s1 + $0x15fc] sm:$0xf]
  %v1469 = vld [vmem:[%s1 + $0x1600] sm:$0xf]
  %v1470 = vld [vmem:[%s1 + $0x1604] sm:$0xf]
  %v1471 = vld [vmem:[%s1 + $0x1608] sm:$0xf]
  %v1472 = vld [vmem:[%s1 + $0x160c] sm:$0xf]
  %v1473 = vld [vmem:[%s1 + $0x1610] sm:$0xf]
  %v1474 = vld [vmem:[%s1 + $0x1614] sm:$0xf]
  %v1475 = vld [vmem:[%s1 + $0x1618] sm:$0xf]
  %v1476 = vld [vmem:[%s1 + $0x161c] sm:$0xf]
  %v1477 = vld [vmem:[%s1 + $0x1620] sm:$0xf]
  %v1478 = vld [vmem:[%s1 + $0x1624] sm:$0xf]
  %v1479 = vld [vmem:[%s1 + $0x1628] sm:$0xf]
  %v1480 = vld [vmem:[%s1 + $0x162c] sm:$0xf]
  %v1481 = vld [vmem:[%s1 + $0x1630] sm:$0xf]
  %v1482 = vld [vmem:[%s1 + $0x1634] sm:$0xf]
  %v1483 = vld [vmem:[%s1 + $0x1638] sm:$0xf]
  %v1484 = vld [vmem:[%s1 + $0x163c] sm:$0xf]
  %v1485 = vld [vmem:[%s1 + $0x1640] sm:$0xf]
  %v1486 = vld [vmem:[%s1 + $0x1644] sm:$0xf]
  %v1487 = vld [vmem:[%s1 + $0x1648] sm:$0xf]
  %v1488 = vld [vmem:[%s1 + $0x164c] sm:$0xf]
  %v1489 = vld [vmem:[%s1 + $0x1650] sm:$0xf]
  %v1490 = vld [vmem:[%s1 + $0x1654] sm:$0xf]
  %v1491 = vld [vmem:[%s1 + $0x1658] sm:$0xf]
  %v1492 = vld [vmem:[%s1 + $0x165c] sm:$0xf]
  %v1493 = vld [vmem:[%s1 + $0x1660] sm:$0xf]
  %v1494 = vld [vmem:[%s1 + $0x1664] sm:$0xf]
  %v1495 = vld [vmem:[%s1 + $0x1668] sm:$0xf]
  %v1496 = vld [vmem:[%s1 + $0x166c] sm:$0xf]
  %v1497 = vld [vmem:[%s1 + $0x1670] sm:$0xf]
  %v1498 = vld [vmem:[%s1 + $0x1674] sm:$0xf]
  %v1499 = vld [vmem:[%s1 + $0x1678] sm:$0xf]
  %v1500 = vld [vmem:[%s1 + $0x167c] sm:$0xf]
  %v1501 = vld [vmem:[%s1 + $0x1680] sm:$0xf]
  %v1502 = vld [vmem:[%s1 + $0x1684] sm:$0xf]
  %v1503 = vld [vmem:[%s1 + $0x1688] sm:$0xf]
  %v1504 = vld [vmem:[%s1 + $0x168c] sm:$0xf]
  %v1505 = vld [vmem:[%s1 + $0x1690] sm:$0xf]
  %v1506 = vld [vmem:[%s1 + $0x1694] sm:$0xf]
  %v1507 = vld [vmem:[%s1 + $0x1698] sm:$0xf]
  %v1508 = vld [vmem:[%s1 + $0x169c] sm:$0xf]
  %v1509 = vld [vmem:[%s1 + $0x16a0] sm:$0xf]
  %v1510 = vld [vmem:[%s1 + $0x16a4] sm:$0xf]
  %v1511 = vld [vmem:[%s1 + $0x16a8] sm:$0xf]
  %v1512 = vld [vmem:[%s1 + $0x16ac] sm:$0xf]
  %v1513 = vld [vmem:[%s1 + $0x16b0] sm:$0xf]
  %v1514 = vld [vmem:[%s1 + $0x16b4] sm:$0xf]
  %v1515 = vld [vmem:[%s1 + $0x16b8] sm:$0xf]
  %v1516 = vld [vmem:[%s1 + $0x16bc] sm:$0xf]
  %v1517 = vld [vmem:[%s1 + $0x16c0] sm:$0xf]
  %v1518 = vld [vmem:[%s1 + $0x16c4] sm:$0xf]
  %v1519 = vld [vmem:[%s1 + $0x16c8] sm:$0xf]
  %v1520 = vld [vmem:[%s1 + $0x16cc] sm:$0xf]
  %v1521 = vld [vmem:[%s1 + $0x16d0] sm:$0xf]
  %v1522 = vld [vmem:[%s1 + $0x16d4] sm:$0xf]
  %v1523 = vld [vmem:[%s1 + $0x16d8] sm:$0xf]
  %v1524 = vld [vmem:[%s1 + $0x16dc] sm:$0xf]
  %v1525 = vld [vmem:[%s1 + $0x16e0] sm:$0xf]
  %v1526 = vld [vmem:[%s1 + $0x16e4] sm:$0xf]
  %v1527 = vld [vmem:[%s1 + $0x16e8] sm:$0xf]
  %v1528 = vld [vmem:[%s1 + $0x16ec] sm:$0xf]
  %v1529 = vld [vmem:[%s1 + $0x16f0] sm:$0xf]
  %v1530 = vld [vmem:[%s1 + $0x16f4] sm:$0xf]
  %v1531 = vld [vmem:[%s1 + $0x16f8] sm:$0xf]
  %v1532 = vld [vmem:[%s1 + $0x16fc] sm:$0xf]
  %v1533 = vld [vmem:[%s1 + $0x1700] sm:$0xf]
  %v1534 = vld [vmem:[%s1 + $0x1704] sm:$0xf]
  %v1535 = vld [vmem:[%s1 + $0x1708] sm:$0xf]
  %v1536 = vld [vmem:[%s1 + $0x170c] sm:$0xf]
  %v1537 = vld [vmem:[%s1 + $0x1710] sm:$0xf]
  %v1538 = vld [vmem:[%s1 + $0x1714] sm:$0xf]
  %v1539 = vld [vmem:[%s1 + $0x1718] sm:$0xf]
  %v1540 = vld [vmem:[%s1 + $0x171c] sm:$0xf]
  %v1541 = vld [vmem:[%s1 + $0x1720] sm:$0xf]
  %v1542 = vld [vmem:[%s1 + $0x1724] sm:$0xf]
  %v1543 = vld [vmem:[%s1 + $0x1728] sm:$0xf]
  %v1544 = vld [vmem:[%s1 + $0x172c] sm:$0xf]
  %v1545 = vld [vmem:[%s1 + $0x1730] sm:$0xf]
  %v1546 = vld [vmem:[%s1 + $0x1734] sm:$0xf]
  %v1547 = vld [vmem:[%s1 + $0x1738] sm:$0xf]
  %v1548 = vld [vmem:[%s1 + $0x173c] sm:$0xf]
  %v1549 = vld [vmem:[%s1 + $0x1740] sm:$0xf]
  %v1550 = vld [vmem:[%s1 + $0x1744] sm:$0xf]
  %v1551 = vld [vmem:[%s1 + $0x1748] sm:$0xf]
  %v1552 = vld [vmem:[%s1 + $0x174c] sm:$0xf]
  %v1553 = vld [vmem:[%s1 + $0x1750] sm:$0xf]
  %v1554 = vld [vmem:[%s1 + $0x1754] sm:$0xf]
  %v1555 = vld [vmem:[%s1 + $0x1758] sm:$0xf]
  %v1556 = vld [vmem:[%s1 + $0x175c] sm:$0xf]
  %v1557 = vld [vmem:[%s1 + $0x1760] sm:$0xf]
  %v1558 = vld [vmem:[%s1 + $0x1764] sm:$0xf]
  %v1559 = vld [vmem:[%s1 + $0x1768] sm:$0xf]
  %v1560 = vld [vmem:[%s1 + $0x176c] sm:$0xf]
  %v1561 = vld [vmem:[%s1 + $0x1770] sm:$0xf]
  %v1562 = vld [vmem:[%s1 + $0x1774] sm:$0xf]
  %v1563 = vld [vmem:[%s1 + $0x1778] sm:$0xf]
  %v1564 = vld [vmem:[%s1 + $0x177c] sm:$0xf]
  %v1565 = vld [vmem:[%s1 + $0x1780] sm:$0xf]
  %v1566 = vld [vmem:[%s1 + $0x1784] sm:$0xf]
  %v1567 = vld [vmem:[%s1 + $0x1788] sm:$0xf]
  %v1568 = vld [vmem:[%s1 + $0x178c] sm:$0xf]
  %v1569 = vld [vmem:[%s1 + $0x1790] sm:$0xf]
  %v1570 = vld [vmem:[%s1 + $0x1794] sm:$0xf]
  %v1571 = vld [vmem:[%s1 + $0x1798] sm:$0xf]
  %v1572 = vld [vmem:[%s1 + $0x179c] sm:$0xf]
  %v1573 = vld [vmem:[%s1 + $0x17a0] sm:$0xf]
  %v1574 = vld [vmem:[%s1 + $0x17a4] sm:$0xf]
  %v1575 = vld [vmem:[%s1 + $0x17a8] sm:$0xf]
  %v1576 = vld [vmem:[%s1 + $0x17ac] sm:$0xf]
  %v1577 = vld [vmem:[%s1 + $0x17b0] sm:$0xf]
  %v1578 = vld [vmem:[%s1 + $0x17b4] sm:$0xf]
  %v1579 = vld [vmem:[%s1 + $0x17b8] sm:$0xf]
  %v1580 = vld [vmem:[%s1 + $0x17bc] sm:$0xf]
  %v1581 = vld [vmem:[%s1 + $0x17c0] sm:$0xf]
  %v1582 = vld [vmem:[%s1 + $0x17c4] sm:$0xf]
  %v1583 = vld [vmem:[%s1 + $0x17c8] sm:$0xf]
  %v1584 = vld [vmem:[%s1 + $0x17cc] sm:$0xf]
  %v1585 = vld [vmem:[%s1 + $0x17d0] sm:$0xf]
  %v1586 = vld [vmem:[%s1 + $0x17d4] sm:$0xf]
  %v1587 = vld [vmem:[%s1 + $0x17d8] sm:$0xf]
  %v1588 = vld [vmem:[%s1 + $0x17dc] sm:$0xf]
  %v1589 = vld [vmem:[%s1 + $0x17e0] sm:$0xf]
  %v1590 = vld [vmem:[%s1 + $0x17e4] sm:$0xf]
  %v1591 = vld [vmem:[%s1 + $0x17e8] sm:$0xf]
  %v1592 = vld [vmem:[%s1 + $0x17ec] sm:$0xf]
  %v1593 = vld [vmem:[%s1 + $0x17f0] sm:$0xf]
  %v1594 = vld [vmem:[%s1 + $0x17f4] sm:$0xf]
  %v1595 = vld [vmem:[%s1 + $0x17f8] sm:$0xf]
  %v1596 = vld [vmem:[%s1 + $0x17fc] sm:$0xf]
  %v1597 = vld [vmem:[%s1 + $0x1800] sm:$0xf]
  %v1598 = vld [vmem:[%s1 + $0x1804] sm:$0xf]
  %v1599 = vld [vmem:[%s1 + $0x1808] sm:$0xf]
  %v1600 = vld [vmem:[%s1 + $0x180c] sm:$0xf]
  %v1601 = vld [vmem:[%s1 + $0x1810] sm:$0xf]
  %v1602 = vld [vmem:[%s1 + $0x1814] sm:$0xf]
  %v1603 = vld [vmem:[%s1 + $0x1818] sm:$0xf]
  %v1604 = vld [vmem:[%s1 + $0x181c] sm:$0xf]
  %v1605 = vld [vmem:[%s1 + $0x1820] sm:$0xf]
  %v1606 = vld [vmem:[%s1 + $0x1824] sm:$0xf]
  %v1607 = vld [vmem:[%s1 + $0x1828] sm:$0xf]
  %v1608 = vld [vmem:[%s1 + $0x182c] sm:$0xf]
  %v1609 = vld [vmem:[%s1 + $0x1830] sm:$0xf]
  %v1610 = vld [vmem:[%s1 + $0x1834] sm:$0xf]
  %v1611 = vld [vmem:[%s1 + $0x1838] sm:$0xf]
  %v1612 = vld [vmem:[%s1 + $0x183c] sm:$0xf]
  %v1613 = vld [vmem:[%s1 + $0x1840] sm:$0xf]
  %v1614 = vld [vmem:[%s1 + $0x1844] sm:$0xf]
  %v1615 = vld [vmem:[%s1 + $0x1848] sm:$0xf]
  %v1616 = vld [vmem:[%s1 + $0x184c] sm:$0xf]
  %v1617 = vld [vmem:[%s1 + $0x1850] sm:$0xf]
  %v1618 = vld [vmem:[%s1 + $0x1854] sm:$0xf]
  %v1619 = vld [vmem:[%s1 + $0x1858] sm:$0xf]
  %v1620 = vld [vmem:[%s1 + $0x185c] sm:$0xf]
  %v1621 = vld [vmem:[%s1 + $0x1860] sm:$0xf]
  %v1622 = vld [vmem:[%s1 + $0x1864] sm:$0xf]
  %v1623 = vld [vmem:[%s1 + $0x1868] sm:$0xf]
  %v1624 = vld [vmem:[%s1 + $0x186c] sm:$0xf]
  %v1625 = vld [vmem:[%s1 + $0x1870] sm:$0xf]
  %v1626 = vld [vmem:[%s1 + $0x1874] sm:$0xf]
  %v1627 = vld [vmem:[%s1 + $0x1878] sm:$0xf]
  %v1628 = vld [vmem:[%s1 + $0x187c] sm:$0xf]
  %v1678 = vunpack.c.l.b16 %v12
  %v1679 = vunpack.c.h.b16 %v12
  %v1680 = vunpack.c.l.b16 %v13
  %v1681 = vunpack.c.h.b16 %v13
  %v1682 = vunpack.c.l.b16 %v14
  %v1683 = vunpack.c.h.b16 %v14
  %v1684 = vunpack.c.l.b16 %v15
  %v1685 = vunpack.c.h.b16 %v15
  %v1686 = vunpack.c.l.b16 %v16
  %v1687 = vunpack.c.h.b16 %v16
  %v1688 = vunpack.c.l.b16 %v17
  %v1689 = vunpack.c.h.b16 %v17
  %v1690 = vunpack.c.l.b16 %v18
  %v1691 = vunpack.c.h.b16 %v18
  %v1692 = vunpack.c.l.b16 %v19
  %v1693 = vunpack.c.h.b16 %v19
  %v1694 = vunpack.c.l.b16 %v20
  %v1695 = vunpack.c.h.b16 %v20
  %v1696 = vunpack.c.l.b16 %v21
  %v1697 = vunpack.c.h.b16 %v21
  %v1698 = vunpack.c.l.b16 %v22
  %v1699 = vunpack.c.h.b16 %v22
  %v1700 = vunpack.c.l.b16 %v23
  %v1701 = vunpack.c.h.b16 %v23
  %v1702 = vunpack.c.l.b16 %v24
  %v1703 = vunpack.c.h.b16 %v24
  %v1704 = vunpack.c.l.b16 %v25
  %v1705 = vunpack.c.h.b16 %v25
  %v1706 = vunpack.c.l.b16 %v26
  %v1707 = vunpack.c.h.b16 %v26
  %v1708 = vunpack.c.l.b16 %v27
  %v1709 = vunpack.c.h.b16 %v27
  %v1710 = vunpack.c.l.b16 %v28
  %v1711 = vunpack.c.h.b16 %v28
  %v1712 = vunpack.c.l.b16 %v29
  %v1713 = vunpack.c.h.b16 %v29
  %v1714 = vunpack.c.l.b16 %v30
  %v1715 = vunpack.c.h.b16 %v30
  %v1716 = vunpack.c.l.b16 %v31
  %v1717 = vunpack.c.h.b16 %v31
  %v1718 = vunpack.c.l.b16 %v32
  %v1719 = vunpack.c.h.b16 %v32
  %v1720 = vunpack.c.l.b16 %v33
  %v1721 = vunpack.c.h.b16 %v33
  %v1722 = vunpack.c.l.b16 %v34
  %v1723 = vunpack.c.h.b16 %v34
  %v1724 = vunpack.c.l.b16 %v35
  %v1725 = vunpack.c.h.b16 %v35
  %v1726 = vunpack.c.l.b16 %v36
  %v1727 = vunpack.c.h.b16 %v36
  %v1728 = vunpack.c.l.b16 %v37
  %v1729 = vunpack.c.h.b16 %v37
  %v1730 = vunpack.c.l.b16 %v38
  %v1731 = vunpack.c.h.b16 %v38
  %v1732 = vunpack.c.l.b16 %v39
  %v1733 = vunpack.c.h.b16 %v39
  %v1734 = vunpack.c.l.b16 %v40
  %v1735 = vunpack.c.h.b16 %v40
  %v1736 = vunpack.c.l.b16 %v41
  %v1737 = vunpack.c.h.b16 %v41
  %v1738 = vunpack.c.l.b16 %v42
  %v1739 = vunpack.c.h.b16 %v42
  %v1740 = vunpack.c.l.b16 %v43
  %v1741 = vunpack.c.h.b16 %v43
  %v1742 = vunpack.c.l.b16 %v44
  %v1743 = vunpack.c.h.b16 %v44
  %v1744 = vunpack.c.l.b16 %v45
  %v1745 = vunpack.c.h.b16 %v45
  %v1746 = vunpack.c.l.b16 %v46
  %v1747 = vunpack.c.h.b16 %v46
  %v1748 = vunpack.c.l.b16 %v47
  %v1749 = vunpack.c.h.b16 %v47
  %v1750 = vunpack.c.l.b16 %v48
  %v1751 = vunpack.c.h.b16 %v48
  %v1752 = vunpack.c.l.b16 %v49
  %v1753 = vunpack.c.h.b16 %v49
  %v1754 = vunpack.c.l.b16 %v50
  %v1755 = vunpack.c.h.b16 %v50
  %v1756 = vunpack.c.l.b16 %v51
  %v1757 = vunpack.c.h.b16 %v51
  %v1758 = vunpack.c.l.b16 %v52
  %v1759 = vunpack.c.h.b16 %v52
  %v1760 = vunpack.c.l.b16 %v53
  %v1761 = vunpack.c.h.b16 %v53
  %v1762 = vunpack.c.l.b16 %v54
  %v1763 = vunpack.c.h.b16 %v54
  %v1764 = vunpack.c.l.b16 %v55
  %v1765 = vunpack.c.h.b16 %v55
  %v1766 = vunpack.c.l.b16 %v56
  %v1767 = vunpack.c.h.b16 %v56
  %v1768 = vunpack.c.l.b16 %v57
  %v1769 = vunpack.c.h.b16 %v57
  %v1770 = vunpack.c.l.b16 %v58
  %v1771 = vunpack.c.h.b16 %v58
  %v1772 = vunpack.c.l.b16 %v59
  %v1773 = vunpack.c.h.b16 %v59
  %v1774 = vunpack.c.l.b16 %v60
  %v1775 = vunpack.c.h.b16 %v60
  %v1776 = vpack.c.b16 %v1678, %v1678
  %v1777 = vpack.c.b16 %v1679, %v1679
  %v1778 = vpack.c.b16 %v1680, %v1680
  %v1779 = vpack.c.b16 %v1681, %v1681
  %v1780 = vpack.c.b16 %v1682, %v1682
  %v1781 = vpack.c.b16 %v1683, %v1683
  %v1782 = vpack.c.b16 %v1684, %v1684
  %v1783 = vpack.c.b16 %v1685, %v1685
  %v1784 = vpack.c.b16 %v1686, %v1686
  %v1785 = vpack.c.b16 %v1687, %v1687
  %v1786 = vpack.c.b16 %v1688, %v1688
  %v1787 = vpack.c.b16 %v1689, %v1689
  %v1788 = vpack.c.b16 %v1690, %v1690
  %v1789 = vpack.c.b16 %v1691, %v1691
  %v1790 = vpack.c.b16 %v1692, %v1692
  %v1791 = vpack.c.b16 %v1693, %v1693
  %v1792 = vpack.c.b16 %v1694, %v1694
  %v1793 = vpack.c.b16 %v1695, %v1695
  %v1794 = vpack.c.b16 %v1696, %v1696
  %v1795 = vpack.c.b16 %v1697, %v1697
  %v1796 = vpack.c.b16 %v1698, %v1698
  %v1797 = vpack.c.b16 %v1699, %v1699
  %v1798 = vpack.c.b16 %v1700, %v1700
  %v1799 = vpack.c.b16 %v1701, %v1701
  %v1800 = vpack.c.b16 %v1702, %v1702
  %v1801 = vpack.c.b16 %v1703, %v1703
  %v1802 = vpack.c.b16 %v1704, %v1704
  %v1803 = vpack.c.b16 %v1705, %v1705
  %v1804 = vpack.c.b16 %v1706, %v1706
  %v1805 = vpack.c.b16 %v1707, %v1707
  %v1806 = vpack.c.b16 %v1708, %v1708
  %v1807 = vpack.c.b16 %v1709, %v1709
  %v1808 = vpack.c.b16 %v1710, %v1710
  %v1809 = vpack.c.b16 %v1711, %v1711
  %v1810 = vpack.c.b16 %v1712, %v1712
  %v1811 = vpack.c.b16 %v1713, %v1713
  %v1812 = vpack.c.b16 %v1714, %v1714
  %v1813 = vpack.c.b16 %v1715, %v1715
  %v1814 = vpack.c.b16 %v1716, %v1716
  %v1815 = vpack.c.b16 %v1717, %v1717
  %v1816 = vpack.c.b16 %v1718, %v1718
  %v1817 = vpack.c.b16 %v1719, %v1719
  %v1818 = vpack.c.b16 %v1720, %v1720
  %v1819 = vpack.c.b16 %v1721, %v1721
  %v1820 = vpack.c.b16 %v1722, %v1722
  %v1821 = vpack.c.b16 %v1723, %v1723
  %v1822 = vpack.c.b16 %v1724, %v1724
  %v1823 = vpack.c.b16 %v1725, %v1725
  %v1824 = vpack.c.b16 %v1726, %v1726
  %v1825 = vpack.c.b16 %v1727, %v1727
  %v1826 = vpack.c.b16 %v1728, %v1728
  %v1827 = vpack.c.b16 %v1729, %v1729
  %v1828 = vpack.c.b16 %v1730, %v1730
  %v1829 = vpack.c.b16 %v1731, %v1731
  %v1830 = vpack.c.b16 %v1732, %v1732
  %v1831 = vpack.c.b16 %v1733, %v1733
  %v1832 = vpack.c.b16 %v1734, %v1734
  %v1833 = vpack.c.b16 %v1735, %v1735
  %v1834 = vpack.c.b16 %v1736, %v1736
  %v1835 = vpack.c.b16 %v1737, %v1737
  %v1836 = vpack.c.b16 %v1738, %v1738
  %v1837 = vpack.c.b16 %v1739, %v1739
  %v1838 = vpack.c.b16 %v1740, %v1740
  %v1839 = vpack.c.b16 %v1741, %v1741
  %v1840 = vpack.c.b16 %v1742, %v1742
  %v1841 = vpack.c.b16 %v1743, %v1743
  %v1842 = vpack.c.b16 %v1744, %v1744
  %v1843 = vpack.c.b16 %v1745, %v1745
  %v1844 = vpack.c.b16 %v1746, %v1746
  %v1845 = vpack.c.b16 %v1747, %v1747
  %v1846 = vpack.c.b16 %v1748, %v1748
  %v1847 = vpack.c.b16 %v1749, %v1749
  %v1848 = vpack.c.b16 %v1750, %v1750
  %v1849 = vpack.c.b16 %v1751, %v1751
  %v1850 = vpack.c.b16 %v1752, %v1752
  %v1851 = vpack.c.b16 %v1753, %v1753
  %v1852 = vpack.c.b16 %v1754, %v1754
  %v1853 = vpack.c.b16 %v1755, %v1755
  %v1854 = vpack.c.b16 %v1756, %v1756
  %v1855 = vpack.c.b16 %v1757, %v1757
  %v1856 = vpack.c.b16 %v1758, %v1758
  %v1857 = vpack.c.b16 %v1759, %v1759
  %v1858 = vpack.c.b16 %v1760, %v1760
  %v1859 = vpack.c.b16 %v1761, %v1761
  %v1860 = vpack.c.b16 %v1762, %v1762
  %v1861 = vpack.c.b16 %v1763, %v1763
  %v1862 = vpack.c.b16 %v1764, %v1764
  %v1863 = vpack.c.b16 %v1765, %v1765
  %v1864 = vpack.c.b16 %v1766, %v1766
  %v1865 = vpack.c.b16 %v1767, %v1767
  %v1866 = vpack.c.b16 %v1768, %v1768
  %v1867 = vpack.c.b16 %v1769, %v1769
  %v1868 = vpack.c.b16 %v1770, %v1770
  %v1869 = vpack.c.b16 %v1771, %v1771
  %v1870 = vpack.c.b16 %v1772, %v1772
  %v1871 = vpack.c.b16 %v1773, %v1773
  %v1872 = vpack.c.b16 %v1774, %v1774
  %v1873 = vpack.c.b16 %v1775, %v1775
  %v3540 = vunpack.c.l.b16 %v61
  %v3541 = vunpack.c.l.b16 %v62
  %v3542 = vunpack.c.l.b16 %v63
  %v3543 = vunpack.c.l.b16 %v64
  %v3544 = vunpack.c.l.b16 %v65
  %v3545 = vunpack.c.l.b16 %v66
  %v3546 = vunpack.c.l.b16 %v67
  %v3547 = vunpack.c.l.b16 %v68
  %v3548 = vunpack.c.l.b16 %v69
  %v3549 = vunpack.c.l.b16 %v70
  %v3550 = vunpack.c.l.b16 %v71
  %v3551 = vunpack.c.l.b16 %v72
  %v3552 = vunpack.c.l.b16 %v73
  %v3553 = vunpack.c.l.b16 %v74
  %v3554 = vunpack.c.l.b16 %v75
  %v3555 = vunpack.c.l.b16 %v76
  %v3556 = vunpack.c.l.b16 %v77
  %v3557 = vunpack.c.l.b16 %v78
  %v3558 = vunpack.c.l.b16 %v79
  %v3559 = vunpack.c.l.b16 %v80
  %v3560 = vunpack.c.l.b16 %v81
  %v3561 = vunpack.c.l.b16 %v82
  %v3562 = vunpack.c.l.b16 %v83
  %v3563 = vunpack.c.l.b16 %v84
  %v3564 = vunpack.c.l.b16 %v85
  %v3565 = vunpack.c.l.b16 %v86
  %v3566 = vunpack.c.l.b16 %v87
  %v3567 = vunpack.c.l.b16 %v88
  %v3568 = vunpack.c.l.b16 %v89
  %v3569 = vunpack.c.l.b16 %v90
  %v3570 = vunpack.c.l.b16 %v91
  %v3571 = vunpack.c.l.b16 %v92
  %v3572 = vunpack.c.l.b16 %v93
  %v3573 = vunpack.c.l.b16 %v94
  %v3574 = vunpack.c.l.b16 %v95
  %v3575 = vunpack.c.l.b16 %v96
  %v3576 = vunpack.c.l.b16 %v97
  %v3577 = vunpack.c.l.b16 %v98
  %v3578 = vunpack.c.l.b16 %v99
  %v3579 = vunpack.c.l.b16 %v100
  %v3580 = vunpack.c.l.b16 %v101
  %v3581 = vunpack.c.l.b16 %v102
  %v3582 = vunpack.c.l.b16 %v103
  %v3583 = vunpack.c.l.b16 %v104
  %v3584 = vunpack.c.l.b16 %v105
  %v3585 = vunpack.c.l.b16 %v106
  %v3586 = vunpack.c.l.b16 %v107
  %v3587 = vunpack.c.l.b16 %v108
  %v3588 = vunpack.c.l.b16 %v109
  %v3589 = vunpack.c.l.b16 %v110
  %v3590 = vunpack.c.l.b16 %v111
  %v3591 = vunpack.c.l.b16 %v112
  %v3592 = vunpack.c.l.b16 %v113
  %v3593 = vunpack.c.l.b16 %v114
  %v3594 = vunpack.c.l.b16 %v115
  %v3595 = vunpack.c.l.b16 %v116
  %v3596 = vunpack.c.l.b16 %v117
  %v3597 = vunpack.c.l.b16 %v118
  %v3598 = vunpack.c.l.b16 %v119
  %v3599 = vunpack.c.l.b16 %v120
  %v3600 = vunpack.c.l.b16 %v121
  %v3601 = vunpack.c.l.b16 %v122
  %v3602 = vunpack.c.l.b16 %v123
  %v3603 = vunpack.c.l.b16 %v124
  %v3604 = vunpack.c.l.b16 %v125
  %v3605 = vunpack.c.l.b16 %v126
  %v3606 = vunpack.c.l.b16 %v127
  %v3607 = vunpack.c.l.b16 %v128
  %v3608 = vunpack.c.l.b16 %v129
  %v3609 = vunpack.c.l.b16 %v130
  %v3610 = vunpack.c.l.b16 %v131
  %v3611 = vunpack.c.l.b16 %v132
  %v3612 = vunpack.c.l.b16 %v133
  %v3613 = vunpack.c.l.b16 %v134
  %v3614 = vunpack.c.l.b16 %v135
  %v3615 = vunpack.c.l.b16 %v136
  %v3616 = vunpack.c.l.b16 %v137
  %v3617 = vunpack.c.l.b16 %v138
  %v3618 = vunpack.c.l.b16 %v139
  %v3619 = vunpack.c.l.b16 %v140
  %v3620 = vunpack.c.l.b16 %v141
  %v3621 = vunpack.c.l.b16 %v142
  %v3622 = vunpack.c.l.b16 %v143
  %v3623 = vunpack.c.l.b16 %v144
  %v3624 = vunpack.c.l.b16 %v145
  %v3625 = vunpack.c.l.b16 %v146
  %v3626 = vunpack.c.l.b16 %v147
  %v3627 = vunpack.c.l.b16 %v148
  %v3628 = vunpack.c.l.b16 %v149
  %v3629 = vunpack.c.l.b16 %v150
  %v3630 = vunpack.c.l.b16 %v151
  %v3631 = vunpack.c.l.b16 %v152
  %v3632 = vunpack.c.l.b16 %v153
  %v3633 = vunpack.c.l.b16 %v154
  %v3634 = vunpack.c.l.b16 %v155
  %v3635 = vunpack.c.l.b16 %v156
  %v3636 = vunpack.c.l.b16 %v157
  %v3637 = vunpack.c.l.b16 %v158
  %v3638 = vunpack.c.l.b16 %v159
  %v3639 = vunpack.c.l.b16 %v160
  %v3640 = vunpack.c.l.b16 %v161
  %v3641 = vunpack.c.l.b16 %v162
  %v3642 = vunpack.c.l.b16 %v163
  %v3643 = vunpack.c.l.b16 %v164
  %v3644 = vunpack.c.l.b16 %v165
  %v3645 = vunpack.c.l.b16 %v166
  %v3646 = vunpack.c.l.b16 %v167
  %v3647 = vunpack.c.l.b16 %v168
  %v3648 = vunpack.c.l.b16 %v169
  %v3649 = vunpack.c.l.b16 %v170
  %v3650 = vunpack.c.l.b16 %v171
  %v3651 = vunpack.c.l.b16 %v172
  %v3652 = vunpack.c.l.b16 %v173
  %v3653 = vunpack.c.l.b16 %v174
  %v3654 = vunpack.c.l.b16 %v175
  %v3655 = vunpack.c.l.b16 %v176
  %v3656 = vunpack.c.l.b16 %v177
  %v3657 = vunpack.c.l.b16 %v178
  %v3658 = vunpack.c.l.b16 %v179
  %v3659 = vunpack.c.l.b16 %v180
  %v3660 = vunpack.c.l.b16 %v181
  %v3661 = vunpack.c.l.b16 %v182
  %v3662 = vunpack.c.l.b16 %v183
  %v3663 = vunpack.c.l.b16 %v184
  %v3664 = vunpack.c.l.b16 %v185
  %v3665 = vunpack.c.l.b16 %v186
  %v3666 = vunpack.c.l.b16 %v187
  %v3667 = vunpack.c.l.b16 %v188
  %v3668 = vunpack.c.l.b16 %v189
  %v3669 = vunpack.c.l.b16 %v190
  %v3670 = vunpack.c.l.b16 %v191
  %v3671 = vunpack.c.l.b16 %v192
  %v3672 = vunpack.c.l.b16 %v193
  %v3673 = vunpack.c.l.b16 %v194
  %v3674 = vunpack.c.l.b16 %v195
  %v3675 = vunpack.c.l.b16 %v196
  %v3676 = vunpack.c.l.b16 %v197
  %v3677 = vunpack.c.l.b16 %v198
  %v3678 = vunpack.c.l.b16 %v199
  %v3679 = vunpack.c.l.b16 %v200
  %v3680 = vunpack.c.l.b16 %v201
  %v3681 = vunpack.c.l.b16 %v202
  %v3682 = vunpack.c.l.b16 %v203
  %v3683 = vunpack.c.l.b16 %v204
  %v3684 = vunpack.c.l.b16 %v205
  %v3685 = vunpack.c.l.b16 %v206
  %v3686 = vunpack.c.l.b16 %v207
  %v3687 = vunpack.c.l.b16 %v208
  %v3688 = vunpack.c.l.b16 %v209
  %v3689 = vunpack.c.l.b16 %v210
  %v3690 = vunpack.c.l.b16 %v211
  %v3691 = vunpack.c.l.b16 %v212
  %v3692 = vunpack.c.l.b16 %v213
  %v3693 = vunpack.c.l.b16 %v214
  %v3694 = vunpack.c.l.b16 %v215
  %v3695 = vunpack.c.l.b16 %v216
  %v3696 = vunpack.c.l.b16 %v217
  %v3697 = vunpack.c.l.b16 %v218
  %v3698 = vunpack.c.l.b16 %v219
  %v3699 = vunpack.c.l.b16 %v220
  %v3700 = vunpack.c.l.b16 %v221
  %v3701 = vunpack.c.l.b16 %v222
  %v3702 = vunpack.c.l.b16 %v223
  %v3703 = vunpack.c.l.b16 %v224
  %v3704 = vunpack.c.l.b16 %v225
  %v3705 = vunpack.c.l.b16 %v226
  %v3706 = vunpack.c.l.b16 %v227
  %v3707 = vunpack.c.l.b16 %v228
  %v3708 = vunpack.c.l.b16 %v229
  %v3709 = vunpack.c.l.b16 %v230
  %v3710 = vunpack.c.l.b16 %v231
  %v3711 = vunpack.c.l.b16 %v232
  %v3712 = vunpack.c.l.b16 %v233
  %v3713 = vunpack.c.l.b16 %v234
  %v3714 = vunpack.c.l.b16 %v235
  %v3715 = vunpack.c.l.b16 %v236
  %v3716 = vunpack.c.l.b16 %v237
  %v3717 = vunpack.c.l.b16 %v238
  %v3718 = vunpack.c.l.b16 %v239
  %v3719 = vunpack.c.l.b16 %v240
  %v3720 = vunpack.c.l.b16 %v241
  %v3721 = vunpack.c.l.b16 %v242
  %v3722 = vunpack.c.l.b16 %v243
  %v3723 = vunpack.c.l.b16 %v244
  %v3724 = vunpack.c.l.b16 %v245
  %v3725 = vunpack.c.l.b16 %v246
  %v3726 = vunpack.c.l.b16 %v247
  %v3727 = vunpack.c.l.b16 %v248
  %v3728 = vunpack.c.l.b16 %v249
  %v3729 = vunpack.c.l.b16 %v250
  %v3730 = vunpack.c.l.b16 %v251
  %v3731 = vunpack.c.l.b16 %v252
  %v3732 = vunpack.c.l.b16 %v253
  %v3733 = vunpack.c.l.b16 %v254
  %v3734 = vunpack.c.l.b16 %v255
  %v3735 = vunpack.c.l.b16 %v256
  %v3736 = vunpack.c.l.b16 %v257
  %v3737 = vunpack.c.l.b16 %v258
  %v3738 = vunpack.c.l.b16 %v259
  %v3739 = vunpack.c.l.b16 %v260
  %v3740 = vunpack.c.l.b16 %v261
  %v3741 = vunpack.c.l.b16 %v262
  %v3742 = vunpack.c.l.b16 %v263
  %v3743 = vunpack.c.l.b16 %v264
  %v3744 = vunpack.c.l.b16 %v265
  %v3745 = vunpack.c.l.b16 %v266
  %v3746 = vunpack.c.l.b16 %v267
  %v3747 = vunpack.c.l.b16 %v268
  %v3748 = vunpack.c.l.b16 %v269
  %v3749 = vunpack.c.l.b16 %v270
  %v3750 = vunpack.c.l.b16 %v271
  %v3751 = vunpack.c.l.b16 %v272
  %v3752 = vunpack.c.l.b16 %v273
  %v3753 = vunpack.c.l.b16 %v274
  %v3754 = vunpack.c.l.b16 %v275
  %v3755 = vunpack.c.l.b16 %v276
  %v3756 = vunpack.c.l.b16 %v277
  %v3757 = vunpack.c.l.b16 %v278
  %v3758 = vunpack.c.l.b16 %v279
  %v3759 = vunpack.c.l.b16 %v280
  %v3760 = vunpack.c.l.b16 %v281
  %v3761 = vunpack.c.l.b16 %v282
  %v3762 = vunpack.c.l.b16 %v283
  %v3763 = vunpack.c.l.b16 %v284
  %v3764 = vunpack.c.l.b16 %v285
  %v3765 = vunpack.c.l.b16 %v286
  %v3766 = vunpack.c.l.b16 %v287
  %v3767 = vunpack.c.l.b16 %v288
  %v3768 = vunpack.c.l.b16 %v289
  %v3769 = vunpack.c.l.b16 %v290
  %v3770 = vunpack.c.l.b16 %v291
  %v3771 = vunpack.c.l.b16 %v292
  %v3772 = vunpack.c.l.b16 %v293
  %v3773 = vunpack.c.l.b16 %v294
  %v3774 = vunpack.c.l.b16 %v295
  %v3775 = vunpack.c.l.b16 %v296
  %v3776 = vunpack.c.l.b16 %v297
  %v3777 = vunpack.c.l.b16 %v298
  %v3778 = vunpack.c.l.b16 %v299
  %v3779 = vunpack.c.l.b16 %v300
  %v3780 = vunpack.c.l.b16 %v301
  %v3781 = vunpack.c.l.b16 %v302
  %v3782 = vunpack.c.l.b16 %v303
  %v3783 = vunpack.c.l.b16 %v304
  %v3784 = vunpack.c.l.b16 %v305
  %v3785 = vunpack.c.l.b16 %v306
  %v3786 = vunpack.c.l.b16 %v307
  %v3787 = vunpack.c.l.b16 %v308
  %v3788 = vunpack.c.l.b16 %v309
  %v3789 = vunpack.c.l.b16 %v310
  %v3790 = vunpack.c.l.b16 %v311
  %v3791 = vunpack.c.l.b16 %v312
  %v3792 = vunpack.c.l.b16 %v313
  %v3793 = vunpack.c.l.b16 %v314
  %v3794 = vunpack.c.l.b16 %v315
  %v3795 = vunpack.c.l.b16 %v316
  %v3796 = vunpack.c.l.b16 %v317
  %v3797 = vunpack.c.l.b16 %v318
  %v3798 = vunpack.c.l.b16 %v319
  %v3799 = vunpack.c.l.b16 %v320
  %v3800 = vunpack.c.l.b16 %v321
  %v3801 = vunpack.c.l.b16 %v322
  %v3802 = vunpack.c.l.b16 %v323
  %v3803 = vunpack.c.l.b16 %v324
  %v3804 = vunpack.c.l.b16 %v325
  %v3805 = vunpack.c.l.b16 %v326
  %v3806 = vunpack.c.l.b16 %v327
  %v3807 = vunpack.c.l.b16 %v328
  %v3808 = vunpack.c.l.b16 %v329
  %v3809 = vunpack.c.l.b16 %v330
  %v3810 = vunpack.c.l.b16 %v331
  %v3811 = vunpack.c.l.b16 %v332
  %v3812 = vunpack.c.l.b16 %v333
  %v3813 = vunpack.c.l.b16 %v334
  %v3814 = vunpack.c.l.b16 %v335
  %v3815 = vunpack.c.l.b16 %v336
  %v3816 = vunpack.c.l.b16 %v337
  %v3817 = vunpack.c.l.b16 %v338
  %v3818 = vunpack.c.l.b16 %v339
  %v3819 = vunpack.c.l.b16 %v340
  %v3820 = vunpack.c.l.b16 %v341
  %v3821 = vunpack.c.l.b16 %v342
  %v3822 = vunpack.c.l.b16 %v343
  %v3823 = vunpack.c.l.b16 %v344
  %v3824 = vunpack.c.l.b16 %v345
  %v3825 = vunpack.c.l.b16 %v346
  %v3826 = vunpack.c.l.b16 %v347
  %v3827 = vunpack.c.l.b16 %v348
  %v3828 = vunpack.c.l.b16 %v349
  %v3829 = vunpack.c.l.b16 %v350
  %v3830 = vunpack.c.l.b16 %v351
  %v3831 = vunpack.c.l.b16 %v352
  %v3832 = vunpack.c.l.b16 %v353
  %v3833 = vunpack.c.l.b16 %v354
  %v3834 = vunpack.c.l.b16 %v355
  %v3835 = vunpack.c.l.b16 %v356
  %v3836 = vunpack.c.l.b16 %v357
  %v3837 = vunpack.c.l.b16 %v358
  %v3838 = vunpack.c.l.b16 %v359
  %v3839 = vunpack.c.l.b16 %v360
  %v3840 = vunpack.c.l.b16 %v361
  %v3841 = vunpack.c.l.b16 %v362
  %v3842 = vunpack.c.l.b16 %v363
  %v3843 = vunpack.c.l.b16 %v364
  %v3844 = vunpack.c.l.b16 %v365
  %v3845 = vunpack.c.l.b16 %v366
  %v3846 = vunpack.c.l.b16 %v367
  %v3847 = vunpack.c.l.b16 %v368
  %v3848 = vunpack.c.l.b16 %v369
  %v3849 = vunpack.c.l.b16 %v370
  %v3850 = vunpack.c.l.b16 %v371
  %v3851 = vunpack.c.l.b16 %v372
  %v3852 = vunpack.c.l.b16 %v373
  %v3853 = vunpack.c.l.b16 %v374
  %v3854 = vunpack.c.l.b16 %v375
  %v3855 = vunpack.c.l.b16 %v376
  %v3856 = vunpack.c.l.b16 %v377
  %v3857 = vunpack.c.l.b16 %v378
  %v3858 = vunpack.c.l.b16 %v379
  %v3859 = vunpack.c.l.b16 %v380
  %v3860 = vunpack.c.l.b16 %v381
  %v3861 = vunpack.c.l.b16 %v382
  %v3862 = vunpack.c.l.b16 %v383
  %v3863 = vunpack.c.l.b16 %v384
  %v3864 = vunpack.c.l.b16 %v385
  %v3865 = vunpack.c.l.b16 %v386
  %v3866 = vunpack.c.l.b16 %v387
  %v3867 = vunpack.c.l.b16 %v388
  %v3868 = vunpack.c.l.b16 %v389
  %v3869 = vunpack.c.l.b16 %v390
  %v3870 = vunpack.c.l.b16 %v391
  %v3871 = vunpack.c.l.b16 %v392
  %v3872 = vunpack.c.l.b16 %v393
  %v3873 = vunpack.c.l.b16 %v394
  %v3874 = vunpack.c.l.b16 %v395
  %v3875 = vunpack.c.l.b16 %v396
  %v3876 = vunpack.c.l.b16 %v397
  %v3877 = vunpack.c.l.b16 %v398
  %v3878 = vunpack.c.l.b16 %v399
  %v3879 = vunpack.c.l.b16 %v400
  %v3880 = vunpack.c.l.b16 %v401
  %v3881 = vunpack.c.l.b16 %v402
  %v3882 = vunpack.c.l.b16 %v403
  %v3883 = vunpack.c.l.b16 %v404
  %v3884 = vunpack.c.l.b16 %v405
  %v3885 = vunpack.c.l.b16 %v406
  %v3886 = vunpack.c.l.b16 %v407
  %v3887 = vunpack.c.l.b16 %v408
  %v3888 = vunpack.c.l.b16 %v409
  %v3889 = vunpack.c.l.b16 %v410
  %v3890 = vunpack.c.l.b16 %v411
  %v3891 = vunpack.c.l.b16 %v412
  %v3892 = vunpack.c.l.b16 %v413
  %v3893 = vunpack.c.l.b16 %v414
  %v3894 = vunpack.c.l.b16 %v415
  %v3895 = vunpack.c.l.b16 %v416
  %v3896 = vunpack.c.l.b16 %v417
  %v3897 = vunpack.c.l.b16 %v418
  %v3898 = vunpack.c.l.b16 %v419
  %v3899 = vunpack.c.l.b16 %v420
  %v3900 = vunpack.c.l.b16 %v421
  %v3901 = vunpack.c.l.b16 %v422
  %v3902 = vunpack.c.l.b16 %v423
  %v3903 = vunpack.c.l.b16 %v424
  %v3904 = vunpack.c.l.b16 %v425
  %v3905 = vunpack.c.l.b16 %v426
  %v3906 = vunpack.c.l.b16 %v427
  %v3907 = vunpack.c.l.b16 %v428
  %v3908 = vunpack.c.l.b16 %v429
  %v3909 = vunpack.c.l.b16 %v430
  %v3910 = vunpack.c.l.b16 %v431
  %v3911 = vunpack.c.l.b16 %v432
  %v3912 = vunpack.c.l.b16 %v433
  %v3913 = vunpack.c.l.b16 %v434
  %v3914 = vunpack.c.l.b16 %v435
  %v3915 = vunpack.c.l.b16 %v436
  %v3916 = vunpack.c.l.b16 %v437
  %v3917 = vunpack.c.l.b16 %v438
  %v3918 = vunpack.c.l.b16 %v439
  %v3919 = vunpack.c.l.b16 %v440
  %v3920 = vunpack.c.l.b16 %v441
  %v3921 = vunpack.c.l.b16 %v442
  %v3922 = vunpack.c.l.b16 %v443
  %v3923 = vunpack.c.l.b16 %v444
  %v3924 = vunpack.c.l.b16 %v445
  %v3925 = vunpack.c.l.b16 %v446
  %v3926 = vunpack.c.l.b16 %v447
  %v3927 = vunpack.c.l.b16 %v448
  %v3928 = vunpack.c.l.b16 %v449
  %v3929 = vunpack.c.l.b16 %v450
  %v3930 = vunpack.c.l.b16 %v451
  %v3931 = vunpack.c.l.b16 %v452
  %v3932 = vunpack.c.l.b16 %v453
  %v3933 = vunpack.c.l.b16 %v454
  %v3934 = vunpack.c.l.b16 %v455
  %v3935 = vunpack.c.l.b16 %v456
  %v3936 = vunpack.c.l.b16 %v457
  %v3937 = vunpack.c.l.b16 %v458
  %v3938 = vunpack.c.l.b16 %v459
  %v3939 = vunpack.c.l.b16 %v460
  %v3940 = vunpack.c.l.b16 %v461
  %v3941 = vunpack.c.l.b16 %v462
  %v3942 = vunpack.c.l.b16 %v463
  %v3943 = vunpack.c.l.b16 %v464
  %v3944 = vunpack.c.l.b16 %v465
  %v3945 = vunpack.c.l.b16 %v466
  %v3946 = vunpack.c.l.b16 %v467
  %v3947 = vunpack.c.l.b16 %v468
  %v3948 = vunpack.c.l.b16 %v469
  %v3949 = vunpack.c.l.b16 %v470
  %v3950 = vunpack.c.l.b16 %v471
  %v3951 = vunpack.c.l.b16 %v472
  %v3952 = vunpack.c.l.b16 %v473
  %v3953 = vunpack.c.l.b16 %v474
  %v3954 = vunpack.c.l.b16 %v475
  %v3955 = vunpack.c.l.b16 %v476
  %v3956 = vunpack.c.l.b16 %v477
  %v3957 = vunpack.c.l.b16 %v478
  %v3958 = vunpack.c.l.b16 %v479
  %v3959 = vunpack.c.l.b16 %v480
  %v3960 = vunpack.c.l.b16 %v481
  %v3961 = vunpack.c.l.b16 %v482
  %v3962 = vunpack.c.l.b16 %v483
  %v3963 = vunpack.c.l.b16 %v484
  %v3964 = vunpack.c.l.b16 %v485
  %v3965 = vunpack.c.l.b16 %v486
  %v3966 = vunpack.c.l.b16 %v487
  %v3967 = vunpack.c.l.b16 %v488
  %v3968 = vunpack.c.l.b16 %v489
  %v3969 = vunpack.c.l.b16 %v490
  %v3970 = vunpack.c.l.b16 %v491
  %v3971 = vunpack.c.l.b16 %v492
  %v3972 = vunpack.c.l.b16 %v493
  %v3973 = vunpack.c.l.b16 %v494
  %v3974 = vunpack.c.l.b16 %v495
  %v3975 = vunpack.c.l.b16 %v496
  %v3976 = vunpack.c.l.b16 %v497
  %v3977 = vunpack.c.l.b16 %v498
  %v3978 = vunpack.c.l.b16 %v499
  %v3979 = vunpack.c.l.b16 %v500
  %v3980 = vunpack.c.l.b16 %v501
  %v3981 = vunpack.c.l.b16 %v502
  %v3982 = vunpack.c.l.b16 %v503
  %v3983 = vunpack.c.l.b16 %v504
  %v3984 = vunpack.c.l.b16 %v505
  %v3985 = vunpack.c.l.b16 %v506
  %v3986 = vunpack.c.l.b16 %v507
  %v3987 = vunpack.c.l.b16 %v508
  %v3988 = vunpack.c.l.b16 %v509
  %v3989 = vunpack.c.l.b16 %v510
  %v3990 = vunpack.c.l.b16 %v511
  %v3991 = vunpack.c.l.b16 %v512
  %v3992 = vunpack.c.l.b16 %v513
  %v3993 = vunpack.c.l.b16 %v514
  %v3994 = vunpack.c.l.b16 %v515
  %v3995 = vunpack.c.l.b16 %v516
  %v3996 = vunpack.c.l.b16 %v517
  %v3997 = vunpack.c.l.b16 %v518
  %v3998 = vunpack.c.l.b16 %v519
  %v3999 = vunpack.c.l.b16 %v520
  %v4000 = vunpack.c.l.b16 %v521
  %v4001 = vunpack.c.l.b16 %v522
  %v4002 = vunpack.c.l.b16 %v523
  %v4003 = vunpack.c.l.b16 %v524
  %v4004 = vunpack.c.l.b16 %v525
  %v4005 = vunpack.c.l.b16 %v526
  %v4006 = vunpack.c.l.b16 %v527
  %v4007 = vunpack.c.l.b16 %v528
  %v4008 = vunpack.c.l.b16 %v529
  %v4009 = vunpack.c.l.b16 %v530
  %v4010 = vunpack.c.l.b16 %v531
  %v4011 = vunpack.c.l.b16 %v532
  %v4012 = vunpack.c.l.b16 %v533
  %v4013 = vunpack.c.l.b16 %v534
  %v4014 = vunpack.c.l.b16 %v535
  %v4015 = vunpack.c.l.b16 %v536
  %v4016 = vunpack.c.l.b16 %v537
  %v4017 = vunpack.c.l.b16 %v538
  %v4018 = vunpack.c.l.b16 %v539
  %v4019 = vunpack.c.l.b16 %v540
  %v4020 = vunpack.c.l.b16 %v541
  %v4021 = vunpack.c.l.b16 %v542
  %v4022 = vunpack.c.l.b16 %v543
  %v4023 = vunpack.c.l.b16 %v544
  %v4024 = vunpack.c.l.b16 %v545
  %v4025 = vunpack.c.l.b16 %v546
  %v4026 = vunpack.c.l.b16 %v547
  %v4027 = vunpack.c.l.b16 %v548
  %v4028 = vunpack.c.l.b16 %v549
  %v4029 = vunpack.c.l.b16 %v550
  %v4030 = vunpack.c.l.b16 %v551
  %v4031 = vunpack.c.l.b16 %v552
  %v4032 = vunpack.c.l.b16 %v553
  %v4033 = vunpack.c.l.b16 %v554
  %v4034 = vunpack.c.l.b16 %v555
  %v4035 = vunpack.c.l.b16 %v556
  %v4036 = vunpack.c.l.b16 %v557
  %v4037 = vunpack.c.l.b16 %v558
  %v4038 = vunpack.c.l.b16 %v559
  %v4039 = vunpack.c.l.b16 %v560
  %v4040 = vunpack.c.l.b16 %v561
  %v4041 = vunpack.c.l.b16 %v562
  %v4042 = vunpack.c.l.b16 %v563
  %v4043 = vunpack.c.l.b16 %v564
  %v4044 = vunpack.c.l.b16 %v565
  %v4045 = vunpack.c.l.b16 %v566
  %v4046 = vunpack.c.l.b16 %v567
  %v4047 = vunpack.c.l.b16 %v568
  %v4048 = vunpack.c.l.b16 %v569
  %v4049 = vunpack.c.l.b16 %v570
  %v4050 = vunpack.c.l.b16 %v571
  %v4051 = vunpack.c.l.b16 %v572
  %v4052 = vunpack.c.l.b16 %v573
  %v4053 = vunpack.c.l.b16 %v574
  %v4054 = vunpack.c.l.b16 %v575
  %v4055 = vunpack.c.l.b16 %v576
  %v4056 = vunpack.c.l.b16 %v577
  %v4057 = vunpack.c.l.b16 %v578
  %v4058 = vunpack.c.l.b16 %v579
  %v4059 = vunpack.c.l.b16 %v580
  %v4060 = vunpack.c.l.b16 %v581
  %v4061 = vunpack.c.l.b16 %v582
  %v4062 = vunpack.c.l.b16 %v583
  %v4063 = vunpack.c.l.b16 %v584
  %v4064 = vunpack.c.l.b16 %v585
  %v4065 = vunpack.c.l.b16 %v586
  %v4066 = vunpack.c.l.b16 %v587
  %v4067 = vunpack.c.l.b16 %v588
  %v4068 = vunpack.c.l.b16 %v589
  %v4069 = vunpack.c.l.b16 %v590
  %v4070 = vunpack.c.l.b16 %v591
  %v4071 = vunpack.c.l.b16 %v592
  %v4072 = vunpack.c.l.b16 %v593
  %v4073 = vunpack.c.l.b16 %v594
  %v4074 = vunpack.c.l.b16 %v595
  %v4075 = vunpack.c.l.b16 %v596
  %v4076 = vunpack.c.l.b16 %v597
  %v4077 = vunpack.c.l.b16 %v598
  %v4078 = vunpack.c.l.b16 %v599
  %v4079 = vunpack.c.l.b16 %v600
  %v4080 = vunpack.c.l.b16 %v601
  %v4081 = vunpack.c.l.b16 %v602
  %v4082 = vunpack.c.l.b16 %v603
  %v4083 = vunpack.c.l.b16 %v604
  %v4084 = vunpack.c.l.b16 %v605
  %v4085 = vunpack.c.l.b16 %v606
  %v4086 = vunpack.c.l.b16 %v607
  %v4087 = vunpack.c.l.b16 %v608
  %v4088 = vunpack.c.l.b16 %v609
  %v4089 = vunpack.c.l.b16 %v610
  %v4090 = vunpack.c.l.b16 %v611
  %v4091 = vunpack.c.l.b16 %v612
  %v4092 = vunpack.c.l.b16 %v613
  %v4093 = vunpack.c.l.b16 %v614
  %v4094 = vunpack.c.l.b16 %v615
  %v4095 = vunpack.c.l.b16 %v616
  %v4096 = vunpack.c.l.b16 %v617
  %v4097 = vunpack.c.l.b16 %v618
  %v4098 = vunpack.c.l.b16 %v619
  %v4099 = vunpack.c.l.b16 %v620
  %v4100 = vunpack.c.l.b16 %v621
  %v4101 = vunpack.c.l.b16 %v622
  %v4102 = vunpack.c.l.b16 %v623
  %v4103 = vunpack.c.l.b16 %v624
  %v4104 = vunpack.c.l.b16 %v625
  %v4105 = vunpack.c.l.b16 %v626
  %v4106 = vunpack.c.l.b16 %v627
  %v4107 = vunpack.c.l.b16 %v628
  %v4108 = vunpack.c.l.b16 %v629
  %v4109 = vunpack.c.l.b16 %v630
  %v4110 = vunpack.c.l.b16 %v631
  %v4111 = vunpack.c.l.b16 %v632
  %v4112 = vunpack.c.l.b16 %v633
  %v4113 = vunpack.c.l.b16 %v634
  %v4114 = vunpack.c.l.b16 %v635
  %v4115 = vunpack.c.l.b16 %v636
  %v4116 = vunpack.c.l.b16 %v637
  %v4117 = vunpack.c.l.b16 %v638
  %v4118 = vunpack.c.l.b16 %v639
  %v4119 = vunpack.c.l.b16 %v640
  %v4120 = vunpack.c.l.b16 %v641
  %v4121 = vunpack.c.l.b16 %v642
  %v4122 = vunpack.c.l.b16 %v643
  %v4123 = vunpack.c.l.b16 %v644
  %v4124 = vunpack.c.l.b16 %v645
  %v4125 = vunpack.c.l.b16 %v646
  %v4126 = vunpack.c.l.b16 %v647
  %v4127 = vunpack.c.l.b16 %v648
  %v4128 = vunpack.c.l.b16 %v649
  %v4129 = vunpack.c.l.b16 %v650
  %v4130 = vunpack.c.l.b16 %v651
  %v4131 = vunpack.c.l.b16 %v652
  %v4132 = vunpack.c.l.b16 %v653
  %v4133 = vunpack.c.l.b16 %v654
  %v4134 = vunpack.c.l.b16 %v655
  %v4135 = vunpack.c.l.b16 %v656
  %v4136 = vunpack.c.l.b16 %v657
  %v4137 = vunpack.c.l.b16 %v658
  %v4138 = vunpack.c.l.b16 %v659
  %v4139 = vunpack.c.l.b16 %v660
  %v4140 = vunpack.c.l.b16 %v661
  %v4141 = vunpack.c.l.b16 %v662
  %v4142 = vunpack.c.l.b16 %v663
  %v4143 = vunpack.c.l.b16 %v664
  %v4144 = vunpack.c.l.b16 %v665
  %v4145 = vunpack.c.l.b16 %v666
  %v4146 = vunpack.c.l.b16 %v667
  %v4147 = vunpack.c.l.b16 %v668
  %v4148 = vunpack.c.l.b16 %v669
  %v4149 = vunpack.c.l.b16 %v670
  %v4150 = vunpack.c.l.b16 %v671
  %v4151 = vunpack.c.l.b16 %v672
  %v4152 = vunpack.c.l.b16 %v673
  %v4153 = vunpack.c.l.b16 %v674
  %v4154 = vunpack.c.l.b16 %v675
  %v4155 = vunpack.c.l.b16 %v676
  %v4156 = vunpack.c.l.b16 %v677
  %v4157 = vunpack.c.l.b16 %v678
  %v4158 = vunpack.c.l.b16 %v679
  %v4159 = vunpack.c.l.b16 %v680
  %v4160 = vunpack.c.l.b16 %v681
  %v4161 = vunpack.c.l.b16 %v682
  %v4162 = vunpack.c.l.b16 %v683
  %v4163 = vunpack.c.l.b16 %v684
  %v4164 = vunpack.c.l.b16 %v685
  %v4165 = vunpack.c.l.b16 %v686
  %v4166 = vunpack.c.l.b16 %v687
  %v4167 = vunpack.c.l.b16 %v688
  %v4168 = vunpack.c.l.b16 %v689
  %v4169 = vunpack.c.l.b16 %v690
  %v4170 = vunpack.c.l.b16 %v691
  %v4171 = vunpack.c.l.b16 %v692
  %v4172 = vunpack.c.l.b16 %v693
  %v4173 = vunpack.c.l.b16 %v694
  %v4174 = vunpack.c.l.b16 %v695
  %v4175 = vunpack.c.l.b16 %v696
  %v4176 = vunpack.c.l.b16 %v697
  %v4177 = vunpack.c.l.b16 %v698
  %v4178 = vunpack.c.l.b16 %v699
  %v4179 = vunpack.c.l.b16 %v700
  %v4180 = vunpack.c.l.b16 %v701
  %v4181 = vunpack.c.l.b16 %v702
  %v4182 = vunpack.c.l.b16 %v703
  %v4183 = vunpack.c.l.b16 %v704
  %v4184 = vunpack.c.l.b16 %v705
  %v4185 = vunpack.c.l.b16 %v706
  %v4186 = vunpack.c.l.b16 %v707
  %v4187 = vunpack.c.l.b16 %v708
  %v4188 = vunpack.c.l.b16 %v709
  %v4189 = vunpack.c.l.b16 %v710
  %v4190 = vunpack.c.l.b16 %v711
  %v4191 = vunpack.c.l.b16 %v712
  %v4192 = vunpack.c.l.b16 %v713
  %v4193 = vunpack.c.l.b16 %v714
  %v4194 = vunpack.c.l.b16 %v715
  %v4195 = vunpack.c.l.b16 %v716
  %v4196 = vunpack.c.l.b16 %v717
  %v4197 = vunpack.c.l.b16 %v718
  %v4198 = vunpack.c.l.b16 %v719
  %v4199 = vunpack.c.l.b16 %v720
  %v4200 = vunpack.c.l.b16 %v721
  %v4201 = vunpack.c.l.b16 %v722
  %v4202 = vunpack.c.l.b16 %v723
  %v4203 = vunpack.c.l.b16 %v724
  %v4204 = vunpack.c.l.b16 %v725
  %v4205 = vunpack.c.l.b16 %v726
  %v4206 = vunpack.c.l.b16 %v727
  %v4207 = vunpack.c.l.b16 %v728
  %v4208 = vunpack.c.l.b16 %v729
  %v4209 = vunpack.c.l.b16 %v730
  %v4210 = vunpack.c.l.b16 %v731
  %v4211 = vunpack.c.l.b16 %v732
  %v4212 = vunpack.c.l.b16 %v733
  %v4213 = vunpack.c.l.b16 %v734
  %v4214 = vunpack.c.l.b16 %v735
  %v4215 = vunpack.c.l.b16 %v736
  %v4216 = vunpack.c.l.b16 %v737
  %v4217 = vunpack.c.l.b16 %v738
  %v4218 = vunpack.c.l.b16 %v739
  %v4219 = vunpack.c.l.b16 %v740
  %v4220 = vunpack.c.l.b16 %v741
  %v4221 = vunpack.c.l.b16 %v742
  %v4222 = vunpack.c.l.b16 %v743
  %v4223 = vunpack.c.l.b16 %v744
  %v4224 = vunpack.c.l.b16 %v745
  %v4225 = vunpack.c.l.b16 %v746
  %v4226 = vunpack.c.l.b16 %v747
  %v4227 = vunpack.c.l.b16 %v748
  %v4228 = vunpack.c.l.b16 %v749
  %v4229 = vunpack.c.l.b16 %v750
  %v4230 = vunpack.c.l.b16 %v751
  %v4231 = vunpack.c.l.b16 %v752
  %v4232 = vunpack.c.l.b16 %v753
  %v4233 = vunpack.c.l.b16 %v754
  %v4234 = vunpack.c.l.b16 %v755
  %v4235 = vunpack.c.l.b16 %v756
  %v4236 = vunpack.c.l.b16 %v757
  %v4237 = vunpack.c.l.b16 %v758
  %v4238 = vunpack.c.l.b16 %v759
  %v4239 = vunpack.c.l.b16 %v760
  %v4240 = vunpack.c.l.b16 %v761
  %v4241 = vunpack.c.l.b16 %v762
  %v4242 = vunpack.c.l.b16 %v763
  %v4243 = vunpack.c.l.b16 %v764
  %v4244 = vunpack.c.l.b16 %v765
  %v4245 = vunpack.c.l.b16 %v766
  %v4246 = vunpack.c.l.b16 %v767
  %v4247 = vunpack.c.l.b16 %v768
  %v4248 = vunpack.c.l.b16 %v769
  %v4249 = vunpack.c.l.b16 %v770
  %v4250 = vunpack.c.l.b16 %v771
  %v4251 = vunpack.c.l.b16 %v772
  %v4252 = vunpack.c.l.b16 %v773
  %v4253 = vunpack.c.l.b16 %v774
  %v4254 = vunpack.c.l.b16 %v775
  %v4255 = vunpack.c.l.b16 %v776
  %v4256 = vunpack.c.l.b16 %v777
  %v4257 = vunpack.c.l.b16 %v778
  %v4258 = vunpack.c.l.b16 %v779
  %v4259 = vunpack.c.l.b16 %v780
  %v4260 = vunpack.c.l.b16 %v781
  %v4261 = vunpack.c.l.b16 %v782
  %v4262 = vunpack.c.l.b16 %v783
  %v4263 = vunpack.c.l.b16 %v784
  %v4264 = vunpack.c.l.b16 %v785
  %v4265 = vunpack.c.l.b16 %v786
  %v4266 = vunpack.c.l.b16 %v787
  %v4267 = vunpack.c.l.b16 %v788
  %v4268 = vunpack.c.l.b16 %v789
  %v4269 = vunpack.c.l.b16 %v790
  %v4270 = vunpack.c.l.b16 %v791
  %v4271 = vunpack.c.l.b16 %v792
  %v4272 = vunpack.c.l.b16 %v793
  %v4273 = vunpack.c.l.b16 %v794
  %v4274 = vunpack.c.l.b16 %v795
  %v4275 = vunpack.c.l.b16 %v796
  %v4276 = vunpack.c.l.b16 %v797
  %v4277 = vunpack.c.l.b16 %v798
  %v4278 = vunpack.c.l.b16 %v799
  %v4279 = vunpack.c.l.b16 %v800
  %v4280 = vunpack.c.l.b16 %v801
  %v4281 = vunpack.c.l.b16 %v802
  %v4282 = vunpack.c.l.b16 %v803
  %v4283 = vunpack.c.l.b16 %v804
  %v4284 = vunpack.c.l.b16 %v805
  %v4285 = vunpack.c.l.b16 %v806
  %v4286 = vunpack.c.l.b16 %v807
  %v4287 = vunpack.c.l.b16 %v808
  %v4288 = vunpack.c.l.b16 %v809
  %v4289 = vunpack.c.l.b16 %v810
  %v4290 = vunpack.c.l.b16 %v811
  %v4291 = vunpack.c.l.b16 %v812
  %v4292 = vunpack.c.l.b16 %v813
  %v4293 = vunpack.c.l.b16 %v814
  %v4294 = vunpack.c.l.b16 %v815
  %v4295 = vunpack.c.l.b16 %v816
  %v4296 = vunpack.c.l.b16 %v817
  %v4297 = vunpack.c.l.b16 %v818
  %v4298 = vunpack.c.l.b16 %v819
  %v4299 = vunpack.c.l.b16 %v820
  %v4300 = vunpack.c.l.b16 %v821
  %v4301 = vunpack.c.l.b16 %v822
  %v4302 = vunpack.c.l.b16 %v823
  %v4303 = vunpack.c.l.b16 %v824
  %v4304 = vunpack.c.l.b16 %v825
  %v4305 = vunpack.c.l.b16 %v826
  %v4306 = vunpack.c.l.b16 %v827
  %v4307 = vunpack.c.l.b16 %v828
  %v4308 = vunpack.c.l.b16 %v829
  %v4309 = vunpack.c.l.b16 %v830
  %v4310 = vunpack.c.l.b16 %v831
  %v4311 = vunpack.c.l.b16 %v832
  %v4312 = vunpack.c.l.b16 %v833
  %v4313 = vunpack.c.l.b16 %v834
  %v4314 = vunpack.c.l.b16 %v835
  %v4315 = vunpack.c.l.b16 %v836
  %v4316 = vunpack.c.l.b16 %v837
  %v4317 = vunpack.c.l.b16 %v838
  %v4318 = vunpack.c.l.b16 %v839
  %v4319 = vunpack.c.l.b16 %v840
  %v4320 = vunpack.c.l.b16 %v841
  %v4321 = vunpack.c.l.b16 %v842
  %v4322 = vunpack.c.l.b16 %v843
  %v4323 = vunpack.c.l.b16 %v844
  %v4324 = vunpack.c.l.b16 %v845
  %v4325 = vunpack.c.l.b16 %v846
  %v4326 = vunpack.c.l.b16 %v847
  %v4327 = vunpack.c.l.b16 %v848
  %v4328 = vunpack.c.l.b16 %v849
  %v4329 = vunpack.c.l.b16 %v850
  %v4330 = vunpack.c.l.b16 %v851
  %v4331 = vunpack.c.l.b16 %v852
  %v4332 = vunpack.c.l.b16 %v853
  %v4333 = vunpack.c.l.b16 %v854
  %v4334 = vunpack.c.l.b16 %v855
  %v4335 = vunpack.c.l.b16 %v856
  %v4336 = vunpack.c.l.b16 %v857
  %v4337 = vunpack.c.l.b16 %v858
  %v4338 = vunpack.c.l.b16 %v859
  %v4339 = vunpack.c.l.b16 %v860
  %v4340 = vunpack.c.l.b16 %v861
  %v4341 = vunpack.c.l.b16 %v862
  %v4342 = vunpack.c.l.b16 %v863
  %v4343 = vunpack.c.l.b16 %v864
  %v4344 = vunpack.c.l.b16 %v865
  %v4345 = vunpack.c.l.b16 %v866
  %v4346 = vunpack.c.l.b16 %v867
  %v4347 = vunpack.c.l.b16 %v868
  %v4348 = vunpack.c.l.b16 %v869
  %v4349 = vunpack.c.l.b16 %v870
  %v4350 = vunpack.c.l.b16 %v871
  %v4351 = vunpack.c.l.b16 %v872
  %v4352 = vunpack.c.l.b16 %v873
  %v4353 = vunpack.c.l.b16 %v874
  %v4354 = vunpack.c.l.b16 %v875
  %v4355 = vunpack.c.l.b16 %v876
  %v4356 = vunpack.c.l.b16 %v877
  %v4357 = vunpack.c.l.b16 %v878
  %v4358 = vunpack.c.l.b16 %v879
  %v4359 = vunpack.c.l.b16 %v880
  %v4360 = vunpack.c.l.b16 %v881
  %v4361 = vunpack.c.l.b16 %v882
  %v4362 = vunpack.c.l.b16 %v883
  %v4363 = vunpack.c.l.b16 %v884
  %v4364 = vunpack.c.l.b16 %v885
  %v4365 = vunpack.c.l.b16 %v886
  %v4366 = vunpack.c.l.b16 %v887
  %v4367 = vunpack.c.l.b16 %v888
  %v4368 = vunpack.c.l.b16 %v889
  %v4369 = vunpack.c.l.b16 %v890
  %v4370 = vunpack.c.l.b16 %v891
  %v4371 = vunpack.c.l.b16 %v892
  %v4372 = vunpack.c.l.b16 %v893
  %v4373 = vunpack.c.l.b16 %v894
  %v4374 = vunpack.c.l.b16 %v895
  %v4375 = vunpack.c.l.b16 %v896
  %v4376 = vunpack.c.l.b16 %v897
  %v4377 = vunpack.c.l.b16 %v898
  %v4378 = vunpack.c.l.b16 %v899
  %v4379 = vunpack.c.l.b16 %v900
  %v4380 = vunpack.c.l.b16 %v901
  %v4381 = vunpack.c.l.b16 %v902
  %v4382 = vunpack.c.l.b16 %v903
  %v4383 = vunpack.c.l.b16 %v904
  %v4384 = vunpack.c.l.b16 %v905
  %v4385 = vunpack.c.l.b16 %v906
  %v4386 = vunpack.c.l.b16 %v907
  %v4387 = vunpack.c.l.b16 %v908
  %v4388 = vunpack.c.l.b16 %v909
  %v4389 = vunpack.c.l.b16 %v910
  %v4390 = vunpack.c.l.b16 %v911
  %v4391 = vunpack.c.l.b16 %v912
  %v4392 = vunpack.c.l.b16 %v913
  %v4393 = vunpack.c.l.b16 %v914
  %v4394 = vunpack.c.l.b16 %v915
  %v4395 = vunpack.c.l.b16 %v916
  %v4396 = vunpack.c.l.b16 %v917
  %v4397 = vunpack.c.l.b16 %v918
  %v4398 = vunpack.c.l.b16 %v919
  %v4399 = vunpack.c.l.b16 %v920
  %v4400 = vunpack.c.l.b16 %v921
  %v4401 = vunpack.c.l.b16 %v922
  %v4402 = vunpack.c.l.b16 %v923
  %v4403 = vunpack.c.l.b16 %v924
  %v4404 = vunpack.c.l.b16 %v925
  %v4405 = vunpack.c.l.b16 %v926
  %v4406 = vunpack.c.l.b16 %v927
  %v4407 = vunpack.c.l.b16 %v928
  %v4408 = vunpack.c.l.b16 %v929
  %v4409 = vunpack.c.l.b16 %v930
  %v4410 = vunpack.c.l.b16 %v931
  %v4411 = vunpack.c.l.b16 %v932
  %v4412 = vunpack.c.l.b16 %v933
  %v4413 = vunpack.c.l.b16 %v934
  %v4414 = vunpack.c.l.b16 %v935
  %v4415 = vunpack.c.l.b16 %v936
  %v4416 = vunpack.c.l.b16 %v937
  %v4417 = vunpack.c.l.b16 %v938
  %v4418 = vunpack.c.l.b16 %v939
  %v4419 = vunpack.c.l.b16 %v940
  %v4420 = vunpack.c.l.b16 %v941
  %v4421 = vunpack.c.l.b16 %v942
  %v4422 = vunpack.c.l.b16 %v943
  %v4423 = vunpack.c.l.b16 %v944
  %v4424 = vunpack.c.l.b16 %v945
  %v4425 = vunpack.c.l.b16 %v946
  %v4426 = vunpack.c.l.b16 %v947
  %v4427 = vunpack.c.l.b16 %v948
  %v4428 = vunpack.c.l.b16 %v949
  %v4429 = vunpack.c.l.b16 %v950
  %v4430 = vunpack.c.l.b16 %v951
  %v4431 = vunpack.c.l.b16 %v952
  %v4432 = vunpack.c.l.b16 %v953
  %v4433 = vunpack.c.l.b16 %v954
  %v4434 = vunpack.c.l.b16 %v955
  %v4435 = vunpack.c.l.b16 %v956
  %v4436 = vunpack.c.l.b16 %v957
  %v4437 = vunpack.c.l.b16 %v958
  %v4438 = vunpack.c.l.b16 %v959
  %v4439 = vunpack.c.l.b16 %v960
  %v4440 = vunpack.c.l.b16 %v961
  %v4441 = vunpack.c.l.b16 %v962
  %v4442 = vunpack.c.l.b16 %v963
  %v4443 = vunpack.c.l.b16 %v964
  %v4444 = vunpack.c.l.b16 %v965
  %v4445 = vunpack.c.l.b16 %v966
  %v4446 = vunpack.c.l.b16 %v967
  %v4447 = vunpack.c.l.b16 %v968
  %v4448 = vunpack.c.l.b16 %v969
  %v4449 = vunpack.c.l.b16 %v970
  %v4450 = vunpack.c.l.b16 %v971
  %v4451 = vunpack.c.l.b16 %v972
  %v4452 = vunpack.c.l.b16 %v973
  %v4453 = vunpack.c.l.b16 %v974
  %v4454 = vunpack.c.l.b16 %v975
  %v4455 = vunpack.c.l.b16 %v976
  %v4456 = vunpack.c.l.b16 %v977
  %v4457 = vunpack.c.l.b16 %v978
  %v4458 = vunpack.c.l.b16 %v979
  %v4459 = vunpack.c.l.b16 %v980
  %v4460 = vunpack.c.l.b16 %v981
  %v4461 = vunpack.c.l.b16 %v982
  %v4462 = vunpack.c.l.b16 %v983
  %v4463 = vunpack.c.l.b16 %v984
  %v4464 = vunpack.c.l.b16 %v985
  %v4465 = vunpack.c.l.b16 %v986
  %v4466 = vunpack.c.l.b16 %v987
  %v4467 = vunpack.c.l.b16 %v988
  %v4468 = vunpack.c.l.b16 %v989
  %v4469 = vunpack.c.l.b16 %v990
  %v4470 = vunpack.c.l.b16 %v991
  %v4471 = vunpack.c.l.b16 %v992
  %v4472 = vunpack.c.l.b16 %v993
  %v4473 = vunpack.c.l.b16 %v994
  %v4474 = vunpack.c.l.b16 %v995
  %v4475 = vunpack.c.l.b16 %v996
  %v4476 = vunpack.c.l.b16 %v997
  %v4477 = vunpack.c.l.b16 %v998
  %v4478 = vunpack.c.l.b16 %v999
  %v4479 = vunpack.c.l.b16 %v1000
  %v4480 = vunpack.c.l.b16 %v1001
  %v4481 = vunpack.c.l.b16 %v1002
  %v4482 = vunpack.c.l.b16 %v1003
  %v4483 = vunpack.c.l.b16 %v1004
  %v4484 = vunpack.c.l.b16 %v1005
  %v4485 = vunpack.c.l.b16 %v1006
  %v4486 = vunpack.c.l.b16 %v1007
  %v4487 = vunpack.c.l.b16 %v1008
  %v4488 = vunpack.c.l.b16 %v1009
  %v4489 = vunpack.c.l.b16 %v1010
  %v4490 = vunpack.c.l.b16 %v1011
  %v4491 = vunpack.c.l.b16 %v1012
  %v4492 = vunpack.c.l.b16 %v1013
  %v4493 = vunpack.c.l.b16 %v1014
  %v4494 = vunpack.c.l.b16 %v1015
  %v4495 = vunpack.c.l.b16 %v1016
  %v4496 = vunpack.c.l.b16 %v1017
  %v4497 = vunpack.c.l.b16 %v1018
  %v4498 = vunpack.c.l.b16 %v1019
  %v4499 = vunpack.c.l.b16 %v1020
  %v4500 = vunpack.c.l.b16 %v1021
  %v4501 = vunpack.c.l.b16 %v1022
  %v4502 = vunpack.c.l.b16 %v1023
  %v4503 = vunpack.c.l.b16 %v1024
  %v4504 = vunpack.c.l.b16 %v1025
  %v4505 = vunpack.c.l.b16 %v1026
  %v4506 = vunpack.c.l.b16 %v1027
  %v4507 = vunpack.c.l.b16 %v1028
  %v4508 = vunpack.c.l.b16 %v1029
  %v4509 = vunpack.c.l.b16 %v1030
  %v4510 = vunpack.c.l.b16 %v1031
  %v4511 = vunpack.c.l.b16 %v1032
  %v4512 = vunpack.c.l.b16 %v1033
  %v4513 = vunpack.c.l.b16 %v1034
  %v4514 = vunpack.c.l.b16 %v1035
  %v4515 = vunpack.c.l.b16 %v1036
  %v4516 = vunpack.c.l.b16 %v1037
  %v4517 = vunpack.c.l.b16 %v1038
  %v4518 = vunpack.c.l.b16 %v1039
  %v4519 = vunpack.c.l.b16 %v1040
  %v4520 = vunpack.c.l.b16 %v1041
  %v4521 = vunpack.c.l.b16 %v1042
  %v4522 = vunpack.c.l.b16 %v1043
  %v4523 = vunpack.c.l.b16 %v1044
  %v4524 = vunpack.c.l.b16 %v1045
  %v4525 = vunpack.c.l.b16 %v1046
  %v4526 = vunpack.c.l.b16 %v1047
  %v4527 = vunpack.c.l.b16 %v1048
  %v4528 = vunpack.c.l.b16 %v1049
  %v4529 = vunpack.c.l.b16 %v1050
  %v4530 = vunpack.c.l.b16 %v1051
  %v4531 = vunpack.c.l.b16 %v1052
  %v4532 = vunpack.c.l.b16 %v1053
  %v4533 = vunpack.c.l.b16 %v1054
  %v4534 = vunpack.c.l.b16 %v1055
  %v4535 = vunpack.c.l.b16 %v1056
  %v4536 = vunpack.c.l.b16 %v1057
  %v4537 = vunpack.c.l.b16 %v1058
  %v4538 = vunpack.c.l.b16 %v1059
  %v4539 = vunpack.c.l.b16 %v1060
  %v4540 = vunpack.c.l.b16 %v1061
  %v4541 = vunpack.c.l.b16 %v1062
  %v4542 = vunpack.c.l.b16 %v1063
  %v4543 = vunpack.c.l.b16 %v1064
  %v4544 = vunpack.c.l.b16 %v1065
  %v4545 = vunpack.c.l.b16 %v1066
  %v4546 = vunpack.c.l.b16 %v1067
  %v4547 = vunpack.c.l.b16 %v1068
  %v4548 = vunpack.c.l.b16 %v1069
  %v4549 = vunpack.c.l.b16 %v1070
  %v4550 = vunpack.c.l.b16 %v1071
  %v4551 = vunpack.c.l.b16 %v1072
  %v4552 = vunpack.c.l.b16 %v1073
  %v4553 = vunpack.c.l.b16 %v1074
  %v4554 = vunpack.c.l.b16 %v1075
  %v4555 = vunpack.c.l.b16 %v1076
  %v4556 = vunpack.c.l.b16 %v1077
  %v4557 = vunpack.c.l.b16 %v1078
  %v4558 = vunpack.c.l.b16 %v1079
  %v4559 = vunpack.c.l.b16 %v1080
  %v4560 = vunpack.c.l.b16 %v1081
  %v4561 = vunpack.c.l.b16 %v1082
  %v4562 = vunpack.c.l.b16 %v1083
  %v4563 = vunpack.c.l.b16 %v1084
  %v4564 = vunpack.c.l.b16 %v1085
  %v4565 = vunpack.c.l.b16 %v1086
  %v4566 = vunpack.c.l.b16 %v1087
  %v4567 = vunpack.c.l.b16 %v1088
  %v4568 = vunpack.c.l.b16 %v1089
  %v4569 = vunpack.c.l.b16 %v1090
  %v4570 = vunpack.c.l.b16 %v1091
  %v4571 = vunpack.c.l.b16 %v1092
  %v4572 = vunpack.c.l.b16 %v1093
  %v4573 = vunpack.c.l.b16 %v1094
  %v4574 = vunpack.c.l.b16 %v1095
  %v4575 = vunpack.c.l.b16 %v1096
  %v4576 = vunpack.c.l.b16 %v1097
  %v4577 = vunpack.c.l.b16 %v1098
  %v4578 = vunpack.c.l.b16 %v1099
  %v4579 = vunpack.c.l.b16 %v1100
  %v4580 = vunpack.c.l.b16 %v1101
  %v4581 = vunpack.c.l.b16 %v1102
  %v4582 = vunpack.c.l.b16 %v1103
  %v4583 = vunpack.c.l.b16 %v1104
  %v4584 = vunpack.c.l.b16 %v1105
  %v4585 = vunpack.c.l.b16 %v1106
  %v4586 = vunpack.c.l.b16 %v1107
  %v4587 = vunpack.c.l.b16 %v1108
  %v4588 = vunpack.c.l.b16 %v1109
  %v4589 = vunpack.c.l.b16 %v1110
  %v4590 = vunpack.c.l.b16 %v1111
  %v4591 = vunpack.c.l.b16 %v1112
  %v4592 = vunpack.c.l.b16 %v1113
  %v4593 = vunpack.c.l.b16 %v1114
  %v4594 = vunpack.c.l.b16 %v1115
  %v4595 = vunpack.c.l.b16 %v1116
  %v4596 = vunpack.c.l.b16 %v1117
  %v4597 = vunpack.c.l.b16 %v1118
  %v4598 = vunpack.c.l.b16 %v1119
  %v4599 = vunpack.c.l.b16 %v1120
  %v4600 = vunpack.c.l.b16 %v1121
  %v4601 = vunpack.c.l.b16 %v1122
  %v4602 = vunpack.c.l.b16 %v1123
  %v4603 = vunpack.c.l.b16 %v1124
  %v4604 = vunpack.c.l.b16 %v1125
  %v4605 = vunpack.c.l.b16 %v1126
  %v4606 = vunpack.c.l.b16 %v1127
  %v4607 = vunpack.c.l.b16 %v1128
  %v4608 = vunpack.c.l.b16 %v1129
  %v4609 = vunpack.c.l.b16 %v1130
  %v4610 = vunpack.c.l.b16 %v1131
  %v4611 = vunpack.c.l.b16 %v1132
  %v4612 = vunpack.c.l.b16 %v1133
  %v4613 = vunpack.c.l.b16 %v1134
  %v4614 = vunpack.c.l.b16 %v1135
  %v4615 = vunpack.c.l.b16 %v1136
  %v4616 = vunpack.c.l.b16 %v1137
  %v4617 = vunpack.c.l.b16 %v1138
  %v4618 = vunpack.c.l.b16 %v1139
  %v4619 = vunpack.c.l.b16 %v1140
  %v4620 = vunpack.c.l.b16 %v1141
  %v4621 = vunpack.c.l.b16 %v1142
  %v4622 = vunpack.c.l.b16 %v1143
  %v4623 = vunpack.c.l.b16 %v1144
  %v4624 = vunpack.c.l.b16 %v1145
  %v4625 = vunpack.c.l.b16 %v1146
  %v4626 = vunpack.c.l.b16 %v1147
  %v4627 = vunpack.c.l.b16 %v1148
  %v4628 = vunpack.c.l.b16 %v1149
  %v4629 = vunpack.c.l.b16 %v1150
  %v4630 = vunpack.c.l.b16 %v1151
  %v4631 = vunpack.c.l.b16 %v1152
  %v4632 = vunpack.c.l.b16 %v1153
  %v4633 = vunpack.c.l.b16 %v1154
  %v4634 = vunpack.c.l.b16 %v1155
  %v4635 = vunpack.c.l.b16 %v1156
  %v4636 = vunpack.c.l.b16 %v1157
  %v4637 = vunpack.c.l.b16 %v1158
  %v4638 = vunpack.c.l.b16 %v1159
  %v4639 = vunpack.c.l.b16 %v1160
  %v4640 = vunpack.c.l.b16 %v1161
  %v4641 = vunpack.c.l.b16 %v1162
  %v4642 = vunpack.c.l.b16 %v1163
  %v4643 = vunpack.c.l.b16 %v1164
  %v4644 = vunpack.c.l.b16 %v1165
  %v4645 = vunpack.c.l.b16 %v1166
  %v4646 = vunpack.c.l.b16 %v1167
  %v4647 = vunpack.c.l.b16 %v1168
  %v4648 = vunpack.c.l.b16 %v1169
  %v4649 = vunpack.c.l.b16 %v1170
  %v4650 = vunpack.c.l.b16 %v1171
  %v4651 = vunpack.c.l.b16 %v1172
  %v4652 = vunpack.c.l.b16 %v1173
  %v4653 = vunpack.c.l.b16 %v1174
  %v4654 = vunpack.c.l.b16 %v1175
  %v4655 = vunpack.c.l.b16 %v1176
  %v4656 = vunpack.c.l.b16 %v1177
  %v4657 = vunpack.c.l.b16 %v1178
  %v4658 = vunpack.c.l.b16 %v1179
  %v4659 = vunpack.c.l.b16 %v1180
  %v4660 = vunpack.c.l.b16 %v1181
  %v4661 = vunpack.c.l.b16 %v1182
  %v4662 = vunpack.c.l.b16 %v1183
  %v4663 = vunpack.c.l.b16 %v1184
  %v4664 = vunpack.c.l.b16 %v1185
  %v4665 = vunpack.c.l.b16 %v1186
  %v4666 = vunpack.c.l.b16 %v1187
  %v4667 = vunpack.c.l.b16 %v1188
  %v4668 = vunpack.c.l.b16 %v1189
  %v4669 = vunpack.c.l.b16 %v1190
  %v4670 = vunpack.c.l.b16 %v1191
  %v4671 = vunpack.c.l.b16 %v1192
  %v4672 = vunpack.c.l.b16 %v1193
  %v4673 = vunpack.c.l.b16 %v1194
  %v4674 = vunpack.c.l.b16 %v1195
  %v4675 = vunpack.c.l.b16 %v1196
  %v4676 = vunpack.c.l.b16 %v1197
  %v4677 = vunpack.c.l.b16 %v1198
  %v4678 = vunpack.c.l.b16 %v1199
  %v4679 = vunpack.c.l.b16 %v1200
  %v4680 = vunpack.c.l.b16 %v1201
  %v4681 = vunpack.c.l.b16 %v1202
  %v4682 = vunpack.c.l.b16 %v1203
  %v4683 = vunpack.c.l.b16 %v1204
  %v4684 = vunpack.c.l.b16 %v1205
  %v4685 = vunpack.c.l.b16 %v1206
  %v4686 = vunpack.c.l.b16 %v1207
  %v4687 = vunpack.c.l.b16 %v1208
  %v4688 = vunpack.c.l.b16 %v1209
  %v4689 = vunpack.c.l.b16 %v1210
  %v4690 = vunpack.c.l.b16 %v1211
  %v4691 = vunpack.c.l.b16 %v1212
  %v4692 = vunpack.c.l.b16 %v1213
  %v4693 = vunpack.c.l.b16 %v1214
  %v4694 = vunpack.c.l.b16 %v1215
  %v4695 = vunpack.c.l.b16 %v1216
  %v4696 = vunpack.c.l.b16 %v1217
  %v4697 = vunpack.c.l.b16 %v1218
  %v4698 = vunpack.c.l.b16 %v1219
  %v4699 = vunpack.c.l.b16 %v1220
  %v4700 = vunpack.c.l.b16 %v1221
  %v4701 = vunpack.c.l.b16 %v1222
  %v4702 = vunpack.c.l.b16 %v1223
  %v4703 = vunpack.c.l.b16 %v1224
  %v4704 = vunpack.c.l.b16 %v1225
  %v4705 = vunpack.c.l.b16 %v1226
  %v4706 = vunpack.c.l.b16 %v1227
  %v4707 = vunpack.c.l.b16 %v1228
  %v4708 = vunpack.c.l.b16 %v1229
  %v4709 = vunpack.c.l.b16 %v1230
  %v4710 = vunpack.c.l.b16 %v1231
  %v4711 = vunpack.c.l.b16 %v1232
  %v4712 = vunpack.c.l.b16 %v1233
  %v4713 = vunpack.c.l.b16 %v1234
  %v4714 = vunpack.c.l.b16 %v1235
  %v4715 = vunpack.c.l.b16 %v1236
  %v4716 = vunpack.c.l.b16 %v1237
  %v4717 = vunpack.c.l.b16 %v1238
  %v4718 = vunpack.c.l.b16 %v1239
  %v4719 = vunpack.c.l.b16 %v1240
  %v4720 = vunpack.c.l.b16 %v1241
  %v4721 = vunpack.c.l.b16 %v1242
  %v4722 = vunpack.c.l.b16 %v1243
  %v4723 = vunpack.c.l.b16 %v1244
  %v4724 = vunpack.c.l.b16 %v1245
  %v4725 = vunpack.c.l.b16 %v1246
  %v4726 = vunpack.c.l.b16 %v1247
  %v4727 = vunpack.c.l.b16 %v1248
  %v4728 = vunpack.c.l.b16 %v1249
  %v4729 = vunpack.c.l.b16 %v1250
  %v4730 = vunpack.c.l.b16 %v1251
  %v4731 = vunpack.c.l.b16 %v1252
  %v4732 = vunpack.c.l.b16 %v1253
  %v4733 = vunpack.c.l.b16 %v1254
  %v4734 = vunpack.c.l.b16 %v1255
  %v4735 = vunpack.c.l.b16 %v1256
  %v4736 = vunpack.c.l.b16 %v1257
  %v4737 = vunpack.c.l.b16 %v1258
  %v4738 = vunpack.c.l.b16 %v1259
  %v4739 = vunpack.c.l.b16 %v1260
  %v4740 = vunpack.c.l.b16 %v1261
  %v4741 = vunpack.c.l.b16 %v1262
  %v4742 = vunpack.c.l.b16 %v1263
  %v4743 = vunpack.c.l.b16 %v1264
  %v4744 = vunpack.c.l.b16 %v1265
  %v4745 = vunpack.c.l.b16 %v1266
  %v4746 = vunpack.c.l.b16 %v1267
  %v4747 = vunpack.c.l.b16 %v1268
  %v4748 = vunpack.c.l.b16 %v1269
  %v4749 = vunpack.c.l.b16 %v1270
  %v4750 = vunpack.c.l.b16 %v1271
  %v4751 = vunpack.c.l.b16 %v1272
  %v4752 = vunpack.c.l.b16 %v1273
  %v4753 = vunpack.c.l.b16 %v1274
  %v4754 = vunpack.c.l.b16 %v1275
  %v4755 = vunpack.c.l.b16 %v1276
  %v4756 = vunpack.c.l.b16 %v1277
  %v4757 = vunpack.c.l.b16 %v1278
  %v4758 = vunpack.c.l.b16 %v1279
  %v4759 = vunpack.c.l.b16 %v1280
  %v4760 = vunpack.c.l.b16 %v1281
  %v4761 = vunpack.c.l.b16 %v1282
  %v4762 = vunpack.c.l.b16 %v1283
  %v4763 = vunpack.c.l.b16 %v1284
  %v4764 = vunpack.c.l.b16 %v1285
  %v4765 = vunpack.c.l.b16 %v1286
  %v4766 = vunpack.c.l.b16 %v1287
  %v4767 = vunpack.c.l.b16 %v1288
  %v4768 = vunpack.c.l.b16 %v1289
  %v4769 = vunpack.c.l.b16 %v1290
  %v4770 = vunpack.c.l.b16 %v1291
  %v4771 = vunpack.c.l.b16 %v1292
  %v4772 = vunpack.c.l.b16 %v1293
  %v4773 = vunpack.c.l.b16 %v1294
  %v4774 = vunpack.c.l.b16 %v1295
  %v4775 = vunpack.c.l.b16 %v1296
  %v4776 = vunpack.c.l.b16 %v1297
  %v4777 = vunpack.c.l.b16 %v1298
  %v4778 = vunpack.c.l.b16 %v1299
  %v4779 = vunpack.c.l.b16 %v1300
  %v4780 = vunpack.c.l.b16 %v1301
  %v4781 = vunpack.c.l.b16 %v1302
  %v4782 = vunpack.c.l.b16 %v1303
  %v4783 = vunpack.c.l.b16 %v1304
  %v4784 = vunpack.c.l.b16 %v1305
  %v4785 = vunpack.c.l.b16 %v1306
  %v4786 = vunpack.c.l.b16 %v1307
  %v4787 = vunpack.c.l.b16 %v1308
  %v4788 = vunpack.c.l.b16 %v1309
  %v4789 = vunpack.c.l.b16 %v1310
  %v4790 = vunpack.c.l.b16 %v1311
  %v4791 = vunpack.c.l.b16 %v1312
  %v4792 = vunpack.c.l.b16 %v1313
  %v4793 = vunpack.c.l.b16 %v1314
  %v4794 = vunpack.c.l.b16 %v1315
  %v4795 = vunpack.c.l.b16 %v1316
  %v4796 = vunpack.c.l.b16 %v1317
  %v4797 = vunpack.c.l.b16 %v1318
  %v4798 = vunpack.c.l.b16 %v1319
  %v4799 = vunpack.c.l.b16 %v1320
  %v4800 = vunpack.c.l.b16 %v1321
  %v4801 = vunpack.c.l.b16 %v1322
  %v4802 = vunpack.c.l.b16 %v1323
  %v4803 = vunpack.c.l.b16 %v1324
  %v4804 = vunpack.c.l.b16 %v1325
  %v4805 = vunpack.c.l.b16 %v1326
  %v4806 = vunpack.c.l.b16 %v1327
  %v4807 = vunpack.c.l.b16 %v1328
  %v4808 = vunpack.c.l.b16 %v1329
  %v4809 = vunpack.c.l.b16 %v1330
  %v4810 = vunpack.c.l.b16 %v1331
  %v4811 = vunpack.c.l.b16 %v1332
  %v4812 = vunpack.c.l.b16 %v1333
  %v4813 = vunpack.c.l.b16 %v1334
  %v4814 = vunpack.c.l.b16 %v1335
  %v4815 = vunpack.c.l.b16 %v1336
  %v4816 = vunpack.c.l.b16 %v1337
  %v4817 = vunpack.c.l.b16 %v1338
  %v4818 = vunpack.c.l.b16 %v1339
  %v4819 = vunpack.c.l.b16 %v1340
  %v4820 = vunpack.c.l.b16 %v1341
  %v4821 = vunpack.c.l.b16 %v1342
  %v4822 = vunpack.c.l.b16 %v1343
  %v4823 = vunpack.c.l.b16 %v1344
  %v4824 = vunpack.c.l.b16 %v1345
  %v4825 = vunpack.c.l.b16 %v1346
  %v4826 = vunpack.c.l.b16 %v1347
  %v4827 = vunpack.c.l.b16 %v1348
  %v4828 = vunpack.c.l.b16 %v1349
  %v4829 = vunpack.c.l.b16 %v1350
  %v4830 = vunpack.c.l.b16 %v1351
  %v4831 = vunpack.c.l.b16 %v1352
  %v4832 = vunpack.c.l.b16 %v1353
  %v4833 = vunpack.c.l.b16 %v1354
  %v4834 = vunpack.c.l.b16 %v1355
  %v4835 = vunpack.c.l.b16 %v1356
  %v4836 = vunpack.c.l.b16 %v1357
  %v4837 = vunpack.c.l.b16 %v1358
  %v4838 = vunpack.c.l.b16 %v1359
  %v4839 = vunpack.c.l.b16 %v1360
  %v4840 = vunpack.c.l.b16 %v1361
  %v4841 = vunpack.c.l.b16 %v1362
  %v4842 = vunpack.c.l.b16 %v1363
  %v4843 = vunpack.c.l.b16 %v1364
  %v4844 = vunpack.c.l.b16 %v1365
  %v4845 = vunpack.c.l.b16 %v1366
  %v4846 = vunpack.c.l.b16 %v1367
  %v4847 = vunpack.c.l.b16 %v1368
  %v4848 = vunpack.c.l.b16 %v1369
  %v4849 = vunpack.c.l.b16 %v1370
  %v4850 = vunpack.c.l.b16 %v1371
  %v4851 = vunpack.c.l.b16 %v1372
  %v4852 = vunpack.c.l.b16 %v1373
  %v4853 = vunpack.c.l.b16 %v1374
  %v4854 = vunpack.c.l.b16 %v1375
  %v4855 = vunpack.c.l.b16 %v1376
  %v4856 = vunpack.c.l.b16 %v1377
  %v4857 = vunpack.c.l.b16 %v1378
  %v4858 = vunpack.c.l.b16 %v1379
  %v4859 = vunpack.c.l.b16 %v1380
  %v4860 = vunpack.c.l.b16 %v1381
  %v4861 = vunpack.c.l.b16 %v1382
  %v4862 = vunpack.c.l.b16 %v1383
  %v4863 = vunpack.c.l.b16 %v1384
  %v4864 = vunpack.c.l.b16 %v1385
  %v4865 = vunpack.c.l.b16 %v1386
  %v4866 = vunpack.c.l.b16 %v1387
  %v4867 = vunpack.c.l.b16 %v1388
  %v4868 = vunpack.c.l.b16 %v1389
  %v4869 = vunpack.c.l.b16 %v1390
  %v4870 = vunpack.c.l.b16 %v1391
  %v4871 = vunpack.c.l.b16 %v1392
  %v4872 = vunpack.c.l.b16 %v1393
  %v4873 = vunpack.c.l.b16 %v1394
  %v4874 = vunpack.c.l.b16 %v1395
  %v4875 = vunpack.c.l.b16 %v1396
  %v4876 = vunpack.c.l.b16 %v1397
  %v4877 = vunpack.c.l.b16 %v1398
  %v4878 = vunpack.c.l.b16 %v1399
  %v4879 = vunpack.c.l.b16 %v1400
  %v4880 = vunpack.c.l.b16 %v1401
  %v4881 = vunpack.c.l.b16 %v1402
  %v4882 = vunpack.c.l.b16 %v1403
  %v4883 = vunpack.c.l.b16 %v1404
  %v4884 = vunpack.c.l.b16 %v1405
  %v4885 = vunpack.c.l.b16 %v1406
  %v4886 = vunpack.c.l.b16 %v1407
  %v4887 = vunpack.c.l.b16 %v1408
  %v4888 = vunpack.c.l.b16 %v1409
  %v4889 = vunpack.c.l.b16 %v1410
  %v4890 = vunpack.c.l.b16 %v1411
  %v4891 = vunpack.c.l.b16 %v1412
  %v4892 = vunpack.c.l.b16 %v1413
  %v4893 = vunpack.c.l.b16 %v1414
  %v4894 = vunpack.c.l.b16 %v1415
  %v4895 = vunpack.c.l.b16 %v1416
  %v4896 = vunpack.c.l.b16 %v1417
  %v4897 = vunpack.c.l.b16 %v1418
  %v4898 = vunpack.c.l.b16 %v1419
  %v4899 = vunpack.c.l.b16 %v1420
  %v4900 = vunpack.c.l.b16 %v1421
  %v4901 = vunpack.c.l.b16 %v1422
  %v4902 = vunpack.c.l.b16 %v1423
  %v4903 = vunpack.c.l.b16 %v1424
  %v4904 = vunpack.c.l.b16 %v1425
  %v4905 = vunpack.c.l.b16 %v1426
  %v4906 = vunpack.c.l.b16 %v1427
  %v4907 = vunpack.c.l.b16 %v1428
  %v4908 = vunpack.c.l.b16 %v1429
  %v4909 = vunpack.c.l.b16 %v1430
  %v4910 = vunpack.c.l.b16 %v1431
  %v4911 = vunpack.c.l.b16 %v1432
  %v4912 = vunpack.c.l.b16 %v1433
  %v4913 = vunpack.c.l.b16 %v1434
  %v4914 = vunpack.c.l.b16 %v1435
  %v4915 = vunpack.c.l.b16 %v1436
  %v4916 = vunpack.c.l.b16 %v1437
  %v4917 = vunpack.c.l.b16 %v1438
  %v4918 = vunpack.c.l.b16 %v1439
  %v4919 = vunpack.c.l.b16 %v1440
  %v4920 = vunpack.c.l.b16 %v1441
  %v4921 = vunpack.c.l.b16 %v1442
  %v4922 = vunpack.c.l.b16 %v1443
  %v4923 = vunpack.c.l.b16 %v1444
  %v4924 = vunpack.c.l.b16 %v1445
  %v4925 = vunpack.c.l.b16 %v1446
  %v4926 = vunpack.c.l.b16 %v1447
  %v4927 = vunpack.c.l.b16 %v1448
  %v4928 = vunpack.c.l.b16 %v1449
  %v4929 = vunpack.c.l.b16 %v1450
  %v4930 = vunpack.c.l.b16 %v1451
  %v4931 = vunpack.c.l.b16 %v1452
  %v4932 = vunpack.c.l.b16 %v1453
  %v4933 = vunpack.c.l.b16 %v1454
  %v4934 = vunpack.c.l.b16 %v1455
  %v4935 = vunpack.c.l.b16 %v1456
  %v4936 = vunpack.c.l.b16 %v1457
  %v4937 = vunpack.c.l.b16 %v1458
  %v4938 = vunpack.c.l.b16 %v1459
  %v4939 = vunpack.c.l.b16 %v1460
  %v4940 = vunpack.c.l.b16 %v1461
  %v4941 = vunpack.c.l.b16 %v1462
  %v4942 = vunpack.c.l.b16 %v1463
  %v4943 = vunpack.c.l.b16 %v1464
  %v4944 = vunpack.c.l.b16 %v1465
  %v4945 = vunpack.c.l.b16 %v1466
  %v4946 = vunpack.c.l.b16 %v1467
  %v4947 = vunpack.c.l.b16 %v1468
  %v4948 = vunpack.c.l.b16 %v1469
  %v4949 = vunpack.c.l.b16 %v1470
  %v4950 = vunpack.c.l.b16 %v1471
  %v4951 = vunpack.c.l.b16 %v1472
  %v4952 = vunpack.c.l.b16 %v1473
  %v4953 = vunpack.c.l.b16 %v1474
  %v4954 = vunpack.c.l.b16 %v1475
  %v4955 = vunpack.c.l.b16 %v1476
  %v4956 = vunpack.c.l.b16 %v1477
  %v4957 = vunpack.c.l.b16 %v1478
  %v4958 = vunpack.c.l.b16 %v1479
  %v4959 = vunpack.c.l.b16 %v1480
  %v4960 = vunpack.c.l.b16 %v1481
  %v4961 = vunpack.c.l.b16 %v1482
  %v4962 = vunpack.c.l.b16 %v1483
  %v4963 = vunpack.c.l.b16 %v1484
  %v4964 = vunpack.c.l.b16 %v1485
  %v4965 = vunpack.c.l.b16 %v1486
  %v4966 = vunpack.c.l.b16 %v1487
  %v4967 = vunpack.c.l.b16 %v1488
  %v4968 = vunpack.c.l.b16 %v1489
  %v4969 = vunpack.c.l.b16 %v1490
  %v4970 = vunpack.c.l.b16 %v1491
  %v4971 = vunpack.c.l.b16 %v1492
  %v4972 = vunpack.c.l.b16 %v1493
  %v4973 = vunpack.c.l.b16 %v1494
  %v4974 = vunpack.c.l.b16 %v1495
  %v4975 = vunpack.c.l.b16 %v1496
  %v4976 = vunpack.c.l.b16 %v1497
  %v4977 = vunpack.c.l.b16 %v1498
  %v4978 = vunpack.c.l.b16 %v1499
  %v4979 = vunpack.c.l.b16 %v1500
  %v4980 = vunpack.c.l.b16 %v1501
  %v4981 = vunpack.c.l.b16 %v1502
  %v4982 = vunpack.c.l.b16 %v1503
  %v4983 = vunpack.c.l.b16 %v1504
  %v4984 = vunpack.c.l.b16 %v1505
  %v4985 = vunpack.c.l.b16 %v1506
  %v4986 = vunpack.c.l.b16 %v1507
  %v4987 = vunpack.c.l.b16 %v1508
  %v4988 = vunpack.c.l.b16 %v1509
  %v4989 = vunpack.c.l.b16 %v1510
  %v4990 = vunpack.c.l.b16 %v1511
  %v4991 = vunpack.c.l.b16 %v1512
  %v4992 = vunpack.c.l.b16 %v1513
  %v4993 = vunpack.c.l.b16 %v1514
  %v4994 = vunpack.c.l.b16 %v1515
  %v4995 = vunpack.c.l.b16 %v1516
  %v4996 = vunpack.c.l.b16 %v1517
  %v4997 = vunpack.c.l.b16 %v1518
  %v4998 = vunpack.c.l.b16 %v1519
  %v4999 = vunpack.c.l.b16 %v1520
  %v5000 = vunpack.c.l.b16 %v1521
  %v5001 = vunpack.c.l.b16 %v1522
  %v5002 = vunpack.c.l.b16 %v1523
  %v5003 = vunpack.c.l.b16 %v1524
  %v5004 = vunpack.c.l.b16 %v1525
  %v5005 = vunpack.c.l.b16 %v1526
  %v5006 = vunpack.c.l.b16 %v1527
  %v5007 = vunpack.c.l.b16 %v1528
  %v5008 = vunpack.c.l.b16 %v1529
  %v5009 = vunpack.c.l.b16 %v1530
  %v5010 = vunpack.c.l.b16 %v1531
  %v5011 = vunpack.c.l.b16 %v1532
  %v5012 = vunpack.c.l.b16 %v1533
  %v5013 = vunpack.c.l.b16 %v1534
  %v5014 = vunpack.c.l.b16 %v1535
  %v5015 = vunpack.c.l.b16 %v1536
  %v5016 = vunpack.c.l.b16 %v1537
  %v5017 = vunpack.c.l.b16 %v1538
  %v5018 = vunpack.c.l.b16 %v1539
  %v5019 = vunpack.c.l.b16 %v1540
  %v5020 = vunpack.c.l.b16 %v1541
  %v5021 = vunpack.c.l.b16 %v1542
  %v5022 = vunpack.c.l.b16 %v1543
  %v5023 = vunpack.c.l.b16 %v1544
  %v5024 = vunpack.c.l.b16 %v1545
  %v5025 = vunpack.c.l.b16 %v1546
  %v5026 = vunpack.c.l.b16 %v1547
  %v5027 = vunpack.c.l.b16 %v1548
  %v5028 = vunpack.c.l.b16 %v1549
  %v5029 = vunpack.c.l.b16 %v1550
  %v5030 = vunpack.c.l.b16 %v1551
  %v5031 = vunpack.c.l.b16 %v1552
  %v5032 = vunpack.c.l.b16 %v1553
  %v5033 = vunpack.c.l.b16 %v1554
  %v5034 = vunpack.c.l.b16 %v1555
  %v5035 = vunpack.c.l.b16 %v1556
  %v5036 = vunpack.c.l.b16 %v1557
  %v5037 = vunpack.c.l.b16 %v1558
  %v5038 = vunpack.c.l.b16 %v1559
  %v5039 = vunpack.c.l.b16 %v1560
  %v5040 = vunpack.c.l.b16 %v1561
  %v5041 = vunpack.c.l.b16 %v1562
  %v5042 = vunpack.c.l.b16 %v1563
  %v5043 = vunpack.c.l.b16 %v1564
  %v5044 = vunpack.c.l.b16 %v1565
  %v5045 = vunpack.c.l.b16 %v1566
  %v5046 = vunpack.c.l.b16 %v1567
  %v5047 = vunpack.c.l.b16 %v1568
  %v5048 = vunpack.c.l.b16 %v1569
  %v5049 = vunpack.c.l.b16 %v1570
  %v5050 = vunpack.c.l.b16 %v1571
  %v5051 = vunpack.c.l.b16 %v1572
  %v5052 = vunpack.c.l.b16 %v1573
  %v5053 = vunpack.c.l.b16 %v1574
  %v5054 = vunpack.c.l.b16 %v1575
  %v5055 = vunpack.c.l.b16 %v1576
  %v5056 = vunpack.c.l.b16 %v1577
  %v5057 = vunpack.c.l.b16 %v1578
  %v5058 = vunpack.c.l.b16 %v1579
  %v5059 = vunpack.c.l.b16 %v1580
  %v5060 = vunpack.c.l.b16 %v1581
  %v5061 = vunpack.c.l.b16 %v1582
  %v5062 = vunpack.c.l.b16 %v1583
  %v5063 = vunpack.c.l.b16 %v1584
  %v5064 = vunpack.c.l.b16 %v1585
  %v5065 = vunpack.c.l.b16 %v1586
  %v5066 = vunpack.c.l.b16 %v1587
  %v5067 = vunpack.c.l.b16 %v1588
  %v5068 = vunpack.c.l.b16 %v1589
  %v5069 = vunpack.c.l.b16 %v1590
  %v5070 = vunpack.c.l.b16 %v1591
  %v5071 = vunpack.c.l.b16 %v1592
  %v5072 = vunpack.c.l.b16 %v1593
  %v5073 = vunpack.c.l.b16 %v1594
  %v5074 = vunpack.c.l.b16 %v1595
  %v5075 = vunpack.c.l.b16 %v1596
  %v5076 = vunpack.c.l.b16 %v1597
  %v5077 = vunpack.c.l.b16 %v1598
  %v5078 = vunpack.c.l.b16 %v1599
  %v5079 = vunpack.c.l.b16 %v1600
  %v5080 = vunpack.c.l.b16 %v1601
  %v5081 = vunpack.c.l.b16 %v1602
  %v5082 = vunpack.c.l.b16 %v1603
  %v5083 = vunpack.c.l.b16 %v1604
  %v5084 = vunpack.c.l.b16 %v1605
  %v5085 = vunpack.c.l.b16 %v1606
  %v5086 = vunpack.c.l.b16 %v1607
  %v5087 = vunpack.c.l.b16 %v1608
  %v5088 = vunpack.c.l.b16 %v1609
  %v5089 = vunpack.c.l.b16 %v1610
  %v5090 = vunpack.c.l.b16 %v1611
  %v5091 = vunpack.c.l.b16 %v1612
  %v5092 = vunpack.c.l.b16 %v1613
  %v5093 = vunpack.c.l.b16 %v1614
  %v5094 = vunpack.c.l.b16 %v1615
  %v5095 = vunpack.c.l.b16 %v1616
  %v5096 = vunpack.c.l.b16 %v1617
  %v5097 = vunpack.c.l.b16 %v1618
  %v5098 = vunpack.c.l.b16 %v1619
  %v5099 = vunpack.c.l.b16 %v1620
  %v5100 = vunpack.c.l.b16 %v1621
  %v5101 = vunpack.c.l.b16 %v1622
  %v5102 = vunpack.c.l.b16 %v1623
  %v5103 = vunpack.c.l.b16 %v1624
  %v5104 = vunpack.c.l.b16 %v1625
  %v5105 = vunpack.c.l.b16 %v1626
  %v5106 = vunpack.c.l.b16 %v1627
  %v5107 = vunpack.c.l.b16 %v1628
  %v5108 = vpack.c.b16 %v3541, %v3540
  %v5109 = vpack.c.b16 %v3543, %v3542
  %v5110 = vpack.c.b16 %v3545, %v3544
  %v5111 = vpack.c.b16 %v3547, %v3546
  %v5112 = vpack.c.b16 %v3549, %v3548
  %v5113 = vpack.c.b16 %v3551, %v3550
  %v5114 = vpack.c.b16 %v3553, %v3552
  %v5115 = vpack.c.b16 %v3555, %v3554
  %v5116 = vpack.c.b16 %v3557, %v3556
  %v5117 = vpack.c.b16 %v3559, %v3558
  %v5118 = vpack.c.b16 %v3561, %v3560
  %v5119 = vpack.c.b16 %v3563, %v3562
  %v5120 = vpack.c.b16 %v3565, %v3564
  %v5121 = vpack.c.b16 %v3567, %v3566
  %v5122 = vpack.c.b16 %v3569, %v3568
  %v5123 = vpack.c.b16 %v3571, %v3570
  %v5124 = vpack.c.b16 %v3573, %v3572
  %v5125 = vpack.c.b16 %v3575, %v3574
  %v5126 = vpack.c.b16 %v3577, %v3576
  %v5127 = vpack.c.b16 %v3579, %v3578
  %v5128 = vpack.c.b16 %v3581, %v3580
  %v5129 = vpack.c.b16 %v3583, %v3582
  %v5130 = vpack.c.b16 %v3585, %v3584
  %v5131 = vpack.c.b16 %v3587, %v3586
  %v5132 = vpack.c.b16 %v3589, %v3588
  %v5133 = vpack.c.b16 %v3591, %v3590
  %v5134 = vpack.c.b16 %v3593, %v3592
  %v5135 = vpack.c.b16 %v3595, %v3594
  %v5136 = vpack.c.b16 %v3597, %v3596
  %v5137 = vpack.c.b16 %v3599, %v3598
  %v5138 = vpack.c.b16 %v3601, %v3600
  %v5139 = vpack.c.b16 %v3603, %v3602
  %v5140 = vpack.c.b16 %v3605, %v3604
  %v5141 = vpack.c.b16 %v3607, %v3606
  %v5142 = vpack.c.b16 %v3609, %v3608
  %v5143 = vpack.c.b16 %v3611, %v3610
  %v5144 = vpack.c.b16 %v3613, %v3612
  %v5145 = vpack.c.b16 %v3615, %v3614
  %v5146 = vpack.c.b16 %v3617, %v3616
  %v5147 = vpack.c.b16 %v3619, %v3618
  %v5148 = vpack.c.b16 %v3621, %v3620
  %v5149 = vpack.c.b16 %v3623, %v3622
  %v5150 = vpack.c.b16 %v3625, %v3624
  %v5151 = vpack.c.b16 %v3627, %v3626
  %v5152 = vpack.c.b16 %v3629, %v3628
  %v5153 = vpack.c.b16 %v3631, %v3630
  %v5154 = vpack.c.b16 %v3633, %v3632
  %v5155 = vpack.c.b16 %v3635, %v3634
  %v5156 = vpack.c.b16 %v3637, %v3636
  %v5157 = vpack.c.b16 %v3639, %v3638
  %v5158 = vpack.c.b16 %v3641, %v3640
  %v5159 = vpack.c.b16 %v3643, %v3642
  %v5160 = vpack.c.b16 %v3645, %v3644
  %v5161 = vpack.c.b16 %v3647, %v3646
  %v5162 = vpack.c.b16 %v3649, %v3648
  %v5163 = vpack.c.b16 %v3651, %v3650
  %v5164 = vpack.c.b16 %v3653, %v3652
  %v5165 = vpack.c.b16 %v3655, %v3654
  %v5166 = vpack.c.b16 %v3657, %v3656
  %v5167 = vpack.c.b16 %v3659, %v3658
  %v5168 = vpack.c.b16 %v3661, %v3660
  %v5169 = vpack.c.b16 %v3663, %v3662
  %v5170 = vpack.c.b16 %v3665, %v3664
  %v5171 = vpack.c.b16 %v3667, %v3666
  %v5172 = vpack.c.b16 %v3669, %v3668
  %v5173 = vpack.c.b16 %v3671, %v3670
  %v5174 = vpack.c.b16 %v3673, %v3672
  %v5175 = vpack.c.b16 %v3675, %v3674
  %v5176 = vpack.c.b16 %v3677, %v3676
  %v5177 = vpack.c.b16 %v3679, %v3678
  %v5178 = vpack.c.b16 %v3681, %v3680
  %v5179 = vpack.c.b16 %v3683, %v3682
  %v5180 = vpack.c.b16 %v3685, %v3684
  %v5181 = vpack.c.b16 %v3687, %v3686
  %v5182 = vpack.c.b16 %v3689, %v3688
  %v5183 = vpack.c.b16 %v3691, %v3690
  %v5184 = vpack.c.b16 %v3693, %v3692
  %v5185 = vpack.c.b16 %v3695, %v3694
  %v5186 = vpack.c.b16 %v3697, %v3696
  %v5187 = vpack.c.b16 %v3699, %v3698
  %v5188 = vpack.c.b16 %v3701, %v3700
  %v5189 = vpack.c.b16 %v3703, %v3702
  %v5190 = vpack.c.b16 %v3705, %v3704
  %v5191 = vpack.c.b16 %v3707, %v3706
  %v5192 = vpack.c.b16 %v3709, %v3708
  %v5193 = vpack.c.b16 %v3711, %v3710
  %v5194 = vpack.c.b16 %v3713, %v3712
  %v5195 = vpack.c.b16 %v3715, %v3714
  %v5196 = vpack.c.b16 %v3717, %v3716
  %v5197 = vpack.c.b16 %v3719, %v3718
  %v5198 = vpack.c.b16 %v3721, %v3720
  %v5199 = vpack.c.b16 %v3723, %v3722
  %v5200 = vpack.c.b16 %v3725, %v3724
  %v5201 = vpack.c.b16 %v3727, %v3726
  %v5202 = vpack.c.b16 %v3729, %v3728
  %v5203 = vpack.c.b16 %v3731, %v3730
  %v5204 = vpack.c.b16 %v3733, %v3732
  %v5205 = vpack.c.b16 %v3735, %v3734
  %v5206 = vpack.c.b16 %v3737, %v3736
  %v5207 = vpack.c.b16 %v3739, %v3738
  %v5208 = vpack.c.b16 %v3741, %v3740
  %v5209 = vpack.c.b16 %v3743, %v3742
  %v5210 = vpack.c.b16 %v3745, %v3744
  %v5211 = vpack.c.b16 %v3747, %v3746
  %v5212 = vpack.c.b16 %v3749, %v3748
  %v5213 = vpack.c.b16 %v3751, %v3750
  %v5214 = vpack.c.b16 %v3753, %v3752
  %v5215 = vpack.c.b16 %v3755, %v3754
  %v5216 = vpack.c.b16 %v3757, %v3756
  %v5217 = vpack.c.b16 %v3759, %v3758
  %v5218 = vpack.c.b16 %v3761, %v3760
  %v5219 = vpack.c.b16 %v3763, %v3762
  %v5220 = vpack.c.b16 %v3765, %v3764
  %v5221 = vpack.c.b16 %v3767, %v3766
  %v5222 = vpack.c.b16 %v3769, %v3768
  %v5223 = vpack.c.b16 %v3771, %v3770
  %v5224 = vpack.c.b16 %v3773, %v3772
  %v5225 = vpack.c.b16 %v3775, %v3774
  %v5226 = vpack.c.b16 %v3777, %v3776
  %v5227 = vpack.c.b16 %v3779, %v3778
  %v5228 = vpack.c.b16 %v3781, %v3780
  %v5229 = vpack.c.b16 %v3783, %v3782
  %v5230 = vpack.c.b16 %v3785, %v3784
  %v5231 = vpack.c.b16 %v3787, %v3786
  %v5232 = vpack.c.b16 %v3789, %v3788
  %v5233 = vpack.c.b16 %v3791, %v3790
  %v5234 = vpack.c.b16 %v3793, %v3792
  %v5235 = vpack.c.b16 %v3795, %v3794
  %v5236 = vpack.c.b16 %v3797, %v3796
  %v5237 = vpack.c.b16 %v3799, %v3798
  %v5238 = vpack.c.b16 %v3801, %v3800
  %v5239 = vpack.c.b16 %v3803, %v3802
  %v5240 = vpack.c.b16 %v3805, %v3804
  %v5241 = vpack.c.b16 %v3807, %v3806
  %v5242 = vpack.c.b16 %v3809, %v3808
  %v5243 = vpack.c.b16 %v3811, %v3810
  %v5244 = vpack.c.b16 %v3813, %v3812
  %v5245 = vpack.c.b16 %v3815, %v3814
  %v5246 = vpack.c.b16 %v3817, %v3816
  %v5247 = vpack.c.b16 %v3819, %v3818
  %v5248 = vpack.c.b16 %v3821, %v3820
  %v5249 = vpack.c.b16 %v3823, %v3822
  %v5250 = vpack.c.b16 %v3825, %v3824
  %v5251 = vpack.c.b16 %v3827, %v3826
  %v5252 = vpack.c.b16 %v3829, %v3828
  %v5253 = vpack.c.b16 %v3831, %v3830
  %v5254 = vpack.c.b16 %v3833, %v3832
  %v5255 = vpack.c.b16 %v3835, %v3834
  %v5256 = vpack.c.b16 %v3837, %v3836
  %v5257 = vpack.c.b16 %v3839, %v3838
  %v5258 = vpack.c.b16 %v3841, %v3840
  %v5259 = vpack.c.b16 %v3843, %v3842
  %v5260 = vpack.c.b16 %v3845, %v3844
  %v5261 = vpack.c.b16 %v3847, %v3846
  %v5262 = vpack.c.b16 %v3849, %v3848
  %v5263 = vpack.c.b16 %v3851, %v3850
  %v5264 = vpack.c.b16 %v3853, %v3852
  %v5265 = vpack.c.b16 %v3855, %v3854
  %v5266 = vpack.c.b16 %v3857, %v3856
  %v5267 = vpack.c.b16 %v3859, %v3858
  %v5268 = vpack.c.b16 %v3861, %v3860
  %v5269 = vpack.c.b16 %v3863, %v3862
  %v5270 = vpack.c.b16 %v3865, %v3864
  %v5271 = vpack.c.b16 %v3867, %v3866
  %v5272 = vpack.c.b16 %v3869, %v3868
  %v5273 = vpack.c.b16 %v3871, %v3870
  %v5274 = vpack.c.b16 %v3873, %v3872
  %v5275 = vpack.c.b16 %v3875, %v3874
  %v5276 = vpack.c.b16 %v3877, %v3876
  %v5277 = vpack.c.b16 %v3879, %v3878
  %v5278 = vpack.c.b16 %v3881, %v3880
  %v5279 = vpack.c.b16 %v3883, %v3882
  %v5280 = vpack.c.b16 %v3885, %v3884
  %v5281 = vpack.c.b16 %v3887, %v3886
  %v5282 = vpack.c.b16 %v3889, %v3888
  %v5283 = vpack.c.b16 %v3891, %v3890
  %v5284 = vpack.c.b16 %v3893, %v3892
  %v5285 = vpack.c.b16 %v3895, %v3894
  %v5286 = vpack.c.b16 %v3897, %v3896
  %v5287 = vpack.c.b16 %v3899, %v3898
  %v5288 = vpack.c.b16 %v3901, %v3900
  %v5289 = vpack.c.b16 %v3903, %v3902
  %v5290 = vpack.c.b16 %v3905, %v3904
  %v5291 = vpack.c.b16 %v3907, %v3906
  %v5292 = vpack.c.b16 %v3909, %v3908
  %v5293 = vpack.c.b16 %v3911, %v3910
  %v5294 = vpack.c.b16 %v3913, %v3912
  %v5295 = vpack.c.b16 %v3915, %v3914
  %v5296 = vpack.c.b16 %v3917, %v3916
  %v5297 = vpack.c.b16 %v3919, %v3918
  %v5298 = vpack.c.b16 %v3921, %v3920
  %v5299 = vpack.c.b16 %v3923, %v3922
  %v5300 = vpack.c.b16 %v3925, %v3924
  %v5301 = vpack.c.b16 %v3927, %v3926
  %v5302 = vpack.c.b16 %v3929, %v3928
  %v5303 = vpack.c.b16 %v3931, %v3930
  %v5304 = vpack.c.b16 %v3933, %v3932
  %v5305 = vpack.c.b16 %v3935, %v3934
  %v5306 = vpack.c.b16 %v3937, %v3936
  %v5307 = vpack.c.b16 %v3939, %v3938
  %v5308 = vpack.c.b16 %v3941, %v3940
  %v5309 = vpack.c.b16 %v3943, %v3942
  %v5310 = vpack.c.b16 %v3945, %v3944
  %v5311 = vpack.c.b16 %v3947, %v3946
  %v5312 = vpack.c.b16 %v3949, %v3948
  %v5313 = vpack.c.b16 %v3951, %v3950
  %v5314 = vpack.c.b16 %v3953, %v3952
  %v5315 = vpack.c.b16 %v3955, %v3954
  %v5316 = vpack.c.b16 %v3957, %v3956
  %v5317 = vpack.c.b16 %v3959, %v3958
  %v5318 = vpack.c.b16 %v3961, %v3960
  %v5319 = vpack.c.b16 %v3963, %v3962
  %v5320 = vpack.c.b16 %v3965, %v3964
  %v5321 = vpack.c.b16 %v3967, %v3966
  %v5322 = vpack.c.b16 %v3969, %v3968
  %v5323 = vpack.c.b16 %v3971, %v3970
  %v5324 = vpack.c.b16 %v3973, %v3972
  %v5325 = vpack.c.b16 %v3975, %v3974
  %v5326 = vpack.c.b16 %v3977, %v3976
  %v5327 = vpack.c.b16 %v3979, %v3978
  %v5328 = vpack.c.b16 %v3981, %v3980
  %v5329 = vpack.c.b16 %v3983, %v3982
  %v5330 = vpack.c.b16 %v3985, %v3984
  %v5331 = vpack.c.b16 %v3987, %v3986
  %v5332 = vpack.c.b16 %v3989, %v3988
  %v5333 = vpack.c.b16 %v3991, %v3990
  %v5334 = vpack.c.b16 %v3993, %v3992
  %v5335 = vpack.c.b16 %v3995, %v3994
  %v5336 = vpack.c.b16 %v3997, %v3996
  %v5337 = vpack.c.b16 %v3999, %v3998
  %v5338 = vpack.c.b16 %v4001, %v4000
  %v5339 = vpack.c.b16 %v4003, %v4002
  %v5340 = vpack.c.b16 %v4005, %v4004
  %v5341 = vpack.c.b16 %v4007, %v4006
  %v5342 = vpack.c.b16 %v4009, %v4008
  %v5343 = vpack.c.b16 %v4011, %v4010
  %v5344 = vpack.c.b16 %v4013, %v4012
  %v5345 = vpack.c.b16 %v4015, %v4014
  %v5346 = vpack.c.b16 %v4017, %v4016
  %v5347 = vpack.c.b16 %v4019, %v4018
  %v5348 = vpack.c.b16 %v4021, %v4020
  %v5349 = vpack.c.b16 %v4023, %v4022
  %v5350 = vpack.c.b16 %v4025, %v4024
  %v5351 = vpack.c.b16 %v4027, %v4026
  %v5352 = vpack.c.b16 %v4029, %v4028
  %v5353 = vpack.c.b16 %v4031, %v4030
  %v5354 = vpack.c.b16 %v4033, %v4032
  %v5355 = vpack.c.b16 %v4035, %v4034
  %v5356 = vpack.c.b16 %v4037, %v4036
  %v5357 = vpack.c.b16 %v4039, %v4038
  %v5358 = vpack.c.b16 %v4041, %v4040
  %v5359 = vpack.c.b16 %v4043, %v4042
  %v5360 = vpack.c.b16 %v4045, %v4044
  %v5361 = vpack.c.b16 %v4047, %v4046
  %v5362 = vpack.c.b16 %v4049, %v4048
  %v5363 = vpack.c.b16 %v4051, %v4050
  %v5364 = vpack.c.b16 %v4053, %v4052
  %v5365 = vpack.c.b16 %v4055, %v4054
  %v5366 = vpack.c.b16 %v4057, %v4056
  %v5367 = vpack.c.b16 %v4059, %v4058
  %v5368 = vpack.c.b16 %v4061, %v4060
  %v5369 = vpack.c.b16 %v4063, %v4062
  %v5370 = vpack.c.b16 %v4065, %v4064
  %v5371 = vpack.c.b16 %v4067, %v4066
  %v5372 = vpack.c.b16 %v4069, %v4068
  %v5373 = vpack.c.b16 %v4071, %v4070
  %v5374 = vpack.c.b16 %v4073, %v4072
  %v5375 = vpack.c.b16 %v4075, %v4074
  %v5376 = vpack.c.b16 %v4077, %v4076
  %v5377 = vpack.c.b16 %v4079, %v4078
  %v5378 = vpack.c.b16 %v4081, %v4080
  %v5379 = vpack.c.b16 %v4083, %v4082
  %v5380 = vpack.c.b16 %v4085, %v4084
  %v5381 = vpack.c.b16 %v4087, %v4086
  %v5382 = vpack.c.b16 %v4089, %v4088
  %v5383 = vpack.c.b16 %v4091, %v4090
  %v5384 = vpack.c.b16 %v4093, %v4092
  %v5385 = vpack.c.b16 %v4095, %v4094
  %v5386 = vpack.c.b16 %v4097, %v4096
  %v5387 = vpack.c.b16 %v4099, %v4098
  %v5388 = vpack.c.b16 %v4101, %v4100
  %v5389 = vpack.c.b16 %v4103, %v4102
  %v5390 = vpack.c.b16 %v4105, %v4104
  %v5391 = vpack.c.b16 %v4107, %v4106
  %v5392 = vpack.c.b16 %v4109, %v4108
  %v5393 = vpack.c.b16 %v4111, %v4110
  %v5394 = vpack.c.b16 %v4113, %v4112
  %v5395 = vpack.c.b16 %v4115, %v4114
  %v5396 = vpack.c.b16 %v4117, %v4116
  %v5397 = vpack.c.b16 %v4119, %v4118
  %v5398 = vpack.c.b16 %v4121, %v4120
  %v5399 = vpack.c.b16 %v4123, %v4122
  %v5400 = vpack.c.b16 %v4125, %v4124
  %v5401 = vpack.c.b16 %v4127, %v4126
  %v5402 = vpack.c.b16 %v4129, %v4128
  %v5403 = vpack.c.b16 %v4131, %v4130
  %v5404 = vpack.c.b16 %v4133, %v4132
  %v5405 = vpack.c.b16 %v4135, %v4134
  %v5406 = vpack.c.b16 %v4137, %v4136
  %v5407 = vpack.c.b16 %v4139, %v4138
  %v5408 = vpack.c.b16 %v4141, %v4140
  %v5409 = vpack.c.b16 %v4143, %v4142
  %v5410 = vpack.c.b16 %v4145, %v4144
  %v5411 = vpack.c.b16 %v4147, %v4146
  %v5412 = vpack.c.b16 %v4149, %v4148
  %v5413 = vpack.c.b16 %v4151, %v4150
  %v5414 = vpack.c.b16 %v4153, %v4152
  %v5415 = vpack.c.b16 %v4155, %v4154
  %v5416 = vpack.c.b16 %v4157, %v4156
  %v5417 = vpack.c.b16 %v4159, %v4158
  %v5418 = vpack.c.b16 %v4161, %v4160
  %v5419 = vpack.c.b16 %v4163, %v4162
  %v5420 = vpack.c.b16 %v4165, %v4164
  %v5421 = vpack.c.b16 %v4167, %v4166
  %v5422 = vpack.c.b16 %v4169, %v4168
  %v5423 = vpack.c.b16 %v4171, %v4170
  %v5424 = vpack.c.b16 %v4173, %v4172
  %v5425 = vpack.c.b16 %v4175, %v4174
  %v5426 = vpack.c.b16 %v4177, %v4176
  %v5427 = vpack.c.b16 %v4179, %v4178
  %v5428 = vpack.c.b16 %v4181, %v4180
  %v5429 = vpack.c.b16 %v4183, %v4182
  %v5430 = vpack.c.b16 %v4185, %v4184
  %v5431 = vpack.c.b16 %v4187, %v4186
  %v5432 = vpack.c.b16 %v4189, %v4188
  %v5433 = vpack.c.b16 %v4191, %v4190
  %v5434 = vpack.c.b16 %v4193, %v4192
  %v5435 = vpack.c.b16 %v4195, %v4194
  %v5436 = vpack.c.b16 %v4197, %v4196
  %v5437 = vpack.c.b16 %v4199, %v4198
  %v5438 = vpack.c.b16 %v4201, %v4200
  %v5439 = vpack.c.b16 %v4203, %v4202
  %v5440 = vpack.c.b16 %v4205, %v4204
  %v5441 = vpack.c.b16 %v4207, %v4206
  %v5442 = vpack.c.b16 %v4209, %v4208
  %v5443 = vpack.c.b16 %v4211, %v4210
  %v5444 = vpack.c.b16 %v4213, %v4212
  %v5445 = vpack.c.b16 %v4215, %v4214
  %v5446 = vpack.c.b16 %v4217, %v4216
  %v5447 = vpack.c.b16 %v4219, %v4218
  %v5448 = vpack.c.b16 %v4221, %v4220
  %v5449 = vpack.c.b16 %v4223, %v4222
  %v5450 = vpack.c.b16 %v4225, %v4224
  %v5451 = vpack.c.b16 %v4227, %v4226
  %v5452 = vpack.c.b16 %v4229, %v4228
  %v5453 = vpack.c.b16 %v4231, %v4230
  %v5454 = vpack.c.b16 %v4233, %v4232
  %v5455 = vpack.c.b16 %v4235, %v4234
  %v5456 = vpack.c.b16 %v4237, %v4236
  %v5457 = vpack.c.b16 %v4239, %v4238
  %v5458 = vpack.c.b16 %v4241, %v4240
  %v5459 = vpack.c.b16 %v4243, %v4242
  %v5460 = vpack.c.b16 %v4245, %v4244
  %v5461 = vpack.c.b16 %v4247, %v4246
  %v5462 = vpack.c.b16 %v4249, %v4248
  %v5463 = vpack.c.b16 %v4251, %v4250
  %v5464 = vpack.c.b16 %v4253, %v4252
  %v5465 = vpack.c.b16 %v4255, %v4254
  %v5466 = vpack.c.b16 %v4257, %v4256
  %v5467 = vpack.c.b16 %v4259, %v4258
  %v5468 = vpack.c.b16 %v4261, %v4260
  %v5469 = vpack.c.b16 %v4263, %v4262
  %v5470 = vpack.c.b16 %v4265, %v4264
  %v5471 = vpack.c.b16 %v4267, %v4266
  %v5472 = vpack.c.b16 %v4269, %v4268
  %v5473 = vpack.c.b16 %v4271, %v4270
  %v5474 = vpack.c.b16 %v4273, %v4272
  %v5475 = vpack.c.b16 %v4275, %v4274
  %v5476 = vpack.c.b16 %v4277, %v4276
  %v5477 = vpack.c.b16 %v4279, %v4278
  %v5478 = vpack.c.b16 %v4281, %v4280
  %v5479 = vpack.c.b16 %v4283, %v4282
  %v5480 = vpack.c.b16 %v4285, %v4284
  %v5481 = vpack.c.b16 %v4287, %v4286
  %v5482 = vpack.c.b16 %v4289, %v4288
  %v5483 = vpack.c.b16 %v4291, %v4290
  %v5484 = vpack.c.b16 %v4293, %v4292
  %v5485 = vpack.c.b16 %v4295, %v4294
  %v5486 = vpack.c.b16 %v4297, %v4296
  %v5487 = vpack.c.b16 %v4299, %v4298
  %v5488 = vpack.c.b16 %v4301, %v4300
  %v5489 = vpack.c.b16 %v4303, %v4302
  %v5490 = vpack.c.b16 %v4305, %v4304
  %v5491 = vpack.c.b16 %v4307, %v4306
  %v5492 = vpack.c.b16 %v4309, %v4308
  %v5493 = vpack.c.b16 %v4311, %v4310
  %v5494 = vpack.c.b16 %v4313, %v4312
  %v5495 = vpack.c.b16 %v4315, %v4314
  %v5496 = vpack.c.b16 %v4317, %v4316
  %v5497 = vpack.c.b16 %v4319, %v4318
  %v5498 = vpack.c.b16 %v4321, %v4320
  %v5499 = vpack.c.b16 %v4323, %v4322
  %v5500 = vpack.c.b16 %v4325, %v4324
  %v5501 = vpack.c.b16 %v4327, %v4326
  %v5502 = vpack.c.b16 %v4329, %v4328
  %v5503 = vpack.c.b16 %v4331, %v4330
  %v5504 = vpack.c.b16 %v4333, %v4332
  %v5505 = vpack.c.b16 %v4335, %v4334
  %v5506 = vpack.c.b16 %v4337, %v4336
  %v5507 = vpack.c.b16 %v4339, %v4338
  %v5508 = vpack.c.b16 %v4341, %v4340
  %v5509 = vpack.c.b16 %v4343, %v4342
  %v5510 = vpack.c.b16 %v4345, %v4344
  %v5511 = vpack.c.b16 %v4347, %v4346
  %v5512 = vpack.c.b16 %v4349, %v4348
  %v5513 = vpack.c.b16 %v4351, %v4350
  %v5514 = vpack.c.b16 %v4353, %v4352
  %v5515 = vpack.c.b16 %v4355, %v4354
  %v5516 = vpack.c.b16 %v4357, %v4356
  %v5517 = vpack.c.b16 %v4359, %v4358
  %v5518 = vpack.c.b16 %v4361, %v4360
  %v5519 = vpack.c.b16 %v4363, %v4362
  %v5520 = vpack.c.b16 %v4365, %v4364
  %v5521 = vpack.c.b16 %v4367, %v4366
  %v5522 = vpack.c.b16 %v4369, %v4368
  %v5523 = vpack.c.b16 %v4371, %v4370
  %v5524 = vpack.c.b16 %v4373, %v4372
  %v5525 = vpack.c.b16 %v4375, %v4374
  %v5526 = vpack.c.b16 %v4377, %v4376
  %v5527 = vpack.c.b16 %v4379, %v4378
  %v5528 = vpack.c.b16 %v4381, %v4380
  %v5529 = vpack.c.b16 %v4383, %v4382
  %v5530 = vpack.c.b16 %v4385, %v4384
  %v5531 = vpack.c.b16 %v4387, %v4386
  %v5532 = vpack.c.b16 %v4389, %v4388
  %v5533 = vpack.c.b16 %v4391, %v4390
  %v5534 = vpack.c.b16 %v4393, %v4392
  %v5535 = vpack.c.b16 %v4395, %v4394
  %v5536 = vpack.c.b16 %v4397, %v4396
  %v5537 = vpack.c.b16 %v4399, %v4398
  %v5538 = vpack.c.b16 %v4401, %v4400
  %v5539 = vpack.c.b16 %v4403, %v4402
  %v5540 = vpack.c.b16 %v4405, %v4404
  %v5541 = vpack.c.b16 %v4407, %v4406
  %v5542 = vpack.c.b16 %v4409, %v4408
  %v5543 = vpack.c.b16 %v4411, %v4410
  %v5544 = vpack.c.b16 %v4413, %v4412
  %v5545 = vpack.c.b16 %v4415, %v4414
  %v5546 = vpack.c.b16 %v4417, %v4416
  %v5547 = vpack.c.b16 %v4419, %v4418
  %v5548 = vpack.c.b16 %v4421, %v4420
  %v5549 = vpack.c.b16 %v4423, %v4422
  %v5550 = vpack.c.b16 %v4425, %v4424
  %v5551 = vpack.c.b16 %v4427, %v4426
  %v5552 = vpack.c.b16 %v4429, %v4428
  %v5553 = vpack.c.b16 %v4431, %v4430
  %v5554 = vpack.c.b16 %v4433, %v4432
  %v5555 = vpack.c.b16 %v4435, %v4434
  %v5556 = vpack.c.b16 %v4437, %v4436
  %v5557 = vpack.c.b16 %v4439, %v4438
  %v5558 = vpack.c.b16 %v4441, %v4440
  %v5559 = vpack.c.b16 %v4443, %v4442
  %v5560 = vpack.c.b16 %v4445, %v4444
  %v5561 = vpack.c.b16 %v4447, %v4446
  %v5562 = vpack.c.b16 %v4449, %v4448
  %v5563 = vpack.c.b16 %v4451, %v4450
  %v5564 = vpack.c.b16 %v4453, %v4452
  %v5565 = vpack.c.b16 %v4455, %v4454
  %v5566 = vpack.c.b16 %v4457, %v4456
  %v5567 = vpack.c.b16 %v4459, %v4458
  %v5568 = vpack.c.b16 %v4461, %v4460
  %v5569 = vpack.c.b16 %v4463, %v4462
  %v5570 = vpack.c.b16 %v4465, %v4464
  %v5571 = vpack.c.b16 %v4467, %v4466
  %v5572 = vpack.c.b16 %v4469, %v4468
  %v5573 = vpack.c.b16 %v4471, %v4470
  %v5574 = vpack.c.b16 %v4473, %v4472
  %v5575 = vpack.c.b16 %v4475, %v4474
  %v5576 = vpack.c.b16 %v4477, %v4476
  %v5577 = vpack.c.b16 %v4479, %v4478
  %v5578 = vpack.c.b16 %v4481, %v4480
  %v5579 = vpack.c.b16 %v4483, %v4482
  %v5580 = vpack.c.b16 %v4485, %v4484
  %v5581 = vpack.c.b16 %v4487, %v4486
  %v5582 = vpack.c.b16 %v4489, %v4488
  %v5583 = vpack.c.b16 %v4491, %v4490
  %v5584 = vpack.c.b16 %v4493, %v4492
  %v5585 = vpack.c.b16 %v4495, %v4494
  %v5586 = vpack.c.b16 %v4497, %v4496
  %v5587 = vpack.c.b16 %v4499, %v4498
  %v5588 = vpack.c.b16 %v4501, %v4500
  %v5589 = vpack.c.b16 %v4503, %v4502
  %v5590 = vpack.c.b16 %v4505, %v4504
  %v5591 = vpack.c.b16 %v4507, %v4506
  %v5592 = vpack.c.b16 %v4509, %v4508
  %v5593 = vpack.c.b16 %v4511, %v4510
  %v5594 = vpack.c.b16 %v4513, %v4512
  %v5595 = vpack.c.b16 %v4515, %v4514
  %v5596 = vpack.c.b16 %v4517, %v4516
  %v5597 = vpack.c.b16 %v4519, %v4518
  %v5598 = vpack.c.b16 %v4521, %v4520
  %v5599 = vpack.c.b16 %v4523, %v4522
  %v5600 = vpack.c.b16 %v4525, %v4524
  %v5601 = vpack.c.b16 %v4527, %v4526
  %v5602 = vpack.c.b16 %v4529, %v4528
  %v5603 = vpack.c.b16 %v4531, %v4530
  %v5604 = vpack.c.b16 %v4533, %v4532
  %v5605 = vpack.c.b16 %v4535, %v4534
  %v5606 = vpack.c.b16 %v4537, %v4536
  %v5607 = vpack.c.b16 %v4539, %v4538
  %v5608 = vpack.c.b16 %v4541, %v4540
  %v5609 = vpack.c.b16 %v4543, %v4542
  %v5610 = vpack.c.b16 %v4545, %v4544
  %v5611 = vpack.c.b16 %v4547, %v4546
  %v5612 = vpack.c.b16 %v4549, %v4548
  %v5613 = vpack.c.b16 %v4551, %v4550
  %v5614 = vpack.c.b16 %v4553, %v4552
  %v5615 = vpack.c.b16 %v4555, %v4554
  %v5616 = vpack.c.b16 %v4557, %v4556
  %v5617 = vpack.c.b16 %v4559, %v4558
  %v5618 = vpack.c.b16 %v4561, %v4560
  %v5619 = vpack.c.b16 %v4563, %v4562
  %v5620 = vpack.c.b16 %v4565, %v4564
  %v5621 = vpack.c.b16 %v4567, %v4566
  %v5622 = vpack.c.b16 %v4569, %v4568
  %v5623 = vpack.c.b16 %v4571, %v4570
  %v5624 = vpack.c.b16 %v4573, %v4572
  %v5625 = vpack.c.b16 %v4575, %v4574
  %v5626 = vpack.c.b16 %v4577, %v4576
  %v5627 = vpack.c.b16 %v4579, %v4578
  %v5628 = vpack.c.b16 %v4581, %v4580
  %v5629 = vpack.c.b16 %v4583, %v4582
  %v5630 = vpack.c.b16 %v4585, %v4584
  %v5631 = vpack.c.b16 %v4587, %v4586
  %v5632 = vpack.c.b16 %v4589, %v4588
  %v5633 = vpack.c.b16 %v4591, %v4590
  %v5634 = vpack.c.b16 %v4593, %v4592
  %v5635 = vpack.c.b16 %v4595, %v4594
  %v5636 = vpack.c.b16 %v4597, %v4596
  %v5637 = vpack.c.b16 %v4599, %v4598
  %v5638 = vpack.c.b16 %v4601, %v4600
  %v5639 = vpack.c.b16 %v4603, %v4602
  %v5640 = vpack.c.b16 %v4605, %v4604
  %v5641 = vpack.c.b16 %v4607, %v4606
  %v5642 = vpack.c.b16 %v4609, %v4608
  %v5643 = vpack.c.b16 %v4611, %v4610
  %v5644 = vpack.c.b16 %v4613, %v4612
  %v5645 = vpack.c.b16 %v4615, %v4614
  %v5646 = vpack.c.b16 %v4617, %v4616
  %v5647 = vpack.c.b16 %v4619, %v4618
  %v5648 = vpack.c.b16 %v4621, %v4620
  %v5649 = vpack.c.b16 %v4623, %v4622
  %v5650 = vpack.c.b16 %v4625, %v4624
  %v5651 = vpack.c.b16 %v4627, %v4626
  %v5652 = vpack.c.b16 %v4629, %v4628
  %v5653 = vpack.c.b16 %v4631, %v4630
  %v5654 = vpack.c.b16 %v4633, %v4632
  %v5655 = vpack.c.b16 %v4635, %v4634
  %v5656 = vpack.c.b16 %v4637, %v4636
  %v5657 = vpack.c.b16 %v4639, %v4638
  %v5658 = vpack.c.b16 %v4641, %v4640
  %v5659 = vpack.c.b16 %v4643, %v4642
  %v5660 = vpack.c.b16 %v4645, %v4644
  %v5661 = vpack.c.b16 %v4647, %v4646
  %v5662 = vpack.c.b16 %v4649, %v4648
  %v5663 = vpack.c.b16 %v4651, %v4650
  %v5664 = vpack.c.b16 %v4653, %v4652
  %v5665 = vpack.c.b16 %v4655, %v4654
  %v5666 = vpack.c.b16 %v4657, %v4656
  %v5667 = vpack.c.b16 %v4659, %v4658
  %v5668 = vpack.c.b16 %v4661, %v4660
  %v5669 = vpack.c.b16 %v4663, %v4662
  %v5670 = vpack.c.b16 %v4665, %v4664
  %v5671 = vpack.c.b16 %v4667, %v4666
  %v5672 = vpack.c.b16 %v4669, %v4668
  %v5673 = vpack.c.b16 %v4671, %v4670
  %v5674 = vpack.c.b16 %v4673, %v4672
  %v5675 = vpack.c.b16 %v4675, %v4674
  %v5676 = vpack.c.b16 %v4677, %v4676
  %v5677 = vpack.c.b16 %v4679, %v4678
  %v5678 = vpack.c.b16 %v4681, %v4680
  %v5679 = vpack.c.b16 %v4683, %v4682
  %v5680 = vpack.c.b16 %v4685, %v4684
  %v5681 = vpack.c.b16 %v4687, %v4686
  %v5682 = vpack.c.b16 %v4689, %v4688
  %v5683 = vpack.c.b16 %v4691, %v4690
  %v5684 = vpack.c.b16 %v4693, %v4692
  %v5685 = vpack.c.b16 %v4695, %v4694
  %v5686 = vpack.c.b16 %v4697, %v4696
  %v5687 = vpack.c.b16 %v4699, %v4698
  %v5688 = vpack.c.b16 %v4701, %v4700
  %v5689 = vpack.c.b16 %v4703, %v4702
  %v5690 = vpack.c.b16 %v4705, %v4704
  %v5691 = vpack.c.b16 %v4707, %v4706
  %v5692 = vpack.c.b16 %v4709, %v4708
  %v5693 = vpack.c.b16 %v4711, %v4710
  %v5694 = vpack.c.b16 %v4713, %v4712
  %v5695 = vpack.c.b16 %v4715, %v4714
  %v5696 = vpack.c.b16 %v4717, %v4716
  %v5697 = vpack.c.b16 %v4719, %v4718
  %v5698 = vpack.c.b16 %v4721, %v4720
  %v5699 = vpack.c.b16 %v4723, %v4722
  %v5700 = vpack.c.b16 %v4725, %v4724
  %v5701 = vpack.c.b16 %v4727, %v4726
  %v5702 = vpack.c.b16 %v4729, %v4728
  %v5703 = vpack.c.b16 %v4731, %v4730
  %v5704 = vpack.c.b16 %v4733, %v4732
  %v5705 = vpack.c.b16 %v4735, %v4734
  %v5706 = vpack.c.b16 %v4737, %v4736
  %v5707 = vpack.c.b16 %v4739, %v4738
  %v5708 = vpack.c.b16 %v4741, %v4740
  %v5709 = vpack.c.b16 %v4743, %v4742
  %v5710 = vpack.c.b16 %v4745, %v4744
  %v5711 = vpack.c.b16 %v4747, %v4746
  %v5712 = vpack.c.b16 %v4749, %v4748
  %v5713 = vpack.c.b16 %v4751, %v4750
  %v5714 = vpack.c.b16 %v4753, %v4752
  %v5715 = vpack.c.b16 %v4755, %v4754
  %v5716 = vpack.c.b16 %v4757, %v4756
  %v5717 = vpack.c.b16 %v4759, %v4758
  %v5718 = vpack.c.b16 %v4761, %v4760
  %v5719 = vpack.c.b16 %v4763, %v4762
  %v5720 = vpack.c.b16 %v4765, %v4764
  %v5721 = vpack.c.b16 %v4767, %v4766
  %v5722 = vpack.c.b16 %v4769, %v4768
  %v5723 = vpack.c.b16 %v4771, %v4770
  %v5724 = vpack.c.b16 %v4773, %v4772
  %v5725 = vpack.c.b16 %v4775, %v4774
  %v5726 = vpack.c.b16 %v4777, %v4776
  %v5727 = vpack.c.b16 %v4779, %v4778
  %v5728 = vpack.c.b16 %v4781, %v4780
  %v5729 = vpack.c.b16 %v4783, %v4782
  %v5730 = vpack.c.b16 %v4785, %v4784
  %v5731 = vpack.c.b16 %v4787, %v4786
  %v5732 = vpack.c.b16 %v4789, %v4788
  %v5733 = vpack.c.b16 %v4791, %v4790
  %v5734 = vpack.c.b16 %v4793, %v4792
  %v5735 = vpack.c.b16 %v4795, %v4794
  %v5736 = vpack.c.b16 %v4797, %v4796
  %v5737 = vpack.c.b16 %v4799, %v4798
  %v5738 = vpack.c.b16 %v4801, %v4800
  %v5739 = vpack.c.b16 %v4803, %v4802
  %v5740 = vpack.c.b16 %v4805, %v4804
  %v5741 = vpack.c.b16 %v4807, %v4806
  %v5742 = vpack.c.b16 %v4809, %v4808
  %v5743 = vpack.c.b16 %v4811, %v4810
  %v5744 = vpack.c.b16 %v4813, %v4812
  %v5745 = vpack.c.b16 %v4815, %v4814
  %v5746 = vpack.c.b16 %v4817, %v4816
  %v5747 = vpack.c.b16 %v4819, %v4818
  %v5748 = vpack.c.b16 %v4821, %v4820
  %v5749 = vpack.c.b16 %v4823, %v4822
  %v5750 = vpack.c.b16 %v4825, %v4824
  %v5751 = vpack.c.b16 %v4827, %v4826
  %v5752 = vpack.c.b16 %v4829, %v4828
  %v5753 = vpack.c.b16 %v4831, %v4830
  %v5754 = vpack.c.b16 %v4833, %v4832
  %v5755 = vpack.c.b16 %v4835, %v4834
  %v5756 = vpack.c.b16 %v4837, %v4836
  %v5757 = vpack.c.b16 %v4839, %v4838
  %v5758 = vpack.c.b16 %v4841, %v4840
  %v5759 = vpack.c.b16 %v4843, %v4842
  %v5760 = vpack.c.b16 %v4845, %v4844
  %v5761 = vpack.c.b16 %v4847, %v4846
  %v5762 = vpack.c.b16 %v4849, %v4848
  %v5763 = vpack.c.b16 %v4851, %v4850
  %v5764 = vpack.c.b16 %v4853, %v4852
  %v5765 = vpack.c.b16 %v4855, %v4854
  %v5766 = vpack.c.b16 %v4857, %v4856
  %v5767 = vpack.c.b16 %v4859, %v4858
  %v5768 = vpack.c.b16 %v4861, %v4860
  %v5769 = vpack.c.b16 %v4863, %v4862
  %v5770 = vpack.c.b16 %v4865, %v4864
  %v5771 = vpack.c.b16 %v4867, %v4866
  %v5772 = vpack.c.b16 %v4869, %v4868
  %v5773 = vpack.c.b16 %v4871, %v4870
  %v5774 = vpack.c.b16 %v4873, %v4872
  %v5775 = vpack.c.b16 %v4875, %v4874
  %v5776 = vpack.c.b16 %v4877, %v4876
  %v5777 = vpack.c.b16 %v4879, %v4878
  %v5778 = vpack.c.b16 %v4881, %v4880
  %v5779 = vpack.c.b16 %v4883, %v4882
  %v5780 = vpack.c.b16 %v4885, %v4884
  %v5781 = vpack.c.b16 %v4887, %v4886
  %v5782 = vpack.c.b16 %v4889, %v4888
  %v5783 = vpack.c.b16 %v4891, %v4890
  %v5784 = vpack.c.b16 %v4893, %v4892
  %v5785 = vpack.c.b16 %v4895, %v4894
  %v5786 = vpack.c.b16 %v4897, %v4896
  %v5787 = vpack.c.b16 %v4899, %v4898
  %v5788 = vpack.c.b16 %v4901, %v4900
  %v5789 = vpack.c.b16 %v4903, %v4902
  %v5790 = vpack.c.b16 %v4905, %v4904
  %v5791 = vpack.c.b16 %v4907, %v4906
  %v5792 = vpack.c.b16 %v4909, %v4908
  %v5793 = vpack.c.b16 %v4911, %v4910
  %v5794 = vpack.c.b16 %v4913, %v4912
  %v5795 = vpack.c.b16 %v4915, %v4914
  %v5796 = vpack.c.b16 %v4917, %v4916
  %v5797 = vpack.c.b16 %v4919, %v4918
  %v5798 = vpack.c.b16 %v4921, %v4920
  %v5799 = vpack.c.b16 %v4923, %v4922
  %v5800 = vpack.c.b16 %v4925, %v4924
  %v5801 = vpack.c.b16 %v4927, %v4926
  %v5802 = vpack.c.b16 %v4929, %v4928
  %v5803 = vpack.c.b16 %v4931, %v4930
  %v5804 = vpack.c.b16 %v4933, %v4932
  %v5805 = vpack.c.b16 %v4935, %v4934
  %v5806 = vpack.c.b16 %v4937, %v4936
  %v5807 = vpack.c.b16 %v4939, %v4938
  %v5808 = vpack.c.b16 %v4941, %v4940
  %v5809 = vpack.c.b16 %v4943, %v4942
  %v5810 = vpack.c.b16 %v4945, %v4944
  %v5811 = vpack.c.b16 %v4947, %v4946
  %v5812 = vpack.c.b16 %v4949, %v4948
  %v5813 = vpack.c.b16 %v4951, %v4950
  %v5814 = vpack.c.b16 %v4953, %v4952
  %v5815 = vpack.c.b16 %v4955, %v4954
  %v5816 = vpack.c.b16 %v4957, %v4956
  %v5817 = vpack.c.b16 %v4959, %v4958
  %v5818 = vpack.c.b16 %v4961, %v4960
  %v5819 = vpack.c.b16 %v4963, %v4962
  %v5820 = vpack.c.b16 %v4965, %v4964
  %v5821 = vpack.c.b16 %v4967, %v4966
  %v5822 = vpack.c.b16 %v4969, %v4968
  %v5823 = vpack.c.b16 %v4971, %v4970
  %v5824 = vpack.c.b16 %v4973, %v4972
  %v5825 = vpack.c.b16 %v4975, %v4974
  %v5826 = vpack.c.b16 %v4977, %v4976
  %v5827 = vpack.c.b16 %v4979, %v4978
  %v5828 = vpack.c.b16 %v4981, %v4980
  %v5829 = vpack.c.b16 %v4983, %v4982
  %v5830 = vpack.c.b16 %v4985, %v4984
  %v5831 = vpack.c.b16 %v4987, %v4986
  %v5832 = vpack.c.b16 %v4989, %v4988
  %v5833 = vpack.c.b16 %v4991, %v4990
  %v5834 = vpack.c.b16 %v4993, %v4992
  %v5835 = vpack.c.b16 %v4995, %v4994
  %v5836 = vpack.c.b16 %v4997, %v4996
  %v5837 = vpack.c.b16 %v4999, %v4998
  %v5838 = vpack.c.b16 %v5001, %v5000
  %v5839 = vpack.c.b16 %v5003, %v5002
  %v5840 = vpack.c.b16 %v5005, %v5004
  %v5841 = vpack.c.b16 %v5007, %v5006
  %v5842 = vpack.c.b16 %v5009, %v5008
  %v5843 = vpack.c.b16 %v5011, %v5010
  %v5844 = vpack.c.b16 %v5013, %v5012
  %v5845 = vpack.c.b16 %v5015, %v5014
  %v5846 = vpack.c.b16 %v5017, %v5016
  %v5847 = vpack.c.b16 %v5019, %v5018
  %v5848 = vpack.c.b16 %v5021, %v5020
  %v5849 = vpack.c.b16 %v5023, %v5022
  %v5850 = vpack.c.b16 %v5025, %v5024
  %v5851 = vpack.c.b16 %v5027, %v5026
  %v5852 = vpack.c.b16 %v5029, %v5028
  %v5853 = vpack.c.b16 %v5031, %v5030
  %v5854 = vpack.c.b16 %v5033, %v5032
  %v5855 = vpack.c.b16 %v5035, %v5034
  %v5856 = vpack.c.b16 %v5037, %v5036
  %v5857 = vpack.c.b16 %v5039, %v5038
  %v5858 = vpack.c.b16 %v5041, %v5040
  %v5859 = vpack.c.b16 %v5043, %v5042
  %v5860 = vpack.c.b16 %v5045, %v5044
  %v5861 = vpack.c.b16 %v5047, %v5046
  %v5862 = vpack.c.b16 %v5049, %v5048
  %v5863 = vpack.c.b16 %v5051, %v5050
  %v5864 = vpack.c.b16 %v5053, %v5052
  %v5865 = vpack.c.b16 %v5055, %v5054
  %v5866 = vpack.c.b16 %v5057, %v5056
  %v5867 = vpack.c.b16 %v5059, %v5058
  %v5868 = vpack.c.b16 %v5061, %v5060
  %v5869 = vpack.c.b16 %v5063, %v5062
  %v5870 = vpack.c.b16 %v5065, %v5064
  %v5871 = vpack.c.b16 %v5067, %v5066
  %v5872 = vpack.c.b16 %v5069, %v5068
  %v5873 = vpack.c.b16 %v5071, %v5070
  %v5874 = vpack.c.b16 %v5073, %v5072
  %v5875 = vpack.c.b16 %v5075, %v5074
  %v5876 = vpack.c.b16 %v5077, %v5076
  %v5877 = vpack.c.b16 %v5079, %v5078
  %v5878 = vpack.c.b16 %v5081, %v5080
  %v5879 = vpack.c.b16 %v5083, %v5082
  %v5880 = vpack.c.b16 %v5085, %v5084
  %v5881 = vpack.c.b16 %v5087, %v5086
  %v5882 = vpack.c.b16 %v5089, %v5088
  %v5883 = vpack.c.b16 %v5091, %v5090
  %v5884 = vpack.c.b16 %v5093, %v5092
  %v5885 = vpack.c.b16 %v5095, %v5094
  %v5886 = vpack.c.b16 %v5097, %v5096
  %v5887 = vpack.c.b16 %v5099, %v5098
  %v5888 = vpack.c.b16 %v5101, %v5100
  %v5889 = vpack.c.b16 %v5103, %v5102
  %v5890 = vpack.c.b16 %v5105, %v5104
  %v5891 = vpack.c.b16 %v5107, %v5106
  %6676 = vmatprep.subr.bf16.mxu0 0
  %6677 = vmatpush1.bf16.msra.mxu0 %v5115
  %6678 = vmatprep.subr.bf16.mxu0 0
  %6679 = vmatpush1.bf16.msra.mxu0 %v5114
  %6680 = vmatprep.subr.bf16.mxu0 0
  %6681 = vmatpush1.bf16.msra.mxu0 %v5113
  %6682 = vmatprep.subr.bf16.mxu0 0
  %6683 = vmatpush1.bf16.msra.mxu0 %v5112
  %6684 = vmatprep.subr.bf16.mxu0 0
  %6685 = vmatpush1.bf16.msra.mxu0 %v5111
  %6686 = vmatprep.subr.bf16.mxu0 0
  %6687 = vmatpush1.bf16.msra.mxu0 %v5110
  %6688 = vmatprep.subr.bf16.mxu0 0
  %6689 = vmatpush1.bf16.msra.mxu0 %v5109
  %6690 = vmatprep.subr.bf16.mxu0 0
  %6691 = vmatpush1.bf16.msra.mxu0 %v5108
  %6692 = vmatprep.subr.bf16.mxu0 0
  %6693 = vmatpush2.bf16.msra.mxu0 %v5123
  %6694 = vmatprep.subr.bf16.mxu0 0
  %6695 = vmatpush2.bf16.msra.mxu0 %v5122
  %6696 = vmatprep.subr.bf16.mxu0 0
  %6697 = vmatpush2.bf16.msra.mxu0 %v5121
  %6698 = vmatprep.subr.bf16.mxu0 0
  %6699 = vmatpush2.bf16.msra.mxu0 %v5120
  %6700 = vmatprep.subr.bf16.mxu0 0
  %6701 = vmatpush2.bf16.msra.mxu0 %v5119
  %6702 = vmatprep.subr.bf16.mxu0 0
  %6703 = vmatpush2.bf16.msra.mxu0 %v5118
  %6704 = vmatprep.subr.bf16.mxu0 0
  %6705 = vmatpush2.bf16.msra.mxu0 %v5117
  %6706 = vmatprep.subr.bf16.mxu0 0
  %6707 = vmatpush2.bf16.msra.mxu0 %v5116
  %6708 = vmatprep.mubr.bf16.mxu0 %v1777
  %6709 = vmatmul.mubr.bf16.gmra.mxu0 %v1776
  %v6710 = vpop.f32.mrf.mxu0
  %v6711 = vadd.f32 0.0, %v6710
  %v6712 = vpop.f32.mrf.mxu0
  %v6713 = vpop.f32.mrf.mxu0
  %v6714 = vpop.f32.mrf.mxu0
  %6715 = vdwg.mxu0
  %6716 = vmatprep.subr.bf16.mxu0 0
  %6717 = vmatpush1.bf16.msra.mxu0 %v5131
  %6718 = vmatprep.subr.bf16.mxu0 0
  %6719 = vmatpush1.bf16.msra.mxu0 %v5130
  %6720 = vmatprep.subr.bf16.mxu0 0
  %6721 = vmatpush1.bf16.msra.mxu0 %v5129
  %6722 = vmatprep.subr.bf16.mxu0 0
  %6723 = vmatpush1.bf16.msra.mxu0 %v5128
  %6724 = vmatprep.subr.bf16.mxu0 0
  %6725 = vmatpush1.bf16.msra.mxu0 %v5127
  %6726 = vmatprep.subr.bf16.mxu0 0
  %6727 = vmatpush1.bf16.msra.mxu0 %v5126
  %6728 = vmatprep.subr.bf16.mxu0 0
  %6729 = vmatpush1.bf16.msra.mxu0 %v5125
  %6730 = vmatprep.subr.bf16.mxu0 0
  %6731 = vmatpush1.bf16.msra.mxu0 %v5124
  %6732 = vmatprep.subr.bf16.mxu0 0
  %6733 = vmatpush2.bf16.msra.mxu0 %v5139
  %6734 = vmatprep.subr.bf16.mxu0 0
  %6735 = vmatpush2.bf16.msra.mxu0 %v5138
  %6736 = vmatprep.subr.bf16.mxu0 0
  %6737 = vmatpush2.bf16.msra.mxu0 %v5137
  %6738 = vmatprep.subr.bf16.mxu0 0
  %6739 = vmatpush2.bf16.msra.mxu0 %v5136
  %6740 = vmatprep.subr.bf16.mxu0 0
  %6741 = vmatpush2.bf16.msra.mxu0 %v5135
  %6742 = vmatprep.subr.bf16.mxu0 0
  %6743 = vmatpush2.bf16.msra.mxu0 %v5134
  %6744 = vmatprep.subr.bf16.mxu0 0
  %6745 = vmatpush2.bf16.msra.mxu0 %v5133
  %6746 = vmatprep.subr.bf16.mxu0 0
  %6747 = vmatpush2.bf16.msra.mxu0 %v5132
  %6748 = vmatprep.mubr.bf16.mxu0 %v1779
  %6749 = vmatmul.mubr.bf16.gmra.mxu0 %v1778
  %v6750 = vpop.f32.mrf.mxu0
  %v6751 = vadd.f32 %v6711, %v6750
  %v6752 = vpop.f32.mrf.mxu0
  %v6753 = vpop.f32.mrf.mxu0
  %v6754 = vpop.f32.mrf.mxu0
  %6755 = vdwg.mxu0
  %6756 = vmatprep.subr.bf16.mxu0 0
  %6757 = vmatpush1.bf16.msra.mxu0 %v5147
  %6758 = vmatprep.subr.bf16.mxu0 0
  %6759 = vmatpush1.bf16.msra.mxu0 %v5146
  %6760 = vmatprep.subr.bf16.mxu0 0
  %6761 = vmatpush1.bf16.msra.mxu0 %v5145
  %6762 = vmatprep.subr.bf16.mxu0 0
  %6763 = vmatpush1.bf16.msra.mxu0 %v5144
  %6764 = vmatprep.subr.bf16.mxu0 0
  %6765 = vmatpush1.bf16.msra.mxu0 %v5143
  %6766 = vmatprep.subr.bf16.mxu0 0
  %6767 = vmatpush1.bf16.msra.mxu0 %v5142
  %6768 = vmatprep.subr.bf16.mxu0 0
  %6769 = vmatpush1.bf16.msra.mxu0 %v5141
  %6770 = vmatprep.subr.bf16.mxu0 0
  %6771 = vmatpush1.bf16.msra.mxu0 %v5140
  %6772 = vmatprep.subr.bf16.mxu0 0
  %6773 = vmatpush2.bf16.msra.mxu0 %v5155
  %6774 = vmatprep.subr.bf16.mxu0 0
  %6775 = vmatpush2.bf16.msra.mxu0 %v5154
  %6776 = vmatprep.subr.bf16.mxu0 0
  %6777 = vmatpush2.bf16.msra.mxu0 %v5153
  %6778 = vmatprep.subr.bf16.mxu0 0
  %6779 = vmatpush2.bf16.msra.mxu0 %v5152
  %6780 = vmatprep.subr.bf16.mxu0 0
  %6781 = vmatpush2.bf16.msra.mxu0 %v5151
  %6782 = vmatprep.subr.bf16.mxu0 0
  %6783 = vmatpush2.bf16.msra.mxu0 %v5150
  %6784 = vmatprep.subr.bf16.mxu0 0
  %6785 = vmatpush2.bf16.msra.mxu0 %v5149
  %6786 = vmatprep.subr.bf16.mxu0 0
  %6787 = vmatpush2.bf16.msra.mxu0 %v5148
  %6788 = vmatprep.mubr.bf16.mxu0 %v1781
  %6789 = vmatmul.mubr.bf16.gmra.mxu0 %v1780
  %v6790 = vpop.f32.mrf.mxu0
  %v6791 = vadd.f32 %v6751, %v6790
  %v6792 = vpop.f32.mrf.mxu0
  %v6793 = vpop.f32.mrf.mxu0
  %v6794 = vpop.f32.mrf.mxu0
  %6795 = vdwg.mxu0
  %6796 = vmatprep.subr.bf16.mxu0 0
  %6797 = vmatpush1.bf16.msra.mxu0 %v5163
  %6798 = vmatprep.subr.bf16.mxu0 0
  %6799 = vmatpush1.bf16.msra.mxu0 %v5162
  %6800 = vmatprep.subr.bf16.mxu0 0
  %6801 = vmatpush1.bf16.msra.mxu0 %v5161
  %6802 = vmatprep.subr.bf16.mxu0 0
  %6803 = vmatpush1.bf16.msra.mxu0 %v5160
  %6804 = vmatprep.subr.bf16.mxu0 0
  %6805 = vmatpush1.bf16.msra.mxu0 %v5159
  %6806 = vmatprep.subr.bf16.mxu0 0
  %6807 = vmatpush1.bf16.msra.mxu0 %v5158
  %6808 = vmatprep.subr.bf16.mxu0 0
  %6809 = vmatpush1.bf16.msra.mxu0 %v5157
  %6810 = vmatprep.subr.bf16.mxu0 0
  %6811 = vmatpush1.bf16.msra.mxu0 %v5156
  %6812 = vmatprep.subr.bf16.mxu0 0
  %6813 = vmatpush2.bf16.msra.mxu0 %v5171
  %6814 = vmatprep.subr.bf16.mxu0 0
  %6815 = vmatpush2.bf16.msra.mxu0 %v5170
  %6816 = vmatprep.subr.bf16.mxu0 0
  %6817 = vmatpush2.bf16.msra.mxu0 %v5169
  %6818 = vmatprep.subr.bf16.mxu0 0
  %6819 = vmatpush2.bf16.msra.mxu0 %v5168
  %6820 = vmatprep.subr.bf16.mxu0 0
  %6821 = vmatpush2.bf16.msra.mxu0 %v5167
  %6822 = vmatprep.subr.bf16.mxu0 0
  %6823 = vmatpush2.bf16.msra.mxu0 %v5166
  %6824 = vmatprep.subr.bf16.mxu0 0
  %6825 = vmatpush2.bf16.msra.mxu0 %v5165
  %6826 = vmatprep.subr.bf16.mxu0 0
  %6827 = vmatpush2.bf16.msra.mxu0 %v5164
  %6828 = vmatprep.mubr.bf16.mxu0 %v1783
  %6829 = vmatmul.mubr.bf16.gmra.mxu0 %v1782
  %v6830 = vpop.f32.mrf.mxu0
  %v6831 = vadd.f32 %v6791, %v6830
  %v6832 = vpop.f32.mrf.mxu0
  %v6833 = vpop.f32.mrf.mxu0
  %v6834 = vpop.f32.mrf.mxu0
  %6835 = vdwg.mxu0
  %6836 = vmatprep.subr.bf16.mxu0 0
  %6837 = vmatpush1.bf16.msra.mxu0 %v5179
  %6838 = vmatprep.subr.bf16.mxu0 0
  %6839 = vmatpush1.bf16.msra.mxu0 %v5178
  %6840 = vmatprep.subr.bf16.mxu0 0
  %6841 = vmatpush1.bf16.msra.mxu0 %v5177
  %6842 = vmatprep.subr.bf16.mxu0 0
  %6843 = vmatpush1.bf16.msra.mxu0 %v5176
  %6844 = vmatprep.subr.bf16.mxu0 0
  %6845 = vmatpush1.bf16.msra.mxu0 %v5175
  %6846 = vmatprep.subr.bf16.mxu0 0
  %6847 = vmatpush1.bf16.msra.mxu0 %v5174
  %6848 = vmatprep.subr.bf16.mxu0 0
  %6849 = vmatpush1.bf16.msra.mxu0 %v5173
  %6850 = vmatprep.subr.bf16.mxu0 0
  %6851 = vmatpush1.bf16.msra.mxu0 %v5172
  %6852 = vmatprep.subr.bf16.mxu0 0
  %6853 = vmatpush2.bf16.msra.mxu0 %v5187
  %6854 = vmatprep.subr.bf16.mxu0 0
  %6855 = vmatpush2.bf16.msra.mxu0 %v5186
  %6856 = vmatprep.subr.bf16.mxu0 0
  %6857 = vmatpush2.bf16.msra.mxu0 %v5185
  %6858 = vmatprep.subr.bf16.mxu0 0
  %6859 = vmatpush2.bf16.msra.mxu0 %v5184
  %6860 = vmatprep.subr.bf16.mxu0 0
  %6861 = vmatpush2.bf16.msra.mxu0 %v5183
  %6862 = vmatprep.subr.bf16.mxu0 0
  %6863 = vmatpush2.bf16.msra.mxu0 %v5182
  %6864 = vmatprep.subr.bf16.mxu0 0
  %6865 = vmatpush2.bf16.msra.mxu0 %v5181
  %6866 = vmatprep.subr.bf16.mxu0 0
  %6867 = vmatpush2.bf16.msra.mxu0 %v5180
  %6868 = vmatprep.mubr.bf16.mxu0 %v1785
  %6869 = vmatmul.mubr.bf16.gmra.mxu0 %v1784
  %v6870 = vpop.f32.mrf.mxu0
  %v6871 = vadd.f32 %v6831, %v6870
  %v6872 = vpop.f32.mrf.mxu0
  %v6873 = vpop.f32.mrf.mxu0
  %v6874 = vpop.f32.mrf.mxu0
  %6875 = vdwg.mxu0
  %6876 = vmatprep.subr.bf16.mxu0 0
  %6877 = vmatpush1.bf16.msra.mxu0 %v5195
  %6878 = vmatprep.subr.bf16.mxu0 0
  %6879 = vmatpush1.bf16.msra.mxu0 %v5194
  %6880 = vmatprep.subr.bf16.mxu0 0
  %6881 = vmatpush1.bf16.msra.mxu0 %v5193
  %6882 = vmatprep.subr.bf16.mxu0 0
  %6883 = vmatpush1.bf16.msra.mxu0 %v5192
  %6884 = vmatprep.subr.bf16.mxu0 0
  %6885 = vmatpush1.bf16.msra.mxu0 %v5191
  %6886 = vmatprep.subr.bf16.mxu0 0
  %6887 = vmatpush1.bf16.msra.mxu0 %v5190
  %6888 = vmatprep.subr.bf16.mxu0 0
  %6889 = vmatpush1.bf16.msra.mxu0 %v5189
  %6890 = vmatprep.subr.bf16.mxu0 0
  %6891 = vmatpush1.bf16.msra.mxu0 %v5188
  %6892 = vmatprep.subr.bf16.mxu0 0
  %6893 = vmatpush2.bf16.msra.mxu0 %v5203
  %6894 = vmatprep.subr.bf16.mxu0 0
  %6895 = vmatpush2.bf16.msra.mxu0 %v5202
  %6896 = vmatprep.subr.bf16.mxu0 0
  %6897 = vmatpush2.bf16.msra.mxu0 %v5201
  %6898 = vmatprep.subr.bf16.mxu0 0
  %6899 = vmatpush2.bf16.msra.mxu0 %v5200
  %6900 = vmatprep.subr.bf16.mxu0 0
  %6901 = vmatpush2.bf16.msra.mxu0 %v5199
  %6902 = vmatprep.subr.bf16.mxu0 0
  %6903 = vmatpush2.bf16.msra.mxu0 %v5198
  %6904 = vmatprep.subr.bf16.mxu0 0
  %6905 = vmatpush2.bf16.msra.mxu0 %v5197
  %6906 = vmatprep.subr.bf16.mxu0 0
  %6907 = vmatpush2.bf16.msra.mxu0 %v5196
  %6908 = vmatprep.mubr.bf16.mxu0 %v1787
  %6909 = vmatmul.mubr.bf16.gmra.mxu0 %v1786
  %v6910 = vpop.f32.mrf.mxu0
  %v6911 = vadd.f32 %v6871, %v6910
  %v6912 = vpop.f32.mrf.mxu0
  %v6913 = vpop.f32.mrf.mxu0
  %v6914 = vpop.f32.mrf.mxu0
  %6915 = vdwg.mxu0
  %6916 = vmatprep.subr.bf16.mxu0 0
  %6917 = vmatpush1.bf16.msra.mxu0 %v5211
  %6918 = vmatprep.subr.bf16.mxu0 0
  %6919 = vmatpush1.bf16.msra.mxu0 %v5210
  %6920 = vmatprep.subr.bf16.mxu0 0
  %6921 = vmatpush1.bf16.msra.mxu0 %v5209
  %6922 = vmatprep.subr.bf16.mxu0 0
  %6923 = vmatpush1.bf16.msra.mxu0 %v5208
  %6924 = vmatprep.subr.bf16.mxu0 0
  %6925 = vmatpush1.bf16.msra.mxu0 %v5207
  %6926 = vmatprep.subr.bf16.mxu0 0
  %6927 = vmatpush1.bf16.msra.mxu0 %v5206
  %6928 = vmatprep.subr.bf16.mxu0 0
  %6929 = vmatpush1.bf16.msra.mxu0 %v5205
  %6930 = vmatprep.subr.bf16.mxu0 0
  %6931 = vmatpush1.bf16.msra.mxu0 %v5204
  %6932 = vmatprep.subr.bf16.mxu0 0
  %6933 = vmatpush2.bf16.msra.mxu0 %v5219
  %6934 = vmatprep.subr.bf16.mxu0 0
  %6935 = vmatpush2.bf16.msra.mxu0 %v5218
  %6936 = vmatprep.subr.bf16.mxu0 0
  %6937 = vmatpush2.bf16.msra.mxu0 %v5217
  %6938 = vmatprep.subr.bf16.mxu0 0
  %6939 = vmatpush2.bf16.msra.mxu0 %v5216
  %6940 = vmatprep.subr.bf16.mxu0 0
  %6941 = vmatpush2.bf16.msra.mxu0 %v5215
  %6942 = vmatprep.subr.bf16.mxu0 0
  %6943 = vmatpush2.bf16.msra.mxu0 %v5214
  %6944 = vmatprep.subr.bf16.mxu0 0
  %6945 = vmatpush2.bf16.msra.mxu0 %v5213
  %6946 = vmatprep.subr.bf16.mxu0 0
  %6947 = vmatpush2.bf16.msra.mxu0 %v5212
  %6948 = vmatprep.mubr.bf16.mxu0 %v1789
  %6949 = vmatmul.mubr.bf16.gmra.mxu0 %v1788
  %v6950 = vpop.f32.mrf.mxu0
  %v6951 = vadd.f32 %v6911, %v6950
  %v6952 = vpop.f32.mrf.mxu0
  %v6953 = vpop.f32.mrf.mxu0
  %v6954 = vpop.f32.mrf.mxu0
  %6955 = vdwg.mxu0
  %6956 = vmatprep.subr.bf16.mxu0 0
  %6957 = vmatpush1.bf16.msra.mxu0 %v5227
  %6958 = vmatprep.subr.bf16.mxu0 0
  %6959 = vmatpush1.bf16.msra.mxu0 %v5226
  %6960 = vmatprep.subr.bf16.mxu0 0
  %6961 = vmatpush1.bf16.msra.mxu0 %v5225
  %6962 = vmatprep.subr.bf16.mxu0 0
  %6963 = vmatpush1.bf16.msra.mxu0 %v5224
  %6964 = vmatprep.subr.bf16.mxu0 0
  %6965 = vmatpush1.bf16.msra.mxu0 %v5223
  %6966 = vmatprep.subr.bf16.mxu0 0
  %6967 = vmatpush1.bf16.msra.mxu0 %v5222
  %6968 = vmatprep.subr.bf16.mxu0 0
  %6969 = vmatpush1.bf16.msra.mxu0 %v5221
  %6970 = vmatprep.subr.bf16.mxu0 0
  %6971 = vmatpush1.bf16.msra.mxu0 %v5220
  %6972 = vmatprep.subr.bf16.mxu0 0
  %6973 = vmatpush2.bf16.msra.mxu0 %v5235
  %6974 = vmatprep.subr.bf16.mxu0 0
  %6975 = vmatpush2.bf16.msra.mxu0 %v5234
  %6976 = vmatprep.subr.bf16.mxu0 0
  %6977 = vmatpush2.bf16.msra.mxu0 %v5233
  %6978 = vmatprep.subr.bf16.mxu0 0
  %6979 = vmatpush2.bf16.msra.mxu0 %v5232
  %6980 = vmatprep.subr.bf16.mxu0 0
  %6981 = vmatpush2.bf16.msra.mxu0 %v5231
  %6982 = vmatprep.subr.bf16.mxu0 0
  %6983 = vmatpush2.bf16.msra.mxu0 %v5230
  %6984 = vmatprep.subr.bf16.mxu0 0
  %6985 = vmatpush2.bf16.msra.mxu0 %v5229
  %6986 = vmatprep.subr.bf16.mxu0 0
  %6987 = vmatpush2.bf16.msra.mxu0 %v5228
  %6988 = vmatprep.mubr.bf16.mxu0 %v1791
  %6989 = vmatmul.mubr.bf16.gmra.mxu0 %v1790
  %v6990 = vpop.f32.mrf.mxu0
  %v6991 = vadd.f32 %v6951, %v6990
  %v6992 = vpop.f32.mrf.mxu0
  %v6993 = vpop.f32.mrf.mxu0
  %v6994 = vpop.f32.mrf.mxu0
  %6995 = vdwg.mxu0
  %6996 = vmatprep.subr.bf16.mxu0 0
  %6997 = vmatpush1.bf16.msra.mxu0 %v5243
  %6998 = vmatprep.subr.bf16.mxu0 0
  %6999 = vmatpush1.bf16.msra.mxu0 %v5242
  %7000 = vmatprep.subr.bf16.mxu0 0
  %7001 = vmatpush1.bf16.msra.mxu0 %v5241
  %7002 = vmatprep.subr.bf16.mxu0 0
  %7003 = vmatpush1.bf16.msra.mxu0 %v5240
  %7004 = vmatprep.subr.bf16.mxu0 0
  %7005 = vmatpush1.bf16.msra.mxu0 %v5239
  %7006 = vmatprep.subr.bf16.mxu0 0
  %7007 = vmatpush1.bf16.msra.mxu0 %v5238
  %7008 = vmatprep.subr.bf16.mxu0 0
  %7009 = vmatpush1.bf16.msra.mxu0 %v5237
  %7010 = vmatprep.subr.bf16.mxu0 0
  %7011 = vmatpush1.bf16.msra.mxu0 %v5236
  %7012 = vmatprep.subr.bf16.mxu0 0
  %7013 = vmatpush2.bf16.msra.mxu0 %v5251
  %7014 = vmatprep.subr.bf16.mxu0 0
  %7015 = vmatpush2.bf16.msra.mxu0 %v5250
  %7016 = vmatprep.subr.bf16.mxu0 0
  %7017 = vmatpush2.bf16.msra.mxu0 %v5249
  %7018 = vmatprep.subr.bf16.mxu0 0
  %7019 = vmatpush2.bf16.msra.mxu0 %v5248
  %7020 = vmatprep.subr.bf16.mxu0 0
  %7021 = vmatpush2.bf16.msra.mxu0 %v5247
  %7022 = vmatprep.subr.bf16.mxu0 0
  %7023 = vmatpush2.bf16.msra.mxu0 %v5246
  %7024 = vmatprep.subr.bf16.mxu0 0
  %7025 = vmatpush2.bf16.msra.mxu0 %v5245
  %7026 = vmatprep.subr.bf16.mxu0 0
  %7027 = vmatpush2.bf16.msra.mxu0 %v5244
  %7028 = vmatprep.mubr.bf16.mxu0 %v1793
  %7029 = vmatmul.mubr.bf16.gmra.mxu0 %v1792
  %v7030 = vpop.f32.mrf.mxu0
  %v7031 = vadd.f32 %v6991, %v7030
  %v7032 = vpop.f32.mrf.mxu0
  %v7033 = vpop.f32.mrf.mxu0
  %v7034 = vpop.f32.mrf.mxu0
  %7035 = vdwg.mxu0
  %7036 = vmatprep.subr.bf16.mxu0 0
  %7037 = vmatpush1.bf16.msra.mxu0 %v5259
  %7038 = vmatprep.subr.bf16.mxu0 0
  %7039 = vmatpush1.bf16.msra.mxu0 %v5258
  %7040 = vmatprep.subr.bf16.mxu0 0
  %7041 = vmatpush1.bf16.msra.mxu0 %v5257
  %7042 = vmatprep.subr.bf16.mxu0 0
  %7043 = vmatpush1.bf16.msra.mxu0 %v5256
  %7044 = vmatprep.subr.bf16.mxu0 0
  %7045 = vmatpush1.bf16.msra.mxu0 %v5255
  %7046 = vmatprep.subr.bf16.mxu0 0
  %7047 = vmatpush1.bf16.msra.mxu0 %v5254
  %7048 = vmatprep.subr.bf16.mxu0 0
  %7049 = vmatpush1.bf16.msra.mxu0 %v5253
  %7050 = vmatprep.subr.bf16.mxu0 0
  %7051 = vmatpush1.bf16.msra.mxu0 %v5252
  %7052 = vmatprep.subr.bf16.mxu0 0
  %7053 = vmatpush2.bf16.msra.mxu0 %v5267
  %7054 = vmatprep.subr.bf16.mxu0 0
  %7055 = vmatpush2.bf16.msra.mxu0 %v5266
  %7056 = vmatprep.subr.bf16.mxu0 0
  %7057 = vmatpush2.bf16.msra.mxu0 %v5265
  %7058 = vmatprep.subr.bf16.mxu0 0
  %7059 = vmatpush2.bf16.msra.mxu0 %v5264
  %7060 = vmatprep.subr.bf16.mxu0 0
  %7061 = vmatpush2.bf16.msra.mxu0 %v5263
  %7062 = vmatprep.subr.bf16.mxu0 0
  %7063 = vmatpush2.bf16.msra.mxu0 %v5262
  %7064 = vmatprep.subr.bf16.mxu0 0
  %7065 = vmatpush2.bf16.msra.mxu0 %v5261
  %7066 = vmatprep.subr.bf16.mxu0 0
  %7067 = vmatpush2.bf16.msra.mxu0 %v5260
  %7068 = vmatprep.mubr.bf16.mxu0 %v1795
  %7069 = vmatmul.mubr.bf16.gmra.mxu0 %v1794
  %v7070 = vpop.f32.mrf.mxu0
  %v7071 = vadd.f32 %v7031, %v7070
  %v7072 = vpop.f32.mrf.mxu0
  %v7073 = vpop.f32.mrf.mxu0
  %v7074 = vpop.f32.mrf.mxu0
  %7075 = vdwg.mxu0
  %7076 = vmatprep.subr.bf16.mxu0 0
  %7077 = vmatpush1.bf16.msra.mxu0 %v5275
  %7078 = vmatprep.subr.bf16.mxu0 0
  %7079 = vmatpush1.bf16.msra.mxu0 %v5274
  %7080 = vmatprep.subr.bf16.mxu0 0
  %7081 = vmatpush1.bf16.msra.mxu0 %v5273
  %7082 = vmatprep.subr.bf16.mxu0 0
  %7083 = vmatpush1.bf16.msra.mxu0 %v5272
  %7084 = vmatprep.subr.bf16.mxu0 0
  %7085 = vmatpush1.bf16.msra.mxu0 %v5271
  %7086 = vmatprep.subr.bf16.mxu0 0
  %7087 = vmatpush1.bf16.msra.mxu0 %v5270
  %7088 = vmatprep.subr.bf16.mxu0 0
  %7089 = vmatpush1.bf16.msra.mxu0 %v5269
  %7090 = vmatprep.subr.bf16.mxu0 0
  %7091 = vmatpush1.bf16.msra.mxu0 %v5268
  %7092 = vmatprep.subr.bf16.mxu0 0
  %7093 = vmatpush2.bf16.msra.mxu0 %v5283
  %7094 = vmatprep.subr.bf16.mxu0 0
  %7095 = vmatpush2.bf16.msra.mxu0 %v5282
  %7096 = vmatprep.subr.bf16.mxu0 0
  %7097 = vmatpush2.bf16.msra.mxu0 %v5281
  %7098 = vmatprep.subr.bf16.mxu0 0
  %7099 = vmatpush2.bf16.msra.mxu0 %v5280
  %7100 = vmatprep.subr.bf16.mxu0 0
  %7101 = vmatpush2.bf16.msra.mxu0 %v5279
  %7102 = vmatprep.subr.bf16.mxu0 0
  %7103 = vmatpush2.bf16.msra.mxu0 %v5278
  %7104 = vmatprep.subr.bf16.mxu0 0
  %7105 = vmatpush2.bf16.msra.mxu0 %v5277
  %7106 = vmatprep.subr.bf16.mxu0 0
  %7107 = vmatpush2.bf16.msra.mxu0 %v5276
  %7108 = vmatprep.mubr.bf16.mxu0 %v1797
  %7109 = vmatmul.mubr.bf16.gmra.mxu0 %v1796
  %v7110 = vpop.f32.mrf.mxu0
  %v7111 = vadd.f32 %v7071, %v7110
  %v7112 = vpop.f32.mrf.mxu0
  %v7113 = vpop.f32.mrf.mxu0
  %v7114 = vpop.f32.mrf.mxu0
  %7115 = vdwg.mxu0
  %7116 = vmatprep.subr.bf16.mxu0 0
  %7117 = vmatpush1.bf16.msra.mxu0 %v5291
  %7118 = vmatprep.subr.bf16.mxu0 0
  %7119 = vmatpush1.bf16.msra.mxu0 %v5290
  %7120 = vmatprep.subr.bf16.mxu0 0
  %7121 = vmatpush1.bf16.msra.mxu0 %v5289
  %7122 = vmatprep.subr.bf16.mxu0 0
  %7123 = vmatpush1.bf16.msra.mxu0 %v5288
  %7124 = vmatprep.subr.bf16.mxu0 0
  %7125 = vmatpush1.bf16.msra.mxu0 %v5287
  %7126 = vmatprep.subr.bf16.mxu0 0
  %7127 = vmatpush1.bf16.msra.mxu0 %v5286
  %7128 = vmatprep.subr.bf16.mxu0 0
  %7129 = vmatpush1.bf16.msra.mxu0 %v5285
  %7130 = vmatprep.subr.bf16.mxu0 0
  %7131 = vmatpush1.bf16.msra.mxu0 %v5284
  %7132 = vmatprep.subr.bf16.mxu0 0
  %7133 = vmatpush2.bf16.msra.mxu0 %v5299
  %7134 = vmatprep.subr.bf16.mxu0 0
  %7135 = vmatpush2.bf16.msra.mxu0 %v5298
  %7136 = vmatprep.subr.bf16.mxu0 0
  %7137 = vmatpush2.bf16.msra.mxu0 %v5297
  %7138 = vmatprep.subr.bf16.mxu0 0
  %7139 = vmatpush2.bf16.msra.mxu0 %v5296
  %7140 = vmatprep.subr.bf16.mxu0 0
  %7141 = vmatpush2.bf16.msra.mxu0 %v5295
  %7142 = vmatprep.subr.bf16.mxu0 0
  %7143 = vmatpush2.bf16.msra.mxu0 %v5294
  %7144 = vmatprep.subr.bf16.mxu0 0
  %7145 = vmatpush2.bf16.msra.mxu0 %v5293
  %7146 = vmatprep.subr.bf16.mxu0 0
  %7147 = vmatpush2.bf16.msra.mxu0 %v5292
  %7148 = vmatprep.mubr.bf16.mxu0 %v1799
  %7149 = vmatmul.mubr.bf16.gmra.mxu0 %v1798
  %v7150 = vpop.f32.mrf.mxu0
  %v7151 = vadd.f32 %v7111, %v7150
  %v7152 = vpop.f32.mrf.mxu0
  %v7153 = vpop.f32.mrf.mxu0
  %v7154 = vpop.f32.mrf.mxu0
  %7155 = vdwg.mxu0
  %7156 = vmatprep.subr.bf16.mxu0 0
  %7157 = vmatpush1.bf16.msra.mxu0 %v5307
  %7158 = vmatprep.subr.bf16.mxu0 0
  %7159 = vmatpush1.bf16.msra.mxu0 %v5306
  %7160 = vmatprep.subr.bf16.mxu0 0
  %7161 = vmatpush1.bf16.msra.mxu0 %v5305
  %7162 = vmatprep.subr.bf16.mxu0 0
  %7163 = vmatpush1.bf16.msra.mxu0 %v5304
  %7164 = vmatprep.subr.bf16.mxu0 0
  %7165 = vmatpush1.bf16.msra.mxu0 %v5303
  %7166 = vmatprep.subr.bf16.mxu0 0
  %7167 = vmatpush1.bf16.msra.mxu0 %v5302
  %7168 = vmatprep.subr.bf16.mxu0 0
  %7169 = vmatpush1.bf16.msra.mxu0 %v5301
  %7170 = vmatprep.subr.bf16.mxu0 0
  %7171 = vmatpush1.bf16.msra.mxu0 %v5300
  %7172 = vmatprep.subr.bf16.mxu0 0
  %7173 = vmatpush2.bf16.msra.mxu0 %v5315
  %7174 = vmatprep.subr.bf16.mxu0 0
  %7175 = vmatpush2.bf16.msra.mxu0 %v5314
  %7176 = vmatprep.subr.bf16.mxu0 0
  %7177 = vmatpush2.bf16.msra.mxu0 %v5313
  %7178 = vmatprep.subr.bf16.mxu0 0
  %7179 = vmatpush2.bf16.msra.mxu0 %v5312
  %7180 = vmatprep.subr.bf16.mxu0 0
  %7181 = vmatpush2.bf16.msra.mxu0 %v5311
  %7182 = vmatprep.subr.bf16.mxu0 0
  %7183 = vmatpush2.bf16.msra.mxu0 %v5310
  %7184 = vmatprep.subr.bf16.mxu0 0
  %7185 = vmatpush2.bf16.msra.mxu0 %v5309
  %7186 = vmatprep.subr.bf16.mxu0 0
  %7187 = vmatpush2.bf16.msra.mxu0 %v5308
  %7188 = vmatprep.mubr.bf16.mxu0 %v1801
  %7189 = vmatmul.mubr.bf16.gmra.mxu0 %v1800
  %v7190 = vpop.f32.mrf.mxu0
  %v7191 = vadd.f32 %v7151, %v7190
  %v7192 = vpop.f32.mrf.mxu0
  %v7193 = vpop.f32.mrf.mxu0
  %v7194 = vpop.f32.mrf.mxu0
  %7195 = vdwg.mxu0
  %7196 = vmatprep.subr.bf16.mxu0 0
  %7197 = vmatpush1.bf16.msra.mxu0 %v5323
  %7198 = vmatprep.subr.bf16.mxu0 0
  %7199 = vmatpush1.bf16.msra.mxu0 %v5322
  %7200 = vmatprep.subr.bf16.mxu0 0
  %7201 = vmatpush1.bf16.msra.mxu0 %v5321
  %7202 = vmatprep.subr.bf16.mxu0 0
  %7203 = vmatpush1.bf16.msra.mxu0 %v5320
  %7204 = vmatprep.subr.bf16.mxu0 0
  %7205 = vmatpush1.bf16.msra.mxu0 %v5319
  %7206 = vmatprep.subr.bf16.mxu0 0
  %7207 = vmatpush1.bf16.msra.mxu0 %v5318
  %7208 = vmatprep.subr.bf16.mxu0 0
  %7209 = vmatpush1.bf16.msra.mxu0 %v5317
  %7210 = vmatprep.subr.bf16.mxu0 0
  %7211 = vmatpush1.bf16.msra.mxu0 %v5316
  %7212 = vmatprep.subr.bf16.mxu0 0
  %7213 = vmatpush2.bf16.msra.mxu0 %v5331
  %7214 = vmatprep.subr.bf16.mxu0 0
  %7215 = vmatpush2.bf16.msra.mxu0 %v5330
  %7216 = vmatprep.subr.bf16.mxu0 0
  %7217 = vmatpush2.bf16.msra.mxu0 %v5329
  %7218 = vmatprep.subr.bf16.mxu0 0
  %7219 = vmatpush2.bf16.msra.mxu0 %v5328
  %7220 = vmatprep.subr.bf16.mxu0 0
  %7221 = vmatpush2.bf16.msra.mxu0 %v5327
  %7222 = vmatprep.subr.bf16.mxu0 0
  %7223 = vmatpush2.bf16.msra.mxu0 %v5326
  %7224 = vmatprep.subr.bf16.mxu0 0
  %7225 = vmatpush2.bf16.msra.mxu0 %v5325
  %7226 = vmatprep.subr.bf16.mxu0 0
  %7227 = vmatpush2.bf16.msra.mxu0 %v5324
  %7228 = vmatprep.mubr.bf16.mxu0 %v1803
  %7229 = vmatmul.mubr.bf16.gmra.mxu0 %v1802
  %v7230 = vpop.f32.mrf.mxu0
  %v7231 = vadd.f32 %v7191, %v7230
  %v7232 = vpop.f32.mrf.mxu0
  %v7233 = vpop.f32.mrf.mxu0
  %v7234 = vpop.f32.mrf.mxu0
  %7235 = vdwg.mxu0
  %7236 = vmatprep.subr.bf16.mxu0 0
  %7237 = vmatpush1.bf16.msra.mxu0 %v5339
  %7238 = vmatprep.subr.bf16.mxu0 0
  %7239 = vmatpush1.bf16.msra.mxu0 %v5338
  %7240 = vmatprep.subr.bf16.mxu0 0
  %7241 = vmatpush1.bf16.msra.mxu0 %v5337
  %7242 = vmatprep.subr.bf16.mxu0 0
  %7243 = vmatpush1.bf16.msra.mxu0 %v5336
  %7244 = vmatprep.subr.bf16.mxu0 0
  %7245 = vmatpush1.bf16.msra.mxu0 %v5335
  %7246 = vmatprep.subr.bf16.mxu0 0
  %7247 = vmatpush1.bf16.msra.mxu0 %v5334
  %7248 = vmatprep.subr.bf16.mxu0 0
  %7249 = vmatpush1.bf16.msra.mxu0 %v5333
  %7250 = vmatprep.subr.bf16.mxu0 0
  %7251 = vmatpush1.bf16.msra.mxu0 %v5332
  %7252 = vmatprep.subr.bf16.mxu0 0
  %7253 = vmatpush2.bf16.msra.mxu0 %v5347
  %7254 = vmatprep.subr.bf16.mxu0 0
  %7255 = vmatpush2.bf16.msra.mxu0 %v5346
  %7256 = vmatprep.subr.bf16.mxu0 0
  %7257 = vmatpush2.bf16.msra.mxu0 %v5345
  %7258 = vmatprep.subr.bf16.mxu0 0
  %7259 = vmatpush2.bf16.msra.mxu0 %v5344
  %7260 = vmatprep.subr.bf16.mxu0 0
  %7261 = vmatpush2.bf16.msra.mxu0 %v5343
  %7262 = vmatprep.subr.bf16.mxu0 0
  %7263 = vmatpush2.bf16.msra.mxu0 %v5342
  %7264 = vmatprep.subr.bf16.mxu0 0
  %7265 = vmatpush2.bf16.msra.mxu0 %v5341
  %7266 = vmatprep.subr.bf16.mxu0 0
  %7267 = vmatpush2.bf16.msra.mxu0 %v5340
  %7268 = vmatprep.mubr.bf16.mxu0 %v1805
  %7269 = vmatmul.mubr.bf16.gmra.mxu0 %v1804
  %v7270 = vpop.f32.mrf.mxu0
  %v7271 = vadd.f32 %v7231, %v7270
  %v7272 = vpop.f32.mrf.mxu0
  %v7273 = vpop.f32.mrf.mxu0
  %v7274 = vpop.f32.mrf.mxu0
  %7275 = vdwg.mxu0
  %7276 = vmatprep.subr.bf16.mxu0 0
  %7277 = vmatpush1.bf16.msra.mxu0 %v5355
  %7278 = vmatprep.subr.bf16.mxu0 0
  %7279 = vmatpush1.bf16.msra.mxu0 %v5354
  %7280 = vmatprep.subr.bf16.mxu0 0
  %7281 = vmatpush1.bf16.msra.mxu0 %v5353
  %7282 = vmatprep.subr.bf16.mxu0 0
  %7283 = vmatpush1.bf16.msra.mxu0 %v5352
  %7284 = vmatprep.subr.bf16.mxu0 0
  %7285 = vmatpush1.bf16.msra.mxu0 %v5351
  %7286 = vmatprep.subr.bf16.mxu0 0
  %7287 = vmatpush1.bf16.msra.mxu0 %v5350
  %7288 = vmatprep.subr.bf16.mxu0 0
  %7289 = vmatpush1.bf16.msra.mxu0 %v5349
  %7290 = vmatprep.subr.bf16.mxu0 0
  %7291 = vmatpush1.bf16.msra.mxu0 %v5348
  %7292 = vmatprep.subr.bf16.mxu0 0
  %7293 = vmatpush2.bf16.msra.mxu0 %v5363
  %7294 = vmatprep.subr.bf16.mxu0 0
  %7295 = vmatpush2.bf16.msra.mxu0 %v5362
  %7296 = vmatprep.subr.bf16.mxu0 0
  %7297 = vmatpush2.bf16.msra.mxu0 %v5361
  %7298 = vmatprep.subr.bf16.mxu0 0
  %7299 = vmatpush2.bf16.msra.mxu0 %v5360
  %7300 = vmatprep.subr.bf16.mxu0 0
  %7301 = vmatpush2.bf16.msra.mxu0 %v5359
  %7302 = vmatprep.subr.bf16.mxu0 0
  %7303 = vmatpush2.bf16.msra.mxu0 %v5358
  %7304 = vmatprep.subr.bf16.mxu0 0
  %7305 = vmatpush2.bf16.msra.mxu0 %v5357
  %7306 = vmatprep.subr.bf16.mxu0 0
  %7307 = vmatpush2.bf16.msra.mxu0 %v5356
  %7308 = vmatprep.mubr.bf16.mxu0 %v1807
  %7309 = vmatmul.mubr.bf16.gmra.mxu0 %v1806
  %v7310 = vpop.f32.mrf.mxu0
  %v7311 = vadd.f32 %v7271, %v7310
  %v7312 = vpop.f32.mrf.mxu0
  %v7313 = vpop.f32.mrf.mxu0
  %v7314 = vpop.f32.mrf.mxu0
  %7315 = vdwg.mxu0
  %7316 = vmatprep.subr.bf16.mxu0 0
  %7317 = vmatpush1.bf16.msra.mxu0 %v5371
  %7318 = vmatprep.subr.bf16.mxu0 0
  %7319 = vmatpush1.bf16.msra.mxu0 %v5370
  %7320 = vmatprep.subr.bf16.mxu0 0
  %7321 = vmatpush1.bf16.msra.mxu0 %v5369
  %7322 = vmatprep.subr.bf16.mxu0 0
  %7323 = vmatpush1.bf16.msra.mxu0 %v5368
  %7324 = vmatprep.subr.bf16.mxu0 0
  %7325 = vmatpush1.bf16.msra.mxu0 %v5367
  %7326 = vmatprep.subr.bf16.mxu0 0
  %7327 = vmatpush1.bf16.msra.mxu0 %v5366
  %7328 = vmatprep.subr.bf16.mxu0 0
  %7329 = vmatpush1.bf16.msra.mxu0 %v5365
  %7330 = vmatprep.subr.bf16.mxu0 0
  %7331 = vmatpush1.bf16.msra.mxu0 %v5364
  %7332 = vmatprep.subr.bf16.mxu0 0
  %7333 = vmatpush2.bf16.msra.mxu0 %v5379
  %7334 = vmatprep.subr.bf16.mxu0 0
  %7335 = vmatpush2.bf16.msra.mxu0 %v5378
  %7336 = vmatprep.subr.bf16.mxu0 0
  %7337 = vmatpush2.bf16.msra.mxu0 %v5377
  %7338 = vmatprep.subr.bf16.mxu0 0
  %7339 = vmatpush2.bf16.msra.mxu0 %v5376
  %7340 = vmatprep.subr.bf16.mxu0 0
  %7341 = vmatpush2.bf16.msra.mxu0 %v5375
  %7342 = vmatprep.subr.bf16.mxu0 0
  %7343 = vmatpush2.bf16.msra.mxu0 %v5374
  %7344 = vmatprep.subr.bf16.mxu0 0
  %7345 = vmatpush2.bf16.msra.mxu0 %v5373
  %7346 = vmatprep.subr.bf16.mxu0 0
  %7347 = vmatpush2.bf16.msra.mxu0 %v5372
  %7348 = vmatprep.mubr.bf16.mxu0 %v1809
  %7349 = vmatmul.mubr.bf16.gmra.mxu0 %v1808
  %v7350 = vpop.f32.mrf.mxu0
  %v7351 = vadd.f32 %v7311, %v7350
  %v7352 = vpop.f32.mrf.mxu0
  %v7353 = vpop.f32.mrf.mxu0
  %v7354 = vpop.f32.mrf.mxu0
  %7355 = vdwg.mxu0
  %7356 = vmatprep.subr.bf16.mxu0 0
  %7357 = vmatpush1.bf16.msra.mxu0 %v5387
  %7358 = vmatprep.subr.bf16.mxu0 0
  %7359 = vmatpush1.bf16.msra.mxu0 %v5386
  %7360 = vmatprep.subr.bf16.mxu0 0
  %7361 = vmatpush1.bf16.msra.mxu0 %v5385
  %7362 = vmatprep.subr.bf16.mxu0 0
  %7363 = vmatpush1.bf16.msra.mxu0 %v5384
  %7364 = vmatprep.subr.bf16.mxu0 0
  %7365 = vmatpush1.bf16.msra.mxu0 %v5383
  %7366 = vmatprep.subr.bf16.mxu0 0
  %7367 = vmatpush1.bf16.msra.mxu0 %v5382
  %7368 = vmatprep.subr.bf16.mxu0 0
  %7369 = vmatpush1.bf16.msra.mxu0 %v5381
  %7370 = vmatprep.subr.bf16.mxu0 0
  %7371 = vmatpush1.bf16.msra.mxu0 %v5380
  %7372 = vmatprep.subr.bf16.mxu0 0
  %7373 = vmatpush2.bf16.msra.mxu0 %v5395
  %7374 = vmatprep.subr.bf16.mxu0 0
  %7375 = vmatpush2.bf16.msra.mxu0 %v5394
  %7376 = vmatprep.subr.bf16.mxu0 0
  %7377 = vmatpush2.bf16.msra.mxu0 %v5393
  %7378 = vmatprep.subr.bf16.mxu0 0
  %7379 = vmatpush2.bf16.msra.mxu0 %v5392
  %7380 = vmatprep.subr.bf16.mxu0 0
  %7381 = vmatpush2.bf16.msra.mxu0 %v5391
  %7382 = vmatprep.subr.bf16.mxu0 0
  %7383 = vmatpush2.bf16.msra.mxu0 %v5390
  %7384 = vmatprep.subr.bf16.mxu0 0
  %7385 = vmatpush2.bf16.msra.mxu0 %v5389
  %7386 = vmatprep.subr.bf16.mxu0 0
  %7387 = vmatpush2.bf16.msra.mxu0 %v5388
  %7388 = vmatprep.mubr.bf16.mxu0 %v1811
  %7389 = vmatmul.mubr.bf16.gmra.mxu0 %v1810
  %v7390 = vpop.f32.mrf.mxu0
  %v7391 = vadd.f32 %v7351, %v7390
  %v7392 = vpop.f32.mrf.mxu0
  %v7393 = vpop.f32.mrf.mxu0
  %v7394 = vpop.f32.mrf.mxu0
  %7395 = vdwg.mxu0
  %7396 = vmatprep.subr.bf16.mxu0 0
  %7397 = vmatpush1.bf16.msra.mxu0 %v5403
  %7398 = vmatprep.subr.bf16.mxu0 0
  %7399 = vmatpush1.bf16.msra.mxu0 %v5402
  %7400 = vmatprep.subr.bf16.mxu0 0
  %7401 = vmatpush1.bf16.msra.mxu0 %v5401
  %7402 = vmatprep.subr.bf16.mxu0 0
  %7403 = vmatpush1.bf16.msra.mxu0 %v5400
  %7404 = vmatprep.subr.bf16.mxu0 0
  %7405 = vmatpush1.bf16.msra.mxu0 %v5399
  %7406 = vmatprep.subr.bf16.mxu0 0
  %7407 = vmatpush1.bf16.msra.mxu0 %v5398
  %7408 = vmatprep.subr.bf16.mxu0 0
  %7409 = vmatpush1.bf16.msra.mxu0 %v5397
  %7410 = vmatprep.subr.bf16.mxu0 0
  %7411 = vmatpush1.bf16.msra.mxu0 %v5396
  %7412 = vmatprep.subr.bf16.mxu0 0
  %7413 = vmatpush2.bf16.msra.mxu0 %v5411
  %7414 = vmatprep.subr.bf16.mxu0 0
  %7415 = vmatpush2.bf16.msra.mxu0 %v5410
  %7416 = vmatprep.subr.bf16.mxu0 0
  %7417 = vmatpush2.bf16.msra.mxu0 %v5409
  %7418 = vmatprep.subr.bf16.mxu0 0
  %7419 = vmatpush2.bf16.msra.mxu0 %v5408
  %7420 = vmatprep.subr.bf16.mxu0 0
  %7421 = vmatpush2.bf16.msra.mxu0 %v5407
  %7422 = vmatprep.subr.bf16.mxu0 0
  %7423 = vmatpush2.bf16.msra.mxu0 %v5406
  %7424 = vmatprep.subr.bf16.mxu0 0
  %7425 = vmatpush2.bf16.msra.mxu0 %v5405
  %7426 = vmatprep.subr.bf16.mxu0 0
  %7427 = vmatpush2.bf16.msra.mxu0 %v5404
  %7428 = vmatprep.mubr.bf16.mxu0 %v1813
  %7429 = vmatmul.mubr.bf16.gmra.mxu0 %v1812
  %v7430 = vpop.f32.mrf.mxu0
  %v7431 = vadd.f32 %v7391, %v7430
  %v7432 = vpop.f32.mrf.mxu0
  %v7433 = vpop.f32.mrf.mxu0
  %v7434 = vpop.f32.mrf.mxu0
  %7435 = vdwg.mxu0
  %7436 = vmatprep.subr.bf16.mxu0 0
  %7437 = vmatpush1.bf16.msra.mxu0 %v5419
  %7438 = vmatprep.subr.bf16.mxu0 0
  %7439 = vmatpush1.bf16.msra.mxu0 %v5418
  %7440 = vmatprep.subr.bf16.mxu0 0
  %7441 = vmatpush1.bf16.msra.mxu0 %v5417
  %7442 = vmatprep.subr.bf16.mxu0 0
  %7443 = vmatpush1.bf16.msra.mxu0 %v5416
  %7444 = vmatprep.subr.bf16.mxu0 0
  %7445 = vmatpush1.bf16.msra.mxu0 %v5415
  %7446 = vmatprep.subr.bf16.mxu0 0
  %7447 = vmatpush1.bf16.msra.mxu0 %v5414
  %7448 = vmatprep.subr.bf16.mxu0 0
  %7449 = vmatpush1.bf16.msra.mxu0 %v5413
  %7450 = vmatprep.subr.bf16.mxu0 0
  %7451 = vmatpush1.bf16.msra.mxu0 %v5412
  %7452 = vmatprep.subr.bf16.mxu0 0
  %7453 = vmatpush2.bf16.msra.mxu0 %v5427
  %7454 = vmatprep.subr.bf16.mxu0 0
  %7455 = vmatpush2.bf16.msra.mxu0 %v5426
  %7456 = vmatprep.subr.bf16.mxu0 0
  %7457 = vmatpush2.bf16.msra.mxu0 %v5425
  %7458 = vmatprep.subr.bf16.mxu0 0
  %7459 = vmatpush2.bf16.msra.mxu0 %v5424
  %7460 = vmatprep.subr.bf16.mxu0 0
  %7461 = vmatpush2.bf16.msra.mxu0 %v5423
  %7462 = vmatprep.subr.bf16.mxu0 0
  %7463 = vmatpush2.bf16.msra.mxu0 %v5422
  %7464 = vmatprep.subr.bf16.mxu0 0
  %7465 = vmatpush2.bf16.msra.mxu0 %v5421
  %7466 = vmatprep.subr.bf16.mxu0 0
  %7467 = vmatpush2.bf16.msra.mxu0 %v5420
  %7468 = vmatprep.mubr.bf16.mxu0 %v1815
  %7469 = vmatmul.mubr.bf16.gmra.mxu0 %v1814
  %v7470 = vpop.f32.mrf.mxu0
  %v7471 = vadd.f32 %v7431, %v7470
  %v7472 = vpop.f32.mrf.mxu0
  %v7473 = vpop.f32.mrf.mxu0
  %v7474 = vpop.f32.mrf.mxu0
  %7475 = vdwg.mxu0
  %7476 = vmatprep.subr.bf16.mxu0 0
  %7477 = vmatpush1.bf16.msra.mxu0 %v5435
  %7478 = vmatprep.subr.bf16.mxu0 0
  %7479 = vmatpush1.bf16.msra.mxu0 %v5434
  %7480 = vmatprep.subr.bf16.mxu0 0
  %7481 = vmatpush1.bf16.msra.mxu0 %v5433
  %7482 = vmatprep.subr.bf16.mxu0 0
  %7483 = vmatpush1.bf16.msra.mxu0 %v5432
  %7484 = vmatprep.subr.bf16.mxu0 0
  %7485 = vmatpush1.bf16.msra.mxu0 %v5431
  %7486 = vmatprep.subr.bf16.mxu0 0
  %7487 = vmatpush1.bf16.msra.mxu0 %v5430
  %7488 = vmatprep.subr.bf16.mxu0 0
  %7489 = vmatpush1.bf16.msra.mxu0 %v5429
  %7490 = vmatprep.subr.bf16.mxu0 0
  %7491 = vmatpush1.bf16.msra.mxu0 %v5428
  %7492 = vmatprep.subr.bf16.mxu0 0
  %7493 = vmatpush2.bf16.msra.mxu0 %v5443
  %7494 = vmatprep.subr.bf16.mxu0 0
  %7495 = vmatpush2.bf16.msra.mxu0 %v5442
  %7496 = vmatprep.subr.bf16.mxu0 0
  %7497 = vmatpush2.bf16.msra.mxu0 %v5441
  %7498 = vmatprep.subr.bf16.mxu0 0
  %7499 = vmatpush2.bf16.msra.mxu0 %v5440
  %7500 = vmatprep.subr.bf16.mxu0 0
  %7501 = vmatpush2.bf16.msra.mxu0 %v5439
  %7502 = vmatprep.subr.bf16.mxu0 0
  %7503 = vmatpush2.bf16.msra.mxu0 %v5438
  %7504 = vmatprep.subr.bf16.mxu0 0
  %7505 = vmatpush2.bf16.msra.mxu0 %v5437
  %7506 = vmatprep.subr.bf16.mxu0 0
  %7507 = vmatpush2.bf16.msra.mxu0 %v5436
  %7508 = vmatprep.mubr.bf16.mxu0 %v1817
  %7509 = vmatmul.mubr.bf16.gmra.mxu0 %v1816
  %v7510 = vpop.f32.mrf.mxu0
  %v7511 = vadd.f32 %v7471, %v7510
  %v7512 = vpop.f32.mrf.mxu0
  %v7513 = vpop.f32.mrf.mxu0
  %v7514 = vpop.f32.mrf.mxu0
  %7515 = vdwg.mxu0
  %7516 = vmatprep.subr.bf16.mxu0 0
  %7517 = vmatpush1.bf16.msra.mxu0 %v5451
  %7518 = vmatprep.subr.bf16.mxu0 0
  %7519 = vmatpush1.bf16.msra.mxu0 %v5450
  %7520 = vmatprep.subr.bf16.mxu0 0
  %7521 = vmatpush1.bf16.msra.mxu0 %v5449
  %7522 = vmatprep.subr.bf16.mxu0 0
  %7523 = vmatpush1.bf16.msra.mxu0 %v5448
  %7524 = vmatprep.subr.bf16.mxu0 0
  %7525 = vmatpush1.bf16.msra.mxu0 %v5447
  %7526 = vmatprep.subr.bf16.mxu0 0
  %7527 = vmatpush1.bf16.msra.mxu0 %v5446
  %7528 = vmatprep.subr.bf16.mxu0 0
  %7529 = vmatpush1.bf16.msra.mxu0 %v5445
  %7530 = vmatprep.subr.bf16.mxu0 0
  %7531 = vmatpush1.bf16.msra.mxu0 %v5444
  %7532 = vmatprep.subr.bf16.mxu0 0
  %7533 = vmatpush2.bf16.msra.mxu0 %v5459
  %7534 = vmatprep.subr.bf16.mxu0 0
  %7535 = vmatpush2.bf16.msra.mxu0 %v5458
  %7536 = vmatprep.subr.bf16.mxu0 0
  %7537 = vmatpush2.bf16.msra.mxu0 %v5457
  %7538 = vmatprep.subr.bf16.mxu0 0
  %7539 = vmatpush2.bf16.msra.mxu0 %v5456
  %7540 = vmatprep.subr.bf16.mxu0 0
  %7541 = vmatpush2.bf16.msra.mxu0 %v5455
  %7542 = vmatprep.subr.bf16.mxu0 0
  %7543 = vmatpush2.bf16.msra.mxu0 %v5454
  %7544 = vmatprep.subr.bf16.mxu0 0
  %7545 = vmatpush2.bf16.msra.mxu0 %v5453
  %7546 = vmatprep.subr.bf16.mxu0 0
  %7547 = vmatpush2.bf16.msra.mxu0 %v5452
  %7548 = vmatprep.mubr.bf16.mxu0 %v1819
  %7549 = vmatmul.mubr.bf16.gmra.mxu0 %v1818
  %v7550 = vpop.f32.mrf.mxu0
  %v7551 = vadd.f32 %v7511, %v7550
  %v7552 = vpop.f32.mrf.mxu0
  %v7553 = vpop.f32.mrf.mxu0
  %v7554 = vpop.f32.mrf.mxu0
  %7555 = vdwg.mxu0
  %7556 = vmatprep.subr.bf16.mxu0 0
  %7557 = vmatpush1.bf16.msra.mxu0 %v5467
  %7558 = vmatprep.subr.bf16.mxu0 0
  %7559 = vmatpush1.bf16.msra.mxu0 %v5466
  %7560 = vmatprep.subr.bf16.mxu0 0
  %7561 = vmatpush1.bf16.msra.mxu0 %v5465
  %7562 = vmatprep.subr.bf16.mxu0 0
  %7563 = vmatpush1.bf16.msra.mxu0 %v5464
  %7564 = vmatprep.subr.bf16.mxu0 0
  %7565 = vmatpush1.bf16.msra.mxu0 %v5463
  %7566 = vmatprep.subr.bf16.mxu0 0
  %7567 = vmatpush1.bf16.msra.mxu0 %v5462
  %7568 = vmatprep.subr.bf16.mxu0 0
  %7569 = vmatpush1.bf16.msra.mxu0 %v5461
  %7570 = vmatprep.subr.bf16.mxu0 0
  %7571 = vmatpush1.bf16.msra.mxu0 %v5460
  %7572 = vmatprep.subr.bf16.mxu0 0
  %7573 = vmatpush2.bf16.msra.mxu0 %v5475
  %7574 = vmatprep.subr.bf16.mxu0 0
  %7575 = vmatpush2.bf16.msra.mxu0 %v5474
  %7576 = vmatprep.subr.bf16.mxu0 0
  %7577 = vmatpush2.bf16.msra.mxu0 %v5473
  %7578 = vmatprep.subr.bf16.mxu0 0
  %7579 = vmatpush2.bf16.msra.mxu0 %v5472
  %7580 = vmatprep.subr.bf16.mxu0 0
  %7581 = vmatpush2.bf16.msra.mxu0 %v5471
  %7582 = vmatprep.subr.bf16.mxu0 0
  %7583 = vmatpush2.bf16.msra.mxu0 %v5470
  %7584 = vmatprep.subr.bf16.mxu0 0
  %7585 = vmatpush2.bf16.msra.mxu0 %v5469
  %7586 = vmatprep.subr.bf16.mxu0 0
  %7587 = vmatpush2.bf16.msra.mxu0 %v5468
  %7588 = vmatprep.mubr.bf16.mxu0 %v1821
  %7589 = vmatmul.mubr.bf16.gmra.mxu0 %v1820
  %v7590 = vpop.f32.mrf.mxu0
  %v7591 = vadd.f32 %v7551, %v7590
  %v7592 = vpop.f32.mrf.mxu0
  %v7593 = vpop.f32.mrf.mxu0
  %v7594 = vpop.f32.mrf.mxu0
  %7595 = vdwg.mxu0
  %7596 = vmatprep.subr.bf16.mxu0 0
  %7597 = vmatpush1.bf16.msra.mxu0 %v5483
  %7598 = vmatprep.subr.bf16.mxu0 0
  %7599 = vmatpush1.bf16.msra.mxu0 %v5482
  %7600 = vmatprep.subr.bf16.mxu0 0
  %7601 = vmatpush1.bf16.msra.mxu0 %v5481
  %7602 = vmatprep.subr.bf16.mxu0 0
  %7603 = vmatpush1.bf16.msra.mxu0 %v5480
  %7604 = vmatprep.subr.bf16.mxu0 0
  %7605 = vmatpush1.bf16.msra.mxu0 %v5479
  %7606 = vmatprep.subr.bf16.mxu0 0
  %7607 = vmatpush1.bf16.msra.mxu0 %v5478
  %7608 = vmatprep.subr.bf16.mxu0 0
  %7609 = vmatpush1.bf16.msra.mxu0 %v5477
  %7610 = vmatprep.subr.bf16.mxu0 0
  %7611 = vmatpush1.bf16.msra.mxu0 %v5476
  %7612 = vmatprep.subr.bf16.mxu0 0
  %7613 = vmatpush2.bf16.msra.mxu0 %v5491
  %7614 = vmatprep.subr.bf16.mxu0 0
  %7615 = vmatpush2.bf16.msra.mxu0 %v5490
  %7616 = vmatprep.subr.bf16.mxu0 0
  %7617 = vmatpush2.bf16.msra.mxu0 %v5489
  %7618 = vmatprep.subr.bf16.mxu0 0
  %7619 = vmatpush2.bf16.msra.mxu0 %v5488
  %7620 = vmatprep.subr.bf16.mxu0 0
  %7621 = vmatpush2.bf16.msra.mxu0 %v5487
  %7622 = vmatprep.subr.bf16.mxu0 0
  %7623 = vmatpush2.bf16.msra.mxu0 %v5486
  %7624 = vmatprep.subr.bf16.mxu0 0
  %7625 = vmatpush2.bf16.msra.mxu0 %v5485
  %7626 = vmatprep.subr.bf16.mxu0 0
  %7627 = vmatpush2.bf16.msra.mxu0 %v5484
  %7628 = vmatprep.mubr.bf16.mxu0 %v1823
  %7629 = vmatmul.mubr.bf16.gmra.mxu0 %v1822
  %v7630 = vpop.f32.mrf.mxu0
  %v7631 = vadd.f32 %v7591, %v7630
  %v7632 = vpop.f32.mrf.mxu0
  %v7633 = vpop.f32.mrf.mxu0
  %v7634 = vpop.f32.mrf.mxu0
  %7635 = vdwg.mxu0
  %7636 = vmatprep.subr.bf16.mxu0 0
  %7637 = vmatpush1.bf16.msra.mxu0 %v5499
  %7638 = vmatprep.subr.bf16.mxu0 0
  %7639 = vmatpush1.bf16.msra.mxu0 %v5498
  %7640 = vmatprep.subr.bf16.mxu0 0
  %7641 = vmatpush1.bf16.msra.mxu0 %v5497
  %7642 = vmatprep.subr.bf16.mxu0 0
  %7643 = vmatpush1.bf16.msra.mxu0 %v5496
  %7644 = vmatprep.subr.bf16.mxu0 0
  %7645 = vmatpush1.bf16.msra.mxu0 %v5495
  %7646 = vmatprep.subr.bf16.mxu0 0
  %7647 = vmatpush1.bf16.msra.mxu0 %v5494
  %7648 = vmatprep.subr.bf16.mxu0 0
  %7649 = vmatpush1.bf16.msra.mxu0 %v5493
  %7650 = vmatprep.subr.bf16.mxu0 0
  %7651 = vmatpush1.bf16.msra.mxu0 %v5492
  %7652 = vmatprep.subr.bf16.mxu0 0
  %7653 = vmatpush2.bf16.msra.mxu0 %v5507
  %7654 = vmatprep.subr.bf16.mxu0 0
  %7655 = vmatpush2.bf16.msra.mxu0 %v5506
  %7656 = vmatprep.subr.bf16.mxu0 0
  %7657 = vmatpush2.bf16.msra.mxu0 %v5505
  %7658 = vmatprep.subr.bf16.mxu0 0
  %7659 = vmatpush2.bf16.msra.mxu0 %v5504
  %7660 = vmatprep.subr.bf16.mxu0 0
  %7661 = vmatpush2.bf16.msra.mxu0 %v5503
  %7662 = vmatprep.subr.bf16.mxu0 0
  %7663 = vmatpush2.bf16.msra.mxu0 %v5502
  %7664 = vmatprep.subr.bf16.mxu0 0
  %7665 = vmatpush2.bf16.msra.mxu0 %v5501
  %7666 = vmatprep.subr.bf16.mxu0 0
  %7667 = vmatpush2.bf16.msra.mxu0 %v5500
  %7668 = vmatprep.mubr.bf16.mxu0 %v1825
  %7669 = vmatmul.mubr.bf16.gmra.mxu0 %v1824
  %v7670 = vpop.f32.mrf.mxu0
  %v7671 = vadd.f32 %v7631, %v7670
  %v7672 = vpop.f32.mrf.mxu0
  %v7673 = vpop.f32.mrf.mxu0
  %v7674 = vpop.f32.mrf.mxu0
  %7675 = vdwg.mxu0
  %7676 = vmatprep.subr.bf16.mxu0 0
  %7677 = vmatpush1.bf16.msra.mxu0 %v5515
  %7678 = vmatprep.subr.bf16.mxu0 0
  %7679 = vmatpush1.bf16.msra.mxu0 %v5514
  %7680 = vmatprep.subr.bf16.mxu0 0
  %7681 = vmatpush1.bf16.msra.mxu0 %v5513
  %7682 = vmatprep.subr.bf16.mxu0 0
  %7683 = vmatpush1.bf16.msra.mxu0 %v5512
  %7684 = vmatprep.subr.bf16.mxu0 0
  %7685 = vmatpush1.bf16.msra.mxu0 %v5511
  %7686 = vmatprep.subr.bf16.mxu0 0
  %7687 = vmatpush1.bf16.msra.mxu0 %v5510
  %7688 = vmatprep.subr.bf16.mxu0 0
  %7689 = vmatpush1.bf16.msra.mxu0 %v5509
  %7690 = vmatprep.subr.bf16.mxu0 0
  %7691 = vmatpush1.bf16.msra.mxu0 %v5508
  %7692 = vmatprep.subr.bf16.mxu0 0
  %7693 = vmatpush2.bf16.msra.mxu0 %v5523
  %7694 = vmatprep.subr.bf16.mxu0 0
  %7695 = vmatpush2.bf16.msra.mxu0 %v5522
  %7696 = vmatprep.subr.bf16.mxu0 0
  %7697 = vmatpush2.bf16.msra.mxu0 %v5521
  %7698 = vmatprep.subr.bf16.mxu0 0
  %7699 = vmatpush2.bf16.msra.mxu0 %v5520
  %7700 = vmatprep.subr.bf16.mxu0 0
  %7701 = vmatpush2.bf16.msra.mxu0 %v5519
  %7702 = vmatprep.subr.bf16.mxu0 0
  %7703 = vmatpush2.bf16.msra.mxu0 %v5518
  %7704 = vmatprep.subr.bf16.mxu0 0
  %7705 = vmatpush2.bf16.msra.mxu0 %v5517
  %7706 = vmatprep.subr.bf16.mxu0 0
  %7707 = vmatpush2.bf16.msra.mxu0 %v5516
  %7708 = vmatprep.mubr.bf16.mxu0 %v1827
  %7709 = vmatmul.mubr.bf16.gmra.mxu0 %v1826
  %v7710 = vpop.f32.mrf.mxu0
  %v7711 = vadd.f32 %v7671, %v7710
  %v7712 = vpop.f32.mrf.mxu0
  %v7713 = vpop.f32.mrf.mxu0
  %v7714 = vpop.f32.mrf.mxu0
  %7715 = vdwg.mxu0
  %7716 = vmatprep.subr.bf16.mxu0 0
  %7717 = vmatpush1.bf16.msra.mxu0 %v5531
  %7718 = vmatprep.subr.bf16.mxu0 0
  %7719 = vmatpush1.bf16.msra.mxu0 %v5530
  %7720 = vmatprep.subr.bf16.mxu0 0
  %7721 = vmatpush1.bf16.msra.mxu0 %v5529
  %7722 = vmatprep.subr.bf16.mxu0 0
  %7723 = vmatpush1.bf16.msra.mxu0 %v5528
  %7724 = vmatprep.subr.bf16.mxu0 0
  %7725 = vmatpush1.bf16.msra.mxu0 %v5527
  %7726 = vmatprep.subr.bf16.mxu0 0
  %7727 = vmatpush1.bf16.msra.mxu0 %v5526
  %7728 = vmatprep.subr.bf16.mxu0 0
  %7729 = vmatpush1.bf16.msra.mxu0 %v5525
  %7730 = vmatprep.subr.bf16.mxu0 0
  %7731 = vmatpush1.bf16.msra.mxu0 %v5524
  %7732 = vmatprep.subr.bf16.mxu0 0
  %7733 = vmatpush2.bf16.msra.mxu0 %v5539
  %7734 = vmatprep.subr.bf16.mxu0 0
  %7735 = vmatpush2.bf16.msra.mxu0 %v5538
  %7736 = vmatprep.subr.bf16.mxu0 0
  %7737 = vmatpush2.bf16.msra.mxu0 %v5537
  %7738 = vmatprep.subr.bf16.mxu0 0
  %7739 = vmatpush2.bf16.msra.mxu0 %v5536
  %7740 = vmatprep.subr.bf16.mxu0 0
  %7741 = vmatpush2.bf16.msra.mxu0 %v5535
  %7742 = vmatprep.subr.bf16.mxu0 0
  %7743 = vmatpush2.bf16.msra.mxu0 %v5534
  %7744 = vmatprep.subr.bf16.mxu0 0
  %7745 = vmatpush2.bf16.msra.mxu0 %v5533
  %7746 = vmatprep.subr.bf16.mxu0 0
  %7747 = vmatpush2.bf16.msra.mxu0 %v5532
  %7748 = vmatprep.mubr.bf16.mxu0 %v1829
  %7749 = vmatmul.mubr.bf16.gmra.mxu0 %v1828
  %v7750 = vpop.f32.mrf.mxu0
  %v7751 = vadd.f32 %v7711, %v7750
  %v7752 = vpop.f32.mrf.mxu0
  %v7753 = vpop.f32.mrf.mxu0
  %v7754 = vpop.f32.mrf.mxu0
  %7755 = vdwg.mxu0
  %7756 = vmatprep.subr.bf16.mxu0 0
  %7757 = vmatpush1.bf16.msra.mxu0 %v5547
  %7758 = vmatprep.subr.bf16.mxu0 0
  %7759 = vmatpush1.bf16.msra.mxu0 %v5546
  %7760 = vmatprep.subr.bf16.mxu0 0
  %7761 = vmatpush1.bf16.msra.mxu0 %v5545
  %7762 = vmatprep.subr.bf16.mxu0 0
  %7763 = vmatpush1.bf16.msra.mxu0 %v5544
  %7764 = vmatprep.subr.bf16.mxu0 0
  %7765 = vmatpush1.bf16.msra.mxu0 %v5543
  %7766 = vmatprep.subr.bf16.mxu0 0
  %7767 = vmatpush1.bf16.msra.mxu0 %v5542
  %7768 = vmatprep.subr.bf16.mxu0 0
  %7769 = vmatpush1.bf16.msra.mxu0 %v5541
  %7770 = vmatprep.subr.bf16.mxu0 0
  %7771 = vmatpush1.bf16.msra.mxu0 %v5540
  %7772 = vmatprep.subr.bf16.mxu0 0
  %7773 = vmatpush2.bf16.msra.mxu0 %v5555
  %7774 = vmatprep.subr.bf16.mxu0 0
  %7775 = vmatpush2.bf16.msra.mxu0 %v5554
  %7776 = vmatprep.subr.bf16.mxu0 0
  %7777 = vmatpush2.bf16.msra.mxu0 %v5553
  %7778 = vmatprep.subr.bf16.mxu0 0
  %7779 = vmatpush2.bf16.msra.mxu0 %v5552
  %7780 = vmatprep.subr.bf16.mxu0 0
  %7781 = vmatpush2.bf16.msra.mxu0 %v5551
  %7782 = vmatprep.subr.bf16.mxu0 0
  %7783 = vmatpush2.bf16.msra.mxu0 %v5550
  %7784 = vmatprep.subr.bf16.mxu0 0
  %7785 = vmatpush2.bf16.msra.mxu0 %v5549
  %7786 = vmatprep.subr.bf16.mxu0 0
  %7787 = vmatpush2.bf16.msra.mxu0 %v5548
  %7788 = vmatprep.mubr.bf16.mxu0 %v1831
  %7789 = vmatmul.mubr.bf16.gmra.mxu0 %v1830
  %v7790 = vpop.f32.mrf.mxu0
  %v7791 = vadd.f32 %v7751, %v7790
  %v7792 = vpop.f32.mrf.mxu0
  %v7793 = vpop.f32.mrf.mxu0
  %v7794 = vpop.f32.mrf.mxu0
  %7795 = vdwg.mxu0
  %7796 = vmatprep.subr.bf16.mxu0 0
  %7797 = vmatpush1.bf16.msra.mxu0 %v5563
  %7798 = vmatprep.subr.bf16.mxu0 0
  %7799 = vmatpush1.bf16.msra.mxu0 %v5562
  %7800 = vmatprep.subr.bf16.mxu0 0
  %7801 = vmatpush1.bf16.msra.mxu0 %v5561
  %7802 = vmatprep.subr.bf16.mxu0 0
  %7803 = vmatpush1.bf16.msra.mxu0 %v5560
  %7804 = vmatprep.subr.bf16.mxu0 0
  %7805 = vmatpush1.bf16.msra.mxu0 %v5559
  %7806 = vmatprep.subr.bf16.mxu0 0
  %7807 = vmatpush1.bf16.msra.mxu0 %v5558
  %7808 = vmatprep.subr.bf16.mxu0 0
  %7809 = vmatpush1.bf16.msra.mxu0 %v5557
  %7810 = vmatprep.subr.bf16.mxu0 0
  %7811 = vmatpush1.bf16.msra.mxu0 %v5556
  %7812 = vmatprep.subr.bf16.mxu0 0
  %7813 = vmatpush2.bf16.msra.mxu0 %v5571
  %7814 = vmatprep.subr.bf16.mxu0 0
  %7815 = vmatpush2.bf16.msra.mxu0 %v5570
  %7816 = vmatprep.subr.bf16.mxu0 0
  %7817 = vmatpush2.bf16.msra.mxu0 %v5569
  %7818 = vmatprep.subr.bf16.mxu0 0
  %7819 = vmatpush2.bf16.msra.mxu0 %v5568
  %7820 = vmatprep.subr.bf16.mxu0 0
  %7821 = vmatpush2.bf16.msra.mxu0 %v5567
  %7822 = vmatprep.subr.bf16.mxu0 0
  %7823 = vmatpush2.bf16.msra.mxu0 %v5566
  %7824 = vmatprep.subr.bf16.mxu0 0
  %7825 = vmatpush2.bf16.msra.mxu0 %v5565
  %7826 = vmatprep.subr.bf16.mxu0 0
  %7827 = vmatpush2.bf16.msra.mxu0 %v5564
  %7828 = vmatprep.mubr.bf16.mxu0 %v1833
  %7829 = vmatmul.mubr.bf16.gmra.mxu0 %v1832
  %v7830 = vpop.f32.mrf.mxu0
  %v7831 = vadd.f32 %v7791, %v7830
  %v7832 = vpop.f32.mrf.mxu0
  %v7833 = vpop.f32.mrf.mxu0
  %v7834 = vpop.f32.mrf.mxu0
  %7835 = vdwg.mxu0
  %7836 = vmatprep.subr.bf16.mxu0 0
  %7837 = vmatpush1.bf16.msra.mxu0 %v5579
  %7838 = vmatprep.subr.bf16.mxu0 0
  %7839 = vmatpush1.bf16.msra.mxu0 %v5578
  %7840 = vmatprep.subr.bf16.mxu0 0
  %7841 = vmatpush1.bf16.msra.mxu0 %v5577
  %7842 = vmatprep.subr.bf16.mxu0 0
  %7843 = vmatpush1.bf16.msra.mxu0 %v5576
  %7844 = vmatprep.subr.bf16.mxu0 0
  %7845 = vmatpush1.bf16.msra.mxu0 %v5575
  %7846 = vmatprep.subr.bf16.mxu0 0
  %7847 = vmatpush1.bf16.msra.mxu0 %v5574
  %7848 = vmatprep.subr.bf16.mxu0 0
  %7849 = vmatpush1.bf16.msra.mxu0 %v5573
  %7850 = vmatprep.subr.bf16.mxu0 0
  %7851 = vmatpush1.bf16.msra.mxu0 %v5572
  %7852 = vmatprep.subr.bf16.mxu0 0
  %7853 = vmatpush2.bf16.msra.mxu0 %v5587
  %7854 = vmatprep.subr.bf16.mxu0 0
  %7855 = vmatpush2.bf16.msra.mxu0 %v5586
  %7856 = vmatprep.subr.bf16.mxu0 0
  %7857 = vmatpush2.bf16.msra.mxu0 %v5585
  %7858 = vmatprep.subr.bf16.mxu0 0
  %7859 = vmatpush2.bf16.msra.mxu0 %v5584
  %7860 = vmatprep.subr.bf16.mxu0 0
  %7861 = vmatpush2.bf16.msra.mxu0 %v5583
  %7862 = vmatprep.subr.bf16.mxu0 0
  %7863 = vmatpush2.bf16.msra.mxu0 %v5582
  %7864 = vmatprep.subr.bf16.mxu0 0
  %7865 = vmatpush2.bf16.msra.mxu0 %v5581
  %7866 = vmatprep.subr.bf16.mxu0 0
  %7867 = vmatpush2.bf16.msra.mxu0 %v5580
  %7868 = vmatprep.mubr.bf16.mxu0 %v1835
  %7869 = vmatmul.mubr.bf16.gmra.mxu0 %v1834
  %v7870 = vpop.f32.mrf.mxu0
  %v7871 = vadd.f32 %v7831, %v7870
  %v7872 = vpop.f32.mrf.mxu0
  %v7873 = vpop.f32.mrf.mxu0
  %v7874 = vpop.f32.mrf.mxu0
  %7875 = vdwg.mxu0
  %7876 = vmatprep.subr.bf16.mxu0 0
  %7877 = vmatpush1.bf16.msra.mxu0 %v5595
  %7878 = vmatprep.subr.bf16.mxu0 0
  %7879 = vmatpush1.bf16.msra.mxu0 %v5594
  %7880 = vmatprep.subr.bf16.mxu0 0
  %7881 = vmatpush1.bf16.msra.mxu0 %v5593
  %7882 = vmatprep.subr.bf16.mxu0 0
  %7883 = vmatpush1.bf16.msra.mxu0 %v5592
  %7884 = vmatprep.subr.bf16.mxu0 0
  %7885 = vmatpush1.bf16.msra.mxu0 %v5591
  %7886 = vmatprep.subr.bf16.mxu0 0
  %7887 = vmatpush1.bf16.msra.mxu0 %v5590
  %7888 = vmatprep.subr.bf16.mxu0 0
  %7889 = vmatpush1.bf16.msra.mxu0 %v5589
  %7890 = vmatprep.subr.bf16.mxu0 0
  %7891 = vmatpush1.bf16.msra.mxu0 %v5588
  %7892 = vmatprep.subr.bf16.mxu0 0
  %7893 = vmatpush2.bf16.msra.mxu0 %v5603
  %7894 = vmatprep.subr.bf16.mxu0 0
  %7895 = vmatpush2.bf16.msra.mxu0 %v5602
  %7896 = vmatprep.subr.bf16.mxu0 0
  %7897 = vmatpush2.bf16.msra.mxu0 %v5601
  %7898 = vmatprep.subr.bf16.mxu0 0
  %7899 = vmatpush2.bf16.msra.mxu0 %v5600
  %7900 = vmatprep.subr.bf16.mxu0 0
  %7901 = vmatpush2.bf16.msra.mxu0 %v5599
  %7902 = vmatprep.subr.bf16.mxu0 0
  %7903 = vmatpush2.bf16.msra.mxu0 %v5598
  %7904 = vmatprep.subr.bf16.mxu0 0
  %7905 = vmatpush2.bf16.msra.mxu0 %v5597
  %7906 = vmatprep.subr.bf16.mxu0 0
  %7907 = vmatpush2.bf16.msra.mxu0 %v5596
  %7908 = vmatprep.mubr.bf16.mxu0 %v1837
  %7909 = vmatmul.mubr.bf16.gmra.mxu0 %v1836
  %v7910 = vpop.f32.mrf.mxu0
  %v7911 = vadd.f32 %v7871, %v7910
  %v7912 = vpop.f32.mrf.mxu0
  %v7913 = vpop.f32.mrf.mxu0
  %v7914 = vpop.f32.mrf.mxu0
  %7915 = vdwg.mxu0
  %7916 = vmatprep.subr.bf16.mxu0 0
  %7917 = vmatpush1.bf16.msra.mxu0 %v5611
  %7918 = vmatprep.subr.bf16.mxu0 0
  %7919 = vmatpush1.bf16.msra.mxu0 %v5610
  %7920 = vmatprep.subr.bf16.mxu0 0
  %7921 = vmatpush1.bf16.msra.mxu0 %v5609
  %7922 = vmatprep.subr.bf16.mxu0 0
  %7923 = vmatpush1.bf16.msra.mxu0 %v5608
  %7924 = vmatprep.subr.bf16.mxu0 0
  %7925 = vmatpush1.bf16.msra.mxu0 %v5607
  %7926 = vmatprep.subr.bf16.mxu0 0
  %7927 = vmatpush1.bf16.msra.mxu0 %v5606
  %7928 = vmatprep.subr.bf16.mxu0 0
  %7929 = vmatpush1.bf16.msra.mxu0 %v5605
  %7930 = vmatprep.subr.bf16.mxu0 0
  %7931 = vmatpush1.bf16.msra.mxu0 %v5604
  %7932 = vmatprep.subr.bf16.mxu0 0
  %7933 = vmatpush2.bf16.msra.mxu0 %v5619
  %7934 = vmatprep.subr.bf16.mxu0 0
  %7935 = vmatpush2.bf16.msra.mxu0 %v5618
  %7936 = vmatprep.subr.bf16.mxu0 0
  %7937 = vmatpush2.bf16.msra.mxu0 %v5617
  %7938 = vmatprep.subr.bf16.mxu0 0
  %7939 = vmatpush2.bf16.msra.mxu0 %v5616
  %7940 = vmatprep.subr.bf16.mxu0 0
  %7941 = vmatpush2.bf16.msra.mxu0 %v5615
  %7942 = vmatprep.subr.bf16.mxu0 0
  %7943 = vmatpush2.bf16.msra.mxu0 %v5614
  %7944 = vmatprep.subr.bf16.mxu0 0
  %7945 = vmatpush2.bf16.msra.mxu0 %v5613
  %7946 = vmatprep.subr.bf16.mxu0 0
  %7947 = vmatpush2.bf16.msra.mxu0 %v5612
  %7948 = vmatprep.mubr.bf16.mxu0 %v1839
  %7949 = vmatmul.mubr.bf16.gmra.mxu0 %v1838
  %v7950 = vpop.f32.mrf.mxu0
  %v7951 = vadd.f32 %v7911, %v7950
  %v7952 = vpop.f32.mrf.mxu0
  %v7953 = vpop.f32.mrf.mxu0
  %v7954 = vpop.f32.mrf.mxu0
  %7955 = vdwg.mxu0
  %7956 = vmatprep.subr.bf16.mxu0 0
  %7957 = vmatpush1.bf16.msra.mxu0 %v5627
  %7958 = vmatprep.subr.bf16.mxu0 0
  %7959 = vmatpush1.bf16.msra.mxu0 %v5626
  %7960 = vmatprep.subr.bf16.mxu0 0
  %7961 = vmatpush1.bf16.msra.mxu0 %v5625
  %7962 = vmatprep.subr.bf16.mxu0 0
  %7963 = vmatpush1.bf16.msra.mxu0 %v5624
  %7964 = vmatprep.subr.bf16.mxu0 0
  %7965 = vmatpush1.bf16.msra.mxu0 %v5623
  %7966 = vmatprep.subr.bf16.mxu0 0
  %7967 = vmatpush1.bf16.msra.mxu0 %v5622
  %7968 = vmatprep.subr.bf16.mxu0 0
  %7969 = vmatpush1.bf16.msra.mxu0 %v5621
  %7970 = vmatprep.subr.bf16.mxu0 0
  %7971 = vmatpush1.bf16.msra.mxu0 %v5620
  %7972 = vmatprep.subr.bf16.mxu0 0
  %7973 = vmatpush2.bf16.msra.mxu0 %v5635
  %7974 = vmatprep.subr.bf16.mxu0 0
  %7975 = vmatpush2.bf16.msra.mxu0 %v5634
  %7976 = vmatprep.subr.bf16.mxu0 0
  %7977 = vmatpush2.bf16.msra.mxu0 %v5633
  %7978 = vmatprep.subr.bf16.mxu0 0
  %7979 = vmatpush2.bf16.msra.mxu0 %v5632
  %7980 = vmatprep.subr.bf16.mxu0 0
  %7981 = vmatpush2.bf16.msra.mxu0 %v5631
  %7982 = vmatprep.subr.bf16.mxu0 0
  %7983 = vmatpush2.bf16.msra.mxu0 %v5630
  %7984 = vmatprep.subr.bf16.mxu0 0
  %7985 = vmatpush2.bf16.msra.mxu0 %v5629
  %7986 = vmatprep.subr.bf16.mxu0 0
  %7987 = vmatpush2.bf16.msra.mxu0 %v5628
  %7988 = vmatprep.mubr.bf16.mxu0 %v1841
  %7989 = vmatmul.mubr.bf16.gmra.mxu0 %v1840
  %v7990 = vpop.f32.mrf.mxu0
  %v7991 = vadd.f32 %v7951, %v7990
  %v7992 = vpop.f32.mrf.mxu0
  %v7993 = vpop.f32.mrf.mxu0
  %v7994 = vpop.f32.mrf.mxu0
  %7995 = vdwg.mxu0
  %7996 = vmatprep.subr.bf16.mxu0 0
  %7997 = vmatpush1.bf16.msra.mxu0 %v5643
  %7998 = vmatprep.subr.bf16.mxu0 0
  %7999 = vmatpush1.bf16.msra.mxu0 %v5642
  %8000 = vmatprep.subr.bf16.mxu0 0
  %8001 = vmatpush1.bf16.msra.mxu0 %v5641
  %8002 = vmatprep.subr.bf16.mxu0 0
  %8003 = vmatpush1.bf16.msra.mxu0 %v5640
  %8004 = vmatprep.subr.bf16.mxu0 0
  %8005 = vmatpush1.bf16.msra.mxu0 %v5639
  %8006 = vmatprep.subr.bf16.mxu0 0
  %8007 = vmatpush1.bf16.msra.mxu0 %v5638
  %8008 = vmatprep.subr.bf16.mxu0 0
  %8009 = vmatpush1.bf16.msra.mxu0 %v5637
  %8010 = vmatprep.subr.bf16.mxu0 0
  %8011 = vmatpush1.bf16.msra.mxu0 %v5636
  %8012 = vmatprep.subr.bf16.mxu0 0
  %8013 = vmatpush2.bf16.msra.mxu0 %v5651
  %8014 = vmatprep.subr.bf16.mxu0 0
  %8015 = vmatpush2.bf16.msra.mxu0 %v5650
  %8016 = vmatprep.subr.bf16.mxu0 0
  %8017 = vmatpush2.bf16.msra.mxu0 %v5649
  %8018 = vmatprep.subr.bf16.mxu0 0
  %8019 = vmatpush2.bf16.msra.mxu0 %v5648
  %8020 = vmatprep.subr.bf16.mxu0 0
  %8021 = vmatpush2.bf16.msra.mxu0 %v5647
  %8022 = vmatprep.subr.bf16.mxu0 0
  %8023 = vmatpush2.bf16.msra.mxu0 %v5646
  %8024 = vmatprep.subr.bf16.mxu0 0
  %8025 = vmatpush2.bf16.msra.mxu0 %v5645
  %8026 = vmatprep.subr.bf16.mxu0 0
  %8027 = vmatpush2.bf16.msra.mxu0 %v5644
  %8028 = vmatprep.mubr.bf16.mxu0 %v1843
  %8029 = vmatmul.mubr.bf16.gmra.mxu0 %v1842
  %v8030 = vpop.f32.mrf.mxu0
  %v8031 = vadd.f32 %v7991, %v8030
  %v8032 = vpop.f32.mrf.mxu0
  %v8033 = vpop.f32.mrf.mxu0
  %v8034 = vpop.f32.mrf.mxu0
  %8035 = vdwg.mxu0
  %8036 = vmatprep.subr.bf16.mxu0 0
  %8037 = vmatpush1.bf16.msra.mxu0 %v5659
  %8038 = vmatprep.subr.bf16.mxu0 0
  %8039 = vmatpush1.bf16.msra.mxu0 %v5658
  %8040 = vmatprep.subr.bf16.mxu0 0
  %8041 = vmatpush1.bf16.msra.mxu0 %v5657
  %8042 = vmatprep.subr.bf16.mxu0 0
  %8043 = vmatpush1.bf16.msra.mxu0 %v5656
  %8044 = vmatprep.subr.bf16.mxu0 0
  %8045 = vmatpush1.bf16.msra.mxu0 %v5655
  %8046 = vmatprep.subr.bf16.mxu0 0
  %8047 = vmatpush1.bf16.msra.mxu0 %v5654
  %8048 = vmatprep.subr.bf16.mxu0 0
  %8049 = vmatpush1.bf16.msra.mxu0 %v5653
  %8050 = vmatprep.subr.bf16.mxu0 0
  %8051 = vmatpush1.bf16.msra.mxu0 %v5652
  %8052 = vmatprep.subr.bf16.mxu0 0
  %8053 = vmatpush2.bf16.msra.mxu0 %v5667
  %8054 = vmatprep.subr.bf16.mxu0 0
  %8055 = vmatpush2.bf16.msra.mxu0 %v5666
  %8056 = vmatprep.subr.bf16.mxu0 0
  %8057 = vmatpush2.bf16.msra.mxu0 %v5665
  %8058 = vmatprep.subr.bf16.mxu0 0
  %8059 = vmatpush2.bf16.msra.mxu0 %v5664
  %8060 = vmatprep.subr.bf16.mxu0 0
  %8061 = vmatpush2.bf16.msra.mxu0 %v5663
  %8062 = vmatprep.subr.bf16.mxu0 0
  %8063 = vmatpush2.bf16.msra.mxu0 %v5662
  %8064 = vmatprep.subr.bf16.mxu0 0
  %8065 = vmatpush2.bf16.msra.mxu0 %v5661
  %8066 = vmatprep.subr.bf16.mxu0 0
  %8067 = vmatpush2.bf16.msra.mxu0 %v5660
  %8068 = vmatprep.mubr.bf16.mxu0 %v1845
  %8069 = vmatmul.mubr.bf16.gmra.mxu0 %v1844
  %v8070 = vpop.f32.mrf.mxu0
  %v8071 = vadd.f32 %v8031, %v8070
  %v8072 = vpop.f32.mrf.mxu0
  %v8073 = vpop.f32.mrf.mxu0
  %v8074 = vpop.f32.mrf.mxu0
  %8075 = vdwg.mxu0
  %8076 = vmatprep.subr.bf16.mxu0 0
  %8077 = vmatpush1.bf16.msra.mxu0 %v5675
  %8078 = vmatprep.subr.bf16.mxu0 0
  %8079 = vmatpush1.bf16.msra.mxu0 %v5674
  %8080 = vmatprep.subr.bf16.mxu0 0
  %8081 = vmatpush1.bf16.msra.mxu0 %v5673
  %8082 = vmatprep.subr.bf16.mxu0 0
  %8083 = vmatpush1.bf16.msra.mxu0 %v5672
  %8084 = vmatprep.subr.bf16.mxu0 0
  %8085 = vmatpush1.bf16.msra.mxu0 %v5671
  %8086 = vmatprep.subr.bf16.mxu0 0
  %8087 = vmatpush1.bf16.msra.mxu0 %v5670
  %8088 = vmatprep.subr.bf16.mxu0 0
  %8089 = vmatpush1.bf16.msra.mxu0 %v5669
  %8090 = vmatprep.subr.bf16.mxu0 0
  %8091 = vmatpush1.bf16.msra.mxu0 %v5668
  %8092 = vmatprep.subr.bf16.mxu0 0
  %8093 = vmatpush2.bf16.msra.mxu0 %v5683
  %8094 = vmatprep.subr.bf16.mxu0 0
  %8095 = vmatpush2.bf16.msra.mxu0 %v5682
  %8096 = vmatprep.subr.bf16.mxu0 0
  %8097 = vmatpush2.bf16.msra.mxu0 %v5681
  %8098 = vmatprep.subr.bf16.mxu0 0
  %8099 = vmatpush2.bf16.msra.mxu0 %v5680
  %8100 = vmatprep.subr.bf16.mxu0 0
  %8101 = vmatpush2.bf16.msra.mxu0 %v5679
  %8102 = vmatprep.subr.bf16.mxu0 0
  %8103 = vmatpush2.bf16.msra.mxu0 %v5678
  %8104 = vmatprep.subr.bf16.mxu0 0
  %8105 = vmatpush2.bf16.msra.mxu0 %v5677
  %8106 = vmatprep.subr.bf16.mxu0 0
  %8107 = vmatpush2.bf16.msra.mxu0 %v5676
  %8108 = vmatprep.mubr.bf16.mxu0 %v1847
  %8109 = vmatmul.mubr.bf16.gmra.mxu0 %v1846
  %v8110 = vpop.f32.mrf.mxu0
  %v8111 = vadd.f32 %v8071, %v8110
  %v8112 = vpop.f32.mrf.mxu0
  %v8113 = vpop.f32.mrf.mxu0
  %v8114 = vpop.f32.mrf.mxu0
  %8115 = vdwg.mxu0
  %8116 = vmatprep.subr.bf16.mxu0 0
  %8117 = vmatpush1.bf16.msra.mxu0 %v5691
  %8118 = vmatprep.subr.bf16.mxu0 0
  %8119 = vmatpush1.bf16.msra.mxu0 %v5690
  %8120 = vmatprep.subr.bf16.mxu0 0
  %8121 = vmatpush1.bf16.msra.mxu0 %v5689
  %8122 = vmatprep.subr.bf16.mxu0 0
  %8123 = vmatpush1.bf16.msra.mxu0 %v5688
  %8124 = vmatprep.subr.bf16.mxu0 0
  %8125 = vmatpush1.bf16.msra.mxu0 %v5687
  %8126 = vmatprep.subr.bf16.mxu0 0
  %8127 = vmatpush1.bf16.msra.mxu0 %v5686
  %8128 = vmatprep.subr.bf16.mxu0 0
  %8129 = vmatpush1.bf16.msra.mxu0 %v5685
  %8130 = vmatprep.subr.bf16.mxu0 0
  %8131 = vmatpush1.bf16.msra.mxu0 %v5684
  %8132 = vmatprep.subr.bf16.mxu0 0
  %8133 = vmatpush2.bf16.msra.mxu0 %v5699
  %8134 = vmatprep.subr.bf16.mxu0 0
  %8135 = vmatpush2.bf16.msra.mxu0 %v5698
  %8136 = vmatprep.subr.bf16.mxu0 0
  %8137 = vmatpush2.bf16.msra.mxu0 %v5697
  %8138 = vmatprep.subr.bf16.mxu0 0
  %8139 = vmatpush2.bf16.msra.mxu0 %v5696
  %8140 = vmatprep.subr.bf16.mxu0 0
  %8141 = vmatpush2.bf16.msra.mxu0 %v5695
  %8142 = vmatprep.subr.bf16.mxu0 0
  %8143 = vmatpush2.bf16.msra.mxu0 %v5694
  %8144 = vmatprep.subr.bf16.mxu0 0
  %8145 = vmatpush2.bf16.msra.mxu0 %v5693
  %8146 = vmatprep.subr.bf16.mxu0 0
  %8147 = vmatpush2.bf16.msra.mxu0 %v5692
  %8148 = vmatprep.mubr.bf16.mxu0 %v1849
  %8149 = vmatmul.mubr.bf16.gmra.mxu0 %v1848
  %v8150 = vpop.f32.mrf.mxu0
  %v8151 = vadd.f32 %v8111, %v8150
  %v8152 = vpop.f32.mrf.mxu0
  %v8153 = vpop.f32.mrf.mxu0
  %v8154 = vpop.f32.mrf.mxu0
  %8155 = vdwg.mxu0
  %8156 = vmatprep.subr.bf16.mxu0 0
  %8157 = vmatpush1.bf16.msra.mxu0 %v5707
  %8158 = vmatprep.subr.bf16.mxu0 0
  %8159 = vmatpush1.bf16.msra.mxu0 %v5706
  %8160 = vmatprep.subr.bf16.mxu0 0
  %8161 = vmatpush1.bf16.msra.mxu0 %v5705
  %8162 = vmatprep.subr.bf16.mxu0 0
  %8163 = vmatpush1.bf16.msra.mxu0 %v5704
  %8164 = vmatprep.subr.bf16.mxu0 0
  %8165 = vmatpush1.bf16.msra.mxu0 %v5703
  %8166 = vmatprep.subr.bf16.mxu0 0
  %8167 = vmatpush1.bf16.msra.mxu0 %v5702
  %8168 = vmatprep.subr.bf16.mxu0 0
  %8169 = vmatpush1.bf16.msra.mxu0 %v5701
  %8170 = vmatprep.subr.bf16.mxu0 0
  %8171 = vmatpush1.bf16.msra.mxu0 %v5700
  %8172 = vmatprep.subr.bf16.mxu0 0
  %8173 = vmatpush2.bf16.msra.mxu0 %v5715
  %8174 = vmatprep.subr.bf16.mxu0 0
  %8175 = vmatpush2.bf16.msra.mxu0 %v5714
  %8176 = vmatprep.subr.bf16.mxu0 0
  %8177 = vmatpush2.bf16.msra.mxu0 %v5713
  %8178 = vmatprep.subr.bf16.mxu0 0
  %8179 = vmatpush2.bf16.msra.mxu0 %v5712
  %8180 = vmatprep.subr.bf16.mxu0 0
  %8181 = vmatpush2.bf16.msra.mxu0 %v5711
  %8182 = vmatprep.subr.bf16.mxu0 0
  %8183 = vmatpush2.bf16.msra.mxu0 %v5710
  %8184 = vmatprep.subr.bf16.mxu0 0
  %8185 = vmatpush2.bf16.msra.mxu0 %v5709
  %8186 = vmatprep.subr.bf16.mxu0 0
  %8187 = vmatpush2.bf16.msra.mxu0 %v5708
  %8188 = vmatprep.mubr.bf16.mxu0 %v1851
  %8189 = vmatmul.mubr.bf16.gmra.mxu0 %v1850
  %v8190 = vpop.f32.mrf.mxu0
  %v8191 = vadd.f32 %v8151, %v8190
  %v8192 = vpop.f32.mrf.mxu0
  %v8193 = vpop.f32.mrf.mxu0
  %v8194 = vpop.f32.mrf.mxu0
  %8195 = vdwg.mxu0
  %8196 = vmatprep.subr.bf16.mxu0 0
  %8197 = vmatpush1.bf16.msra.mxu0 %v5723
  %8198 = vmatprep.subr.bf16.mxu0 0
  %8199 = vmatpush1.bf16.msra.mxu0 %v5722
  %8200 = vmatprep.subr.bf16.mxu0 0
  %8201 = vmatpush1.bf16.msra.mxu0 %v5721
  %8202 = vmatprep.subr.bf16.mxu0 0
  %8203 = vmatpush1.bf16.msra.mxu0 %v5720
  %8204 = vmatprep.subr.bf16.mxu0 0
  %8205 = vmatpush1.bf16.msra.mxu0 %v5719
  %8206 = vmatprep.subr.bf16.mxu0 0
  %8207 = vmatpush1.bf16.msra.mxu0 %v5718
  %8208 = vmatprep.subr.bf16.mxu0 0
  %8209 = vmatpush1.bf16.msra.mxu0 %v5717
  %8210 = vmatprep.subr.bf16.mxu0 0
  %8211 = vmatpush1.bf16.msra.mxu0 %v5716
  %8212 = vmatprep.subr.bf16.mxu0 0
  %8213 = vmatpush2.bf16.msra.mxu0 %v5731
  %8214 = vmatprep.subr.bf16.mxu0 0
  %8215 = vmatpush2.bf16.msra.mxu0 %v5730
  %8216 = vmatprep.subr.bf16.mxu0 0
  %8217 = vmatpush2.bf16.msra.mxu0 %v5729
  %8218 = vmatprep.subr.bf16.mxu0 0
  %8219 = vmatpush2.bf16.msra.mxu0 %v5728
  %8220 = vmatprep.subr.bf16.mxu0 0
  %8221 = vmatpush2.bf16.msra.mxu0 %v5727
  %8222 = vmatprep.subr.bf16.mxu0 0
  %8223 = vmatpush2.bf16.msra.mxu0 %v5726
  %8224 = vmatprep.subr.bf16.mxu0 0
  %8225 = vmatpush2.bf16.msra.mxu0 %v5725
  %8226 = vmatprep.subr.bf16.mxu0 0
  %8227 = vmatpush2.bf16.msra.mxu0 %v5724
  %8228 = vmatprep.mubr.bf16.mxu0 %v1853
  %8229 = vmatmul.mubr.bf16.gmra.mxu0 %v1852
  %v8230 = vpop.f32.mrf.mxu0
  %v8231 = vadd.f32 %v8191, %v8230
  %v8232 = vpop.f32.mrf.mxu0
  %v8233 = vpop.f32.mrf.mxu0
  %v8234 = vpop.f32.mrf.mxu0
  %8235 = vdwg.mxu0
  %8236 = vmatprep.subr.bf16.mxu0 0
  %8237 = vmatpush1.bf16.msra.mxu0 %v5739
  %8238 = vmatprep.subr.bf16.mxu0 0
  %8239 = vmatpush1.bf16.msra.mxu0 %v5738
  %8240 = vmatprep.subr.bf16.mxu0 0
  %8241 = vmatpush1.bf16.msra.mxu0 %v5737
  %8242 = vmatprep.subr.bf16.mxu0 0
  %8243 = vmatpush1.bf16.msra.mxu0 %v5736
  %8244 = vmatprep.subr.bf16.mxu0 0
  %8245 = vmatpush1.bf16.msra.mxu0 %v5735
  %8246 = vmatprep.subr.bf16.mxu0 0
  %8247 = vmatpush1.bf16.msra.mxu0 %v5734
  %8248 = vmatprep.subr.bf16.mxu0 0
  %8249 = vmatpush1.bf16.msra.mxu0 %v5733
  %8250 = vmatprep.subr.bf16.mxu0 0
  %8251 = vmatpush1.bf16.msra.mxu0 %v5732
  %8252 = vmatprep.subr.bf16.mxu0 0
  %8253 = vmatpush2.bf16.msra.mxu0 %v5747
  %8254 = vmatprep.subr.bf16.mxu0 0
  %8255 = vmatpush2.bf16.msra.mxu0 %v5746
  %8256 = vmatprep.subr.bf16.mxu0 0
  %8257 = vmatpush2.bf16.msra.mxu0 %v5745
  %8258 = vmatprep.subr.bf16.mxu0 0
  %8259 = vmatpush2.bf16.msra.mxu0 %v5744
  %8260 = vmatprep.subr.bf16.mxu0 0
  %8261 = vmatpush2.bf16.msra.mxu0 %v5743
  %8262 = vmatprep.subr.bf16.mxu0 0
  %8263 = vmatpush2.bf16.msra.mxu0 %v5742
  %8264 = vmatprep.subr.bf16.mxu0 0
  %8265 = vmatpush2.bf16.msra.mxu0 %v5741
  %8266 = vmatprep.subr.bf16.mxu0 0
  %8267 = vmatpush2.bf16.msra.mxu0 %v5740
  %8268 = vmatprep.mubr.bf16.mxu0 %v1855
  %8269 = vmatmul.mubr.bf16.gmra.mxu0 %v1854
  %v8270 = vpop.f32.mrf.mxu0
  %v8271 = vadd.f32 %v8231, %v8270
  %v8272 = vpop.f32.mrf.mxu0
  %v8273 = vpop.f32.mrf.mxu0
  %v8274 = vpop.f32.mrf.mxu0
  %8275 = vdwg.mxu0
  %8276 = vmatprep.subr.bf16.mxu0 0
  %8277 = vmatpush1.bf16.msra.mxu0 %v5755
  %8278 = vmatprep.subr.bf16.mxu0 0
  %8279 = vmatpush1.bf16.msra.mxu0 %v5754
  %8280 = vmatprep.subr.bf16.mxu0 0
  %8281 = vmatpush1.bf16.msra.mxu0 %v5753
  %8282 = vmatprep.subr.bf16.mxu0 0
  %8283 = vmatpush1.bf16.msra.mxu0 %v5752
  %8284 = vmatprep.subr.bf16.mxu0 0
  %8285 = vmatpush1.bf16.msra.mxu0 %v5751
  %8286 = vmatprep.subr.bf16.mxu0 0
  %8287 = vmatpush1.bf16.msra.mxu0 %v5750
  %8288 = vmatprep.subr.bf16.mxu0 0
  %8289 = vmatpush1.bf16.msra.mxu0 %v5749
  %8290 = vmatprep.subr.bf16.mxu0 0
  %8291 = vmatpush1.bf16.msra.mxu0 %v5748
  %8292 = vmatprep.subr.bf16.mxu0 0
  %8293 = vmatpush2.bf16.msra.mxu0 %v5763
  %8294 = vmatprep.subr.bf16.mxu0 0
  %8295 = vmatpush2.bf16.msra.mxu0 %v5762
  %8296 = vmatprep.subr.bf16.mxu0 0
  %8297 = vmatpush2.bf16.msra.mxu0 %v5761
  %8298 = vmatprep.subr.bf16.mxu0 0
  %8299 = vmatpush2.bf16.msra.mxu0 %v5760
  %8300 = vmatprep.subr.bf16.mxu0 0
  %8301 = vmatpush2.bf16.msra.mxu0 %v5759
  %8302 = vmatprep.subr.bf16.mxu0 0
  %8303 = vmatpush2.bf16.msra.mxu0 %v5758
  %8304 = vmatprep.subr.bf16.mxu0 0
  %8305 = vmatpush2.bf16.msra.mxu0 %v5757
  %8306 = vmatprep.subr.bf16.mxu0 0
  %8307 = vmatpush2.bf16.msra.mxu0 %v5756
  %8308 = vmatprep.mubr.bf16.mxu0 %v1857
  %8309 = vmatmul.mubr.bf16.gmra.mxu0 %v1856
  %v8310 = vpop.f32.mrf.mxu0
  %v8311 = vadd.f32 %v8271, %v8310
  %v8312 = vpop.f32.mrf.mxu0
  %v8313 = vpop.f32.mrf.mxu0
  %v8314 = vpop.f32.mrf.mxu0
  %8315 = vdwg.mxu0
  %8316 = vmatprep.subr.bf16.mxu0 0
  %8317 = vmatpush1.bf16.msra.mxu0 %v5771
  %8318 = vmatprep.subr.bf16.mxu0 0
  %8319 = vmatpush1.bf16.msra.mxu0 %v5770
  %8320 = vmatprep.subr.bf16.mxu0 0
  %8321 = vmatpush1.bf16.msra.mxu0 %v5769
  %8322 = vmatprep.subr.bf16.mxu0 0
  %8323 = vmatpush1.bf16.msra.mxu0 %v5768
  %8324 = vmatprep.subr.bf16.mxu0 0
  %8325 = vmatpush1.bf16.msra.mxu0 %v5767
  %8326 = vmatprep.subr.bf16.mxu0 0
  %8327 = vmatpush1.bf16.msra.mxu0 %v5766
  %8328 = vmatprep.subr.bf16.mxu0 0
  %8329 = vmatpush1.bf16.msra.mxu0 %v5765
  %8330 = vmatprep.subr.bf16.mxu0 0
  %8331 = vmatpush1.bf16.msra.mxu0 %v5764
  %8332 = vmatprep.subr.bf16.mxu0 0
  %8333 = vmatpush2.bf16.msra.mxu0 %v5779
  %8334 = vmatprep.subr.bf16.mxu0 0
  %8335 = vmatpush2.bf16.msra.mxu0 %v5778
  %8336 = vmatprep.subr.bf16.mxu0 0
  %8337 = vmatpush2.bf16.msra.mxu0 %v5777
  %8338 = vmatprep.subr.bf16.mxu0 0
  %8339 = vmatpush2.bf16.msra.mxu0 %v5776
  %8340 = vmatprep.subr.bf16.mxu0 0
  %8341 = vmatpush2.bf16.msra.mxu0 %v5775
  %8342 = vmatprep.subr.bf16.mxu0 0
  %8343 = vmatpush2.bf16.msra.mxu0 %v5774
  %8344 = vmatprep.subr.bf16.mxu0 0
  %8345 = vmatpush2.bf16.msra.mxu0 %v5773
  %8346 = vmatprep.subr.bf16.mxu0 0
  %8347 = vmatpush2.bf16.msra.mxu0 %v5772
  %8348 = vmatprep.mubr.bf16.mxu0 %v1859
  %8349 = vmatmul.mubr.bf16.gmra.mxu0 %v1858
  %v8350 = vpop.f32.mrf.mxu0
  %v8351 = vadd.f32 %v8311, %v8350
  %v8352 = vpop.f32.mrf.mxu0
  %v8353 = vpop.f32.mrf.mxu0
  %v8354 = vpop.f32.mrf.mxu0
  %8355 = vdwg.mxu0
  %8356 = vmatprep.subr.bf16.mxu0 0
  %8357 = vmatpush1.bf16.msra.mxu0 %v5787
  %8358 = vmatprep.subr.bf16.mxu0 0
  %8359 = vmatpush1.bf16.msra.mxu0 %v5786
  %8360 = vmatprep.subr.bf16.mxu0 0
  %8361 = vmatpush1.bf16.msra.mxu0 %v5785
  %8362 = vmatprep.subr.bf16.mxu0 0
  %8363 = vmatpush1.bf16.msra.mxu0 %v5784
  %8364 = vmatprep.subr.bf16.mxu0 0
  %8365 = vmatpush1.bf16.msra.mxu0 %v5783
  %8366 = vmatprep.subr.bf16.mxu0 0
  %8367 = vmatpush1.bf16.msra.mxu0 %v5782
  %8368 = vmatprep.subr.bf16.mxu0 0
  %8369 = vmatpush1.bf16.msra.mxu0 %v5781
  %8370 = vmatprep.subr.bf16.mxu0 0
  %8371 = vmatpush1.bf16.msra.mxu0 %v5780
  %8372 = vmatprep.subr.bf16.mxu0 0
  %8373 = vmatpush2.bf16.msra.mxu0 %v5795
  %8374 = vmatprep.subr.bf16.mxu0 0
  %8375 = vmatpush2.bf16.msra.mxu0 %v5794
  %8376 = vmatprep.subr.bf16.mxu0 0
  %8377 = vmatpush2.bf16.msra.mxu0 %v5793
  %8378 = vmatprep.subr.bf16.mxu0 0
  %8379 = vmatpush2.bf16.msra.mxu0 %v5792
  %8380 = vmatprep.subr.bf16.mxu0 0
  %8381 = vmatpush2.bf16.msra.mxu0 %v5791
  %8382 = vmatprep.subr.bf16.mxu0 0
  %8383 = vmatpush2.bf16.msra.mxu0 %v5790
  %8384 = vmatprep.subr.bf16.mxu0 0
  %8385 = vmatpush2.bf16.msra.mxu0 %v5789
  %8386 = vmatprep.subr.bf16.mxu0 0
  %8387 = vmatpush2.bf16.msra.mxu0 %v5788
  %8388 = vmatprep.mubr.bf16.mxu0 %v1861
  %8389 = vmatmul.mubr.bf16.gmra.mxu0 %v1860
  %v8390 = vpop.f32.mrf.mxu0
  %v8391 = vadd.f32 %v8351, %v8390
  %v8392 = vpop.f32.mrf.mxu0
  %v8393 = vpop.f32.mrf.mxu0
  %v8394 = vpop.f32.mrf.mxu0
  %8395 = vdwg.mxu0
  %8396 = vmatprep.subr.bf16.mxu0 0
  %8397 = vmatpush1.bf16.msra.mxu0 %v5803
  %8398 = vmatprep.subr.bf16.mxu0 0
  %8399 = vmatpush1.bf16.msra.mxu0 %v5802
  %8400 = vmatprep.subr.bf16.mxu0 0
  %8401 = vmatpush1.bf16.msra.mxu0 %v5801
  %8402 = vmatprep.subr.bf16.mxu0 0
  %8403 = vmatpush1.bf16.msra.mxu0 %v5800
  %8404 = vmatprep.subr.bf16.mxu0 0
  %8405 = vmatpush1.bf16.msra.mxu0 %v5799
  %8406 = vmatprep.subr.bf16.mxu0 0
  %8407 = vmatpush1.bf16.msra.mxu0 %v5798
  %8408 = vmatprep.subr.bf16.mxu0 0
  %8409 = vmatpush1.bf16.msra.mxu0 %v5797
  %8410 = vmatprep.subr.bf16.mxu0 0
  %8411 = vmatpush1.bf16.msra.mxu0 %v5796
  %8412 = vmatprep.subr.bf16.mxu0 0
  %8413 = vmatpush2.bf16.msra.mxu0 %v5811
  %8414 = vmatprep.subr.bf16.mxu0 0
  %8415 = vmatpush2.bf16.msra.mxu0 %v5810
  %8416 = vmatprep.subr.bf16.mxu0 0
  %8417 = vmatpush2.bf16.msra.mxu0 %v5809
  %8418 = vmatprep.subr.bf16.mxu0 0
  %8419 = vmatpush2.bf16.msra.mxu0 %v5808
  %8420 = vmatprep.subr.bf16.mxu0 0
  %8421 = vmatpush2.bf16.msra.mxu0 %v5807
  %8422 = vmatprep.subr.bf16.mxu0 0
  %8423 = vmatpush2.bf16.msra.mxu0 %v5806
  %8424 = vmatprep.subr.bf16.mxu0 0
  %8425 = vmatpush2.bf16.msra.mxu0 %v5805
  %8426 = vmatprep.subr.bf16.mxu0 0
  %8427 = vmatpush2.bf16.msra.mxu0 %v5804
  %8428 = vmatprep.mubr.bf16.mxu0 %v1863
  %8429 = vmatmul.mubr.bf16.gmra.mxu0 %v1862
  %v8430 = vpop.f32.mrf.mxu0
  %v8431 = vadd.f32 %v8391, %v8430
  %v8432 = vpop.f32.mrf.mxu0
  %v8433 = vpop.f32.mrf.mxu0
  %v8434 = vpop.f32.mrf.mxu0
  %8435 = vdwg.mxu0
  %8436 = vmatprep.subr.bf16.mxu0 0
  %8437 = vmatpush1.bf16.msra.mxu0 %v5819
  %8438 = vmatprep.subr.bf16.mxu0 0
  %8439 = vmatpush1.bf16.msra.mxu0 %v5818
  %8440 = vmatprep.subr.bf16.mxu0 0
  %8441 = vmatpush1.bf16.msra.mxu0 %v5817
  %8442 = vmatprep.subr.bf16.mxu0 0
  %8443 = vmatpush1.bf16.msra.mxu0 %v5816
  %8444 = vmatprep.subr.bf16.mxu0 0
  %8445 = vmatpush1.bf16.msra.mxu0 %v5815
  %8446 = vmatprep.subr.bf16.mxu0 0
  %8447 = vmatpush1.bf16.msra.mxu0 %v5814
  %8448 = vmatprep.subr.bf16.mxu0 0
  %8449 = vmatpush1.bf16.msra.mxu0 %v5813
  %8450 = vmatprep.subr.bf16.mxu0 0
  %8451 = vmatpush1.bf16.msra.mxu0 %v5812
  %8452 = vmatprep.subr.bf16.mxu0 0
  %8453 = vmatpush2.bf16.msra.mxu0 %v5827
  %8454 = vmatprep.subr.bf16.mxu0 0
  %8455 = vmatpush2.bf16.msra.mxu0 %v5826
  %8456 = vmatprep.subr.bf16.mxu0 0
  %8457 = vmatpush2.bf16.msra.mxu0 %v5825
  %8458 = vmatprep.subr.bf16.mxu0 0
  %8459 = vmatpush2.bf16.msra.mxu0 %v5824
  %8460 = vmatprep.subr.bf16.mxu0 0
  %8461 = vmatpush2.bf16.msra.mxu0 %v5823
  %8462 = vmatprep.subr.bf16.mxu0 0
  %8463 = vmatpush2.bf16.msra.mxu0 %v5822
  %8464 = vmatprep.subr.bf16.mxu0 0
  %8465 = vmatpush2.bf16.msra.mxu0 %v5821
  %8466 = vmatprep.subr.bf16.mxu0 0
  %8467 = vmatpush2.bf16.msra.mxu0 %v5820
  %8468 = vmatprep.mubr.bf16.mxu0 %v1865
  %8469 = vmatmul.mubr.bf16.gmra.mxu0 %v1864
  %v8470 = vpop.f32.mrf.mxu0
  %v8471 = vadd.f32 %v8431, %v8470
  %v8472 = vpop.f32.mrf.mxu0
  %v8473 = vpop.f32.mrf.mxu0
  %v8474 = vpop.f32.mrf.mxu0
  %8475 = vdwg.mxu0
  %8476 = vmatprep.subr.bf16.mxu0 0
  %8477 = vmatpush1.bf16.msra.mxu0 %v5835
  %8478 = vmatprep.subr.bf16.mxu0 0
  %8479 = vmatpush1.bf16.msra.mxu0 %v5834
  %8480 = vmatprep.subr.bf16.mxu0 0
  %8481 = vmatpush1.bf16.msra.mxu0 %v5833
  %8482 = vmatprep.subr.bf16.mxu0 0
  %8483 = vmatpush1.bf16.msra.mxu0 %v5832
  %8484 = vmatprep.subr.bf16.mxu0 0
  %8485 = vmatpush1.bf16.msra.mxu0 %v5831
  %8486 = vmatprep.subr.bf16.mxu0 0
  %8487 = vmatpush1.bf16.msra.mxu0 %v5830
  %8488 = vmatprep.subr.bf16.mxu0 0
  %8489 = vmatpush1.bf16.msra.mxu0 %v5829
  %8490 = vmatprep.subr.bf16.mxu0 0
  %8491 = vmatpush1.bf16.msra.mxu0 %v5828
  %8492 = vmatprep.subr.bf16.mxu0 0
  %8493 = vmatpush2.bf16.msra.mxu0 %v5843
  %8494 = vmatprep.subr.bf16.mxu0 0
  %8495 = vmatpush2.bf16.msra.mxu0 %v5842
  %8496 = vmatprep.subr.bf16.mxu0 0
  %8497 = vmatpush2.bf16.msra.mxu0 %v5841
  %8498 = vmatprep.subr.bf16.mxu0 0
  %8499 = vmatpush2.bf16.msra.mxu0 %v5840
  %8500 = vmatprep.subr.bf16.mxu0 0
  %8501 = vmatpush2.bf16.msra.mxu0 %v5839
  %8502 = vmatprep.subr.bf16.mxu0 0
  %8503 = vmatpush2.bf16.msra.mxu0 %v5838
  %8504 = vmatprep.subr.bf16.mxu0 0
  %8505 = vmatpush2.bf16.msra.mxu0 %v5837
  %8506 = vmatprep.subr.bf16.mxu0 0
  %8507 = vmatpush2.bf16.msra.mxu0 %v5836
  %8508 = vmatprep.mubr.bf16.mxu0 %v1867
  %8509 = vmatmul.mubr.bf16.gmra.mxu0 %v1866
  %v8510 = vpop.f32.mrf.mxu0
  %v8511 = vadd.f32 %v8471, %v8510
  %v8512 = vpop.f32.mrf.mxu0
  %v8513 = vpop.f32.mrf.mxu0
  %v8514 = vpop.f32.mrf.mxu0
  %8515 = vdwg.mxu0
  %8516 = vmatprep.subr.bf16.mxu0 0
  %8517 = vmatpush1.bf16.msra.mxu0 %v5851
  %8518 = vmatprep.subr.bf16.mxu0 0
  %8519 = vmatpush1.bf16.msra.mxu0 %v5850
  %8520 = vmatprep.subr.bf16.mxu0 0
  %8521 = vmatpush1.bf16.msra.mxu0 %v5849
  %8522 = vmatprep.subr.bf16.mxu0 0
  %8523 = vmatpush1.bf16.msra.mxu0 %v5848
  %8524 = vmatprep.subr.bf16.mxu0 0
  %8525 = vmatpush1.bf16.msra.mxu0 %v5847
  %8526 = vmatprep.subr.bf16.mxu0 0
  %8527 = vmatpush1.bf16.msra.mxu0 %v5846
  %8528 = vmatprep.subr.bf16.mxu0 0
  %8529 = vmatpush1.bf16.msra.mxu0 %v5845
  %8530 = vmatprep.subr.bf16.mxu0 0
  %8531 = vmatpush1.bf16.msra.mxu0 %v5844
  %8532 = vmatprep.subr.bf16.mxu0 0
  %8533 = vmatpush2.bf16.msra.mxu0 %v5859
  %8534 = vmatprep.subr.bf16.mxu0 0
  %8535 = vmatpush2.bf16.msra.mxu0 %v5858
  %8536 = vmatprep.subr.bf16.mxu0 0
  %8537 = vmatpush2.bf16.msra.mxu0 %v5857
  %8538 = vmatprep.subr.bf16.mxu0 0
  %8539 = vmatpush2.bf16.msra.mxu0 %v5856
  %8540 = vmatprep.subr.bf16.mxu0 0
  %8541 = vmatpush2.bf16.msra.mxu0 %v5855
  %8542 = vmatprep.subr.bf16.mxu0 0
  %8543 = vmatpush2.bf16.msra.mxu0 %v5854
  %8544 = vmatprep.subr.bf16.mxu0 0
  %8545 = vmatpush2.bf16.msra.mxu0 %v5853
  %8546 = vmatprep.subr.bf16.mxu0 0
  %8547 = vmatpush2.bf16.msra.mxu0 %v5852
  %8548 = vmatprep.mubr.bf16.mxu0 %v1869
  %8549 = vmatmul.mubr.bf16.gmra.mxu0 %v1868
  %v8550 = vpop.f32.mrf.mxu0
  %v8551 = vadd.f32 %v8511, %v8550
  %v8552 = vpop.f32.mrf.mxu0
  %v8553 = vpop.f32.mrf.mxu0
  %v8554 = vpop.f32.mrf.mxu0
  %8555 = vdwg.mxu0
  %8556 = vmatprep.subr.bf16.mxu0 0
  %8557 = vmatpush1.bf16.msra.mxu0 %v5867
  %8558 = vmatprep.subr.bf16.mxu0 0
  %8559 = vmatpush1.bf16.msra.mxu0 %v5866
  %8560 = vmatprep.subr.bf16.mxu0 0
  %8561 = vmatpush1.bf16.msra.mxu0 %v5865
  %8562 = vmatprep.subr.bf16.mxu0 0
  %8563 = vmatpush1.bf16.msra.mxu0 %v5864
  %8564 = vmatprep.subr.bf16.mxu0 0
  %8565 = vmatpush1.bf16.msra.mxu0 %v5863
  %8566 = vmatprep.subr.bf16.mxu0 0
  %8567 = vmatpush1.bf16.msra.mxu0 %v5862
  %8568 = vmatprep.subr.bf16.mxu0 0
  %8569 = vmatpush1.bf16.msra.mxu0 %v5861
  %8570 = vmatprep.subr.bf16.mxu0 0
  %8571 = vmatpush1.bf16.msra.mxu0 %v5860
  %8572 = vmatprep.subr.bf16.mxu0 0
  %8573 = vmatpush2.bf16.msra.mxu0 %v5875
  %8574 = vmatprep.subr.bf16.mxu0 0
  %8575 = vmatpush2.bf16.msra.mxu0 %v5874
  %8576 = vmatprep.subr.bf16.mxu0 0
  %8577 = vmatpush2.bf16.msra.mxu0 %v5873
  %8578 = vmatprep.subr.bf16.mxu0 0
  %8579 = vmatpush2.bf16.msra.mxu0 %v5872
  %8580 = vmatprep.subr.bf16.mxu0 0
  %8581 = vmatpush2.bf16.msra.mxu0 %v5871
  %8582 = vmatprep.subr.bf16.mxu0 0
  %8583 = vmatpush2.bf16.msra.mxu0 %v5870
  %8584 = vmatprep.subr.bf16.mxu0 0
  %8585 = vmatpush2.bf16.msra.mxu0 %v5869
  %8586 = vmatprep.subr.bf16.mxu0 0
  %8587 = vmatpush2.bf16.msra.mxu0 %v5868
  %8588 = vmatprep.mubr.bf16.mxu0 %v1871
  %8589 = vmatmul.mubr.bf16.gmra.mxu0 %v1870
  %v8590 = vpop.f32.mrf.mxu0
  %v8591 = vadd.f32 %v8551, %v8590
  %v8592 = vpop.f32.mrf.mxu0
  %v8593 = vpop.f32.mrf.mxu0
  %v8594 = vpop.f32.mrf.mxu0
  %8595 = vdwg.mxu0
  %8596 = vmatprep.subr.bf16.mxu0 0
  %8597 = vmatpush1.bf16.msra.mxu0 %v5883
  %8598 = vmatprep.subr.bf16.mxu0 0
  %8599 = vmatpush1.bf16.msra.mxu0 %v5882
  %8600 = vmatprep.subr.bf16.mxu0 0
  %8601 = vmatpush1.bf16.msra.mxu0 %v5881
  %8602 = vmatprep.subr.bf16.mxu0 0
  %8603 = vmatpush1.bf16.msra.mxu0 %v5880
  %8604 = vmatprep.subr.bf16.mxu0 0
  %8605 = vmatpush1.bf16.msra.mxu0 %v5879
  %8606 = vmatprep.subr.bf16.mxu0 0
  %8607 = vmatpush1.bf16.msra.mxu0 %v5878
  %8608 = vmatprep.subr.bf16.mxu0 0
  %8609 = vmatpush1.bf16.msra.mxu0 %v5877
  %8610 = vmatprep.subr.bf16.mxu0 0
  %8611 = vmatpush1.bf16.msra.mxu0 %v5876
  %8612 = vmatprep.subr.bf16.mxu0 0
  %8613 = vmatpush2.bf16.msra.mxu0 %v5891
  %8614 = vmatprep.subr.bf16.mxu0 0
  %8615 = vmatpush2.bf16.msra.mxu0 %v5890
  %8616 = vmatprep.subr.bf16.mxu0 0
  %8617 = vmatpush2.bf16.msra.mxu0 %v5889
  %8618 = vmatprep.subr.bf16.mxu0 0
  %8619 = vmatpush2.bf16.msra.mxu0 %v5888
  %8620 = vmatprep.subr.bf16.mxu0 0
  %8621 = vmatpush2.bf16.msra.mxu0 %v5887
  %8622 = vmatprep.subr.bf16.mxu0 0
  %8623 = vmatpush2.bf16.msra.mxu0 %v5886
  %8624 = vmatprep.subr.bf16.mxu0 0
  %8625 = vmatpush2.bf16.msra.mxu0 %v5885
  %8626 = vmatprep.subr.bf16.mxu0 0
  %8627 = vmatpush2.bf16.msra.mxu0 %v5884
  %8628 = vmatprep.mubr.bf16.mxu0 %v1873
  %8629 = vmatmul.mubr.bf16.gmra.mxu0 %v1872
  %v8630 = vpop.f32.mrf.mxu0
  %v8631 = vadd.f32 %v8591, %v8630
  %v8632 = vpop.f32.mrf.mxu0
  %v8633 = vpop.f32.mrf.mxu0
  %v8634 = vpop.f32.mrf.mxu0
  %8635 = vdwg.mxu0
  %v8636 = vsub.f32 0.0, %v8631
  %v8637 = vmul.f32 %v8636, 1.442695
  %v8638 = vpow.pop %v8637
  %v8639 = vadd.f32 %v8638, 1.0
  %v8640 = vrcp.pop %v8639
  %8641 = vst [vmem:[%s2] sm:$0xff] %v8640
  // Predicated region
  $region10: #{bla_forward.9} parent=0 // pred_check
    _
  $region11: #{bla_forward.9} parent=0 // pred_check_branch
    %8643 = sbr.rel (0) target = $region13
  $region12: #{bla_forward.9} parent=0 // pred_region
    _
  $region13: #{bla_forward.9} parent=0 // pred_fallthru
    _
  // Predicated region
  $region14: #{bla_forward.9} parent=0 // pred_check
    _
  $region15: #{bla_forward.9} parent=0 // pred_check_branch
    %8645 = sbr.rel (0) target = $region17
  $region16: #{bla_forward.9} parent=0 // pred_region
    _
  $region17: #{bla_forward.9} parent=0 // pred_fallthru
    _

</llo_original>
